<compile_context>
chip_gen: v7x
topology: tpu7x:2x2x1
jax: 0.10.0
libtpu: 0.0.40
codegen_flags: <defaults>
</compile_context>

<pallas_src>
import functools

import jax
import jax.numpy as jnp
from jax.experimental import pallas as pl
from jax.experimental.pallas import tpu as pltpu

# ---------------- model hyper-parameters (small synthetic sizes) -------------
NUM_CLASSES = 5
CNN_FEATURE_DIM = 32        # stands in for ResNet-18's 512
CONV_CH = 8                 # backbone conv channels
PERSON_HIDDEN = 32          # person_hidden_dim (stand-in for 256)
GROUP_HIDDEN = 32           # group_hidden_dim  (stand-in for 256)

B, T, P = 2, 4, 3           # batch, time steps, persons per sample
C_IMG, H_IMG, W_IMG = 3, 16, 16


def _num_megacore_tcs():
    """2 on chips whose TensorCores can split a 'parallel' grid (v4/v7x), else 1."""
    try:
        kind = jax.devices()[0].device_kind.lower()
    except Exception:
        return 1
    return 2 if ("v7" in kind or "v4" in kind) else 1


# ========================== fused backbone kernel ============================

def _backbone_kernel(p_ref, cw_ref, cb_ref, pw_ref, pb_ref, o_ref, *, nb, hw):
    """conv3x3 (im2col matmul, bf16 in / f32 acc) + bias + ReLU
       -> global-avg-pool (one segmented mean) -> linear projection
       -> ONE full-block store.

    p_ref : [nb*hw, 9C] bf16   cw_ref: [9C, CONV_CH] bf16   cb_ref: [1, CONV_CH]
    pw_ref: [CONV_CH, F] f32   pb_ref: [1, F]               o_ref : [nb, F]
    """
    conv = jnp.dot(p_ref[...], cw_ref[...], preferred_element_type=jnp.float32)
    conv = jnp.maximum(conv + cb_ref[...], 0.0)                 # [nb*hw, CH] f32
    # Pool BEFORE projecting: one axis=1 mean over the hw segment of each crop.
    pooled = jnp.mean(conv.reshape(nb, hw, conv.shape[-1]), axis=1)   # [nb, CH]
    out = jnp.dot(pooled, pw_ref[...], preferred_element_type=jnp.float32)
    o_ref[...] = (out + pb_ref[...]).astype(o_ref.dtype)        # single store


def _im2col_3x3_nhwc(x_nchw):
    """x:[N,C,H,W] -> patch rows [N*H*W, 9*C]  ((dy,dx) outer, c inner).
    Lane-friendly: pad + 9 shifted slices + concat on the LAST axis only."""
    N, C, H, W = x_nchw.shape
    x = jnp.transpose(x_nchw, (0, 2, 3, 1))                     # NHWC
    xp = jnp.pad(x, ((0, 0), (1, 1), (1, 1), (0, 0)))
    cols = [xp[:, dy:dy + H, dx:dx + W, :]
            for dy in range(3) for dx in range(3)]              # each [N,H,W,C]
    patches = jnp.concatenate(cols, axis=-1)                    # [N,H,W,9C]
    return patches.reshape(N * H * W, 9 * C)


def resnet_backbone(x, prm):
    """Synthetic ResNetBackbone over ALL crops at once. x:[N,C,H,W] -> [N, F]."""
    N, C, H, W = x.shape
    hw = H * W
    F = prm["proj_w"].shape[1]

    # Grid: 1 step on single-TC chips (v5e/v6e); even 2-way split on megacore
    # chips only if the per-core output block stays 8-row aligned.
    split = _num_megacore_tcs()
    if split > 1 and N % split == 0 and (N // split) % 8 == 0:
        nb = N // split
    else:
        nb = N

    patches = _im2col_3x3_nhwc(x).astype(jnp.bfloat16)          # halve DMA bytes
    return pl.pallas_call(
        functools.partial(_backbone_kernel, nb=nb, hw=hw),
        out_shape=jax.ShapeDtypeStruct((N, F), jnp.float32),
        grid_spec=pltpu.PrefetchScalarGridSpec(
            num_scalar_prefetch=0,
            grid=(N // nb,),
            in_specs=[
                pl.BlockSpec((nb * hw, 9 * C), lambda i: (i, 0)),
                pl.BlockSpec((9 * C, CONV_CH), lambda i: (0, 0)),
                pl.BlockSpec((1, CONV_CH), lambda i: (0, 0)),
                pl.BlockSpec((CONV_CH, F), lambda i: (0, 0)),
                pl.BlockSpec((1, F), lambda i: (0, 0)),
            ],
            out_specs=pl.BlockSpec((nb, F), lambda i: (i, 0)),
        ),
        compiler_params=pltpu.CompilerParams(
            dimension_semantics=("parallel",)),                 # inert when grid=(1,)
    )(patches, prm["conv_w"].astype(jnp.bfloat16), prm["conv_b"],
      prm["proj_w"], prm["proj_b"])


# ============ fused head: max-pool + person biLSTM + group biLSTM + cls ======

def _fused_head_kernel(feats_ref,
                       p_wih, p_whh_f, p_b_f, p_whh_b, p_b_b, p_fc_w, p_fc_b,
                       g_wih, g_whh_f, g_b_f, g_whh_b, g_b_b, g_fc_w, g_fc_b,
                       cls_w, cls_b, o_ref, *, n_person, batch):
    """feats_ref: [P*T*B, F] ordered (p, t, b).  o_ref: [B, num_classes].

    Single launch: max over persons, person biLSTM (seq=P, batch=T*B) + FC,
    group biLSTM (seq=T, batch=B) + FC, classifier.  All intermediates stay in
    VMEM/vregs; input projections are hoisted out of the recurrences.
    """
    Pn = n_person
    Bn = batch
    NF, F = feats_ref.shape
    TB = NF // Pn
    Tn = TB // Bn
    Hp = p_whh_f.shape[0]
    Hg = g_whh_f.shape[0]

    def cell(pre, h, c, whh_ref, b_ref, H):
        # pre = x_t @ W_ih (pre-computed).  PyTorch gate order i, f, g, o.
        g = pre + jnp.dot(h, whh_ref[...], preferred_element_type=jnp.float32) \
                + b_ref[...]
        sg = jax.nn.sigmoid(g)                 # one EUP pass over full [*, 4H]
        tg = jnp.tanh(g)                       # one EUP pass over full [*, 4H]
        c_new = sg[:, H:2 * H] * c + sg[:, :H] * tg[:, 2 * H:3 * H]
        h_new = sg[:, 3 * H:] * jnp.tanh(c_new)
        return h_new, c_new

    feats = feats_ref[...]                                       # [P*TB, F]

    # ---- max over persons per (t, b) frame --------------------------------
    cnn_pooled = feats[:TB, :]
    for p in range(1, Pn):
        cnn_pooled = jnp.maximum(cnn_pooled, feats[p * TB:(p + 1) * TB, :])

    # ---- person biLSTM (seq = persons, batch = T*B) ------------------------
    # Hoisted input projection: one [P*TB, F] x [F, 8Hp] matmul (fwd|bwd cols).
    pg = jnp.dot(feats, p_wih[...], preferred_element_type=jnp.float32)
    zp = jnp.zeros((TB, Hp), jnp.float32)
    h_f, c_f = zp, zp
    for p in range(Pn):                                          # static unroll
        h_f, c_f = cell(pg[p * TB:(p + 1) * TB, :4 * Hp],
                        h_f, c_f, p_whh_f, p_b_f, Hp)
    # backward direction contributes only its first step (on x[P-1]) to out[:, -1].
    h_b, _ = cell(pg[(Pn - 1) * TB:, 4 * Hp:], zp, zp, p_whh_b, p_b_b, Hp)
    # FC on concat([h_f, h_b]) without a lane concat: split the weight rows.
    lstm_feats = (jnp.dot(h_f, p_fc_w[:Hp, :], preferred_element_type=jnp.float32)
                  + jnp.dot(h_b, p_fc_w[Hp:, :], preferred_element_type=jnp.float32)
                  + p_fc_b[...])                                 # [TB, F]

    # ---- group biLSTM (seq = T, batch = B) ---------------------------------
    # group_input = concat([cnn_pooled, lstm_feats]) folded into the hoisted
    # input projection by splitting W_ih's rows (no concat materialized).
    gg = (jnp.dot(cnn_pooled, g_wih[:F, :], preferred_element_type=jnp.float32)
          + jnp.dot(lstm_feats, g_wih[F:, :], preferred_element_type=jnp.float32))
    zg = jnp.zeros((Bn, Hg), jnp.float32)
    h_gf, c_gf = zg, zg
    for t in range(Tn):                                          # static unroll
        h_gf, c_gf = cell(gg[t * Bn:(t + 1) * Bn, :4 * Hg],
                          h_gf, c_gf, g_whh_f, g_b_f, Hg)
    h_gb, _ = cell(gg[(Tn - 1) * Bn:, 4 * Hg:], zg, zg, g_whh_b, g_b_b, Hg)
    y = (jnp.dot(h_gf, g_fc_w[:Hg, :], preferred_element_type=jnp.float32)
         + jnp.dot(h_gb, g_fc_w[Hg:, :], preferred_element_type=jnp.float32)
         + g_fc_b[...])                                          # [B, Hg]

    # ---- classifier ---------------------------------------------------------
    logits = jnp.dot(y, cls_w[...], preferred_element_type=jnp.float32) + cls_b[...]
    o_ref[...] = logits.astype(o_ref.dtype)


def fused_head(feats, params, *, n_person, batch):
    """feats: [P*T*B, F] (ordered (p, t, b)) -> logits [B, num_classes]."""
    pp, pg = params["person_lstm"], params["group_lstm"]
    num_classes = params["cls_w"].shape[1]
    inputs = [
        feats,
        pp["wih"], pp["whh_f"], pp["b_f"], pp["whh_b"], pp["b_b"],
        pp["fc_w"], pp["fc_b"],
        pg["wih"], pg["whh_f"], pg["b_f"], pg["whh_b"], pg["b_b"],
        pg["fc_w"], pg["fc_b"],
        params["cls_w"], params["cls_b"],
    ]
    vmem = pl.BlockSpec(memory_space=pltpu.MemorySpace.VMEM)
    return pl.pallas_call(
        functools.partial(_fused_head_kernel, n_person=n_person, batch=batch),
        out_shape=jax.ShapeDtypeStruct((batch, num_classes), jnp.float32),
        in_specs=[vmem] * len(inputs),
        out_specs=vmem,
    )(*inputs)


# ================================ forward pass ===============================

def group_activity_forward(frames, person_crops, params):
    """frames:[B,T,C,H,W]  person_crops:[B,P,T,C,Hc,Wc] -> logits [B,num_classes]."""
    Bn, Tn = frames.shape[0], frames.shape[1]
    Pn = person_crops.shape[1]

    # Re-order crops to (P, T, B) before the backbone so every downstream slice
    # (person steps, group time steps) is a contiguous static row range and no
    # transpose/reshape is needed between the two pallas_calls.
    crops = jnp.transpose(person_crops, (1, 2, 0, 3, 4, 5))
    crops = crops.reshape((-1,) + person_crops.shape[3:])        # [P*T*B, C, H, W]

    feats = resnet_backbone(crops, params["person_cnn"])         # [P*T*B, F]

    # max-over-persons, person biLSTM + FC, group biLSTM + FC, classifier:
    # one fused launch, everything stays in VMEM.
    return fused_head(feats, params, n_person=Pn, batch=Bn)      # [B, num_classes]


# ============================== parameter init ===============================

def _w(key, shape, scale=0.05):
    return (scale * jax.random.normal(key, shape)).astype(jnp.float32)


def _init_lstm(key, in_dim, hidden, out_dim):
    ks = jax.random.split(key, 6)
    return {
        # columns [0:4H] = forward W_ih^T, [4H:8H] = backward W_ih^T
        "wih":   _w(ks[0], (in_dim, 8 * hidden)),
        "whh_f": _w(ks[1], (hidden, 4 * hidden)),
        "b_f":   _w(ks[2], (1, 4 * hidden)),     # = b_ih + b_hh of nn.LSTM (fwd)
        "whh_b": _w(ks[3], (hidden, 4 * hidden)),
        "b_b":   _w(ks[3], (1, 4 * hidden)),     # = b_ih + b_hh of nn.LSTM (bwd)
        "fc_w":  _w(ks[4], (2 * hidden, out_dim)),
        "fc_b":  _w(ks[5], (1, out_dim)),
    }


def init_params(key):
    ks = jax.random.split(key, 8)
    person_cnn = {
        "conv_w": _w(ks[0], (9 * C_IMG, CONV_CH)),   # rows: (dy,dx) outer, c inner
        "conv_b": _w(ks[1], (1, CONV_CH)),
        "proj_w": _w(ks[2], (CONV_CH, CNN_FEATURE_DIM)),
        "proj_b": _w(ks[3], (1, CNN_FEATURE_DIM)),
    }
    return {
        "person_cnn": person_cnn,
        "person_lstm": _init_lstm(ks[4], CNN_FEATURE_DIM, PERSON_HIDDEN,
                                  CNN_FEATURE_DIM),
        "group_lstm": _init_lstm(ks[5], 2 * CNN_FEATURE_DIM, GROUP_HIDDEN,
                                 GROUP_HIDDEN),
        "cls_w": _w(ks[6], (GROUP_HIDDEN, NUM_CLASSES)),
        "cls_b": _w(ks[7], (1, NUM_CLASSES)),
    }


# ==================================== main ===================================

if __name__ == "__main__":
    key = jax.random.PRNGKey(0)
    k_frames, k_crops = jax.random.split(key)
    frames = jax.random.normal(k_frames, (B, T, C_IMG, H_IMG, W_IMG), jnp.float32)
    person_crops = jax.random.normal(
        k_crops, (B, P, T, C_IMG, H_IMG, W_IMG), jnp.float32)

    params = init_params(jax.random.PRNGKey(42))

    logits = jax.jit(group_activity_forward)(frames, person_crops, params)
    logits = jax.block_until_ready(logits)

    assert logits.shape == (B, NUM_CLASSES), logits.shape
    assert jnp.all(jnp.isfinite(logits))
    print("KERNEL_OK")
</pallas_src>

<mosaic_0001>
module attributes {stable_mosaic.version = 11 : i64} {
  func.func @_backbone_kernel(%arg0: i32, %arg1: memref<6144x27xbf16, #tpu.memory_space<vmem>>, %arg2: memref<27x8xbf16, #tpu.memory_space<vmem>>, %arg3: memref<1x8xf32, #tpu.memory_space<vmem>>, %arg4: memref<8x32xf32, #tpu.memory_space<vmem>>, %arg5: memref<1x32xf32, #tpu.memory_space<vmem>>, %arg6: memref<24x32xf32, #tpu.memory_space<vmem>>) attributes {dimension_semantics = [#tpu.dimension_semantics<parallel>], iteration_bounds = array<i64: 1>, scalar_prefetch = 0 : i64, scratch_operands = 0 : i64, tpu.core_type = #tpu.core_type<tc>, window_params = [{transform_indices = @transform_0, window_bounds = array<i64: 6144, 27>}, {pipeline_mode = #tpu.pipeline_mode<synchronous>, transform_indices = @transform_1, window_bounds = array<i64: 27, 8>}, {pipeline_mode = #tpu.pipeline_mode<synchronous>, transform_indices = @transform_2, window_bounds = array<i64: 1, 8>}, {pipeline_mode = #tpu.pipeline_mode<synchronous>, transform_indices = @transform_3, window_bounds = array<i64: 8, 32>}, {pipeline_mode = #tpu.pipeline_mode<synchronous>, transform_indices = @transform_4, window_bounds = array<i64: 1, 32>}, {transform_indices = @transform_5, window_bounds = array<i64: 24, 32>}]} {
    %c0 = arith.constant 0 : index
    %c0_0 = arith.constant 0 : index
    %0 = vector.load %arg1[%c0, %c0_0] : memref<6144x27xbf16, #tpu.memory_space<vmem>>, vector<6144x27xbf16>
    %c0_1 = arith.constant 0 : index
    %c0_2 = arith.constant 0 : index
    %1 = vector.load %arg2[%c0_1, %c0_2] : memref<27x8xbf16, #tpu.memory_space<vmem>>, vector<27x8xbf16>
    %cst = arith.constant dense<0.000000e+00> : vector<6144x8xf32>
    %2 = tpu.matmul %0, %1, %cst {dimension_numbers = #tpu.dot_dimension_numbers<[1], [0], [0], [1], [0, 0, 1, 1], [], []>} : vector<6144x27xbf16>, vector<27x8xbf16>, vector<6144x8xf32> -> vector<6144x8xf32>
    %c0_3 = arith.constant 0 : index
    %c0_4 = arith.constant 0 : index
    %3 = vector.load %arg3[%c0_3, %c0_4] : memref<1x8xf32, #tpu.memory_space<vmem>>, vector<1x8xf32>
    %4 = vector.broadcast %3 : vector<1x8xf32> to vector<6144x8xf32>
    %5 = arith.addf %2, %4 : vector<6144x8xf32>
    %cst_5 = arith.constant 0.000000e+00 : f32
    %6 = vector.broadcast %cst_5 : f32 to vector<6144x8xf32>
    %7 = arith.maximumf %5, %6 : vector<6144x8xf32>
    %8 = vector.shape_cast %7 : vector<6144x8xf32> to vector<24x256x8xf32>
    %cst_6 = arith.constant dense<0.000000e+00> : vector<24x8xf32>
    %9 = vector.multi_reduction <add>, %8, %cst_6 [1] : vector<24x256x8xf32> to vector<24x8xf32>
    %cst_7 = arith.constant 2.560000e+02 : f32
    %10 = vector.broadcast %cst_7 : f32 to vector<24x8xf32>
    %11 = arith.divf %9, %10 : vector<24x8xf32>
    %c0_8 = arith.constant 0 : index
    %c0_9 = arith.constant 0 : index
    %12 = vector.load %arg4[%c0_8, %c0_9] : memref<8x32xf32, #tpu.memory_space<vmem>>, vector<8x32xf32>
    %cst_10 = arith.constant dense<0.000000e+00> : vector<24x32xf32>
    %13 = tpu.matmul %11, %12, %cst_10 {dimension_numbers = #tpu.dot_dimension_numbers<[1], [0], [0], [1], [0, 0, 1, 1], [], []>} : vector<24x8xf32>, vector<8x32xf32>, vector<24x32xf32> -> vector<24x32xf32>
    %c0_11 = arith.constant 0 : index
    %c0_12 = arith.constant 0 : index
    %14 = vector.load %arg5[%c0_11, %c0_12] : memref<1x32xf32, #tpu.memory_space<vmem>>, vector<1x32xf32>
    %15 = vector.broadcast %14 : vector<1x32xf32> to vector<24x32xf32>
    %16 = arith.addf %13, %15 : vector<24x32xf32>
    %c0_13 = arith.constant 0 : index
    %c0_14 = arith.constant 0 : index
    %17 = vector.load %arg6[%c0_13, %c0_14] : memref<24x32xf32, #tpu.memory_space<vmem>>, vector<24x32xf32>
    tpu.vector_store %arg6[%c0_13, %c0_14], %16 {strides = array<i32>} : memref<24x32xf32, #tpu.memory_space<vmem>>, vector<24x32xf32>,
    return
  }
  func.func @transform_0(%arg0: i32) -> (i32, i32) {
    %c0_i32 = arith.constant 0 : i32
    %c0_i32_0 = arith.constant 0 : i32
    return %arg0, %c0_i32 : i32, i32
  }
  func.func @transform_1(%arg0: i32) -> (i32, i32) {
    %c0_i32 = arith.constant 0 : i32
    %c0_i32_0 = arith.constant 0 : i32
    %c0_i32_1 = arith.constant 0 : i32
    return %c0_i32, %c0_i32_0 : i32, i32
  }
  func.func @transform_2(%arg0: i32) -> (i32, i32) {
    %c0_i32 = arith.constant 0 : i32
    %c0_i32_0 = arith.constant 0 : i32
    %c0_i32_1 = arith.constant 0 : i32
    return %c0_i32, %c0_i32_0 : i32, i32
  }
  func.func @transform_3(%arg0: i32) -> (i32, i32) {
    %c0_i32 = arith.constant 0 : i32
    %c0_i32_0 = arith.constant 0 : i32
    %c0_i32_1 = arith.constant 0 : i32
    return %c0_i32, %c0_i32_0 : i32, i32
  }
  func.func @transform_4(%arg0: i32) -> (i32, i32) {
    %c0_i32 = arith.constant 0 : i32
    %c0_i32_0 = arith.constant 0 : i32
    %c0_i32_1 = arith.constant 0 : i32
    return %c0_i32, %c0_i32_0 : i32, i32
  }
  func.func @transform_5(%arg0: i32) -> (i32, i32) {
    %c0_i32 = arith.constant 0 : i32
    %c0_i32_0 = arith.constant 0 : i32
    return %arg0, %c0_i32 : i32, i32
  }
}

module attributes {stable_mosaic.version = 11 : i64} {
  func.func @_fused_head_kernel(%arg0: memref<24x32xf32, #tpu.memory_space<vmem>>, %arg1: memref<32x256xf32, #tpu.memory_space<vmem>>, %arg2: memref<32x128xf32, #tpu.memory_space<vmem>>, %arg3: memref<1x128xf32, #tpu.memory_space<vmem>>, %arg4: memref<32x128xf32, #tpu.memory_space<vmem>>, %arg5: memref<1x128xf32, #tpu.memory_space<vmem>>, %arg6: memref<64x32xf32, #tpu.memory_space<vmem>>, %arg7: memref<1x32xf32, #tpu.memory_space<vmem>>, %arg8: memref<64x256xf32, #tpu.memory_space<vmem>>, %arg9: memref<32x128xf32, #tpu.memory_space<vmem>>, %arg10: memref<1x128xf32, #tpu.memory_space<vmem>>, %arg11: memref<32x128xf32, #tpu.memory_space<vmem>>, %arg12: memref<1x128xf32, #tpu.memory_space<vmem>>, %arg13: memref<64x32xf32, #tpu.memory_space<vmem>>, %arg14: memref<1x32xf32, #tpu.memory_space<vmem>>, %arg15: memref<32x5xf32, #tpu.memory_space<vmem>>, %arg16: memref<1x5xf32, #tpu.memory_space<vmem>>, %arg17: memref<2x5xf32, #tpu.memory_space<vmem>>) attributes {dimension_semantics = [], scalar_prefetch = 0 : i64, scratch_operands = 0 : i64, tpu.core_type = #tpu.core_type<tc>} {
    %c0 = arith.constant 0 : index
    %c0_0 = arith.constant 0 : index
    %0 = vector.load %arg0[%c0, %c0_0] : memref<24x32xf32, #tpu.memory_space<vmem>>, vector<24x32xf32>
    %1 = vector.extract_strided_slice %0 {offsets = [0, 0], sizes = [8, 32], strides = [1, 1]} : vector<24x32xf32> to vector<8x32xf32>
    %2 = vector.extract_strided_slice %0 {offsets = [8, 0], sizes = [8, 32], strides = [1, 1]} : vector<24x32xf32> to vector<8x32xf32>
    %3 = arith.maximumf %1, %2 : vector<8x32xf32>
    %4 = vector.extract_strided_slice %0 {offsets = [16, 0], sizes = [8, 32], strides = [1, 1]} : vector<24x32xf32> to vector<8x32xf32>
    %5 = arith.maximumf %3, %4 : vector<8x32xf32>
    %c0_1 = arith.constant 0 : index
    %c0_2 = arith.constant 0 : index
    %6 = vector.load %arg1[%c0_1, %c0_2] : memref<32x256xf32, #tpu.memory_space<vmem>>, vector<32x256xf32>
    %cst = arith.constant dense<0.000000e+00> : vector<24x256xf32>
    %7 = tpu.matmul %0, %6, %cst {dimension_numbers = #tpu.dot_dimension_numbers<[1], [0], [0], [1], [0, 0, 1, 1], [], []>} : vector<24x32xf32>, vector<32x256xf32>, vector<24x256xf32> -> vector<24x256xf32>
    %cst_3 = arith.constant 0.000000e+00 : f32
    %8 = vector.broadcast %cst_3 : f32 to vector<8x32xf32>
    %9 = vector.extract_strided_slice %7 {offsets = [0, 0], sizes = [8, 128], strides = [1, 1]} : vector<24x256xf32> to vector<8x128xf32>
    %c0_4 = arith.constant 0 : index
    %c0_5 = arith.constant 0 : index
    %10 = vector.load %arg2[%c0_4, %c0_5] : memref<32x128xf32, #tpu.memory_space<vmem>>, vector<32x128xf32>
    %cst_6 = arith.constant dense<0.000000e+00> : vector<8x128xf32>
    %11 = tpu.matmul %8, %10, %cst_6 {dimension_numbers = #tpu.dot_dimension_numbers<[1], [0], [0], [1], [0, 0, 1, 1], [], []>} : vector<8x32xf32>, vector<32x128xf32>, vector<8x128xf32> -> vector<8x128xf32>
    %12 = arith.addf %9, %11 : vector<8x128xf32>
    %c0_7 = arith.constant 0 : index
    %c0_8 = arith.constant 0 : index
    %13 = vector.load %arg3[%c0_7, %c0_8] : memref<1x128xf32, #tpu.memory_space<vmem>>, vector<1x128xf32>
    %14 = vector.broadcast %13 : vector<1x128xf32> to vector<8x128xf32>
    %15 = arith.addf %12, %14 : vector<8x128xf32>
    %16 = arith.negf %15 : vector<8x128xf32>
    %17 = math.exp %16 : vector<8x128xf32>
    %cst_9 = arith.constant 1.000000e+00 : f32
    %18 = vector.broadcast %cst_9 : f32 to vector<8x128xf32>
    %19 = arith.addf %18, %17 : vector<8x128xf32>
    %20 = arith.divf %18, %19 : vector<8x128xf32>
    %21 = math.tanh %15 : vector<8x128xf32>
    %22 = vector.extract_strided_slice %20 {offsets = [0, 32], sizes = [8, 32], strides = [1, 1]} : vector<8x128xf32> to vector<8x32xf32>
    %23 = arith.mulf %22, %8 : vector<8x32xf32>
    %24 = vector.extract_strided_slice %20 {offsets = [0, 0], sizes = [8, 32], strides = [1, 1]} : vector<8x128xf32> to vector<8x32xf32>
    %25 = vector.extract_strided_slice %21 {offsets = [0, 64], sizes = [8, 32], strides = [1, 1]} : vector<8x128xf32> to vector<8x32xf32>
    %26 = arith.mulf %24, %25 : vector<8x32xf32>
    %27 = arith.addf %23, %26 : vector<8x32xf32>
    %28 = vector.extract_strided_slice %20 {offsets = [0, 96], sizes = [8, 32], strides = [1, 1]} : vector<8x128xf32> to vector<8x32xf32>
    %29 = math.tanh %27 : vector<8x32xf32>
    %30 = arith.mulf %28, %29 : vector<8x32xf32>
    %31 = vector.extract_strided_slice %7 {offsets = [8, 0], sizes = [8, 128], strides = [1, 1]} : vector<24x256xf32> to vector<8x128xf32>
    %c0_10 = arith.constant 0 : index
    %c0_11 = arith.constant 0 : index
    %32 = vector.load %arg2[%c0_10, %c0_11] : memref<32x128xf32, #tpu.memory_space<vmem>>, vector<32x128xf32>
    %cst_12 = arith.constant dense<0.000000e+00> : vector<8x128xf32>
    %33 = tpu.matmul %30, %32, %cst_12 {dimension_numbers = #tpu.dot_dimension_numbers<[1], [0], [0], [1], [0, 0, 1, 1], [], []>} : vector<8x32xf32>, vector<32x128xf32>, vector<8x128xf32> -> vector<8x128xf32>
    %34 = arith.addf %31, %33 : vector<8x128xf32>
    %c0_13 = arith.constant 0 : index
    %c0_14 = arith.constant 0 : index
    %35 = vector.load %arg3[%c0_13, %c0_14] : memref<1x128xf32, #tpu.memory_space<vmem>>, vector<1x128xf32>
    %36 = vector.broadcast %35 : vector<1x128xf32> to vector<8x128xf32>
    %37 = arith.addf %34, %36 : vector<8x128xf32>
    %38 = arith.negf %37 : vector<8x128xf32>
    %39 = math.exp %38 : vector<8x128xf32>
    %cst_15 = arith.constant 1.000000e+00 : f32
    %40 = vector.broadcast %cst_15 : f32 to vector<8x128xf32>
    %41 = arith.addf %40, %39 : vector<8x128xf32>
    %42 = arith.divf %40, %41 : vector<8x128xf32>
    %43 = math.tanh %37 : vector<8x128xf32>
    %44 = vector.extract_strided_slice %42 {offsets = [0, 32], sizes = [8, 32], strides = [1, 1]} : vector<8x128xf32> to vector<8x32xf32>
    %45 = arith.mulf %44, %27 : vector<8x32xf32>
    %46 = vector.extract_strided_slice %42 {offsets = [0, 0], sizes = [8, 32], strides = [1, 1]} : vector<8x128xf32> to vector<8x32xf32>
    %47 = vector.extract_strided_slice %43 {offsets = [0, 64], sizes = [8, 32], strides = [1, 1]} : vector<8x128xf32> to vector<8x32xf32>
    %48 = arith.mulf %46, %47 : vector<8x32xf32>
    %49 = arith.addf %45, %48 : vector<8x32xf32>
    %50 = vector.extract_strided_slice %42 {offsets = [0, 96], sizes = [8, 32], strides = [1, 1]} : vector<8x128xf32> to vector<8x32xf32>
    %51 = math.tanh %49 : vector<8x32xf32>
    %52 = arith.mulf %50, %51 : vector<8x32xf32>
    %53 = vector.extract_strided_slice %7 {offsets = [16, 0], sizes = [8, 128], strides = [1, 1]} : vector<24x256xf32> to vector<8x128xf32>
    %c0_16 = arith.constant 0 : index
    %c0_17 = arith.constant 0 : index
    %54 = vector.load %arg2[%c0_16, %c0_17] : memref<32x128xf32, #tpu.memory_space<vmem>>, vector<32x128xf32>
    %cst_18 = arith.constant dense<0.000000e+00> : vector<8x128xf32>
    %55 = tpu.matmul %52, %54, %cst_18 {dimension_numbers = #tpu.dot_dimension_numbers<[1], [0], [0], [1], [0, 0, 1, 1], [], []>} : vector<8x32xf32>, vector<32x128xf32>, vector<8x128xf32> -> vector<8x128xf32>
    %56 = arith.addf %53, %55 : vector<8x128xf32>
    %c0_19 = arith.constant 0 : index
    %c0_20 = arith.constant 0 : index
    %57 = vector.load %arg3[%c0_19, %c0_20] : memref<1x128xf32, #tpu.memory_space<vmem>>, vector<1x128xf32>
    %58 = vector.broadcast %57 : vector<1x128xf32> to vector<8x128xf32>
    %59 = arith.addf %56, %58 : vector<8x128xf32>
    %60 = arith.negf %59 : vector<8x128xf32>
    %61 = math.exp %60 : vector<8x128xf32>
    %cst_21 = arith.constant 1.000000e+00 : f32
    %62 = vector.broadcast %cst_21 : f32 to vector<8x128xf32>
    %63 = arith.addf %62, %61 : vector<8x128xf32>
    %64 = arith.divf %62, %63 : vector<8x128xf32>
    %65 = math.tanh %59 : vector<8x128xf32>
    %66 = vector.extract_strided_slice %64 {offsets = [0, 32], sizes = [8, 32], strides = [1, 1]} : vector<8x128xf32> to vector<8x32xf32>
    %67 = arith.mulf %66, %49 : vector<8x32xf32>
    %68 = vector.extract_strided_slice %64 {offsets = [0, 0], sizes = [8, 32], strides = [1, 1]} : vector<8x128xf32> to vector<8x32xf32>
    %69 = vector.extract_strided_slice %65 {offsets = [0, 64], sizes = [8, 32], strides = [1, 1]} : vector<8x128xf32> to vector<8x32xf32>
    %70 = arith.mulf %68, %69 : vector<8x32xf32>
    %71 = arith.addf %67, %70 : vector<8x32xf32>
    %72 = vector.extract_strided_slice %64 {offsets = [0, 96], sizes = [8, 32], strides = [1, 1]} : vector<8x128xf32> to vector<8x32xf32>
    %73 = math.tanh %71 : vector<8x32xf32>
    %74 = arith.mulf %72, %73 : vector<8x32xf32>
    %75 = vector.extract_strided_slice %7 {offsets = [16, 128], sizes = [8, 128], strides = [1, 1]} : vector<24x256xf32> to vector<8x128xf32>
    %c0_22 = arith.constant 0 : index
    %c0_23 = arith.constant 0 : index
    %76 = vector.load %arg4[%c0_22, %c0_23] : memref<32x128xf32, #tpu.memory_space<vmem>>, vector<32x128xf32>
    %cst_24 = arith.constant dense<0.000000e+00> : vector<8x128xf32>
    %77 = tpu.matmul %8, %76, %cst_24 {dimension_numbers = #tpu.dot_dimension_numbers<[1], [0], [0], [1], [0, 0, 1, 1], [], []>} : vector<8x32xf32>, vector<32x128xf32>, vector<8x128xf32> -> vector<8x128xf32>
    %78 = arith.addf %75, %77 : vector<8x128xf32>
    %c0_25 = arith.constant 0 : index
    %c0_26 = arith.constant 0 : index
    %79 = vector.load %arg5[%c0_25, %c0_26] : memref<1x128xf32, #tpu.memory_space<vmem>>, vector<1x128xf32>
    %80 = vector.broadcast %79 : vector<1x128xf32> to vector<8x128xf32>
    %81 = arith.addf %78, %80 : vector<8x128xf32>
    %82 = arith.negf %81 : vector<8x128xf32>
    %83 = math.exp %82 : vector<8x128xf32>
    %cst_27 = arith.constant 1.000000e+00 : f32
    %84 = vector.broadcast %cst_27 : f32 to vector<8x128xf32>
    %85 = arith.addf %84, %83 : vector<8x128xf32>
    %86 = arith.divf %84, %85 : vector<8x128xf32>
    %87 = math.tanh %81 : vector<8x128xf32>
    %88 = vector.extract_strided_slice %86 {offsets = [0, 32], sizes = [8, 32], strides = [1, 1]} : vector<8x128xf32> to vector<8x32xf32>
    %89 = arith.mulf %88, %8 : vector<8x32xf32>
    %90 = vector.extract_strided_slice %86 {offsets = [0, 0], sizes = [8, 32], strides = [1, 1]} : vector<8x128xf32> to vector<8x32xf32>
    %91 = vector.extract_strided_slice %87 {offsets = [0, 64], sizes = [8, 32], strides = [1, 1]} : vector<8x128xf32> to vector<8x32xf32>
    %92 = arith.mulf %90, %91 : vector<8x32xf32>
    %93 = arith.addf %89, %92 : vector<8x32xf32>
    %94 = vector.extract_strided_slice %86 {offsets = [0, 96], sizes = [8, 32], strides = [1, 1]} : vector<8x128xf32> to vector<8x32xf32>
    %95 = math.tanh %93 : vector<8x32xf32>
    %96 = arith.mulf %94, %95 : vector<8x32xf32>
    %c0_28 = arith.constant 0 : index
    %c0_29 = arith.constant 0 : index
    %97 = vector.load %arg6[%c0_28, %c0_29] : memref<64x32xf32, #tpu.memory_space<vmem>>, vector<32x32xf32>
    %cst_30 = arith.constant dense<0.000000e+00> : vector<8x32xf32>
    %98 = tpu.matmul %74, %97, %cst_30 {dimension_numbers = #tpu.dot_dimension_numbers<[1], [0], [0], [1], [0, 0, 1, 1], [], []>} : vector<8x32xf32>, vector<32x32xf32>, vector<8x32xf32> -> vector<8x32xf32>
    %c32 = arith.constant 32 : index
    %c0_31 = arith.constant 0 : index
    %99 = vector.load %arg6[%c32, %c0_31] : memref<64x32xf32, #tpu.memory_space<vmem>>, vector<32x32xf32>
    %cst_32 = arith.constant dense<0.000000e+00> : vector<8x32xf32>
    %100 = tpu.matmul %96, %99, %cst_32 {dimension_numbers = #tpu.dot_dimension_numbers<[1], [0], [0], [1], [0, 0, 1, 1], [], []>} : vector<8x32xf32>, vector<32x32xf32>, vector<8x32xf32> -> vector<8x32xf32>
    %101 = arith.addf %98, %100 : vector<8x32xf32>
    %c0_33 = arith.constant 0 : index
    %c0_34 = arith.constant 0 : index
    %102 = vector.load %arg7[%c0_33, %c0_34] : memref<1x32xf32, #tpu.memory_space<vmem>>, vector<1x32xf32>
    %103 = vector.broadcast %102 : vector<1x32xf32> to vector<8x32xf32>
    %104 = arith.addf %101, %103 : vector<8x32xf32>
    %c0_35 = arith.constant 0 : index
    %c0_36 = arith.constant 0 : index
    %105 = vector.load %arg8[%c0_35, %c0_36] : memref<64x256xf32, #tpu.memory_space<vmem>>, vector<32x256xf32>
    %cst_37 = arith.constant dense<0.000000e+00> : vector<8x256xf32>
    %106 = tpu.matmul %5, %105, %cst_37 {dimension_numbers = #tpu.dot_dimension_numbers<[1], [0], [0], [1], [0, 0, 1, 1], [], []>} : vector<8x32xf32>, vector<32x256xf32>, vector<8x256xf32> -> vector<8x256xf32>
    %c32_38 = arith.constant 32 : index
    %c0_39 = arith.constant 0 : index
    %107 = vector.load %arg8[%c32_38, %c0_39] : memref<64x256xf32, #tpu.memory_space<vmem>>, vector<32x256xf32>
    %cst_40 = arith.constant dense<0.000000e+00> : vector<8x256xf32>
    %108 = tpu.matmul %104, %107, %cst_40 {dimension_numbers = #tpu.dot_dimension_numbers<[1], [0], [0], [1], [0, 0, 1, 1], [], []>} : vector<8x32xf32>, vector<32x256xf32>, vector<8x256xf32> -> vector<8x256xf32>
    %109 = arith.addf %106, %108 : vector<8x256xf32>
    %cst_41 = arith.constant 0.000000e+00 : f32
    %110 = vector.broadcast %cst_41 : f32 to vector<2x32xf32>
    %111 = vector.extract_strided_slice %109 {offsets = [0, 0], sizes = [2, 128], strides = [1, 1]} : vector<8x256xf32> to vector<2x128xf32>
    %c0_42 = arith.constant 0 : index
    %c0_43 = arith.constant 0 : index
    %112 = vector.load %arg9[%c0_42, %c0_43] : memref<32x128xf32, #tpu.memory_space<vmem>>, vector<32x128xf32>
    %cst_44 = arith.constant dense<0.000000e+00> : vector<2x128xf32>
    %113 = tpu.matmul %110, %112, %cst_44 {dimension_numbers = #tpu.dot_dimension_numbers<[1], [0], [0], [1], [0, 0, 1, 1], [], []>} : vector<2x32xf32>, vector<32x128xf32>, vector<2x128xf32> -> vector<2x128xf32>
    %114 = arith.addf %111, %113 : vector<2x128xf32>
    %c0_45 = arith.constant 0 : index
    %c0_46 = arith.constant 0 : index
    %115 = vector.load %arg10[%c0_45, %c0_46] : memref<1x128xf32, #tpu.memory_space<vmem>>, vector<1x128xf32>
    %116 = vector.broadcast %115 : vector<1x128xf32> to vector<2x128xf32>
    %117 = arith.addf %114, %116 : vector<2x128xf32>
    %118 = arith.negf %117 : vector<2x128xf32>
    %119 = math.exp %118 : vector<2x128xf32>
    %cst_47 = arith.constant 1.000000e+00 : f32
    %120 = vector.broadcast %cst_47 : f32 to vector<2x128xf32>
    %121 = arith.addf %120, %119 : vector<2x128xf32>
    %122 = arith.divf %120, %121 : vector<2x128xf32>
    %123 = math.tanh %117 : vector<2x128xf32>
    %124 = vector.extract_strided_slice %122 {offsets = [0, 32], sizes = [2, 32], strides = [1, 1]} : vector<2x128xf32> to vector<2x32xf32>
    %125 = arith.mulf %124, %110 : vector<2x32xf32>
    %126 = vector.extract_strided_slice %122 {offsets = [0, 0], sizes = [2, 32], strides = [1, 1]} : vector<2x128xf32> to vector<2x32xf32>
    %127 = vector.extract_strided_slice %123 {offsets = [0, 64], sizes = [2, 32], strides = [1, 1]} : vector<2x128xf32> to vector<2x32xf32>
    %128 = arith.mulf %126, %127 : vector<2x32xf32>
    %129 = arith.addf %125, %128 : vector<2x32xf32>
    %130 = vector.extract_strided_slice %122 {offsets = [0, 96], sizes = [2, 32], strides = [1, 1]} : vector<2x128xf32> to vector<2x32xf32>
    %131 = math.tanh %129 : vector<2x32xf32>
    %132 = arith.mulf %130, %131 : vector<2x32xf32>
    %133 = vector.extract_strided_slice %109 {offsets = [2, 0], sizes = [2, 128], strides = [1, 1]} : vector<8x256xf32> to vector<2x128xf32>
    %c0_48 = arith.constant 0 : index
    %c0_49 = arith.constant 0 : index
    %134 = vector.load %arg9[%c0_48, %c0_49] : memref<32x128xf32, #tpu.memory_space<vmem>>, vector<32x128xf32>
    %cst_50 = arith.constant dense<0.000000e+00> : vector<2x128xf32>
    %135 = tpu.matmul %132, %134, %cst_50 {dimension_numbers = #tpu.dot_dimension_numbers<[1], [0], [0], [1], [0, 0, 1, 1], [], []>} : vector<2x32xf32>, vector<32x128xf32>, vector<2x128xf32> -> vector<2x128xf32>
    %136 = arith.addf %133, %135 : vector<2x128xf32>
    %c0_51 = arith.constant 0 : index
    %c0_52 = arith.constant 0 : index
    %137 = vector.load %arg10[%c0_51, %c0_52] : memref<1x128xf32, #tpu.memory_space<vmem>>, vector<1x128xf32>
    %138 = vector.broadcast %137 : vector<1x128xf32> to vector<2x128xf32>
    %139 = arith.addf %136, %138 : vector<2x128xf32>
    %140 = arith.negf %139 : vector<2x128xf32>
    %141 = math.exp %140 : vector<2x128xf32>
    %cst_53 = arith.constant 1.000000e+00 : f32
    %142 = vector.broadcast %cst_53 : f32 to vector<2x128xf32>
    %143 = arith.addf %142, %141 : vector<2x128xf32>
    %144 = arith.divf %142, %143 : vector<2x128xf32>
    %145 = math.tanh %139 : vector<2x128xf32>
    %146 = vector.extract_strided_slice %144 {offsets = [0, 32], sizes = [2, 32], strides = [1, 1]} : vector<2x128xf32> to vector<2x32xf32>
    %147 = arith.mulf %146, %129 : vector<2x32xf32>
    %148 = vector.extract_strided_slice %144 {offsets = [0, 0], sizes = [2, 32], strides = [1, 1]} : vector<2x128xf32> to vector<2x32xf32>
    %149 = vector.extract_strided_slice %145 {offsets = [0, 64], sizes = [2, 32], strides = [1, 1]} : vector<2x128xf32> to vector<2x32xf32>
    %150 = arith.mulf %148, %149 : vector<2x32xf32>
    %151 = arith.addf %147, %150 : vector<2x32xf32>
    %152 = vector.extract_strided_slice %144 {offsets = [0, 96], sizes = [2, 32], strides = [1, 1]} : vector<2x128xf32> to vector<2x32xf32>
    %153 = math.tanh %151 : vector<2x32xf32>
    %154 = arith.mulf %152, %153 : vector<2x32xf32>
    %155 = vector.extract_strided_slice %109 {offsets = [4, 0], sizes = [2, 128], strides = [1, 1]} : vector<8x256xf32> to vector<2x128xf32>
    %c0_54 = arith.constant 0 : index
    %c0_55 = arith.constant 0 : index
    %156 = vector.load %arg9[%c0_54, %c0_55] : memref<32x128xf32, #tpu.memory_space<vmem>>, vector<32x128xf32>
    %cst_56 = arith.constant dense<0.000000e+00> : vector<2x128xf32>
    %157 = tpu.matmul %154, %156, %cst_56 {dimension_numbers = #tpu.dot_dimension_numbers<[1], [0], [0], [1], [0, 0, 1, 1], [], []>} : vector<2x32xf32>, vector<32x128xf32>, vector<2x128xf32> -> vector<2x128xf32>
    %158 = arith.addf %155, %157 : vector<2x128xf32>
    %c0_57 = arith.constant 0 : index
    %c0_58 = arith.constant 0 : index
    %159 = vector.load %arg10[%c0_57, %c0_58] : memref<1x128xf32, #tpu.memory_space<vmem>>, vector<1x128xf32>
    %160 = vector.broadcast %159 : vector<1x128xf32> to vector<2x128xf32>
    %161 = arith.addf %158, %160 : vector<2x128xf32>
    %162 = arith.negf %161 : vector<2x128xf32>
    %163 = math.exp %162 : vector<2x128xf32>
    %cst_59 = arith.constant 1.000000e+00 : f32
    %164 = vector.broadcast %cst_59 : f32 to vector<2x128xf32>
    %165 = arith.addf %164, %163 : vector<2x128xf32>
    %166 = arith.divf %164, %165 : vector<2x128xf32>
    %167 = math.tanh %161 : vector<2x128xf32>
    %168 = vector.extract_strided_slice %166 {offsets = [0, 32], sizes = [2, 32], strides = [1, 1]} : vector<2x128xf32> to vector<2x32xf32>
    %169 = arith.mulf %168, %151 : vector<2x32xf32>
    %170 = vector.extract_strided_slice %166 {offsets = [0, 0], sizes = [2, 32], strides = [1, 1]} : vector<2x128xf32> to vector<2x32xf32>
    %171 = vector.extract_strided_slice %167 {offsets = [0, 64], sizes = [2, 32], strides = [1, 1]} : vector<2x128xf32> to vector<2x32xf32>
    %172 = arith.mulf %170, %171 : vector<2x32xf32>
    %173 = arith.addf %169, %172 : vector<2x32xf32>
    %174 = vector.extract_strided_slice %166 {offsets = [0, 96], sizes = [2, 32], strides = [1, 1]} : vector<2x128xf32> to vector<2x32xf32>
    %175 = math.tanh %173 : vector<2x32xf32>
    %176 = arith.mulf %174, %175 : vector<2x32xf32>
    %177 = vector.extract_strided_slice %109 {offsets = [6, 0], sizes = [2, 128], strides = [1, 1]} : vector<8x256xf32> to vector<2x128xf32>
    %c0_60 = arith.constant 0 : index
    %c0_61 = arith.constant 0 : index
    %178 = vector.load %arg9[%c0_60, %c0_61] : memref<32x128xf32, #tpu.memory_space<vmem>>, vector<32x128xf32>
    %cst_62 = arith.constant dense<0.000000e+00> : vector<2x128xf32>
    %179 = tpu.matmul %176, %178, %cst_62 {dimension_numbers = #tpu.dot_dimension_numbers<[1], [0], [0], [1], [0, 0, 1, 1], [], []>} : vector<2x32xf32>, vector<32x128xf32>, vector<2x128xf32> -> vector<2x128xf32>
    %180 = arith.addf %177, %179 : vector<2x128xf32>
    %c0_63 = arith.constant 0 : index
    %c0_64 = arith.constant 0 : index
    %181 = vector.load %arg10[%c0_63, %c0_64] : memref<1x128xf32, #tpu.memory_space<vmem>>, vector<1x128xf32>
    %182 = vector.broadcast %181 : vector<1x128xf32> to vector<2x128xf32>
    %183 = arith.addf %180, %182 : vector<2x128xf32>
    %184 = arith.negf %183 : vector<2x128xf32>
    %185 = math.exp %184 : vector<2x128xf32>
    %cst_65 = arith.constant 1.000000e+00 : f32
    %186 = vector.broadcast %cst_65 : f32 to vector<2x128xf32>
    %187 = arith.addf %186, %185 : vector<2x128xf32>
    %188 = arith.divf %186, %187 : vector<2x128xf32>
    %189 = math.tanh %183 : vector<2x128xf32>
    %190 = vector.extract_strided_slice %188 {offsets = [0, 32], sizes = [2, 32], strides = [1, 1]} : vector<2x128xf32> to vector<2x32xf32>
    %191 = arith.mulf %190, %173 : vector<2x32xf32>
    %192 = vector.extract_strided_slice %188 {offsets = [0, 0], sizes = [2, 32], strides = [1, 1]} : vector<2x128xf32> to vector<2x32xf32>
    %193 = vector.extract_strided_slice %189 {offsets = [0, 64], sizes = [2, 32], strides = [1, 1]} : vector<2x128xf32> to vector<2x32xf32>
    %194 = arith.mulf %192, %193 : vector<2x32xf32>
    %195 = arith.addf %191, %194 : vector<2x32xf32>
    %196 = vector.extract_strided_slice %188 {offsets = [0, 96], sizes = [2, 32], strides = [1, 1]} : vector<2x128xf32> to vector<2x32xf32>
    %197 = math.tanh %195 : vector<2x32xf32>
    %198 = arith.mulf %196, %197 : vector<2x32xf32>
    %199 = vector.extract_strided_slice %109 {offsets = [6, 128], sizes = [2, 128], strides = [1, 1]} : vector<8x256xf32> to vector<2x128xf32>
    %c0_66 = arith.constant 0 : index
    %c0_67 = arith.constant 0 : index
    %200 = vector.load %arg11[%c0_66, %c0_67] : memref<32x128xf32, #tpu.memory_space<vmem>>, vector<32x128xf32>
    %cst_68 = arith.constant dense<0.000000e+00> : vector<2x128xf32>
    %201 = tpu.matmul %110, %200, %cst_68 {dimension_numbers = #tpu.dot_dimension_numbers<[1], [0], [0], [1], [0, 0, 1, 1], [], []>} : vector<2x32xf32>, vector<32x128xf32>, vector<2x128xf32> -> vector<2x128xf32>
    %202 = arith.addf %199, %201 : vector<2x128xf32>
    %c0_69 = arith.constant 0 : index
    %c0_70 = arith.constant 0 : index
    %203 = vector.load %arg12[%c0_69, %c0_70] : memref<1x128xf32, #tpu.memory_space<vmem>>, vector<1x128xf32>
    %204 = vector.broadcast %203 : vector<1x128xf32> to vector<2x128xf32>
    %205 = arith.addf %202, %204 : vector<2x128xf32>
    %206 = arith.negf %205 : vector<2x128xf32>
    %207 = math.exp %206 : vector<2x128xf32>
    %cst_71 = arith.constant 1.000000e+00 : f32
    %208 = vector.broadcast %cst_71 : f32 to vector<2x128xf32>
    %209 = arith.addf %208, %207 : vector<2x128xf32>
    %210 = arith.divf %208, %209 : vector<2x128xf32>
    %211 = math.tanh %205 : vector<2x128xf32>
    %212 = vector.extract_strided_slice %210 {offsets = [0, 32], sizes = [2, 32], strides = [1, 1]} : vector<2x128xf32> to vector<2x32xf32>
    %213 = arith.mulf %212, %110 : vector<2x32xf32>
    %214 = vector.extract_strided_slice %210 {offsets = [0, 0], sizes = [2, 32], strides = [1, 1]} : vector<2x128xf32> to vector<2x32xf32>
    %215 = vector.extract_strided_slice %211 {offsets = [0, 64], sizes = [2, 32], strides = [1, 1]} : vector<2x128xf32> to vector<2x32xf32>
    %216 = arith.mulf %214, %215 : vector<2x32xf32>
    %217 = arith.addf %213, %216 : vector<2x32xf32>
    %218 = vector.extract_strided_slice %210 {offsets = [0, 96], sizes = [2, 32], strides = [1, 1]} : vector<2x128xf32> to vector<2x32xf32>
    %219 = math.tanh %217 : vector<2x32xf32>
    %220 = arith.mulf %218, %219 : vector<2x32xf32>
    %c0_72 = arith.constant 0 : index
    %c0_73 = arith.constant 0 : index
    %221 = vector.load %arg13[%c0_72, %c0_73] : memref<64x32xf32, #tpu.memory_space<vmem>>, vector<32x32xf32>
    %cst_74 = arith.constant dense<0.000000e+00> : vector<2x32xf32>
    %222 = tpu.matmul %198, %221, %cst_74 {dimension_numbers = #tpu.dot_dimension_numbers<[1], [0], [0], [1], [0, 0, 1, 1], [], []>} : vector<2x32xf32>, vector<32x32xf32>, vector<2x32xf32> -> vector<2x32xf32>
    %c32_75 = arith.constant 32 : index
    %c0_76 = arith.constant 0 : index
    %223 = vector.load %arg13[%c32_75, %c0_76] : memref<64x32xf32, #tpu.memory_space<vmem>>, vector<32x32xf32>
    %cst_77 = arith.constant dense<0.000000e+00> : vector<2x32xf32>
    %224 = tpu.matmul %220, %223, %cst_77 {dimension_numbers = #tpu.dot_dimension_numbers<[1], [0], [0], [1], [0, 0, 1, 1], [], []>} : vector<2x32xf32>, vector<32x32xf32>, vector<2x32xf32> -> vector<2x32xf32>
    %225 = arith.addf %222, %224 : vector<2x32xf32>
    %c0_78 = arith.constant 0 : index
    %c0_79 = arith.constant 0 : index
    %226 = vector.load %arg14[%c0_78, %c0_79] : memref<1x32xf32, #tpu.memory_space<vmem>>, vector<1x32xf32>
    %227 = vector.broadcast %226 : vector<1x32xf32> to vector<2x32xf32>
    %228 = arith.addf %225, %227 : vector<2x32xf32>
    %c0_80 = arith.constant 0 : index
    %c0_81 = arith.constant 0 : index
    %229 = vector.load %arg15[%c0_80, %c0_81] : memref<32x5xf32, #tpu.memory_space<vmem>>, vector<32x5xf32>
    %cst_82 = arith.constant dense<0.000000e+00> : vector<2x5xf32>
    %230 = tpu.matmul %228, %229, %cst_82 {dimension_numbers = #tpu.dot_dimension_numbers<[1], [0], [0], [1], [0, 0, 1, 1], [], []>} : vector<2x32xf32>, vector<32x5xf32>, vector<2x5xf32> -> vector<2x5xf32>
    %c0_83 = arith.constant 0 : index
    %c0_84 = arith.constant 0 : index
    %231 = vector.load %arg16[%c0_83, %c0_84] : memref<1x5xf32, #tpu.memory_space<vmem>>, vector<1x5xf32>
    %232 = vector.broadcast %231 : vector<1x5xf32> to vector<2x5xf32>
    %233 = arith.addf %230, %232 : vector<2x5xf32>
    %c0_85 = arith.constant 0 : index
    %c0_86 = arith.constant 0 : index
    %234 = vector.load %arg17[%c0_85, %c0_86] : memref<2x5xf32, #tpu.memory_space<vmem>>, vector<2x5xf32>
    tpu.vector_store %arg17[%c0_85, %c0_86], %233 {strides = array<i32>} : memref<2x5xf32, #tpu.memory_space<vmem>>, vector<2x5xf32>,
    return
  }
}

</mosaic_0001>

<llo_original>
// kernel: group_activity_forward.3
$region0: #{group_activity_forward.3}
  #allocation0 [shape = 'u32[]', space=smem, size = 0x4, offset = 0x4, fixed_abs, tag = 'smem constant byte address 0x4 - core index']
  #allocation1 [shape = 'u32[144,128]{1,0:T(1,128)}', space=vmem, size = 0x12000, scoped, tag = 'internal scratch']
  %s0 = inlined_call_operand.vmem [shape: f32[24,32], index: 0, kind: input, shape index: {}]
  %s1 = inlined_call_operand.vmem [shape: f32[32,256], index: 1, kind: input, shape index: {}]
  %s2 = inlined_call_operand.vmem [shape: f32[32,128], index: 2, kind: input, shape index: {}]
  %s3 = inlined_call_operand.vmem [shape: f32[1,128], index: 3, kind: input, shape index: {}]
  %s4 = inlined_call_operand.vmem [shape: f32[32,128], index: 4, kind: input, shape index: {}]
  %s5 = inlined_call_operand.vmem [shape: f32[1,128], index: 5, kind: input, shape index: {}]
  %s6 = inlined_call_operand.vmem [shape: f32[64,32], index: 6, kind: input, shape index: {}]
  %s7 = inlined_call_operand.vmem [shape: f32[1,32], index: 7, kind: input, shape index: {}]
  %s8 = inlined_call_operand.vmem [shape: f32[64,256], index: 8, kind: input, shape index: {}]
  %s9 = inlined_call_operand.vmem [shape: f32[32,128], index: 9, kind: input, shape index: {}]
  %s10 = inlined_call_operand.vmem [shape: f32[1,128], index: 10, kind: input, shape index: {}]
  %s11 = inlined_call_operand.vmem [shape: f32[32,128], index: 11, kind: input, shape index: {}]
  %s12 = inlined_call_operand.vmem [shape: f32[1,128], index: 12, kind: input, shape index: {}]
  %s13 = inlined_call_operand.vmem [shape: f32[64,32], index: 13, kind: input, shape index: {}]
  %s14 = inlined_call_operand.vmem [shape: f32[1,32], index: 14, kind: input, shape index: {}]
  %s15 = inlined_call_operand.vmem [shape: f32[32,5], index: 15, kind: input, shape index: {}]
  %s16 = inlined_call_operand.vmem [shape: f32[1,5], index: 16, kind: input, shape index: {}]
  %s17 = inlined_call_operand.hbm [shape: f32[2,5], index: 17, kind: output, shape index: {}]
  %s18 = sld [smem:[#allocation0]]
  $region78: #{group_activity_forward.3} parent=0
    _
  %s20 = ssub.s32 1, %s18
  %s21 = scalar_select 0, %s20, %s18
  $region1: #{group_activity_forward.3} parent=0
    #allocation2 [shape = 'u8[1024]{0}', space=vmem, size = 0x400, scoped, tag = 'output window, operand 0, single buffered']
    #allocation3 [shape = 's32[1]{0}', space=sflag, size = 0x4, scoped, tag = 'scoped memory for group_activity_forward.3']
    %22 = vsyncpa [#allocation3], 0
    // Predicated region
    $region2: #{group_activity_forward.3} parent=1 // pred_check
      _
    $region3: #{group_activity_forward.3} parent=1 // pred_check_branch
      %24 = sbr.rel (0) target = $region5
    $region4: #{group_activity_forward.3} parent=1 // pred_region
      _
    $region5: #{group_activity_forward.3} parent=1 // pred_fallthru
      _
    // Predicated region
    $region6: #{group_activity_forward.3} parent=1 // pred_check
      _
    $region7: #{group_activity_forward.3} parent=1 // pred_check_branch
      %26 = sbr.rel (0) target = $region9
    $region8: #{group_activity_forward.3} parent=1 // pred_region
      _
    $region9: #{group_activity_forward.3} parent=1 // pred_fallthru
      _
    // Predicated region
    $region10: #{group_activity_forward.3} parent=1 // pred_check
      _
    $region11: #{group_activity_forward.3} parent=1 // pred_check_branch
      %28 = sbr.rel (0) target = $region13
    $region12: #{group_activity_forward.3} parent=1 // pred_region
      _
    $region13: #{group_activity_forward.3} parent=1 // pred_fallthru
      _
    // Predicated region
    $region14: #{group_activity_forward.3} parent=1 // pred_check
      _
    $region15: #{group_activity_forward.3} parent=1 // pred_check_branch
      %30 = sbr.rel (0) target = $region17
    $region16: #{group_activity_forward.3} parent=1 // pred_region
      _
    $region17: #{group_activity_forward.3} parent=1 // pred_fallthru
      _
    // Predicated region
    $region18: #{group_activity_forward.3} parent=1 // pred_check
      _
    $region19: #{group_activity_forward.3} parent=1 // pred_check_branch
      %32 = sbr.rel (0) target = $region21
    $region20: #{group_activity_forward.3} parent=1 // pred_region
      _
    $region21: #{group_activity_forward.3} parent=1 // pred_fallthru
      _
    // Predicated region
    $region22: #{group_activity_forward.3} parent=1 // pred_check
      _
    $region23: #{group_activity_forward.3} parent=1 // pred_check_branch
      %34 = sbr.rel (0) target = $region25
    $region24: #{group_activity_forward.3} parent=1 // pred_region
      _
    $region25: #{group_activity_forward.3} parent=1 // pred_fallthru
      _
    // Predicated region
    $region26: #{group_activity_forward.3} parent=1 // pred_check
      _
    $region27: #{group_activity_forward.3} parent=1 // pred_check_branch
      %36 = sbr.rel (0) target = $region29
    $region28: #{group_activity_forward.3} parent=1 // pred_region
      _
    $region29: #{group_activity_forward.3} parent=1 // pred_fallthru
      _
    // Predicated region
    $region30: #{group_activity_forward.3} parent=1 // pred_check
      _
    $region31: #{group_activity_forward.3} parent=1 // pred_check_branch
      %38 = sbr.rel (0) target = $region33
    $region32: #{group_activity_forward.3} parent=1 // pred_region
      _
    $region33: #{group_activity_forward.3} parent=1 // pred_fallthru
      _
    // Predicated region
    $region34: #{group_activity_forward.3} parent=1 // pred_check
      _
    $region35: #{group_activity_forward.3} parent=1 // pred_check_branch
      %40 = sbr.rel (0) target = $region37
    $region36: #{group_activity_forward.3} parent=1 // pred_region
      _
    $region37: #{group_activity_forward.3} parent=1 // pred_fallthru
      _
    // Predicated region
    $region38: #{group_activity_forward.3} parent=1 // pred_check
      _
    $region39: #{group_activity_forward.3} parent=1 // pred_check_branch
      %42 = sbr.rel (0) target = $region41
    $region40: #{group_activity_forward.3} parent=1 // pred_region
      _
    $region41: #{group_activity_forward.3} parent=1 // pred_fallthru
      _
    // Predicated region
    $region42: #{group_activity_forward.3} parent=1 // pred_check
      _
    $region43: #{group_activity_forward.3} parent=1 // pred_check_branch
      %44 = sbr.rel (0) target = $region45
    $region44: #{group_activity_forward.3} parent=1 // pred_region
      _
    $region45: #{group_activity_forward.3} parent=1 // pred_fallthru
      _
    // Predicated region
    $region46: #{group_activity_forward.3} parent=1 // pred_check
      _
    $region47: #{group_activity_forward.3} parent=1 // pred_check_branch
      %46 = sbr.rel (0) target = $region49
    $region48: #{group_activity_forward.3} parent=1 // pred_region
      _
    $region49: #{group_activity_forward.3} parent=1 // pred_fallthru
      _
    // Predicated region
    $region50: #{group_activity_forward.3} parent=1 // pred_check
      _
    $region51: #{group_activity_forward.3} parent=1 // pred_check_branch
      %48 = sbr.rel (0) target = $region53
    $region52: #{group_activity_forward.3} parent=1 // pred_region
      _
    $region53: #{group_activity_forward.3} parent=1 // pred_fallthru
      _
    // Predicated region
    $region54: #{group_activity_forward.3} parent=1 // pred_check
      _
    $region55: #{group_activity_forward.3} parent=1 // pred_check_branch
      %50 = sbr.rel (0) target = $region57
    $region56: #{group_activity_forward.3} parent=1 // pred_region
      _
    $region57: #{group_activity_forward.3} parent=1 // pred_fallthru
      _
    // Predicated region
    $region58: #{group_activity_forward.3} parent=1 // pred_check
      _
    $region59: #{group_activity_forward.3} parent=1 // pred_check_branch
      %52 = sbr.rel (0) target = $region61
    $region60: #{group_activity_forward.3} parent=1 // pred_region
      _
    $region61: #{group_activity_forward.3} parent=1 // pred_fallthru
      _
    // Predicated region
    $region62: #{group_activity_forward.3} parent=1 // pred_check
      _
    $region63: #{group_activity_forward.3} parent=1 // pred_check_branch
      %54 = sbr.rel (0) target = $region65
    $region64: #{group_activity_forward.3} parent=1 // pred_region
      _
    $region65: #{group_activity_forward.3} parent=1 // pred_fallthru
      _
    // Predicated region
    $region66: #{group_activity_forward.3} parent=1 // pred_check
      _
    $region67: #{group_activity_forward.3} parent=1 // pred_check_branch
      %56 = sbr.rel (0) target = $region69
    $region68: #{group_activity_forward.3} parent=1 // pred_region
      _
    $region69: #{group_activity_forward.3} parent=1 // pred_fallthru
      _
    %v57 = vld [vmem:[%s0] sm:$0xff]
    %v58 = vld [vmem:[%s0 + $0x8] sm:$0xff]
    %v59 = vld [vmem:[%s0 + $0x10] sm:$0xff]
    %v60 = vmax.f32 %v57, %v58
    %v61 = vmax.f32 %v60, %v59
    %v62 = vld [vmem:[%s1] sm:$0xff]
    %v63 = vld [vmem:[%s1 + $0x8] sm:$0xff]
    %v64 = vld [vmem:[%s1 + $0x10] sm:$0xff]
    %v65 = vld [vmem:[%s1 + $0x18] sm:$0xff]
    %v66 = vld [vmem:[%s1 + $0x20] sm:$0xff]
    %v67 = vld [vmem:[%s1 + $0x28] sm:$0xff]
    %v68 = vld [vmem:[%s1 + $0x30] sm:$0xff]
    %v69 = vld [vmem:[%s1 + $0x38] sm:$0xff]
    %vm70 = vcmask 261120
    %v72 = vsel %vm70, %v57, 0
    %v75 = vsel %vm70, %v58, 0
    %v78 = vsel %vm70, %v59, 0
    %80 = vmatprep.subr.mxu0 %v63
    %81 = vmatpush1.msra.mxu0 %v62
    %82 = vmatprep.subr.mxu0 %v65
    %83 = vmatpush1.msra.mxu0 %v64
    %84 = vmatprep.subr.mxu0 %v67
    %85 = vmatpush1.msra.mxu0 %v66
    %86 = vmatprep.subr.mxu0 %v69
    %87 = vmatpush1.msra.mxu0 %v68
    %88 = vmatprep.subr.mxu0 0.0
    %89 = vmatpush1.msra.mxu0 0.0
    %90 = vmatprep.subr.mxu0 0.0
    %91 = vmatpush1.msra.mxu0 0.0
    %92 = vmatprep.subr.mxu0 0.0
    %93 = vmatpush1.msra.mxu0 0.0
    %94 = vmatprep.subr.mxu0 0.0
    %95 = vmatpush1.msra.mxu0 0.0
    %96 = vmatprep.subr.mxu0 0.0
    %97 = vmatpush1.msra.mxu0 0.0
    %98 = vmatprep.subr.mxu0 0.0
    %99 = vmatpush1.msra.mxu0 0.0
    %100 = vmatprep.subr.mxu0 0.0
    %101 = vmatpush1.msra.mxu0 0.0
    %102 = vmatprep.subr.mxu0 0.0
    %103 = vmatpush1.msra.mxu0 0.0
    %104 = vmatprep.subr.mxu0 0.0
    %105 = vmatpush1.msra.mxu0 0.0
    %106 = vmatprep.subr.mxu0 0.0
    %107 = vmatpush1.msra.mxu0 0.0
    %108 = vmatprep.subr.mxu0 0.0
    %109 = vmatpush1.msra.mxu0 0.0
    %110 = vmatprep.subr.mxu0 0.0
    %111 = vmatpush1.msra.mxu0 0.0
    %112 = vmatprep.subr.mxu0 0.0
    %113 = vmatpush1.msra.mxu0 0.0
    %114 = vmatprep.subr.mxu0 0.0
    %115 = vmatpush1.msra.mxu0 0.0
    %116 = vmatprep.subr.mxu0 0.0
    %117 = vmatpush1.msra.mxu0 0.0
    %118 = vmatprep.subr.mxu0 0.0
    %119 = vmatpush1.msra.mxu0 0.0
    %120 = vmatprep.subr.mxu0 0.0
    %121 = vmatpush1.msra.mxu0 0.0
    %122 = vmatprep.subr.mxu0 0.0
    %123 = vmatpush1.msra.mxu0 0.0
    %124 = vmatprep.subr.mxu0 0.0
    %125 = vmatpush1.msra.mxu0 0.0
    %126 = vmatprep.subr.mxu0 0.0
    %127 = vmatpush1.msra.mxu0 0.0
    %128 = vmatprep.subr.mxu0 0.0
    %129 = vmatpush1.msra.mxu0 0.0
    %130 = vmatprep.subr.mxu0 0.0
    %131 = vmatpush1.msra.mxu0 0.0
    %132 = vmatprep.subr.mxu0 0.0
    %133 = vmatpush1.msra.mxu0 0.0
    %134 = vmatprep.subr.mxu0 0.0
    %135 = vmatpush1.msra.mxu0 0.0
    %136 = vmatprep.subr.mxu0 0.0
    %137 = vmatpush1.msra.mxu0 0.0
    %138 = vmatprep.subr.mxu0 0.0
    %139 = vmatpush1.msra.mxu0 0.0
    %140 = vmatprep.subr.mxu0 0.0
    %141 = vmatpush1.msra.mxu0 0.0
    %142 = vmatprep.subr.mxu0 0.0
    %143 = vmatpush1.msra.mxu0 0.0
    %144 = vmatprep.mubr.f32.mxu0 0.0
    %145 = vmatmul.mubr.f32.gmra.mrb[0].mxu0 %v72
    %v146 = vpop.f32.mrb[0].mxu0
    %v147 = vadd.f32 0.0, %v146
    %v148 = vpop.f32.mrb[0].mxu0
    %149 = vmatprep.mubr.f32.mxu0 0.0
    %150 = vmatmul.mubr.f32.gmra.mrb[0].mxu0 %v75
    %v151 = vpop.f32.mrb[0].mxu0
    %v152 = vadd.f32 0.0, %v151
    %v153 = vpop.f32.mrb[0].mxu0
    %154 = vmatprep.mubr.f32.mxu0 0.0
    %155 = vmatmul.mubr.f32.gmra.mrb[0].mxu0 %v78
    %v156 = vpop.f32.mrb[0].mxu0
    %v157 = vadd.f32 0.0, %v156
    %v158 = vpop.f32.mrb[0].mxu0
    %v159 = vadd.f32 0.0, %v158
    %160 = vdwg.mxu0
    %v161 = vld [vmem:[%s2] sm:$0xff]
    %v162 = vld [vmem:[%s2 + $0x8] sm:$0xff]
    %v163 = vld [vmem:[%s2 + $0x10] sm:$0xff]
    %v164 = vld [vmem:[%s2 + $0x18] sm:$0xff]
    %v166 = vsel %vm70, 0.0, 0
    %168 = vmatprep.subr.mxu0 0.0
    %169 = vmatpush1.msra.mxu0 %v161
    %170 = vmatprep.subr.mxu0 0.0
    %171 = vmatpush1.msra.mxu0 %v162
    %172 = vmatprep.subr.mxu0 0.0
    %173 = vmatpush1.msra.mxu0 %v163
    %174 = vmatprep.subr.mxu0 0.0
    %175 = vmatpush1.msra.mxu0 %v164
    %176 = vmatprep.subr.mxu0 0.0
    %177 = vmatpush1.msra.mxu0 0.0
    %178 = vmatprep.subr.mxu0 0.0
    %179 = vmatpush1.msra.mxu0 0.0
    %180 = vmatprep.subr.mxu0 0.0
    %181 = vmatpush1.msra.mxu0 0.0
    %182 = vmatprep.subr.mxu0 0.0
    %183 = vmatpush1.msra.mxu0 0.0
    %184 = vmatprep.subr.mxu0 0.0
    %185 = vmatpush1.msra.mxu0 0.0
    %186 = vmatprep.subr.mxu0 0.0
    %187 = vmatpush1.msra.mxu0 0.0
    %188 = vmatprep.subr.mxu0 0.0
    %189 = vmatpush1.msra.mxu0 0.0
    %190 = vmatprep.subr.mxu0 0.0
    %191 = vmatpush1.msra.mxu0 0.0
    %192 = vmatprep.subr.mxu0 0.0
    %193 = vmatpush1.msra.mxu0 0.0
    %194 = vmatprep.subr.mxu0 0.0
    %195 = vmatpush1.msra.mxu0 0.0
    %196 = vmatprep.subr.mxu0 0.0
    %197 = vmatpush1.msra.mxu0 0.0
    %198 = vmatprep.subr.mxu0 0.0
    %199 = vmatpush1.msra.mxu0 0.0
    %200 = vmatprep.subr.mxu0 0.0
    %201 = vmatpush1.msra.mxu0 0.0
    %202 = vmatprep.subr.mxu0 0.0
    %203 = vmatpush1.msra.mxu0 0.0
    %204 = vmatprep.subr.mxu0 0.0
    %205 = vmatpush1.msra.mxu0 0.0
    %206 = vmatprep.subr.mxu0 0.0
    %207 = vmatpush1.msra.mxu0 0.0
    %208 = vmatprep.subr.mxu0 0.0
    %209 = vmatpush1.msra.mxu0 0.0
    %210 = vmatprep.subr.mxu0 0.0
    %211 = vmatpush1.msra.mxu0 0.0
    %212 = vmatprep.subr.mxu0 0.0
    %213 = vmatpush1.msra.mxu0 0.0
    %214 = vmatprep.subr.mxu0 0.0
    %215 = vmatpush1.msra.mxu0 0.0
    %216 = vmatprep.subr.mxu0 0.0
    %217 = vmatpush1.msra.mxu0 0.0
    %218 = vmatprep.subr.mxu0 0.0
    %219 = vmatpush1.msra.mxu0 0.0
    %220 = vmatprep.subr.mxu0 0.0
    %221 = vmatpush1.msra.mxu0 0.0
    %222 = vmatprep.subr.mxu0 0.0
    %223 = vmatpush1.msra.mxu0 0.0
    %224 = vmatprep.subr.mxu0 0.0
    %225 = vmatpush1.msra.mxu0 0.0
    %226 = vmatprep.subr.mxu0 0.0
    %227 = vmatpush1.msra.mxu0 0.0
    %228 = vmatprep.subr.mxu0 0.0
    %229 = vmatpush1.msra.mxu0 0.0
    %230 = vmatprep.subr.mxu0 0.0
    %231 = vmatpush1.msra.mxu0 0.0
    %232 = vmatprep.mubr.f32.mxu0 0.0
    %233 = vmatmul.mubr.f32.gmra.mrb[0].mxu0 %v166
    %v234 = vpop.f32.mrb[0].mxu0
    %v235 = vadd.f32 0.0, %v234
    %v236 = vpop.f32.mrb[0].mxu0
    %237 = vdwg.mxu0
    %v238 = vadd.f32 %v147, %v235
    %v239 = vld [vmem:[%s3] sm:$0x1]
    %v241 = vlaneseq
    %v242 = vshrl.u32 %v241, 7
    %v243 = vsub.s32 0, %v242
    %v244 = vrot.slane %v239, %v243
    %v246 = vadd.f32 %v238, %v244
    %v247 = vxor.u32 %v246, 2147483648
    %v248 = vmul.f32 %v247, 1.442695
    %v249 = vpow.pop %v248
    %v250 = vadd.f32 %v249, 1.0
    %v251 = vrcp.pop %v250
    %v252 = vmul.f32 1.0, %v251
    %v253 = vtanh.pop %v246
    %v254 = vmul.f32 %v252, 0.0
    %256 = vrot.lane.b32.xlu0 %v253, 64
    %v257 = vpop.permute.xlu0 %256
    %v259 = vmul.f32 %v252, %v257
    %261 = vrot.lane.b32.xlu0 %v259, 32
    %v262 = vpop.permute.xlu0 %261
    %v264 = vadd.f32 %v254, %v262
    %v265 = vtanh.pop %v264
    %267 = vrot.lane.b32.xlu0 %v265, 64
    %v268 = vpop.permute.xlu0 %267
    %v270 = vmul.f32 %v252, %v268
    %272 = vrot.lane.b32.xlu0 %v270, 32
    %v273 = vpop.permute.xlu0 %272
    %v274 = vsel %vm70, %v273, 0
    %276 = vmatprep.subr.mxu0 0.0
    %277 = vmatpush1.msra.mxu0 %v161
    %278 = vmatprep.subr.mxu0 0.0
    %279 = vmatpush1.msra.mxu0 %v162
    %280 = vmatprep.subr.mxu0 0.0
    %281 = vmatpush1.msra.mxu0 %v163
    %282 = vmatprep.subr.mxu0 0.0
    %283 = vmatpush1.msra.mxu0 %v164
    %284 = vmatprep.subr.mxu0 0.0
    %285 = vmatpush1.msra.mxu0 0.0
    %286 = vmatprep.subr.mxu0 0.0
    %287 = vmatpush1.msra.mxu0 0.0
    %288 = vmatprep.subr.mxu0 0.0
    %289 = vmatpush1.msra.mxu0 0.0
    %290 = vmatprep.subr.mxu0 0.0
    %291 = vmatpush1.msra.mxu0 0.0
    %292 = vmatprep.subr.mxu0 0.0
    %293 = vmatpush1.msra.mxu0 0.0
    %294 = vmatprep.subr.mxu0 0.0
    %295 = vmatpush1.msra.mxu0 0.0
    %296 = vmatprep.subr.mxu0 0.0
    %297 = vmatpush1.msra.mxu0 0.0
    %298 = vmatprep.subr.mxu0 0.0
    %299 = vmatpush1.msra.mxu0 0.0
    %300 = vmatprep.subr.mxu0 0.0
    %301 = vmatpush1.msra.mxu0 0.0
    %302 = vmatprep.subr.mxu0 0.0
    %303 = vmatpush1.msra.mxu0 0.0
    %304 = vmatprep.subr.mxu0 0.0
    %305 = vmatpush1.msra.mxu0 0.0
    %306 = vmatprep.subr.mxu0 0.0
    %307 = vmatpush1.msra.mxu0 0.0
    %308 = vmatprep.subr.mxu0 0.0
    %309 = vmatpush1.msra.mxu0 0.0
    %310 = vmatprep.subr.mxu0 0.0
    %311 = vmatpush1.msra.mxu0 0.0
    %312 = vmatprep.subr.mxu0 0.0
    %313 = vmatpush1.msra.mxu0 0.0
    %314 = vmatprep.subr.mxu0 0.0
    %315 = vmatpush1.msra.mxu0 0.0
    %316 = vmatprep.subr.mxu0 0.0
    %317 = vmatpush1.msra.mxu0 0.0
    %318 = vmatprep.subr.mxu0 0.0
    %319 = vmatpush1.msra.mxu0 0.0
    %320 = vmatprep.subr.mxu0 0.0
    %321 = vmatpush1.msra.mxu0 0.0
    %322 = vmatprep.subr.mxu0 0.0
    %323 = vmatpush1.msra.mxu0 0.0
    %324 = vmatprep.subr.mxu0 0.0
    %325 = vmatpush1.msra.mxu0 0.0
    %326 = vmatprep.subr.mxu0 0.0
    %327 = vmatpush1.msra.mxu0 0.0
    %328 = vmatprep.subr.mxu0 0.0
    %329 = vmatpush1.msra.mxu0 0.0
    %330 = vmatprep.subr.mxu0 0.0
    %331 = vmatpush1.msra.mxu0 0.0
    %332 = vmatprep.subr.mxu0 0.0
    %333 = vmatpush1.msra.mxu0 0.0
    %334 = vmatprep.subr.mxu0 0.0
    %335 = vmatpush1.msra.mxu0 0.0
    %336 = vmatprep.subr.mxu0 0.0
    %337 = vmatpush1.msra.mxu0 0.0
    %338 = vmatprep.subr.mxu0 0.0
    %339 = vmatpush1.msra.mxu0 0.0
    %340 = vmatprep.mubr.f32.mxu0 0.0
    %341 = vmatmul.mubr.f32.gmra.mrb[0].mxu0 %v274
    %v342 = vpop.f32.mrb[0].mxu0
    %v343 = vadd.f32 0.0, %v342
    %v344 = vpop.f32.mrb[0].mxu0
    %345 = vdwg.mxu0
    %v346 = vadd.f32 %v152, %v343
    %v347 = vadd.f32 %v346, %v244
    %v348 = vxor.u32 %v347, 2147483648
    %v349 = vmul.f32 %v348, 1.442695
    %v350 = vpow.pop %v349
    %v351 = vadd.f32 %v350, 1.0
    %v352 = vrcp.pop %v351
    %v353 = vmul.f32 1.0, %v352
    %v354 = vtanh.pop %v347
    %v355 = vmul.f32 %v353, %v264
    %357 = vrot.lane.b32.xlu0 %v354, 64
    %v358 = vpop.permute.xlu0 %357
    %v360 = vmul.f32 %v353, %v358
    %362 = vrot.lane.b32.xlu0 %v360, 32
    %v363 = vpop.permute.xlu0 %362
    %v365 = vadd.f32 %v355, %v363
    %v366 = vtanh.pop %v365
    %368 = vrot.lane.b32.xlu0 %v366, 64
    %v369 = vpop.permute.xlu0 %368
    %v371 = vmul.f32 %v353, %v369
    %373 = vrot.lane.b32.xlu0 %v371, 32
    %v374 = vpop.permute.xlu0 %373
    %v375 = vsel %vm70, %v374, 0
    %377 = vmatprep.subr.mxu0 0.0
    %378 = vmatpush1.msra.mxu0 %v161
    %379 = vmatprep.subr.mxu0 0.0
    %380 = vmatpush1.msra.mxu0 %v162
    %381 = vmatprep.subr.mxu0 0.0
    %382 = vmatpush1.msra.mxu0 %v163
    %383 = vmatprep.subr.mxu0 0.0
    %384 = vmatpush1.msra.mxu0 %v164
    %385 = vmatprep.subr.mxu0 0.0
    %386 = vmatpush1.msra.mxu0 0.0
    %387 = vmatprep.subr.mxu0 0.0
    %388 = vmatpush1.msra.mxu0 0.0
    %389 = vmatprep.subr.mxu0 0.0
    %390 = vmatpush1.msra.mxu0 0.0
    %391 = vmatprep.subr.mxu0 0.0
    %392 = vmatpush1.msra.mxu0 0.0
    %393 = vmatprep.subr.mxu0 0.0
    %394 = vmatpush1.msra.mxu0 0.0
    %395 = vmatprep.subr.mxu0 0.0
    %396 = vmatpush1.msra.mxu0 0.0
    %397 = vmatprep.subr.mxu0 0.0
    %398 = vmatpush1.msra.mxu0 0.0
    %399 = vmatprep.subr.mxu0 0.0
    %400 = vmatpush1.msra.mxu0 0.0
    %401 = vmatprep.subr.mxu0 0.0
    %402 = vmatpush1.msra.mxu0 0.0
    %403 = vmatprep.subr.mxu0 0.0
    %404 = vmatpush1.msra.mxu0 0.0
    %405 = vmatprep.subr.mxu0 0.0
    %406 = vmatpush1.msra.mxu0 0.0
    %407 = vmatprep.subr.mxu0 0.0
    %408 = vmatpush1.msra.mxu0 0.0
    %409 = vmatprep.subr.mxu0 0.0
    %410 = vmatpush1.msra.mxu0 0.0
    %411 = vmatprep.subr.mxu0 0.0
    %412 = vmatpush1.msra.mxu0 0.0
    %413 = vmatprep.subr.mxu0 0.0
    %414 = vmatpush1.msra.mxu0 0.0
    %415 = vmatprep.subr.mxu0 0.0
    %416 = vmatpush1.msra.mxu0 0.0
    %417 = vmatprep.subr.mxu0 0.0
    %418 = vmatpush1.msra.mxu0 0.0
    %419 = vmatprep.subr.mxu0 0.0
    %420 = vmatpush1.msra.mxu0 0.0
    %421 = vmatprep.subr.mxu0 0.0
    %422 = vmatpush1.msra.mxu0 0.0
    %423 = vmatprep.subr.mxu0 0.0
    %424 = vmatpush1.msra.mxu0 0.0
    %425 = vmatprep.subr.mxu0 0.0
    %426 = vmatpush1.msra.mxu0 0.0
    %427 = vmatprep.subr.mxu0 0.0
    %428 = vmatpush1.msra.mxu0 0.0
    %429 = vmatprep.subr.mxu0 0.0
    %430 = vmatpush1.msra.mxu0 0.0
    %431 = vmatprep.subr.mxu0 0.0
    %432 = vmatpush1.msra.mxu0 0.0
    %433 = vmatprep.subr.mxu0 0.0
    %434 = vmatpush1.msra.mxu0 0.0
    %435 = vmatprep.subr.mxu0 0.0
    %436 = vmatpush1.msra.mxu0 0.0
    %437 = vmatprep.subr.mxu0 0.0
    %438 = vmatpush1.msra.mxu0 0.0
    %439 = vmatprep.subr.mxu0 0.0
    %440 = vmatpush1.msra.mxu0 0.0
    %441 = vmatprep.mubr.f32.mxu0 0.0
    %442 = vmatmul.mubr.f32.gmra.mrb[0].mxu0 %v375
    %v443 = vpop.f32.mrb[0].mxu0
    %v444 = vadd.f32 0.0, %v443
    %v445 = vpop.f32.mrb[0].mxu0
    %446 = vdwg.mxu0
    %v447 = vadd.f32 %v157, %v444
    %v448 = vadd.f32 %v447, %v244
    %v449 = vxor.u32 %v448, 2147483648
    %v450 = vmul.f32 %v449, 1.442695
    %v451 = vpow.pop %v450
    %v452 = vadd.f32 %v451, 1.0
    %v453 = vrcp.pop %v452
    %v454 = vmul.f32 1.0, %v453
    %v455 = vtanh.pop %v448
    %v456 = vmul.f32 %v454, %v365
    %458 = vrot.lane.b32.xlu0 %v455, 64
    %v459 = vpop.permute.xlu0 %458
    %v461 = vmul.f32 %v454, %v459
    %463 = vrot.lane.b32.xlu0 %v461, 32
    %v464 = vpop.permute.xlu0 %463
    %v466 = vadd.f32 %v456, %v464
    %v467 = vtanh.pop %v466
    %469 = vrot.lane.b32.xlu0 %v467, 64
    %v470 = vpop.permute.xlu0 %469
    %v472 = vmul.f32 %v454, %v470
    %v473 = vld [vmem:[%s4] sm:$0xff]
    %v474 = vld [vmem:[%s4 + $0x8] sm:$0xff]
    %v475 = vld [vmem:[%s4 + $0x10] sm:$0xff]
    %v476 = vld [vmem:[%s4 + $0x18] sm:$0xff]
    %477 = vmatprep.subr.mxu0 0.0
    %478 = vmatpush1.msra.mxu0 %v473
    %479 = vmatprep.subr.mxu0 0.0
    %480 = vmatpush1.msra.mxu0 %v474
    %481 = vmatprep.subr.mxu0 0.0
    %482 = vmatpush1.msra.mxu0 %v475
    %483 = vmatprep.subr.mxu0 0.0
    %484 = vmatpush1.msra.mxu0 %v476
    %485 = vmatprep.subr.mxu0 0.0
    %486 = vmatpush1.msra.mxu0 0.0
    %487 = vmatprep.subr.mxu0 0.0
    %488 = vmatpush1.msra.mxu0 0.0
    %489 = vmatprep.subr.mxu0 0.0
    %490 = vmatpush1.msra.mxu0 0.0
    %491 = vmatprep.subr.mxu0 0.0
    %492 = vmatpush1.msra.mxu0 0.0
    %493 = vmatprep.subr.mxu0 0.0
    %494 = vmatpush1.msra.mxu0 0.0
    %495 = vmatprep.subr.mxu0 0.0
    %496 = vmatpush1.msra.mxu0 0.0
    %497 = vmatprep.subr.mxu0 0.0
    %498 = vmatpush1.msra.mxu0 0.0
    %499 = vmatprep.subr.mxu0 0.0
    %500 = vmatpush1.msra.mxu0 0.0
    %501 = vmatprep.subr.mxu0 0.0
    %502 = vmatpush1.msra.mxu0 0.0
    %503 = vmatprep.subr.mxu0 0.0
    %504 = vmatpush1.msra.mxu0 0.0
    %505 = vmatprep.subr.mxu0 0.0
    %506 = vmatpush1.msra.mxu0 0.0
    %507 = vmatprep.subr.mxu0 0.0
    %508 = vmatpush1.msra.mxu0 0.0
    %509 = vmatprep.subr.mxu0 0.0
    %510 = vmatpush1.msra.mxu0 0.0
    %511 = vmatprep.subr.mxu0 0.0
    %512 = vmatpush1.msra.mxu0 0.0
    %513 = vmatprep.subr.mxu0 0.0
    %514 = vmatpush1.msra.mxu0 0.0
    %515 = vmatprep.subr.mxu0 0.0
    %516 = vmatpush1.msra.mxu0 0.0
    %517 = vmatprep.subr.mxu0 0.0
    %518 = vmatpush1.msra.mxu0 0.0
    %519 = vmatprep.subr.mxu0 0.0
    %520 = vmatpush1.msra.mxu0 0.0
    %521 = vmatprep.subr.mxu0 0.0
    %522 = vmatpush1.msra.mxu0 0.0
    %523 = vmatprep.subr.mxu0 0.0
    %524 = vmatpush1.msra.mxu0 0.0
    %525 = vmatprep.subr.mxu0 0.0
    %526 = vmatpush1.msra.mxu0 0.0
    %527 = vmatprep.subr.mxu0 0.0
    %528 = vmatpush1.msra.mxu0 0.0
    %529 = vmatprep.subr.mxu0 0.0
    %530 = vmatpush1.msra.mxu0 0.0
    %531 = vmatprep.subr.mxu0 0.0
    %532 = vmatpush1.msra.mxu0 0.0
    %533 = vmatprep.subr.mxu0 0.0
    %534 = vmatpush1.msra.mxu0 0.0
    %535 = vmatprep.subr.mxu0 0.0
    %536 = vmatpush1.msra.mxu0 0.0
    %537 = vmatprep.subr.mxu0 0.0
    %538 = vmatpush1.msra.mxu0 0.0
    %539 = vmatprep.subr.mxu0 0.0
    %540 = vmatpush1.msra.mxu0 0.0
    %541 = vmatprep.mubr.f32.mxu0 0.0
    %542 = vmatmul.mubr.f32.gmra.mrb[0].mxu0 %v166
    %v543 = vpop.f32.mrb[0].mxu0
    %v544 = vadd.f32 0.0, %v543
    %v545 = vpop.f32.mrb[0].mxu0
    %546 = vdwg.mxu0
    %v547 = vadd.f32 %v159, %v544
    %v548 = vld [vmem:[%s5] sm:$0x1]
    %v550 = vlaneseq
    %v551 = vshrl.u32 %v550, 7
    %v552 = vsub.s32 0, %v551
    %v553 = vrot.slane %v548, %v552
    %v555 = vadd.f32 %v547, %v553
    %v556 = vxor.u32 %v555, 2147483648
    %v557 = vmul.f32 %v556, 1.442695
    %v558 = vpow.pop %v557
    %v559 = vadd.f32 %v558, 1.0
    %v560 = vrcp.pop %v559
    %v561 = vmul.f32 1.0, %v560
    %v562 = vtanh.pop %v555
    %v563 = vmul.f32 %v561, 0.0
    %565 = vrot.lane.b32.xlu0 %v562, 64
    %v566 = vpop.permute.xlu0 %565
    %v568 = vmul.f32 %v561, %v566
    %570 = vrot.lane.b32.xlu0 %v568, 32
    %v571 = vpop.permute.xlu0 %570
    %v573 = vadd.f32 %v563, %v571
    %v574 = vtanh.pop %v573
    %576 = vrot.lane.b32.xlu0 %v574, 64
    %v577 = vpop.permute.xlu0 %576
    %v579 = vmul.f32 %v561, %v577
    %v580 = vld [vmem:[%s6] sm:$0xff]
    %v581 = vld [vmem:[%s6 + $0x8] sm:$0xff]
    %v582 = vld [vmem:[%s6 + $0x10] sm:$0xff]
    %v583 = vld [vmem:[%s6 + $0x18] sm:$0xff]
    %v584 = vld [vmem:[%s6 + $0x20] sm:$0xff]
    %v585 = vld [vmem:[%s6 + $0x28] sm:$0xff]
    %v586 = vld [vmem:[%s6 + $0x30] sm:$0xff]
    %v587 = vld [vmem:[%s6 + $0x38] sm:$0xff]
    %589 = vrot.lane.b32.xlu0 %v579, 32
    %v590 = vpop.permute.xlu0 %589
    %v591 = vsel %vm70, %v590, 0
    %593 = vmatprep.subr.mxu0 0.0
    %594 = vmatpush1.msra.mxu0 %v584
    %595 = vmatprep.subr.mxu0 0.0
    %596 = vmatpush1.msra.mxu0 %v585
    %597 = vmatprep.subr.mxu0 0.0
    %598 = vmatpush1.msra.mxu0 %v586
    %599 = vmatprep.subr.mxu0 0.0
    %600 = vmatpush1.msra.mxu0 %v587
    %601 = vmatprep.subr.mxu0 0.0
    %602 = vmatpush1.msra.mxu0 0.0
    %603 = vmatprep.subr.mxu0 0.0
    %604 = vmatpush1.msra.mxu0 0.0
    %605 = vmatprep.subr.mxu0 0.0
    %606 = vmatpush1.msra.mxu0 0.0
    %607 = vmatprep.subr.mxu0 0.0
    %608 = vmatpush1.msra.mxu0 0.0
    %609 = vmatprep.subr.mxu0 0.0
    %610 = vmatpush1.msra.mxu0 0.0
    %611 = vmatprep.subr.mxu0 0.0
    %612 = vmatpush1.msra.mxu0 0.0
    %613 = vmatprep.subr.mxu0 0.0
    %614 = vmatpush1.msra.mxu0 0.0
    %615 = vmatprep.subr.mxu0 0.0
    %616 = vmatpush1.msra.mxu0 0.0
    %617 = vmatprep.subr.mxu0 0.0
    %618 = vmatpush1.msra.mxu0 0.0
    %619 = vmatprep.subr.mxu0 0.0
    %620 = vmatpush1.msra.mxu0 0.0
    %621 = vmatprep.subr.mxu0 0.0
    %622 = vmatpush1.msra.mxu0 0.0
    %623 = vmatprep.subr.mxu0 0.0
    %624 = vmatpush1.msra.mxu0 0.0
    %625 = vmatprep.subr.mxu0 0.0
    %626 = vmatpush1.msra.mxu0 0.0
    %627 = vmatprep.subr.mxu0 0.0
    %628 = vmatpush1.msra.mxu0 0.0
    %629 = vmatprep.subr.mxu0 0.0
    %630 = vmatpush1.msra.mxu0 0.0
    %631 = vmatprep.subr.mxu0 0.0
    %632 = vmatpush1.msra.mxu0 0.0
    %633 = vmatprep.subr.mxu0 0.0
    %634 = vmatpush1.msra.mxu0 0.0
    %635 = vmatprep.subr.mxu0 0.0
    %636 = vmatpush1.msra.mxu0 0.0
    %637 = vmatprep.subr.mxu0 0.0
    %638 = vmatpush1.msra.mxu0 0.0
    %639 = vmatprep.subr.mxu0 0.0
    %640 = vmatpush1.msra.mxu0 0.0
    %641 = vmatprep.subr.mxu0 0.0
    %642 = vmatpush1.msra.mxu0 0.0
    %643 = vmatprep.subr.mxu0 0.0
    %644 = vmatpush1.msra.mxu0 0.0
    %645 = vmatprep.subr.mxu0 0.0
    %646 = vmatpush1.msra.mxu0 0.0
    %647 = vmatprep.subr.mxu0 0.0
    %648 = vmatpush1.msra.mxu0 0.0
    %649 = vmatprep.subr.mxu0 0.0
    %650 = vmatpush1.msra.mxu0 0.0
    %651 = vmatprep.subr.mxu0 0.0
    %652 = vmatpush1.msra.mxu0 0.0
    %653 = vmatprep.subr.mxu0 0.0
    %654 = vmatpush1.msra.mxu0 0.0
    %655 = vmatprep.subr.mxu0 0.0
    %656 = vmatpush1.msra.mxu0 0.0
    %657 = vmatprep.mubr.f32.mxu0 0.0
    %658 = vmatmul.mubr.f32.gmra.mrb[0].mxu0 %v591
    %v659 = vpop.f32.mrb[0].mxu0
    %v660 = vadd.f32 0.0, %v659
    %v661 = vpop.f32.mrb[0].mxu0
    %662 = vdwg.mxu0
    %664 = vrot.lane.b32.xlu0 %v472, 32
    %v665 = vpop.permute.xlu0 %664
    %v666 = vsel %vm70, %v665, 0
    %668 = vmatprep.subr.mxu0 0.0
    %669 = vmatpush1.msra.mxu0 %v580
    %670 = vmatprep.subr.mxu0 0.0
    %671 = vmatpush1.msra.mxu0 %v581
    %672 = vmatprep.subr.mxu0 0.0
    %673 = vmatpush1.msra.mxu0 %v582
    %674 = vmatprep.subr.mxu0 0.0
    %675 = vmatpush1.msra.mxu0 %v583
    %676 = vmatprep.subr.mxu0 0.0
    %677 = vmatpush1.msra.mxu0 0.0
    %678 = vmatprep.subr.mxu0 0.0
    %679 = vmatpush1.msra.mxu0 0.0
    %680 = vmatprep.subr.mxu0 0.0
    %681 = vmatpush1.msra.mxu0 0.0
    %682 = vmatprep.subr.mxu0 0.0
    %683 = vmatpush1.msra.mxu0 0.0
    %684 = vmatprep.subr.mxu0 0.0
    %685 = vmatpush1.msra.mxu0 0.0
    %686 = vmatprep.subr.mxu0 0.0
    %687 = vmatpush1.msra.mxu0 0.0
    %688 = vmatprep.subr.mxu0 0.0
    %689 = vmatpush1.msra.mxu0 0.0
    %690 = vmatprep.subr.mxu0 0.0
    %691 = vmatpush1.msra.mxu0 0.0
    %692 = vmatprep.subr.mxu0 0.0
    %693 = vmatpush1.msra.mxu0 0.0
    %694 = vmatprep.subr.mxu0 0.0
    %695 = vmatpush1.msra.mxu0 0.0
    %696 = vmatprep.subr.mxu0 0.0
    %697 = vmatpush1.msra.mxu0 0.0
    %698 = vmatprep.subr.mxu0 0.0
    %699 = vmatpush1.msra.mxu0 0.0
    %700 = vmatprep.subr.mxu0 0.0
    %701 = vmatpush1.msra.mxu0 0.0
    %702 = vmatprep.subr.mxu0 0.0
    %703 = vmatpush1.msra.mxu0 0.0
    %704 = vmatprep.subr.mxu0 0.0
    %705 = vmatpush1.msra.mxu0 0.0
    %706 = vmatprep.subr.mxu0 0.0
    %707 = vmatpush1.msra.mxu0 0.0
    %708 = vmatprep.subr.mxu0 0.0
    %709 = vmatpush1.msra.mxu0 0.0
    %710 = vmatprep.subr.mxu0 0.0
    %711 = vmatpush1.msra.mxu0 0.0
    %712 = vmatprep.subr.mxu0 0.0
    %713 = vmatpush1.msra.mxu0 0.0
    %714 = vmatprep.subr.mxu0 0.0
    %715 = vmatpush1.msra.mxu0 0.0
    %716 = vmatprep.subr.mxu0 0.0
    %717 = vmatpush1.msra.mxu0 0.0
    %718 = vmatprep.subr.mxu0 0.0
    %719 = vmatpush1.msra.mxu0 0.0
    %720 = vmatprep.subr.mxu0 0.0
    %721 = vmatpush1.msra.mxu0 0.0
    %722 = vmatprep.subr.mxu0 0.0
    %723 = vmatpush1.msra.mxu0 0.0
    %724 = vmatprep.subr.mxu0 0.0
    %725 = vmatpush1.msra.mxu0 0.0
    %726 = vmatprep.subr.mxu0 0.0
    %727 = vmatpush1.msra.mxu0 0.0
    %728 = vmatprep.subr.mxu0 0.0
    %729 = vmatpush1.msra.mxu0 0.0
    %730 = vmatprep.subr.mxu0 0.0
    %731 = vmatpush1.msra.mxu0 0.0
    %732 = vmatprep.mubr.f32.mxu0 0.0
    %733 = vmatmul.mubr.f32.gmra.mrb[0].mxu0 %v666
    %v734 = vpop.f32.mrb[0].mxu0
    %v735 = vadd.f32 %v660, %v734
    %v736 = vpop.f32.mrb[0].mxu0
    %737 = vdwg.mxu0
    %v738 = vld [vmem:[%s7] sm:$0x1]
    %v740 = vlaneseq
    %v741 = vshrl.u32 %v740, 7
    %v742 = vsub.s32 0, %v741
    %v743 = vrot.slane %v738, %v742
    %v745 = vadd.f32 %v735, %v743
    %v746 = vld [vmem:[%s8] sm:$0xff]
    %v747 = vld [vmem:[%s8 + $0x8] sm:$0xff]
    %v748 = vld [vmem:[%s8 + $0x10] sm:$0xff]
    %v749 = vld [vmem:[%s8 + $0x18] sm:$0xff]
    %v750 = vld [vmem:[%s8 + $0x20] sm:$0xff]
    %v751 = vld [vmem:[%s8 + $0x28] sm:$0xff]
    %v752 = vld [vmem:[%s8 + $0x30] sm:$0xff]
    %v753 = vld [vmem:[%s8 + $0x38] sm:$0xff]
    %v754 = vld [vmem:[%s8 + $0x40] sm:$0xff]
    %v755 = vld [vmem:[%s8 + $0x48] sm:$0xff]
    %v756 = vld [vmem:[%s8 + $0x50] sm:$0xff]
    %v757 = vld [vmem:[%s8 + $0x58] sm:$0xff]
    %v758 = vld [vmem:[%s8 + $0x60] sm:$0xff]
    %v759 = vld [vmem:[%s8 + $0x68] sm:$0xff]
    %v760 = vld [vmem:[%s8 + $0x70] sm:$0xff]
    %v761 = vld [vmem:[%s8 + $0x78] sm:$0xff]
    %v763 = vsel %vm70, %v745, 0
    %765 = vmatprep.subr.mxu0 %v755
    %766 = vmatpush1.msra.mxu0 %v754
    %767 = vmatprep.subr.mxu0 %v757
    %768 = vmatpush1.msra.mxu0 %v756
    %769 = vmatprep.subr.mxu0 %v759
    %770 = vmatpush1.msra.mxu0 %v758
    %771 = vmatprep.subr.mxu0 %v761
    %772 = vmatpush1.msra.mxu0 %v760
    %773 = vmatprep.subr.mxu0 0.0
    %774 = vmatpush1.msra.mxu0 0.0
    %775 = vmatprep.subr.mxu0 0.0
    %776 = vmatpush1.msra.mxu0 0.0
    %777 = vmatprep.subr.mxu0 0.0
    %778 = vmatpush1.msra.mxu0 0.0
    %779 = vmatprep.subr.mxu0 0.0
    %780 = vmatpush1.msra.mxu0 0.0
    %781 = vmatprep.subr.mxu0 0.0
    %782 = vmatpush1.msra.mxu0 0.0
    %783 = vmatprep.subr.mxu0 0.0
    %784 = vmatpush1.msra.mxu0 0.0
    %785 = vmatprep.subr.mxu0 0.0
    %786 = vmatpush1.msra.mxu0 0.0
    %787 = vmatprep.subr.mxu0 0.0
    %788 = vmatpush1.msra.mxu0 0.0
    %789 = vmatprep.subr.mxu0 0.0
    %790 = vmatpush1.msra.mxu0 0.0
    %791 = vmatprep.subr.mxu0 0.0
    %792 = vmatpush1.msra.mxu0 0.0
    %793 = vmatprep.subr.mxu0 0.0
    %794 = vmatpush1.msra.mxu0 0.0
    %795 = vmatprep.subr.mxu0 0.0
    %796 = vmatpush1.msra.mxu0 0.0
    %797 = vmatprep.subr.mxu0 0.0
    %798 = vmatpush1.msra.mxu0 0.0
    %799 = vmatprep.subr.mxu0 0.0
    %800 = vmatpush1.msra.mxu0 0.0
    %801 = vmatprep.subr.mxu0 0.0
    %802 = vmatpush1.msra.mxu0 0.0
    %803 = vmatprep.subr.mxu0 0.0
    %804 = vmatpush1.msra.mxu0 0.0
    %805 = vmatprep.subr.mxu0 0.0
    %806 = vmatpush1.msra.mxu0 0.0
    %807 = vmatprep.subr.mxu0 0.0
    %808 = vmatpush1.msra.mxu0 0.0
    %809 = vmatprep.subr.mxu0 0.0
    %810 = vmatpush1.msra.mxu0 0.0
    %811 = vmatprep.subr.mxu0 0.0
    %812 = vmatpush1.msra.mxu0 0.0
    %813 = vmatprep.subr.mxu0 0.0
    %814 = vmatpush1.msra.mxu0 0.0
    %815 = vmatprep.subr.mxu0 0.0
    %816 = vmatpush1.msra.mxu0 0.0
    %817 = vmatprep.subr.mxu0 0.0
    %818 = vmatpush1.msra.mxu0 0.0
    %819 = vmatprep.subr.mxu0 0.0
    %820 = vmatpush1.msra.mxu0 0.0
    %821 = vmatprep.subr.mxu0 0.0
    %822 = vmatpush1.msra.mxu0 0.0
    %823 = vmatprep.subr.mxu0 0.0
    %824 = vmatpush1.msra.mxu0 0.0
    %825 = vmatprep.subr.mxu0 0.0
    %826 = vmatpush1.msra.mxu0 0.0
    %827 = vmatprep.subr.mxu0 0.0
    %828 = vmatpush1.msra.mxu0 0.0
    %829 = vmatprep.mubr.f32.mxu0 0.0
    %830 = vmatmul.mubr.f32.gmra.mrb[0].mxu0 %v763
    %v831 = vpop.f32.mrb[0].mxu0
    %v832 = vadd.f32 0.0, %v831
    %v833 = vpop.f32.mrb[0].mxu0
    %v834 = vadd.f32 0.0, %v833
    %835 = vdwg.mxu0
    %v837 = vsel %vm70, %v61, 0
    %839 = vmatprep.subr.mxu0 %v747
    %840 = vmatpush1.msra.mxu0 %v746
    %841 = vmatprep.subr.mxu0 %v749
    %842 = vmatpush1.msra.mxu0 %v748
    %843 = vmatprep.subr.mxu0 %v751
    %844 = vmatpush1.msra.mxu0 %v750
    %845 = vmatprep.subr.mxu0 %v753
    %846 = vmatpush1.msra.mxu0 %v752
    %847 = vmatprep.subr.mxu0 0.0
    %848 = vmatpush1.msra.mxu0 0.0
    %849 = vmatprep.subr.mxu0 0.0
    %850 = vmatpush1.msra.mxu0 0.0
    %851 = vmatprep.subr.mxu0 0.0
    %852 = vmatpush1.msra.mxu0 0.0
    %853 = vmatprep.subr.mxu0 0.0
    %854 = vmatpush1.msra.mxu0 0.0
    %855 = vmatprep.subr.mxu0 0.0
    %856 = vmatpush1.msra.mxu0 0.0
    %857 = vmatprep.subr.mxu0 0.0
    %858 = vmatpush1.msra.mxu0 0.0
    %859 = vmatprep.subr.mxu0 0.0
    %860 = vmatpush1.msra.mxu0 0.0
    %861 = vmatprep.subr.mxu0 0.0
    %862 = vmatpush1.msra.mxu0 0.0
    %863 = vmatprep.subr.mxu0 0.0
    %864 = vmatpush1.msra.mxu0 0.0
    %865 = vmatprep.subr.mxu0 0.0
    %866 = vmatpush1.msra.mxu0 0.0
    %867 = vmatprep.subr.mxu0 0.0
    %868 = vmatpush1.msra.mxu0 0.0
    %869 = vmatprep.subr.mxu0 0.0
    %870 = vmatpush1.msra.mxu0 0.0
    %871 = vmatprep.subr.mxu0 0.0
    %872 = vmatpush1.msra.mxu0 0.0
    %873 = vmatprep.subr.mxu0 0.0
    %874 = vmatpush1.msra.mxu0 0.0
    %875 = vmatprep.subr.mxu0 0.0
    %876 = vmatpush1.msra.mxu0 0.0
    %877 = vmatprep.subr.mxu0 0.0
    %878 = vmatpush1.msra.mxu0 0.0
    %879 = vmatprep.subr.mxu0 0.0
    %880 = vmatpush1.msra.mxu0 0.0
    %881 = vmatprep.subr.mxu0 0.0
    %882 = vmatpush1.msra.mxu0 0.0
    %883 = vmatprep.subr.mxu0 0.0
    %884 = vmatpush1.msra.mxu0 0.0
    %885 = vmatprep.subr.mxu0 0.0
    %886 = vmatpush1.msra.mxu0 0.0
    %887 = vmatprep.subr.mxu0 0.0
    %888 = vmatpush1.msra.mxu0 0.0
    %889 = vmatprep.subr.mxu0 0.0
    %890 = vmatpush1.msra.mxu0 0.0
    %891 = vmatprep.subr.mxu0 0.0
    %892 = vmatpush1.msra.mxu0 0.0
    %893 = vmatprep.subr.mxu0 0.0
    %894 = vmatpush1.msra.mxu0 0.0
    %895 = vmatprep.subr.mxu0 0.0
    %896 = vmatpush1.msra.mxu0 0.0
    %897 = vmatprep.subr.mxu0 0.0
    %898 = vmatpush1.msra.mxu0 0.0
    %899 = vmatprep.subr.mxu0 0.0
    %900 = vmatpush1.msra.mxu0 0.0
    %901 = vmatprep.subr.mxu0 0.0
    %902 = vmatpush1.msra.mxu0 0.0
    %903 = vmatprep.mubr.f32.mxu0 0.0
    %904 = vmatmul.mubr.f32.gmra.mrb[0].mxu0 %v837
    %v905 = vpop.f32.mrb[0].mxu0
    %v906 = vadd.f32 %v832, %v905
    %v907 = vpop.f32.mrb[0].mxu0
    %v908 = vadd.f32 %v834, %v907
    %909 = vdwg.mxu0
    %v910 = vld [vmem:[%s9] sm:$0xff]
    %v911 = vld [vmem:[%s9 + $0x8] sm:$0xff]
    %v912 = vld [vmem:[%s9 + $0x10] sm:$0xff]
    %v913 = vld [vmem:[%s9 + $0x18] sm:$0xff]
    %914 = vmatprep.subr.mxu0 0.0
    %915 = vmatpush1.msra.mxu0 %v910
    %916 = vmatprep.subr.mxu0 0.0
    %917 = vmatpush1.msra.mxu0 %v911
    %918 = vmatprep.subr.mxu0 0.0
    %919 = vmatpush1.msra.mxu0 %v912
    %920 = vmatprep.subr.mxu0 0.0
    %921 = vmatpush1.msra.mxu0 %v913
    %922 = vmatprep.subr.mxu0 0.0
    %923 = vmatpush1.msra.mxu0 0.0
    %924 = vmatprep.subr.mxu0 0.0
    %925 = vmatpush1.msra.mxu0 0.0
    %926 = vmatprep.subr.mxu0 0.0
    %927 = vmatpush1.msra.mxu0 0.0
    %928 = vmatprep.subr.mxu0 0.0
    %929 = vmatpush1.msra.mxu0 0.0
    %930 = vmatprep.subr.mxu0 0.0
    %931 = vmatpush1.msra.mxu0 0.0
    %932 = vmatprep.subr.mxu0 0.0
    %933 = vmatpush1.msra.mxu0 0.0
    %934 = vmatprep.subr.mxu0 0.0
    %935 = vmatpush1.msra.mxu0 0.0
    %936 = vmatprep.subr.mxu0 0.0
    %937 = vmatpush1.msra.mxu0 0.0
    %938 = vmatprep.subr.mxu0 0.0
    %939 = vmatpush1.msra.mxu0 0.0
    %940 = vmatprep.subr.mxu0 0.0
    %941 = vmatpush1.msra.mxu0 0.0
    %942 = vmatprep.subr.mxu0 0.0
    %943 = vmatpush1.msra.mxu0 0.0
    %944 = vmatprep.subr.mxu0 0.0
    %945 = vmatpush1.msra.mxu0 0.0
    %946 = vmatprep.subr.mxu0 0.0
    %947 = vmatpush1.msra.mxu0 0.0
    %948 = vmatprep.subr.mxu0 0.0
    %949 = vmatpush1.msra.mxu0 0.0
    %950 = vmatprep.subr.mxu0 0.0
    %951 = vmatpush1.msra.mxu0 0.0
    %952 = vmatprep.subr.mxu0 0.0
    %953 = vmatpush1.msra.mxu0 0.0
    %954 = vmatprep.subr.mxu0 0.0
    %955 = vmatpush1.msra.mxu0 0.0
    %956 = vmatprep.subr.mxu0 0.0
    %957 = vmatpush1.msra.mxu0 0.0
    %958 = vmatprep.subr.mxu0 0.0
    %959 = vmatpush1.msra.mxu0 0.0
    %960 = vmatprep.subr.mxu0 0.0
    %961 = vmatpush1.msra.mxu0 0.0
    %962 = vmatprep.subr.mxu0 0.0
    %963 = vmatpush1.msra.mxu0 0.0
    %964 = vmatprep.subr.mxu0 0.0
    %965 = vmatpush1.msra.mxu0 0.0
    %966 = vmatprep.subr.mxu0 0.0
    %967 = vmatpush1.msra.mxu0 0.0
    %968 = vmatprep.subr.mxu0 0.0
    %969 = vmatpush1.msra.mxu0 0.0
    %970 = vmatprep.subr.mxu0 0.0
    %971 = vmatpush1.msra.mxu0 0.0
    %972 = vmatprep.subr.mxu0 0.0
    %973 = vmatpush1.msra.mxu0 0.0
    %974 = vmatprep.subr.mxu0 0.0
    %975 = vmatpush1.msra.mxu0 0.0
    %976 = vmatprep.subr.mxu0 0.0
    %977 = vmatpush1.msra.mxu0 0.0
    %978 = vmatprep.mubr.f32.mxu0 0.0
    %979 = vmatmul.mubr.f32.gmra.mrb[0].mxu0 %v166
    %v980 = vpop.f32.mrb[0].mxu0
    %v981 = vadd.f32 0.0, %v980
    %v982 = vpop.f32.mrb[0].mxu0
    %983 = vdwg.mxu0
    %v984 = vadd.f32 %v906, %v981
    %v985 = vld [vmem:[%s10] sm:$0x1]
    %v987 = vlaneseq
    %v988 = vshrl.u32 %v987, 7
    %v989 = vsub.s32 0, %v988
    %v990 = vrot.slane %v985, %v989
    %v992 = vadd.f32 %v984, %v990
    %v993 = vxor.u32 %v992, 2147483648
    %v994 = vmul.f32 %v993, 1.442695
    %v995 = vpow.pop %v994
    %v996 = vadd.f32 %v995, 1.0
    %v997 = vrcp.pop %v996
    %v998 = vmul.f32 1.0, %v997
    %v999 = vtanh.pop %v992
    %v1000 = vmul.f32 %v998, 0.0
    %1002 = vrot.lane.b32.xlu0 %v999, 64
    %v1003 = vpop.permute.xlu0 %1002
    %v1005 = vmul.f32 %v998, %v1003
    %1007 = vrot.lane.b32.xlu0 %v1005, 32
    %v1008 = vpop.permute.xlu0 %1007
    %v1010 = vadd.f32 %v1000, %v1008
    %v1011 = vtanh.pop %v1010
    %1013 = vrot.lane.b32.xlu0 %v1011, 64
    %v1014 = vpop.permute.xlu0 %1013
    %v1016 = vmul.f32 %v998, %v1014
    %1018 = vrot.lane.b32.xlu0 %v1016, 32
    %v1019 = vpop.permute.xlu0 %1018
    %v1020 = vsel %vm70, %v1019, 0
    %1022 = vmatprep.subr.mxu0 0.0
    %1023 = vmatpush1.msra.mxu0 %v910
    %1024 = vmatprep.subr.mxu0 0.0
    %1025 = vmatpush1.msra.mxu0 %v911
    %1026 = vmatprep.subr.mxu0 0.0
    %1027 = vmatpush1.msra.mxu0 %v912
    %1028 = vmatprep.subr.mxu0 0.0
    %1029 = vmatpush1.msra.mxu0 %v913
    %1030 = vmatprep.subr.mxu0 0.0
    %1031 = vmatpush1.msra.mxu0 0.0
    %1032 = vmatprep.subr.mxu0 0.0
    %1033 = vmatpush1.msra.mxu0 0.0
    %1034 = vmatprep.subr.mxu0 0.0
    %1035 = vmatpush1.msra.mxu0 0.0
    %1036 = vmatprep.subr.mxu0 0.0
    %1037 = vmatpush1.msra.mxu0 0.0
    %1038 = vmatprep.subr.mxu0 0.0
    %1039 = vmatpush1.msra.mxu0 0.0
    %1040 = vmatprep.subr.mxu0 0.0
    %1041 = vmatpush1.msra.mxu0 0.0
    %1042 = vmatprep.subr.mxu0 0.0
    %1043 = vmatpush1.msra.mxu0 0.0
    %1044 = vmatprep.subr.mxu0 0.0
    %1045 = vmatpush1.msra.mxu0 0.0
    %1046 = vmatprep.subr.mxu0 0.0
    %1047 = vmatpush1.msra.mxu0 0.0
    %1048 = vmatprep.subr.mxu0 0.0
    %1049 = vmatpush1.msra.mxu0 0.0
    %1050 = vmatprep.subr.mxu0 0.0
    %1051 = vmatpush1.msra.mxu0 0.0
    %1052 = vmatprep.subr.mxu0 0.0
    %1053 = vmatpush1.msra.mxu0 0.0
    %1054 = vmatprep.subr.mxu0 0.0
    %1055 = vmatpush1.msra.mxu0 0.0
    %1056 = vmatprep.subr.mxu0 0.0
    %1057 = vmatpush1.msra.mxu0 0.0
    %1058 = vmatprep.subr.mxu0 0.0
    %1059 = vmatpush1.msra.mxu0 0.0
    %1060 = vmatprep.subr.mxu0 0.0
    %1061 = vmatpush1.msra.mxu0 0.0
    %1062 = vmatprep.subr.mxu0 0.0
    %1063 = vmatpush1.msra.mxu0 0.0
    %1064 = vmatprep.subr.mxu0 0.0
    %1065 = vmatpush1.msra.mxu0 0.0
    %1066 = vmatprep.subr.mxu0 0.0
    %1067 = vmatpush1.msra.mxu0 0.0
    %1068 = vmatprep.subr.mxu0 0.0
    %1069 = vmatpush1.msra.mxu0 0.0
    %1070 = vmatprep.subr.mxu0 0.0
    %1071 = vmatpush1.msra.mxu0 0.0
    %1072 = vmatprep.subr.mxu0 0.0
    %1073 = vmatpush1.msra.mxu0 0.0
    %1074 = vmatprep.subr.mxu0 0.0
    %1075 = vmatpush1.msra.mxu0 0.0
    %1076 = vmatprep.subr.mxu0 0.0
    %1077 = vmatpush1.msra.mxu0 0.0
    %1078 = vmatprep.subr.mxu0 0.0
    %1079 = vmatpush1.msra.mxu0 0.0
    %1080 = vmatprep.subr.mxu0 0.0
    %1081 = vmatpush1.msra.mxu0 0.0
    %1082 = vmatprep.subr.mxu0 0.0
    %1083 = vmatpush1.msra.mxu0 0.0
    %1084 = vmatprep.subr.mxu0 0.0
    %1085 = vmatpush1.msra.mxu0 0.0
    %1086 = vmatprep.mubr.f32.mxu0 0.0
    %1087 = vmatmul.mubr.f32.gmra.mrb[0].mxu0 %v1020
    %v1088 = vpop.f32.mrb[0].mxu0
    %v1089 = vadd.f32 0.0, %v1088
    %v1090 = vpop.f32.mrb[0].mxu0
    %1091 = vdwg.mxu0
    %v1093 = vrot.slane %v1089, 6
    %v1095 = vadd.f32 %v906, %v1093
    %v1096 = vadd.f32 %v1095, %v990
    %v1097 = vxor.u32 %v1096, 2147483648
    %v1098 = vmul.f32 %v1097, 1.442695
    %v1099 = vpow.pop %v1098
    %v1100 = vadd.f32 %v1099, 1.0
    %v1101 = vrcp.pop %v1100
    %v1102 = vmul.f32 1.0, %v1101
    %v1103 = vtanh.pop %v1096
    %v1105 = vrot.slane %v1010, 6
    %v1107 = vmul.f32 %v1102, %v1105
    %1109 = vrot.lane.b32.xlu0 %v1103, 64
    %v1110 = vpop.permute.xlu0 %1109
    %v1112 = vmul.f32 %v1102, %v1110
    %1114 = vrot.lane.b32.xlu0 %v1112, 32
    %v1115 = vpop.permute.xlu0 %1114
    %v1117 = vadd.f32 %v1107, %v1115
    %v1118 = vtanh.pop %v1117
    %1120 = vrot.lane.b32.xlu0 %v1118, 64
    %v1121 = vpop.permute.xlu0 %1120
    %v1123 = vmul.f32 %v1102, %v1121
    %v1125 = vrot.slane %v1123, 2
    %1126 = vrot.lane.b32.xlu0 %v1125, 32
    %v1127 = vpop.permute.xlu0 %1126
    %v1128 = vsel %vm70, %v1127, 0
    %1130 = vmatprep.subr.mxu0 0.0
    %1131 = vmatpush1.msra.mxu0 %v910
    %1132 = vmatprep.subr.mxu0 0.0
    %1133 = vmatpush1.msra.mxu0 %v911
    %1134 = vmatprep.subr.mxu0 0.0
    %1135 = vmatpush1.msra.mxu0 %v912
    %1136 = vmatprep.subr.mxu0 0.0
    %1137 = vmatpush1.msra.mxu0 %v913
    %1138 = vmatprep.subr.mxu0 0.0
    %1139 = vmatpush1.msra.mxu0 0.0
    %1140 = vmatprep.subr.mxu0 0.0
    %1141 = vmatpush1.msra.mxu0 0.0
    %1142 = vmatprep.subr.mxu0 0.0
    %1143 = vmatpush1.msra.mxu0 0.0
    %1144 = vmatprep.subr.mxu0 0.0
    %1145 = vmatpush1.msra.mxu0 0.0
    %1146 = vmatprep.subr.mxu0 0.0
    %1147 = vmatpush1.msra.mxu0 0.0
    %1148 = vmatprep.subr.mxu0 0.0
    %1149 = vmatpush1.msra.mxu0 0.0
    %1150 = vmatprep.subr.mxu0 0.0
    %1151 = vmatpush1.msra.mxu0 0.0
    %1152 = vmatprep.subr.mxu0 0.0
    %1153 = vmatpush1.msra.mxu0 0.0
    %1154 = vmatprep.subr.mxu0 0.0
    %1155 = vmatpush1.msra.mxu0 0.0
    %1156 = vmatprep.subr.mxu0 0.0
    %1157 = vmatpush1.msra.mxu0 0.0
    %1158 = vmatprep.subr.mxu0 0.0
    %1159 = vmatpush1.msra.mxu0 0.0
    %1160 = vmatprep.subr.mxu0 0.0
    %1161 = vmatpush1.msra.mxu0 0.0
    %1162 = vmatprep.subr.mxu0 0.0
    %1163 = vmatpush1.msra.mxu0 0.0
    %1164 = vmatprep.subr.mxu0 0.0
    %1165 = vmatpush1.msra.mxu0 0.0
    %1166 = vmatprep.subr.mxu0 0.0
    %1167 = vmatpush1.msra.mxu0 0.0
    %1168 = vmatprep.subr.mxu0 0.0
    %1169 = vmatpush1.msra.mxu0 0.0
    %1170 = vmatprep.subr.mxu0 0.0
    %1171 = vmatpush1.msra.mxu0 0.0
    %1172 = vmatprep.subr.mxu0 0.0
    %1173 = vmatpush1.msra.mxu0 0.0
    %1174 = vmatprep.subr.mxu0 0.0
    %1175 = vmatpush1.msra.mxu0 0.0
    %1176 = vmatprep.subr.mxu0 0.0
    %1177 = vmatpush1.msra.mxu0 0.0
    %1178 = vmatprep.subr.mxu0 0.0
    %1179 = vmatpush1.msra.mxu0 0.0
    %1180 = vmatprep.subr.mxu0 0.0
    %1181 = vmatpush1.msra.mxu0 0.0
    %1182 = vmatprep.subr.mxu0 0.0
    %1183 = vmatpush1.msra.mxu0 0.0
    %1184 = vmatprep.subr.mxu0 0.0
    %1185 = vmatpush1.msra.mxu0 0.0
    %1186 = vmatprep.subr.mxu0 0.0
    %1187 = vmatpush1.msra.mxu0 0.0
    %1188 = vmatprep.subr.mxu0 0.0
    %1189 = vmatpush1.msra.mxu0 0.0
    %1190 = vmatprep.subr.mxu0 0.0
    %1191 = vmatpush1.msra.mxu0 0.0
    %1192 = vmatprep.subr.mxu0 0.0
    %1193 = vmatpush1.msra.mxu0 0.0
    %1194 = vmatprep.mubr.f32.mxu0 0.0
    %1195 = vmatmul.mubr.f32.gmra.mrb[0].mxu0 %v1128
    %v1196 = vpop.f32.mrb[0].mxu0
    %v1197 = vadd.f32 0.0, %v1196
    %v1198 = vpop.f32.mrb[0].mxu0
    %1199 = vdwg.mxu0
    %v1201 = vrot.slane %v1197, 4
    %v1203 = vadd.f32 %v906, %v1201
    %v1204 = vadd.f32 %v1203, %v990
    %v1205 = vxor.u32 %v1204, 2147483648
    %v1206 = vmul.f32 %v1205, 1.442695
    %v1207 = vpow.pop %v1206
    %v1208 = vadd.f32 %v1207, 1.0
    %v1209 = vrcp.pop %v1208
    %v1210 = vmul.f32 1.0, %v1209
    %v1211 = vtanh.pop %v1204
    %v1213 = vrot.slane %v1117, 6
    %v1215 = vmul.f32 %v1210, %v1213
    %1217 = vrot.lane.b32.xlu0 %v1211, 64
    %v1218 = vpop.permute.xlu0 %1217
    %v1220 = vmul.f32 %v1210, %v1218
    %1222 = vrot.lane.b32.xlu0 %v1220, 32
    %v1223 = vpop.permute.xlu0 %1222
    %v1225 = vadd.f32 %v1215, %v1223
    %v1226 = vtanh.pop %v1225
    %1228 = vrot.lane.b32.xlu0 %v1226, 64
    %v1229 = vpop.permute.xlu0 %1228
    %v1231 = vmul.f32 %v1210, %v1229
    %v1233 = vrot.slane %v1231, 4
    %1234 = vrot.lane.b32.xlu0 %v1233, 32
    %v1235 = vpop.permute.xlu0 %1234
    %v1236 = vsel %vm70, %v1235, 0
    %1238 = vmatprep.subr.mxu0 0.0
    %1239 = vmatpush1.msra.mxu0 %v910
    %1240 = vmatprep.subr.mxu0 0.0
    %1241 = vmatpush1.msra.mxu0 %v911
    %1242 = vmatprep.subr.mxu0 0.0
    %1243 = vmatpush1.msra.mxu0 %v912
    %1244 = vmatprep.subr.mxu0 0.0
    %1245 = vmatpush1.msra.mxu0 %v913
    %1246 = vmatprep.subr.mxu0 0.0
    %1247 = vmatpush1.msra.mxu0 0.0
    %1248 = vmatprep.subr.mxu0 0.0
    %1249 = vmatpush1.msra.mxu0 0.0
    %1250 = vmatprep.subr.mxu0 0.0
    %1251 = vmatpush1.msra.mxu0 0.0
    %1252 = vmatprep.subr.mxu0 0.0
    %1253 = vmatpush1.msra.mxu0 0.0
    %1254 = vmatprep.subr.mxu0 0.0
    %1255 = vmatpush1.msra.mxu0 0.0
    %1256 = vmatprep.subr.mxu0 0.0
    %1257 = vmatpush1.msra.mxu0 0.0
    %1258 = vmatprep.subr.mxu0 0.0
    %1259 = vmatpush1.msra.mxu0 0.0
    %1260 = vmatprep.subr.mxu0 0.0
    %1261 = vmatpush1.msra.mxu0 0.0
    %1262 = vmatprep.subr.mxu0 0.0
    %1263 = vmatpush1.msra.mxu0 0.0
    %1264 = vmatprep.subr.mxu0 0.0
    %1265 = vmatpush1.msra.mxu0 0.0
    %1266 = vmatprep.subr.mxu0 0.0
    %1267 = vmatpush1.msra.mxu0 0.0
    %1268 = vmatprep.subr.mxu0 0.0
    %1269 = vmatpush1.msra.mxu0 0.0
    %1270 = vmatprep.subr.mxu0 0.0
    %1271 = vmatpush1.msra.mxu0 0.0
    %1272 = vmatprep.subr.mxu0 0.0
    %1273 = vmatpush1.msra.mxu0 0.0
    %1274 = vmatprep.subr.mxu0 0.0
    %1275 = vmatpush1.msra.mxu0 0.0
    %1276 = vmatprep.subr.mxu0 0.0
    %1277 = vmatpush1.msra.mxu0 0.0
    %1278 = vmatprep.subr.mxu0 0.0
    %1279 = vmatpush1.msra.mxu0 0.0
    %1280 = vmatprep.subr.mxu0 0.0
    %1281 = vmatpush1.msra.mxu0 0.0
    %1282 = vmatprep.subr.mxu0 0.0
    %1283 = vmatpush1.msra.mxu0 0.0
    %1284 = vmatprep.subr.mxu0 0.0
    %1285 = vmatpush1.msra.mxu0 0.0
    %1286 = vmatprep.subr.mxu0 0.0
    %1287 = vmatpush1.msra.mxu0 0.0
    %1288 = vmatprep.subr.mxu0 0.0
    %1289 = vmatpush1.msra.mxu0 0.0
    %1290 = vmatprep.subr.mxu0 0.0
    %1291 = vmatpush1.msra.mxu0 0.0
    %1292 = vmatprep.subr.mxu0 0.0
    %1293 = vmatpush1.msra.mxu0 0.0
    %1294 = vmatprep.subr.mxu0 0.0
    %1295 = vmatpush1.msra.mxu0 0.0
    %1296 = vmatprep.subr.mxu0 0.0
    %1297 = vmatpush1.msra.mxu0 0.0
    %1298 = vmatprep.subr.mxu0 0.0
    %1299 = vmatpush1.msra.mxu0 0.0
    %1300 = vmatprep.subr.mxu0 0.0
    %1301 = vmatpush1.msra.mxu0 0.0
    %1302 = vmatprep.mubr.f32.mxu0 0.0
    %1303 = vmatmul.mubr.f32.gmra.mrb[0].mxu0 %v1236
    %v1304 = vpop.f32.mrb[0].mxu0
    %v1305 = vadd.f32 0.0, %v1304
    %v1306 = vpop.f32.mrb[0].mxu0
    %1307 = vdwg.mxu0
    %v1309 = vrot.slane %v1305, 2
    %v1311 = vadd.f32 %v906, %v1309
    %v1312 = vadd.f32 %v1311, %v990
    %v1313 = vxor.u32 %v1312, 2147483648
    %v1314 = vmul.f32 %v1313, 1.442695
    %v1315 = vpow.pop %v1314
    %v1316 = vadd.f32 %v1315, 1.0
    %v1317 = vrcp.pop %v1316
    %v1318 = vmul.f32 1.0, %v1317
    %v1319 = vtanh.pop %v1312
    %v1321 = vrot.slane %v1225, 6
    %v1323 = vmul.f32 %v1318, %v1321
    %1325 = vrot.lane.b32.xlu0 %v1319, 64
    %v1326 = vpop.permute.xlu0 %1325
    %v1328 = vmul.f32 %v1318, %v1326
    %1330 = vrot.lane.b32.xlu0 %v1328, 32
    %v1331 = vpop.permute.xlu0 %1330
    %v1333 = vadd.f32 %v1323, %v1331
    %v1334 = vtanh.pop %v1333
    %1336 = vrot.lane.b32.xlu0 %v1334, 64
    %v1337 = vpop.permute.xlu0 %1336
    %v1339 = vmul.f32 %v1318, %v1337
    %v1340 = vld [vmem:[%s11] sm:$0xff]
    %v1341 = vld [vmem:[%s11 + $0x8] sm:$0xff]
    %v1342 = vld [vmem:[%s11 + $0x10] sm:$0xff]
    %v1343 = vld [vmem:[%s11 + $0x18] sm:$0xff]
    %1344 = vmatprep.subr.mxu0 0.0
    %1345 = vmatpush1.msra.mxu0 %v1340
    %1346 = vmatprep.subr.mxu0 0.0
    %1347 = vmatpush1.msra.mxu0 %v1341
    %1348 = vmatprep.subr.mxu0 0.0
    %1349 = vmatpush1.msra.mxu0 %v1342
    %1350 = vmatprep.subr.mxu0 0.0
    %1351 = vmatpush1.msra.mxu0 %v1343
    %1352 = vmatprep.subr.mxu0 0.0
    %1353 = vmatpush1.msra.mxu0 0.0
    %1354 = vmatprep.subr.mxu0 0.0
    %1355 = vmatpush1.msra.mxu0 0.0
    %1356 = vmatprep.subr.mxu0 0.0
    %1357 = vmatpush1.msra.mxu0 0.0
    %1358 = vmatprep.subr.mxu0 0.0
    %1359 = vmatpush1.msra.mxu0 0.0
    %1360 = vmatprep.subr.mxu0 0.0
    %1361 = vmatpush1.msra.mxu0 0.0
    %1362 = vmatprep.subr.mxu0 0.0
    %1363 = vmatpush1.msra.mxu0 0.0
    %1364 = vmatprep.subr.mxu0 0.0
    %1365 = vmatpush1.msra.mxu0 0.0
    %1366 = vmatprep.subr.mxu0 0.0
    %1367 = vmatpush1.msra.mxu0 0.0
    %1368 = vmatprep.subr.mxu0 0.0
    %1369 = vmatpush1.msra.mxu0 0.0
    %1370 = vmatprep.subr.mxu0 0.0
    %1371 = vmatpush1.msra.mxu0 0.0
    %1372 = vmatprep.subr.mxu0 0.0
    %1373 = vmatpush1.msra.mxu0 0.0
    %1374 = vmatprep.subr.mxu0 0.0
    %1375 = vmatpush1.msra.mxu0 0.0
    %1376 = vmatprep.subr.mxu0 0.0
    %1377 = vmatpush1.msra.mxu0 0.0
    %1378 = vmatprep.subr.mxu0 0.0
    %1379 = vmatpush1.msra.mxu0 0.0
    %1380 = vmatprep.subr.mxu0 0.0
    %1381 = vmatpush1.msra.mxu0 0.0
    %1382 = vmatprep.subr.mxu0 0.0
    %1383 = vmatpush1.msra.mxu0 0.0
    %1384 = vmatprep.subr.mxu0 0.0
    %1385 = vmatpush1.msra.mxu0 0.0
    %1386 = vmatprep.subr.mxu0 0.0
    %1387 = vmatpush1.msra.mxu0 0.0
    %1388 = vmatprep.subr.mxu0 0.0
    %1389 = vmatpush1.msra.mxu0 0.0
    %1390 = vmatprep.subr.mxu0 0.0
    %1391 = vmatpush1.msra.mxu0 0.0
    %1392 = vmatprep.subr.mxu0 0.0
    %1393 = vmatpush1.msra.mxu0 0.0
    %1394 = vmatprep.subr.mxu0 0.0
    %1395 = vmatpush1.msra.mxu0 0.0
    %1396 = vmatprep.subr.mxu0 0.0
    %1397 = vmatpush1.msra.mxu0 0.0
    %1398 = vmatprep.subr.mxu0 0.0
    %1399 = vmatpush1.msra.mxu0 0.0
    %1400 = vmatprep.subr.mxu0 0.0
    %1401 = vmatpush1.msra.mxu0 0.0
    %1402 = vmatprep.subr.mxu0 0.0
    %1403 = vmatpush1.msra.mxu0 0.0
    %1404 = vmatprep.subr.mxu0 0.0
    %1405 = vmatpush1.msra.mxu0 0.0
    %1406 = vmatprep.subr.mxu0 0.0
    %1407 = vmatpush1.msra.mxu0 0.0
    %1408 = vmatprep.mubr.f32.mxu0 0.0
    %1409 = vmatmul.mubr.f32.gmra.mrb[0].mxu0 %v166
    %v1410 = vpop.f32.mrb[0].mxu0
    %v1411 = vadd.f32 0.0, %v1410
    %v1412 = vpop.f32.mrb[0].mxu0
    %1413 = vdwg.mxu0
    %v1415 = vrot.slane %v1411, 2
    %v1417 = vadd.f32 %v908, %v1415
    %v1418 = vld [vmem:[%s12] sm:$0x1]
    %v1420 = vlaneseq
    %v1421 = vshrl.u32 %v1420, 7
    %v1422 = vsub.s32 0, %v1421
    %v1423 = vrot.slane %v1418, %v1422
    %v1425 = vadd.f32 %v1417, %v1423
    %v1426 = vxor.u32 %v1425, 2147483648
    %v1427 = vmul.f32 %v1426, 1.442695
    %v1428 = vpow.pop %v1427
    %v1429 = vadd.f32 %v1428, 1.0
    %v1430 = vrcp.pop %v1429
    %v1431 = vmul.f32 1.0, %v1430
    %v1432 = vtanh.pop %v1425
    %v1433 = vmul.f32 %v1431, 0.0
    %1435 = vrot.lane.b32.xlu0 %v1432, 64
    %v1436 = vpop.permute.xlu0 %1435
    %v1438 = vmul.f32 %v1431, %v1436
    %1440 = vrot.lane.b32.xlu0 %v1438, 32
    %v1441 = vpop.permute.xlu0 %1440
    %v1443 = vadd.f32 %v1433, %v1441
    %v1444 = vtanh.pop %v1443
    %1446 = vrot.lane.b32.xlu0 %v1444, 64
    %v1447 = vpop.permute.xlu0 %1446
    %v1449 = vmul.f32 %v1431, %v1447
    %v1450 = vld [vmem:[%s13] sm:$0xff]
    %v1451 = vld [vmem:[%s13 + $0x8] sm:$0xff]
    %v1452 = vld [vmem:[%s13 + $0x10] sm:$0xff]
    %v1453 = vld [vmem:[%s13 + $0x18] sm:$0xff]
    %v1454 = vld [vmem:[%s13 + $0x20] sm:$0xff]
    %v1455 = vld [vmem:[%s13 + $0x28] sm:$0xff]
    %v1456 = vld [vmem:[%s13 + $0x30] sm:$0xff]
    %v1457 = vld [vmem:[%s13 + $0x38] sm:$0xff]
    %v1459 = vrot.slane %v1449, 6
    %1460 = vrot.lane.b32.xlu0 %v1459, 32
    %v1461 = vpop.permute.xlu0 %1460
    %v1462 = vsel %vm70, %v1461, 0
    %1464 = vmatprep.subr.mxu0 0.0
    %1465 = vmatpush1.msra.mxu0 %v1454
    %1466 = vmatprep.subr.mxu0 0.0
    %1467 = vmatpush1.msra.mxu0 %v1455
    %1468 = vmatprep.subr.mxu0 0.0
    %1469 = vmatpush1.msra.mxu0 %v1456
    %1470 = vmatprep.subr.mxu0 0.0
    %1471 = vmatpush1.msra.mxu0 %v1457
    %1472 = vmatprep.subr.mxu0 0.0
    %1473 = vmatpush1.msra.mxu0 0.0
    %1474 = vmatprep.subr.mxu0 0.0
    %1475 = vmatpush1.msra.mxu0 0.0
    %1476 = vmatprep.subr.mxu0 0.0
    %1477 = vmatpush1.msra.mxu0 0.0
    %1478 = vmatprep.subr.mxu0 0.0
    %1479 = vmatpush1.msra.mxu0 0.0
    %1480 = vmatprep.subr.mxu0 0.0
    %1481 = vmatpush1.msra.mxu0 0.0
    %1482 = vmatprep.subr.mxu0 0.0
    %1483 = vmatpush1.msra.mxu0 0.0
    %1484 = vmatprep.subr.mxu0 0.0
    %1485 = vmatpush1.msra.mxu0 0.0
    %1486 = vmatprep.subr.mxu0 0.0
    %1487 = vmatpush1.msra.mxu0 0.0
    %1488 = vmatprep.subr.mxu0 0.0
    %1489 = vmatpush1.msra.mxu0 0.0
    %1490 = vmatprep.subr.mxu0 0.0
    %1491 = vmatpush1.msra.mxu0 0.0
    %1492 = vmatprep.subr.mxu0 0.0
    %1493 = vmatpush1.msra.mxu0 0.0
    %1494 = vmatprep.subr.mxu0 0.0
    %1495 = vmatpush1.msra.mxu0 0.0
    %1496 = vmatprep.subr.mxu0 0.0
    %1497 = vmatpush1.msra.mxu0 0.0
    %1498 = vmatprep.subr.mxu0 0.0
    %1499 = vmatpush1.msra.mxu0 0.0
    %1500 = vmatprep.subr.mxu0 0.0
    %1501 = vmatpush1.msra.mxu0 0.0
    %1502 = vmatprep.subr.mxu0 0.0
    %1503 = vmatpush1.msra.mxu0 0.0
    %1504 = vmatprep.subr.mxu0 0.0
    %1505 = vmatpush1.msra.mxu0 0.0
    %1506 = vmatprep.subr.mxu0 0.0
    %1507 = vmatpush1.msra.mxu0 0.0
    %1508 = vmatprep.subr.mxu0 0.0
    %1509 = vmatpush1.msra.mxu0 0.0
    %1510 = vmatprep.subr.mxu0 0.0
    %1511 = vmatpush1.msra.mxu0 0.0
    %1512 = vmatprep.subr.mxu0 0.0
    %1513 = vmatpush1.msra.mxu0 0.0
    %1514 = vmatprep.subr.mxu0 0.0
    %1515 = vmatpush1.msra.mxu0 0.0
    %1516 = vmatprep.subr.mxu0 0.0
    %1517 = vmatpush1.msra.mxu0 0.0
    %1518 = vmatprep.subr.mxu0 0.0
    %1519 = vmatpush1.msra.mxu0 0.0
    %1520 = vmatprep.subr.mxu0 0.0
    %1521 = vmatpush1.msra.mxu0 0.0
    %1522 = vmatprep.subr.mxu0 0.0
    %1523 = vmatpush1.msra.mxu0 0.0
    %1524 = vmatprep.subr.mxu0 0.0
    %1525 = vmatpush1.msra.mxu0 0.0
    %1526 = vmatprep.subr.mxu0 0.0
    %1527 = vmatpush1.msra.mxu0 0.0
    %1528 = vmatprep.mubr.f32.mxu0 0.0
    %1529 = vmatmul.mubr.f32.gmra.mrb[0].mxu0 %v1462
    %v1530 = vpop.f32.mrb[0].mxu0
    %v1531 = vadd.f32 0.0, %v1530
    %v1532 = vpop.f32.mrb[0].mxu0
    %1533 = vdwg.mxu0
    %v1535 = vrot.slane %v1339, 6
    %1536 = vrot.lane.b32.xlu0 %v1535, 32
    %v1537 = vpop.permute.xlu0 %1536
    %v1538 = vsel %vm70, %v1537, 0
    %1540 = vmatprep.subr.mxu0 0.0
    %1541 = vmatpush1.msra.mxu0 %v1450
    %1542 = vmatprep.subr.mxu0 0.0
    %1543 = vmatpush1.msra.mxu0 %v1451
    %1544 = vmatprep.subr.mxu0 0.0
    %1545 = vmatpush1.msra.mxu0 %v1452
    %1546 = vmatprep.subr.mxu0 0.0
    %1547 = vmatpush1.msra.mxu0 %v1453
    %1548 = vmatprep.subr.mxu0 0.0
    %1549 = vmatpush1.msra.mxu0 0.0
    %1550 = vmatprep.subr.mxu0 0.0
    %1551 = vmatpush1.msra.mxu0 0.0
    %1552 = vmatprep.subr.mxu0 0.0
    %1553 = vmatpush1.msra.mxu0 0.0
    %1554 = vmatprep.subr.mxu0 0.0
    %1555 = vmatpush1.msra.mxu0 0.0
    %1556 = vmatprep.subr.mxu0 0.0
    %1557 = vmatpush1.msra.mxu0 0.0
    %1558 = vmatprep.subr.mxu0 0.0
    %1559 = vmatpush1.msra.mxu0 0.0
    %1560 = vmatprep.subr.mxu0 0.0
    %1561 = vmatpush1.msra.mxu0 0.0
    %1562 = vmatprep.subr.mxu0 0.0
    %1563 = vmatpush1.msra.mxu0 0.0
    %1564 = vmatprep.subr.mxu0 0.0
    %1565 = vmatpush1.msra.mxu0 0.0
    %1566 = vmatprep.subr.mxu0 0.0
    %1567 = vmatpush1.msra.mxu0 0.0
    %1568 = vmatprep.subr.mxu0 0.0
    %1569 = vmatpush1.msra.mxu0 0.0
    %1570 = vmatprep.subr.mxu0 0.0
    %1571 = vmatpush1.msra.mxu0 0.0
    %1572 = vmatprep.subr.mxu0 0.0
    %1573 = vmatpush1.msra.mxu0 0.0
    %1574 = vmatprep.subr.mxu0 0.0
    %1575 = vmatpush1.msra.mxu0 0.0
    %1576 = vmatprep.subr.mxu0 0.0
    %1577 = vmatpush1.msra.mxu0 0.0
    %1578 = vmatprep.subr.mxu0 0.0
    %1579 = vmatpush1.msra.mxu0 0.0
    %1580 = vmatprep.subr.mxu0 0.0
    %1581 = vmatpush1.msra.mxu0 0.0
    %1582 = vmatprep.subr.mxu0 0.0
    %1583 = vmatpush1.msra.mxu0 0.0
    %1584 = vmatprep.subr.mxu0 0.0
    %1585 = vmatpush1.msra.mxu0 0.0
    %1586 = vmatprep.subr.mxu0 0.0
    %1587 = vmatpush1.msra.mxu0 0.0
    %1588 = vmatprep.subr.mxu0 0.0
    %1589 = vmatpush1.msra.mxu0 0.0
    %1590 = vmatprep.subr.mxu0 0.0
    %1591 = vmatpush1.msra.mxu0 0.0
    %1592 = vmatprep.subr.mxu0 0.0
    %1593 = vmatpush1.msra.mxu0 0.0
    %1594 = vmatprep.subr.mxu0 0.0
    %1595 = vmatpush1.msra.mxu0 0.0
    %1596 = vmatprep.subr.mxu0 0.0
    %1597 = vmatpush1.msra.mxu0 0.0
    %1598 = vmatprep.subr.mxu0 0.0
    %1599 = vmatpush1.msra.mxu0 0.0
    %1600 = vmatprep.subr.mxu0 0.0
    %1601 = vmatpush1.msra.mxu0 0.0
    %1602 = vmatprep.subr.mxu0 0.0
    %1603 = vmatpush1.msra.mxu0 0.0
    %1604 = vmatprep.mubr.f32.mxu0 0.0
    %1605 = vmatmul.mubr.f32.gmra.mrb[0].mxu0 %v1538
    %v1606 = vpop.f32.mrb[0].mxu0
    %v1607 = vadd.f32 %v1531, %v1606
    %v1608 = vpop.f32.mrb[0].mxu0
    %1609 = vdwg.mxu0
    %v1610 = vld [vmem:[%s14] sm:$0x1]
    %v1612 = vlaneseq
    %v1613 = vshrl.u32 %v1612, 7
    %v1614 = vsub.s32 0, %v1613
    %v1615 = vrot.slane %v1610, %v1614
    %v1617 = vadd.f32 %v1607, %v1615
    %v1618 = vld [vmem:[%s15] sm:$0xff]
    %v1619 = vld [vmem:[%s15 + $0x8] sm:$0xff]
    %v1620 = vld [vmem:[%s15 + $0x10] sm:$0xff]
    %v1621 = vld [vmem:[%s15 + $0x18] sm:$0xff]
    %v1622 = vld [vmem:[%s16] sm:$0x1]
    %v1624 = vlaneseq
    %v1625 = vshrl.u32 %v1624, 7
    %v1626 = vsub.s32 0, %v1625
    %v1627 = vrot.slane %v1622, %v1626
    %v1630 = vsel %vm70, %v1617, 0
    %1632 = vmatprep.subr.mxu0 0.0
    %1633 = vmatpush1.msra.mxu0 %v1618
    %1634 = vmatprep.subr.mxu0 0.0
    %1635 = vmatpush1.msra.mxu0 %v1619
    %1636 = vmatprep.subr.mxu0 0.0
    %1637 = vmatpush1.msra.mxu0 %v1620
    %1638 = vmatprep.subr.mxu0 0.0
    %1639 = vmatpush1.msra.mxu0 %v1621
    %1640 = vmatprep.subr.mxu0 0.0
    %1641 = vmatpush1.msra.mxu0 0.0
    %1642 = vmatprep.subr.mxu0 0.0
    %1643 = vmatpush1.msra.mxu0 0.0
    %1644 = vmatprep.subr.mxu0 0.0
    %1645 = vmatpush1.msra.mxu0 0.0
    %1646 = vmatprep.subr.mxu0 0.0
    %1647 = vmatpush1.msra.mxu0 0.0
    %1648 = vmatprep.subr.mxu0 0.0
    %1649 = vmatpush1.msra.mxu0 0.0
    %1650 = vmatprep.subr.mxu0 0.0
    %1651 = vmatpush1.msra.mxu0 0.0
    %1652 = vmatprep.subr.mxu0 0.0
    %1653 = vmatpush1.msra.mxu0 0.0
    %1654 = vmatprep.subr.mxu0 0.0
    %1655 = vmatpush1.msra.mxu0 0.0
    %1656 = vmatprep.subr.mxu0 0.0
    %1657 = vmatpush1.msra.mxu0 0.0
    %1658 = vmatprep.subr.mxu0 0.0
    %1659 = vmatpush1.msra.mxu0 0.0
    %1660 = vmatprep.subr.mxu0 0.0
    %1661 = vmatpush1.msra.mxu0 0.0
    %1662 = vmatprep.subr.mxu0 0.0
    %1663 = vmatpush1.msra.mxu0 0.0
    %1664 = vmatprep.subr.mxu0 0.0
    %1665 = vmatpush1.msra.mxu0 0.0
    %1666 = vmatprep.subr.mxu0 0.0
    %1667 = vmatpush1.msra.mxu0 0.0
    %1668 = vmatprep.subr.mxu0 0.0
    %1669 = vmatpush1.msra.mxu0 0.0
    %1670 = vmatprep.subr.mxu0 0.0
    %1671 = vmatpush1.msra.mxu0 0.0
    %1672 = vmatprep.subr.mxu0 0.0
    %1673 = vmatpush1.msra.mxu0 0.0
    %1674 = vmatprep.subr.mxu0 0.0
    %1675 = vmatpush1.msra.mxu0 0.0
    %1676 = vmatprep.subr.mxu0 0.0
    %1677 = vmatpush1.msra.mxu0 0.0
    %1678 = vmatprep.subr.mxu0 0.0
    %1679 = vmatpush1.msra.mxu0 0.0
    %1680 = vmatprep.subr.mxu0 0.0
    %1681 = vmatpush1.msra.mxu0 0.0
    %1682 = vmatprep.subr.mxu0 0.0
    %1683 = vmatpush1.msra.mxu0 0.0
    %1684 = vmatprep.subr.mxu0 0.0
    %1685 = vmatpush1.msra.mxu0 0.0
    %1686 = vmatprep.subr.mxu0 0.0
    %1687 = vmatpush1.msra.mxu0 0.0
    %1688 = vmatprep.subr.mxu0 0.0
    %1689 = vmatpush1.msra.mxu0 0.0
    %1690 = vmatprep.subr.mxu0 0.0
    %1691 = vmatpush1.msra.mxu0 0.0
    %1692 = vmatprep.subr.mxu0 0.0
    %1693 = vmatpush1.msra.mxu0 0.0
    %1694 = vmatprep.subr.mxu0 0.0
    %1695 = vmatpush1.msra.mxu0 0.0
    %1696 = vmatprep.mubr.f32.mxu0 0.0
    %1697 = vmatmul.mubr.f32.gmra.mrb[0].mxu0 %v1630
    %v1698 = vpop.f32.mrb[0].mxu0
    %v1699 = vadd.f32 %v1627, %v1698
    %v1700 = vpop.f32.mrb[0].mxu0
    %1701 = vdwg.mxu0
    %vm1702 = vcmask 33792
    %1703 = vst.msk [vmem:[#allocation2] sm:$0x3] %vm1702, %v1699
    // Predicated region
    $region70: #{group_activity_forward.3} parent=1 // pred_check
      _
    $region71: #{group_activity_forward.3} parent=1 // pred_check_branch
      %1705 = sbr.rel (0) target = $region73
    $region72: #{group_activity_forward.3} parent=1 // pred_region
      %s1707 = ssub.s32 32, 32
      %1708 = vsyncadd [#allocation3], %s1707
      %s1710 = sshll.u32 [#allocation2], 4
      %s1711 = int_to_ptr.vmem [resolvable:$true] %s1710
      %1713 = dma.vmem_to_hbm [thread:$0]  %s1711, 32, %s17, [#allocation3]
    $region73: #{group_activity_forward.3} parent=1 // pred_fallthru
      _
    // Predicated region
    $region74: #{group_activity_forward.3} parent=1 // pred_check
      _
    $region75: #{group_activity_forward.3} parent=1 // pred_check_branch
      %1715 = sbr.rel (0) target = $region77
    $region76: #{group_activity_forward.3} parent=1 // pred_region
      %1716 = dma.done [#allocation3], 32
    $region77: #{group_activity_forward.3} parent=1 // pred_fallthru
      _
    %1717 = vsyncpa [#allocation3], 1

// kernel: group_activity_forward.2
$region0: #{group_activity_forward.2}
  #allocation0 [shape = 'u32[]', space=smem, size = 0x4, offset = 0x4, fixed_abs, tag = 'smem constant byte address 0x4 - core index']
  #allocation1 [shape = 'u32[144,128]{1,0:T(1,128)}', space=vmem, size = 0x12000, scoped, tag = 'internal scratch']
  %s0 = inlined_call_operand.vmem [shape: bf16[6144,27], index: 0, kind: input, shape index: {}]
  %s1 = inlined_call_operand.vmem [shape: bf16[27,8], index: 1, kind: input, shape index: {}]
  %s2 = inlined_call_operand.vmem [shape: f32[1,8], index: 2, kind: input, shape index: {}]
  %s3 = inlined_call_operand.vmem [shape: f32[8,32], index: 3, kind: input, shape index: {}]
  %s4 = inlined_call_operand.vmem [shape: f32[1,32], index: 4, kind: input, shape index: {}]
  %s5 = inlined_call_operand.vmem [shape: f32[24,32], index: 5, kind: output, shape index: {}]
  %s6 = sld [smem:[#allocation0]]
  $region30: #{group_activity_forward.2} parent=0
    _
  %s8 = ssub.s32 1, %s6
  %s9 = scalar_select 0, %s8, %s6
  // Predicated region
  $region2: #{group_activity_forward.2} parent=0 // pred_check
    _
  $region3: #{group_activity_forward.2} parent=0 // pred_check_branch
    %11 = sbr.rel (0) target = $region5
  $region4: #{group_activity_forward.2} parent=0 // pred_region
    _
  $region5: #{group_activity_forward.2} parent=0 // pred_fallthru
    _
  // Predicated region
  $region6: #{group_activity_forward.2} parent=0 // pred_check
    _
  $region7: #{group_activity_forward.2} parent=0 // pred_check_branch
    %13 = sbr.rel (0) target = $region9
  $region8: #{group_activity_forward.2} parent=0 // pred_region
    _
  $region9: #{group_activity_forward.2} parent=0 // pred_fallthru
    _
  // Predicated region
  $region10: #{group_activity_forward.2} parent=0 // pred_check
    _
  $region11: #{group_activity_forward.2} parent=0 // pred_check_branch
    %15 = sbr.rel (0) target = $region13
  $region12: #{group_activity_forward.2} parent=0 // pred_region
    _
  $region13: #{group_activity_forward.2} parent=0 // pred_fallthru
    _
  // Predicated region
  $region14: #{group_activity_forward.2} parent=0 // pred_check
    _
  $region15: #{group_activity_forward.2} parent=0 // pred_check_branch
    %17 = sbr.rel (0) target = $region17
  $region16: #{group_activity_forward.2} parent=0 // pred_region
    _
  $region17: #{group_activity_forward.2} parent=0 // pred_fallthru
    _
  // Predicated region
  $region18: #{group_activity_forward.2} parent=0 // pred_check
    _
  $region19: #{group_activity_forward.2} parent=0 // pred_check_branch
    %19 = sbr.rel (0) target = $region21
  $region20: #{group_activity_forward.2} parent=0 // pred_region
    _
  $region21: #{group_activity_forward.2} parent=0 // pred_fallthru
    _
  %v21 = vld [vmem:[%s0] sm:$0xf]
  %v22 = vld [vmem:[%s0 + $0x4] sm:$0xf]
  %v23 = vld [vmem:[%s0 + $0x8] sm:$0xf]
  %v24 = vld [vmem:[%s0 + $0xc] sm:$0xf]
  %v25 = vld [vmem:[%s0 + $0x10] sm:$0xf]
  %v26 = vld [vmem:[%s0 + $0x14] sm:$0xf]
  %v27 = vld [vmem:[%s0 + $0x18] sm:$0xf]
  %v28 = vld [vmem:[%s0 + $0x1c] sm:$0xf]
  %v29 = vld [vmem:[%s0 + $0x20] sm:$0xf]
  %v30 = vld [vmem:[%s0 + $0x24] sm:$0xf]
  %v31 = vld [vmem:[%s0 + $0x28] sm:$0xf]
  %v32 = vld [vmem:[%s0 + $0x2c] sm:$0xf]
  %v33 = vld [vmem:[%s0 + $0x30] sm:$0xf]
  %v34 = vld [vmem:[%s0 + $0x34] sm:$0xf]
  %v35 = vld [vmem:[%s0 + $0x38] sm:$0xf]
  %v36 = vld [vmem:[%s0 + $0x3c] sm:$0xf]
  %v37 = vld [vmem:[%s0 + $0x40] sm:$0xf]
  %v38 = vld [vmem:[%s0 + $0x44] sm:$0xf]
  %v39 = vld [vmem:[%s0 + $0x48] sm:$0xf]
  %v40 = vld [vmem:[%s0 + $0x4c] sm:$0xf]
  %v41 = vld [vmem:[%s0 + $0x50] sm:$0xf]
  %v42 = vld [vmem:[%s0 + $0x54] sm:$0xf]
  %v43 = vld [vmem:[%s0 + $0x58] sm:$0xf]
  %v44 = vld [vmem:[%s0 + $0x5c] sm:$0xf]
  %v45 = vld [vmem:[%s0 + $0x60] sm:$0xf]
  %v46 = vld [vmem:[%s0 + $0x64] sm:$0xf]
  %v47 = vld [vmem:[%s0 + $0x68] sm:$0xf]
  %v48 = vld [vmem:[%s0 + $0x6c] sm:$0xf]
  %v49 = vld [vmem:[%s0 + $0x70] sm:$0xf]
  %v50 = vld [vmem:[%s0 + $0x74] sm:$0xf]
  %v51 = vld [vmem:[%s0 + $0x78] sm:$0xf]
  %v52 = vld [vmem:[%s0 + $0x7c] sm:$0xf]
  %v53 = vld [vmem:[%s0 + $0x80] sm:$0xf]
  %v54 = vld [vmem:[%s0 + $0x84] sm:$0xf]
  %v55 = vld [vmem:[%s0 + $0x88] sm:$0xf]
  %v56 = vld [vmem:[%s0 + $0x8c] sm:$0xf]
  %v57 = vld [vmem:[%s0 + $0x90] sm:$0xf]
  %v58 = vld [vmem:[%s0 + $0x94] sm:$0xf]
  %v59 = vld [vmem:[%s0 + $0x98] sm:$0xf]
  %v60 = vld [vmem:[%s0 + $0x9c] sm:$0xf]
  %v61 = vld [vmem:[%s0 + $0xa0] sm:$0xf]
  %v62 = vld [vmem:[%s0 + $0xa4] sm:$0xf]
  %v63 = vld [vmem:[%s0 + $0xa8] sm:$0xf]
  %v64 = vld [vmem:[%s0 + $0xac] sm:$0xf]
  %v65 = vld [vmem:[%s0 + $0xb0] sm:$0xf]
  %v66 = vld [vmem:[%s0 + $0xb4] sm:$0xf]
  %v67 = vld [vmem:[%s0 + $0xb8] sm:$0xf]
  %v68 = vld [vmem:[%s0 + $0xbc] sm:$0xf]
  %v69 = vld [vmem:[%s0 + $0xc0] sm:$0xf]
  %v70 = vld [vmem:[%s0 + $0xc4] sm:$0xf]
  %v71 = vld [vmem:[%s0 + $0xc8] sm:$0xf]
  %v72 = vld [vmem:[%s0 + $0xcc] sm:$0xf]
  %v73 = vld [vmem:[%s0 + $0xd0] sm:$0xf]
  %v74 = vld [vmem:[%s0 + $0xd4] sm:$0xf]
  %v75 = vld [vmem:[%s0 + $0xd8] sm:$0xf]
  %v76 = vld [vmem:[%s0 + $0xdc] sm:$0xf]
  %v77 = vld [vmem:[%s0 + $0xe0] sm:$0xf]
  %v78 = vld [vmem:[%s0 + $0xe4] sm:$0xf]
  %v79 = vld [vmem:[%s0 + $0xe8] sm:$0xf]
  %v80 = vld [vmem:[%s0 + $0xec] sm:$0xf]
  %v81 = vld [vmem:[%s0 + $0xf0] sm:$0xf]
  %v82 = vld [vmem:[%s0 + $0xf4] sm:$0xf]
  %v83 = vld [vmem:[%s0 + $0xf8] sm:$0xf]
  %v84 = vld [vmem:[%s0 + $0xfc] sm:$0xf]
  %v85 = vld [vmem:[%s0 + $0x100] sm:$0xf]
  %v86 = vld [vmem:[%s0 + $0x104] sm:$0xf]
  %v87 = vld [vmem:[%s0 + $0x108] sm:$0xf]
  %v88 = vld [vmem:[%s0 + $0x10c] sm:$0xf]
  %v89 = vld [vmem:[%s0 + $0x110] sm:$0xf]
  %v90 = vld [vmem:[%s0 + $0x114] sm:$0xf]
  %v91 = vld [vmem:[%s0 + $0x118] sm:$0xf]
  %v92 = vld [vmem:[%s0 + $0x11c] sm:$0xf]
  %v93 = vld [vmem:[%s0 + $0x120] sm:$0xf]
  %v94 = vld [vmem:[%s0 + $0x124] sm:$0xf]
  %v95 = vld [vmem:[%s0 + $0x128] sm:$0xf]
  %v96 = vld [vmem:[%s0 + $0x12c] sm:$0xf]
  %v97 = vld [vmem:[%s0 + $0x130] sm:$0xf]
  %v98 = vld [vmem:[%s0 + $0x134] sm:$0xf]
  %v99 = vld [vmem:[%s0 + $0x138] sm:$0xf]
  %v100 = vld [vmem:[%s0 + $0x13c] sm:$0xf]
  %v101 = vld [vmem:[%s0 + $0x140] sm:$0xf]
  %v102 = vld [vmem:[%s0 + $0x144] sm:$0xf]
  %v103 = vld [vmem:[%s0 + $0x148] sm:$0xf]
  %v104 = vld [vmem:[%s0 + $0x14c] sm:$0xf]
  %v105 = vld [vmem:[%s0 + $0x150] sm:$0xf]
  %v106 = vld [vmem:[%s0 + $0x154] sm:$0xf]
  %v107 = vld [vmem:[%s0 + $0x158] sm:$0xf]
  %v108 = vld [vmem:[%s0 + $0x15c] sm:$0xf]
  %v109 = vld [vmem:[%s0 + $0x160] sm:$0xf]
  %v110 = vld [vmem:[%s0 + $0x164] sm:$0xf]
  %v111 = vld [vmem:[%s0 + $0x168] sm:$0xf]
  %v112 = vld [vmem:[%s0 + $0x16c] sm:$0xf]
  %v113 = vld [vmem:[%s0 + $0x170] sm:$0xf]
  %v114 = vld [vmem:[%s0 + $0x174] sm:$0xf]
  %v115 = vld [vmem:[%s0 + $0x178] sm:$0xf]
  %v116 = vld [vmem:[%s0 + $0x17c] sm:$0xf]
  %v117 = vld [vmem:[%s0 + $0x180] sm:$0xf]
  %v118 = vld [vmem:[%s0 + $0x184] sm:$0xf]
  %v119 = vld [vmem:[%s0 + $0x188] sm:$0xf]
  %v120 = vld [vmem:[%s0 + $0x18c] sm:$0xf]
  %v121 = vld [vmem:[%s0 + $0x190] sm:$0xf]
  %v122 = vld [vmem:[%s0 + $0x194] sm:$0xf]
  %v123 = vld [vmem:[%s0 + $0x198] sm:$0xf]
  %v124 = vld [vmem:[%s0 + $0x19c] sm:$0xf]
  %v125 = vld [vmem:[%s0 + $0x1a0] sm:$0xf]
  %v126 = vld [vmem:[%s0 + $0x1a4] sm:$0xf]
  %v127 = vld [vmem:[%s0 + $0x1a8] sm:$0xf]
  %v128 = vld [vmem:[%s0 + $0x1ac] sm:$0xf]
  %v129 = vld [vmem:[%s0 + $0x1b0] sm:$0xf]
  %v130 = vld [vmem:[%s0 + $0x1b4] sm:$0xf]
  %v131 = vld [vmem:[%s0 + $0x1b8] sm:$0xf]
  %v132 = vld [vmem:[%s0 + $0x1bc] sm:$0xf]
  %v133 = vld [vmem:[%s0 + $0x1c0] sm:$0xf]
  %v134 = vld [vmem:[%s0 + $0x1c4] sm:$0xf]
  %v135 = vld [vmem:[%s0 + $0x1c8] sm:$0xf]
  %v136 = vld [vmem:[%s0 + $0x1cc] sm:$0xf]
  %v137 = vld [vmem:[%s0 + $0x1d0] sm:$0xf]
  %v138 = vld [vmem:[%s0 + $0x1d4] sm:$0xf]
  %v139 = vld [vmem:[%s0 + $0x1d8] sm:$0xf]
  %v140 = vld [vmem:[%s0 + $0x1dc] sm:$0xf]
  %v141 = vld [vmem:[%s0 + $0x1e0] sm:$0xf]
  %v142 = vld [vmem:[%s0 + $0x1e4] sm:$0xf]
  %v143 = vld [vmem:[%s0 + $0x1e8] sm:$0xf]
  %v144 = vld [vmem:[%s0 + $0x1ec] sm:$0xf]
  %v145 = vld [vmem:[%s0 + $0x1f0] sm:$0xf]
  %v146 = vld [vmem:[%s0 + $0x1f4] sm:$0xf]
  %v147 = vld [vmem:[%s0 + $0x1f8] sm:$0xf]
  %v148 = vld [vmem:[%s0 + $0x1fc] sm:$0xf]
  %v149 = vld [vmem:[%s0 + $0x200] sm:$0xf]
  %v150 = vld [vmem:[%s0 + $0x204] sm:$0xf]
  %v151 = vld [vmem:[%s0 + $0x208] sm:$0xf]
  %v152 = vld [vmem:[%s0 + $0x20c] sm:$0xf]
  %v153 = vld [vmem:[%s0 + $0x210] sm:$0xf]
  %v154 = vld [vmem:[%s0 + $0x214] sm:$0xf]
  %v155 = vld [vmem:[%s0 + $0x218] sm:$0xf]
  %v156 = vld [vmem:[%s0 + $0x21c] sm:$0xf]
  %v157 = vld [vmem:[%s0 + $0x220] sm:$0xf]
  %v158 = vld [vmem:[%s0 + $0x224] sm:$0xf]
  %v159 = vld [vmem:[%s0 + $0x228] sm:$0xf]
  %v160 = vld [vmem:[%s0 + $0x22c] sm:$0xf]
  %v161 = vld [vmem:[%s0 + $0x230] sm:$0xf]
  %v162 = vld [vmem:[%s0 + $0x234] sm:$0xf]
  %v163 = vld [vmem:[%s0 + $0x238] sm:$0xf]
  %v164 = vld [vmem:[%s0 + $0x23c] sm:$0xf]
  %v165 = vld [vmem:[%s0 + $0x240] sm:$0xf]
  %v166 = vld [vmem:[%s0 + $0x244] sm:$0xf]
  %v167 = vld [vmem:[%s0 + $0x248] sm:$0xf]
  %v168 = vld [vmem:[%s0 + $0x24c] sm:$0xf]
  %v169 = vld [vmem:[%s0 + $0x250] sm:$0xf]
  %v170 = vld [vmem:[%s0 + $0x254] sm:$0xf]
  %v171 = vld [vmem:[%s0 + $0x258] sm:$0xf]
  %v172 = vld [vmem:[%s0 + $0x25c] sm:$0xf]
  %v173 = vld [vmem:[%s0 + $0x260] sm:$0xf]
  %v174 = vld [vmem:[%s0 + $0x264] sm:$0xf]
  %v175 = vld [vmem:[%s0 + $0x268] sm:$0xf]
  %v176 = vld [vmem:[%s0 + $0x26c] sm:$0xf]
  %v177 = vld [vmem:[%s0 + $0x270] sm:$0xf]
  %v178 = vld [vmem:[%s0 + $0x274] sm:$0xf]
  %v179 = vld [vmem:[%s0 + $0x278] sm:$0xf]
  %v180 = vld [vmem:[%s0 + $0x27c] sm:$0xf]
  %v181 = vld [vmem:[%s0 + $0x280] sm:$0xf]
  %v182 = vld [vmem:[%s0 + $0x284] sm:$0xf]
  %v183 = vld [vmem:[%s0 + $0x288] sm:$0xf]
  %v184 = vld [vmem:[%s0 + $0x28c] sm:$0xf]
  %v185 = vld [vmem:[%s0 + $0x290] sm:$0xf]
  %v186 = vld [vmem:[%s0 + $0x294] sm:$0xf]
  %v187 = vld [vmem:[%s0 + $0x298] sm:$0xf]
  %v188 = vld [vmem:[%s0 + $0x29c] sm:$0xf]
  %v189 = vld [vmem:[%s0 + $0x2a0] sm:$0xf]
  %v190 = vld [vmem:[%s0 + $0x2a4] sm:$0xf]
  %v191 = vld [vmem:[%s0 + $0x2a8] sm:$0xf]
  %v192 = vld [vmem:[%s0 + $0x2ac] sm:$0xf]
  %v193 = vld [vmem:[%s0 + $0x2b0] sm:$0xf]
  %v194 = vld [vmem:[%s0 + $0x2b4] sm:$0xf]
  %v195 = vld [vmem:[%s0 + $0x2b8] sm:$0xf]
  %v196 = vld [vmem:[%s0 + $0x2bc] sm:$0xf]
  %v197 = vld [vmem:[%s0 + $0x2c0] sm:$0xf]
  %v198 = vld [vmem:[%s0 + $0x2c4] sm:$0xf]
  %v199 = vld [vmem:[%s0 + $0x2c8] sm:$0xf]
  %v200 = vld [vmem:[%s0 + $0x2cc] sm:$0xf]
  %v201 = vld [vmem:[%s0 + $0x2d0] sm:$0xf]
  %v202 = vld [vmem:[%s0 + $0x2d4] sm:$0xf]
  %v203 = vld [vmem:[%s0 + $0x2d8] sm:$0xf]
  %v204 = vld [vmem:[%s0 + $0x2dc] sm:$0xf]
  %v205 = vld [vmem:[%s0 + $0x2e0] sm:$0xf]
  %v206 = vld [vmem:[%s0 + $0x2e4] sm:$0xf]
  %v207 = vld [vmem:[%s0 + $0x2e8] sm:$0xf]
  %v208 = vld [vmem:[%s0 + $0x2ec] sm:$0xf]
  %v209 = vld [vmem:[%s0 + $0x2f0] sm:$0xf]
  %v210 = vld [vmem:[%s0 + $0x2f4] sm:$0xf]
  %v211 = vld [vmem:[%s0 + $0x2f8] sm:$0xf]
  %v212 = vld [vmem:[%s0 + $0x2fc] sm:$0xf]
  %v213 = vld [vmem:[%s0 + $0x300] sm:$0xf]
  %v214 = vld [vmem:[%s0 + $0x304] sm:$0xf]
  %v215 = vld [vmem:[%s0 + $0x308] sm:$0xf]
  %v216 = vld [vmem:[%s0 + $0x30c] sm:$0xf]
  %v217 = vld [vmem:[%s0 + $0x310] sm:$0xf]
  %v218 = vld [vmem:[%s0 + $0x314] sm:$0xf]
  %v219 = vld [vmem:[%s0 + $0x318] sm:$0xf]
  %v220 = vld [vmem:[%s0 + $0x31c] sm:$0xf]
  %v221 = vld [vmem:[%s0 + $0x320] sm:$0xf]
  %v222 = vld [vmem:[%s0 + $0x324] sm:$0xf]
  %v223 = vld [vmem:[%s0 + $0x328] sm:$0xf]
  %v224 = vld [vmem:[%s0 + $0x32c] sm:$0xf]
  %v225 = vld [vmem:[%s0 + $0x330] sm:$0xf]
  %v226 = vld [vmem:[%s0 + $0x334] sm:$0xf]
  %v227 = vld [vmem:[%s0 + $0x338] sm:$0xf]
  %v228 = vld [vmem:[%s0 + $0x33c] sm:$0xf]
  %v229 = vld [vmem:[%s0 + $0x340] sm:$0xf]
  %v230 = vld [vmem:[%s0 + $0x344] sm:$0xf]
  %v231 = vld [vmem:[%s0 + $0x348] sm:$0xf]
  %v232 = vld [vmem:[%s0 + $0x34c] sm:$0xf]
  %v233 = vld [vmem:[%s0 + $0x350] sm:$0xf]
  %v234 = vld [vmem:[%s0 + $0x354] sm:$0xf]
  %v235 = vld [vmem:[%s0 + $0x358] sm:$0xf]
  %v236 = vld [vmem:[%s0 + $0x35c] sm:$0xf]
  %v237 = vld [vmem:[%s0 + $0x360] sm:$0xf]
  %v238 = vld [vmem:[%s0 + $0x364] sm:$0xf]
  %v239 = vld [vmem:[%s0 + $0x368] sm:$0xf]
  %v240 = vld [vmem:[%s0 + $0x36c] sm:$0xf]
  %v241 = vld [vmem:[%s0 + $0x370] sm:$0xf]
  %v242 = vld [vmem:[%s0 + $0x374] sm:$0xf]
  %v243 = vld [vmem:[%s0 + $0x378] sm:$0xf]
  %v244 = vld [vmem:[%s0 + $0x37c] sm:$0xf]
  %v245 = vld [vmem:[%s0 + $0x380] sm:$0xf]
  %v246 = vld [vmem:[%s0 + $0x384] sm:$0xf]
  %v247 = vld [vmem:[%s0 + $0x388] sm:$0xf]
  %v248 = vld [vmem:[%s0 + $0x38c] sm:$0xf]
  %v249 = vld [vmem:[%s0 + $0x390] sm:$0xf]
  %v250 = vld [vmem:[%s0 + $0x394] sm:$0xf]
  %v251 = vld [vmem:[%s0 + $0x398] sm:$0xf]
  %v252 = vld [vmem:[%s0 + $0x39c] sm:$0xf]
  %v253 = vld [vmem:[%s0 + $0x3a0] sm:$0xf]
  %v254 = vld [vmem:[%s0 + $0x3a4] sm:$0xf]
  %v255 = vld [vmem:[%s0 + $0x3a8] sm:$0xf]
  %v256 = vld [vmem:[%s0 + $0x3ac] sm:$0xf]
  %v257 = vld [vmem:[%s0 + $0x3b0] sm:$0xf]
  %v258 = vld [vmem:[%s0 + $0x3b4] sm:$0xf]
  %v259 = vld [vmem:[%s0 + $0x3b8] sm:$0xf]
  %v260 = vld [vmem:[%s0 + $0x3bc] sm:$0xf]
  %v261 = vld [vmem:[%s0 + $0x3c0] sm:$0xf]
  %v262 = vld [vmem:[%s0 + $0x3c4] sm:$0xf]
  %v263 = vld [vmem:[%s0 + $0x3c8] sm:$0xf]
  %v264 = vld [vmem:[%s0 + $0x3cc] sm:$0xf]
  %v265 = vld [vmem:[%s0 + $0x3d0] sm:$0xf]
  %v266 = vld [vmem:[%s0 + $0x3d4] sm:$0xf]
  %v267 = vld [vmem:[%s0 + $0x3d8] sm:$0xf]
  %v268 = vld [vmem:[%s0 + $0x3dc] sm:$0xf]
  %v269 = vld [vmem:[%s0 + $0x3e0] sm:$0xf]
  %v270 = vld [vmem:[%s0 + $0x3e4] sm:$0xf]
  %v271 = vld [vmem:[%s0 + $0x3e8] sm:$0xf]
  %v272 = vld [vmem:[%s0 + $0x3ec] sm:$0xf]
  %v273 = vld [vmem:[%s0 + $0x3f0] sm:$0xf]
  %v274 = vld [vmem:[%s0 + $0x3f4] sm:$0xf]
  %v275 = vld [vmem:[%s0 + $0x3f8] sm:$0xf]
  %v276 = vld [vmem:[%s0 + $0x3fc] sm:$0xf]
  %v277 = vld [vmem:[%s0 + $0x400] sm:$0xf]
  %v278 = vld [vmem:[%s0 + $0x404] sm:$0xf]
  %v279 = vld [vmem:[%s0 + $0x408] sm:$0xf]
  %v280 = vld [vmem:[%s0 + $0x40c] sm:$0xf]
  %v281 = vld [vmem:[%s0 + $0x410] sm:$0xf]
  %v282 = vld [vmem:[%s0 + $0x414] sm:$0xf]
  %v283 = vld [vmem:[%s0 + $0x418] sm:$0xf]
  %v284 = vld [vmem:[%s0 + $0x41c] sm:$0xf]
  %v285 = vld [vmem:[%s0 + $0x420] sm:$0xf]
  %v286 = vld [vmem:[%s0 + $0x424] sm:$0xf]
  %v287 = vld [vmem:[%s0 + $0x428] sm:$0xf]
  %v288 = vld [vmem:[%s0 + $0x42c] sm:$0xf]
  %v289 = vld [vmem:[%s0 + $0x430] sm:$0xf]
  %v290 = vld [vmem:[%s0 + $0x434] sm:$0xf]
  %v291 = vld [vmem:[%s0 + $0x438] sm:$0xf]
  %v292 = vld [vmem:[%s0 + $0x43c] sm:$0xf]
  %v293 = vld [vmem:[%s0 + $0x440] sm:$0xf]
  %v294 = vld [vmem:[%s0 + $0x444] sm:$0xf]
  %v295 = vld [vmem:[%s0 + $0x448] sm:$0xf]
  %v296 = vld [vmem:[%s0 + $0x44c] sm:$0xf]
  %v297 = vld [vmem:[%s0 + $0x450] sm:$0xf]
  %v298 = vld [vmem:[%s0 + $0x454] sm:$0xf]
  %v299 = vld [vmem:[%s0 + $0x458] sm:$0xf]
  %v300 = vld [vmem:[%s0 + $0x45c] sm:$0xf]
  %v301 = vld [vmem:[%s0 + $0x460] sm:$0xf]
  %v302 = vld [vmem:[%s0 + $0x464] sm:$0xf]
  %v303 = vld [vmem:[%s0 + $0x468] sm:$0xf]
  %v304 = vld [vmem:[%s0 + $0x46c] sm:$0xf]
  %v305 = vld [vmem:[%s0 + $0x470] sm:$0xf]
  %v306 = vld [vmem:[%s0 + $0x474] sm:$0xf]
  %v307 = vld [vmem:[%s0 + $0x478] sm:$0xf]
  %v308 = vld [vmem:[%s0 + $0x47c] sm:$0xf]
  %v309 = vld [vmem:[%s0 + $0x480] sm:$0xf]
  %v310 = vld [vmem:[%s0 + $0x484] sm:$0xf]
  %v311 = vld [vmem:[%s0 + $0x488] sm:$0xf]
  %v312 = vld [vmem:[%s0 + $0x48c] sm:$0xf]
  %v313 = vld [vmem:[%s0 + $0x490] sm:$0xf]
  %v314 = vld [vmem:[%s0 + $0x494] sm:$0xf]
  %v315 = vld [vmem:[%s0 + $0x498] sm:$0xf]
  %v316 = vld [vmem:[%s0 + $0x49c] sm:$0xf]
  %v317 = vld [vmem:[%s0 + $0x4a0] sm:$0xf]
  %v318 = vld [vmem:[%s0 + $0x4a4] sm:$0xf]
  %v319 = vld [vmem:[%s0 + $0x4a8] sm:$0xf]
  %v320 = vld [vmem:[%s0 + $0x4ac] sm:$0xf]
  %v321 = vld [vmem:[%s0 + $0x4b0] sm:$0xf]
  %v322 = vld [vmem:[%s0 + $0x4b4] sm:$0xf]
  %v323 = vld [vmem:[%s0 + $0x4b8] sm:$0xf]
  %v324 = vld [vmem:[%s0 + $0x4bc] sm:$0xf]
  %v325 = vld [vmem:[%s0 + $0x4c0] sm:$0xf]
  %v326 = vld [vmem:[%s0 + $0x4c4] sm:$0xf]
  %v327 = vld [vmem:[%s0 + $0x4c8] sm:$0xf]
  %v328 = vld [vmem:[%s0 + $0x4cc] sm:$0xf]
  %v329 = vld [vmem:[%s0 + $0x4d0] sm:$0xf]
  %v330 = vld [vmem:[%s0 + $0x4d4] sm:$0xf]
  %v331 = vld [vmem:[%s0 + $0x4d8] sm:$0xf]
  %v332 = vld [vmem:[%s0 + $0x4dc] sm:$0xf]
  %v333 = vld [vmem:[%s0 + $0x4e0] sm:$0xf]
  %v334 = vld [vmem:[%s0 + $0x4e4] sm:$0xf]
  %v335 = vld [vmem:[%s0 + $0x4e8] sm:$0xf]
  %v336 = vld [vmem:[%s0 + $0x4ec] sm:$0xf]
  %v337 = vld [vmem:[%s0 + $0x4f0] sm:$0xf]
  %v338 = vld [vmem:[%s0 + $0x4f4] sm:$0xf]
  %v339 = vld [vmem:[%s0 + $0x4f8] sm:$0xf]
  %v340 = vld [vmem:[%s0 + $0x4fc] sm:$0xf]
  %v341 = vld [vmem:[%s0 + $0x500] sm:$0xf]
  %v342 = vld [vmem:[%s0 + $0x504] sm:$0xf]
  %v343 = vld [vmem:[%s0 + $0x508] sm:$0xf]
  %v344 = vld [vmem:[%s0 + $0x50c] sm:$0xf]
  %v345 = vld [vmem:[%s0 + $0x510] sm:$0xf]
  %v346 = vld [vmem:[%s0 + $0x514] sm:$0xf]
  %v347 = vld [vmem:[%s0 + $0x518] sm:$0xf]
  %v348 = vld [vmem:[%s0 + $0x51c] sm:$0xf]
  %v349 = vld [vmem:[%s0 + $0x520] sm:$0xf]
  %v350 = vld [vmem:[%s0 + $0x524] sm:$0xf]
  %v351 = vld [vmem:[%s0 + $0x528] sm:$0xf]
  %v352 = vld [vmem:[%s0 + $0x52c] sm:$0xf]
  %v353 = vld [vmem:[%s0 + $0x530] sm:$0xf]
  %v354 = vld [vmem:[%s0 + $0x534] sm:$0xf]
  %v355 = vld [vmem:[%s0 + $0x538] sm:$0xf]
  %v356 = vld [vmem:[%s0 + $0x53c] sm:$0xf]
  %v357 = vld [vmem:[%s0 + $0x540] sm:$0xf]
  %v358 = vld [vmem:[%s0 + $0x544] sm:$0xf]
  %v359 = vld [vmem:[%s0 + $0x548] sm:$0xf]
  %v360 = vld [vmem:[%s0 + $0x54c] sm:$0xf]
  %v361 = vld [vmem:[%s0 + $0x550] sm:$0xf]
  %v362 = vld [vmem:[%s0 + $0x554] sm:$0xf]
  %v363 = vld [vmem:[%s0 + $0x558] sm:$0xf]
  %v364 = vld [vmem:[%s0 + $0x55c] sm:$0xf]
  %v365 = vld [vmem:[%s0 + $0x560] sm:$0xf]
  %v366 = vld [vmem:[%s0 + $0x564] sm:$0xf]
  %v367 = vld [vmem:[%s0 + $0x568] sm:$0xf]
  %v368 = vld [vmem:[%s0 + $0x56c] sm:$0xf]
  %v369 = vld [vmem:[%s0 + $0x570] sm:$0xf]
  %v370 = vld [vmem:[%s0 + $0x574] sm:$0xf]
  %v371 = vld [vmem:[%s0 + $0x578] sm:$0xf]
  %v372 = vld [vmem:[%s0 + $0x57c] sm:$0xf]
  %v373 = vld [vmem:[%s0 + $0x580] sm:$0xf]
  %v374 = vld [vmem:[%s0 + $0x584] sm:$0xf]
  %v375 = vld [vmem:[%s0 + $0x588] sm:$0xf]
  %v376 = vld [vmem:[%s0 + $0x58c] sm:$0xf]
  %v377 = vld [vmem:[%s0 + $0x590] sm:$0xf]
  %v378 = vld [vmem:[%s0 + $0x594] sm:$0xf]
  %v379 = vld [vmem:[%s0 + $0x598] sm:$0xf]
  %v380 = vld [vmem:[%s0 + $0x59c] sm:$0xf]
  %v381 = vld [vmem:[%s0 + $0x5a0] sm:$0xf]
  %v382 = vld [vmem:[%s0 + $0x5a4] sm:$0xf]
  %v383 = vld [vmem:[%s0 + $0x5a8] sm:$0xf]
  %v384 = vld [vmem:[%s0 + $0x5ac] sm:$0xf]
  %v385 = vld [vmem:[%s0 + $0x5b0] sm:$0xf]
  %v386 = vld [vmem:[%s0 + $0x5b4] sm:$0xf]
  %v387 = vld [vmem:[%s0 + $0x5b8] sm:$0xf]
  %v388 = vld [vmem:[%s0 + $0x5bc] sm:$0xf]
  %v389 = vld [vmem:[%s0 + $0x5c0] sm:$0xf]
  %v390 = vld [vmem:[%s0 + $0x5c4] sm:$0xf]
  %v391 = vld [vmem:[%s0 + $0x5c8] sm:$0xf]
  %v392 = vld [vmem:[%s0 + $0x5cc] sm:$0xf]
  %v393 = vld [vmem:[%s0 + $0x5d0] sm:$0xf]
  %v394 = vld [vmem:[%s0 + $0x5d4] sm:$0xf]
  %v395 = vld [vmem:[%s0 + $0x5d8] sm:$0xf]
  %v396 = vld [vmem:[%s0 + $0x5dc] sm:$0xf]
  %v397 = vld [vmem:[%s0 + $0x5e0] sm:$0xf]
  %v398 = vld [vmem:[%s0 + $0x5e4] sm:$0xf]
  %v399 = vld [vmem:[%s0 + $0x5e8] sm:$0xf]
  %v400 = vld [vmem:[%s0 + $0x5ec] sm:$0xf]
  %v401 = vld [vmem:[%s0 + $0x5f0] sm:$0xf]
  %v402 = vld [vmem:[%s0 + $0x5f4] sm:$0xf]
  %v403 = vld [vmem:[%s0 + $0x5f8] sm:$0xf]
  %v404 = vld [vmem:[%s0 + $0x5fc] sm:$0xf]
  %v405 = vld [vmem:[%s0 + $0x600] sm:$0xf]
  %v406 = vld [vmem:[%s0 + $0x604] sm:$0xf]
  %v407 = vld [vmem:[%s0 + $0x608] sm:$0xf]
  %v408 = vld [vmem:[%s0 + $0x60c] sm:$0xf]
  %v409 = vld [vmem:[%s0 + $0x610] sm:$0xf]
  %v410 = vld [vmem:[%s0 + $0x614] sm:$0xf]
  %v411 = vld [vmem:[%s0 + $0x618] sm:$0xf]
  %v412 = vld [vmem:[%s0 + $0x61c] sm:$0xf]
  %v413 = vld [vmem:[%s0 + $0x620] sm:$0xf]
  %v414 = vld [vmem:[%s0 + $0x624] sm:$0xf]
  %v415 = vld [vmem:[%s0 + $0x628] sm:$0xf]
  %v416 = vld [vmem:[%s0 + $0x62c] sm:$0xf]
  %v417 = vld [vmem:[%s0 + $0x630] sm:$0xf]
  %v418 = vld [vmem:[%s0 + $0x634] sm:$0xf]
  %v419 = vld [vmem:[%s0 + $0x638] sm:$0xf]
  %v420 = vld [vmem:[%s0 + $0x63c] sm:$0xf]
  %v421 = vld [vmem:[%s0 + $0x640] sm:$0xf]
  %v422 = vld [vmem:[%s0 + $0x644] sm:$0xf]
  %v423 = vld [vmem:[%s0 + $0x648] sm:$0xf]
  %v424 = vld [vmem:[%s0 + $0x64c] sm:$0xf]
  %v425 = vld [vmem:[%s0 + $0x650] sm:$0xf]
  %v426 = vld [vmem:[%s0 + $0x654] sm:$0xf]
  %v427 = vld [vmem:[%s0 + $0x658] sm:$0xf]
  %v428 = vld [vmem:[%s0 + $0x65c] sm:$0xf]
  %v429 = vld [vmem:[%s0 + $0x660] sm:$0xf]
  %v430 = vld [vmem:[%s0 + $0x664] sm:$0xf]
  %v431 = vld [vmem:[%s0 + $0x668] sm:$0xf]
  %v432 = vld [vmem:[%s0 + $0x66c] sm:$0xf]
  %v433 = vld [vmem:[%s0 + $0x670] sm:$0xf]
  %v434 = vld [vmem:[%s0 + $0x674] sm:$0xf]
  %v435 = vld [vmem:[%s0 + $0x678] sm:$0xf]
  %v436 = vld [vmem:[%s0 + $0x67c] sm:$0xf]
  %v437 = vld [vmem:[%s0 + $0x680] sm:$0xf]
  %v438 = vld [vmem:[%s0 + $0x684] sm:$0xf]
  %v439 = vld [vmem:[%s0 + $0x688] sm:$0xf]
  %v440 = vld [vmem:[%s0 + $0x68c] sm:$0xf]
  %v441 = vld [vmem:[%s0 + $0x690] sm:$0xf]
  %v442 = vld [vmem:[%s0 + $0x694] sm:$0xf]
  %v443 = vld [vmem:[%s0 + $0x698] sm:$0xf]
  %v444 = vld [vmem:[%s0 + $0x69c] sm:$0xf]
  %v445 = vld [vmem:[%s0 + $0x6a0] sm:$0xf]
  %v446 = vld [vmem:[%s0 + $0x6a4] sm:$0xf]
  %v447 = vld [vmem:[%s0 + $0x6a8] sm:$0xf]
  %v448 = vld [vmem:[%s0 + $0x6ac] sm:$0xf]
  %v449 = vld [vmem:[%s0 + $0x6b0] sm:$0xf]
  %v450 = vld [vmem:[%s0 + $0x6b4] sm:$0xf]
  %v451 = vld [vmem:[%s0 + $0x6b8] sm:$0xf]
  %v452 = vld [vmem:[%s0 + $0x6bc] sm:$0xf]
  %v453 = vld [vmem:[%s0 + $0x6c0] sm:$0xf]
  %v454 = vld [vmem:[%s0 + $0x6c4] sm:$0xf]
  %v455 = vld [vmem:[%s0 + $0x6c8] sm:$0xf]
  %v456 = vld [vmem:[%s0 + $0x6cc] sm:$0xf]
  %v457 = vld [vmem:[%s0 + $0x6d0] sm:$0xf]
  %v458 = vld [vmem:[%s0 + $0x6d4] sm:$0xf]
  %v459 = vld [vmem:[%s0 + $0x6d8] sm:$0xf]
  %v460 = vld [vmem:[%s0 + $0x6dc] sm:$0xf]
  %v461 = vld [vmem:[%s0 + $0x6e0] sm:$0xf]
  %v462 = vld [vmem:[%s0 + $0x6e4] sm:$0xf]
  %v463 = vld [vmem:[%s0 + $0x6e8] sm:$0xf]
  %v464 = vld [vmem:[%s0 + $0x6ec] sm:$0xf]
  %v465 = vld [vmem:[%s0 + $0x6f0] sm:$0xf]
  %v466 = vld [vmem:[%s0 + $0x6f4] sm:$0xf]
  %v467 = vld [vmem:[%s0 + $0x6f8] sm:$0xf]
  %v468 = vld [vmem:[%s0 + $0x6fc] sm:$0xf]
  %v469 = vld [vmem:[%s0 + $0x700] sm:$0xf]
  %v470 = vld [vmem:[%s0 + $0x704] sm:$0xf]
  %v471 = vld [vmem:[%s0 + $0x708] sm:$0xf]
  %v472 = vld [vmem:[%s0 + $0x70c] sm:$0xf]
  %v473 = vld [vmem:[%s0 + $0x710] sm:$0xf]
  %v474 = vld [vmem:[%s0 + $0x714] sm:$0xf]
  %v475 = vld [vmem:[%s0 + $0x718] sm:$0xf]
  %v476 = vld [vmem:[%s0 + $0x71c] sm:$0xf]
  %v477 = vld [vmem:[%s0 + $0x720] sm:$0xf]
  %v478 = vld [vmem:[%s0 + $0x724] sm:$0xf]
  %v479 = vld [vmem:[%s0 + $0x728] sm:$0xf]
  %v480 = vld [vmem:[%s0 + $0x72c] sm:$0xf]
  %v481 = vld [vmem:[%s0 + $0x730] sm:$0xf]
  %v482 = vld [vmem:[%s0 + $0x734] sm:$0xf]
  %v483 = vld [vmem:[%s0 + $0x738] sm:$0xf]
  %v484 = vld [vmem:[%s0 + $0x73c] sm:$0xf]
  %v485 = vld [vmem:[%s0 + $0x740] sm:$0xf]
  %v486 = vld [vmem:[%s0 + $0x744] sm:$0xf]
  %v487 = vld [vmem:[%s0 + $0x748] sm:$0xf]
  %v488 = vld [vmem:[%s0 + $0x74c] sm:$0xf]
  %v489 = vld [vmem:[%s0 + $0x750] sm:$0xf]
  %v490 = vld [vmem:[%s0 + $0x754] sm:$0xf]
  %v491 = vld [vmem:[%s0 + $0x758] sm:$0xf]
  %v492 = vld [vmem:[%s0 + $0x75c] sm:$0xf]
  %v493 = vld [vmem:[%s0 + $0x760] sm:$0xf]
  %v494 = vld [vmem:[%s0 + $0x764] sm:$0xf]
  %v495 = vld [vmem:[%s0 + $0x768] sm:$0xf]
  %v496 = vld [vmem:[%s0 + $0x76c] sm:$0xf]
  %v497 = vld [vmem:[%s0 + $0x770] sm:$0xf]
  %v498 = vld [vmem:[%s0 + $0x774] sm:$0xf]
  %v499 = vld [vmem:[%s0 + $0x778] sm:$0xf]
  %v500 = vld [vmem:[%s0 + $0x77c] sm:$0xf]
  %v501 = vld [vmem:[%s0 + $0x780] sm:$0xf]
  %v502 = vld [vmem:[%s0 + $0x784] sm:$0xf]
  %v503 = vld [vmem:[%s0 + $0x788] sm:$0xf]
  %v504 = vld [vmem:[%s0 + $0x78c] sm:$0xf]
  %v505 = vld [vmem:[%s0 + $0x790] sm:$0xf]
  %v506 = vld [vmem:[%s0 + $0x794] sm:$0xf]
  %v507 = vld [vmem:[%s0 + $0x798] sm:$0xf]
  %v508 = vld [vmem:[%s0 + $0x79c] sm:$0xf]
  %v509 = vld [vmem:[%s0 + $0x7a0] sm:$0xf]
  %v510 = vld [vmem:[%s0 + $0x7a4] sm:$0xf]
  %v511 = vld [vmem:[%s0 + $0x7a8] sm:$0xf]
  %v512 = vld [vmem:[%s0 + $0x7ac] sm:$0xf]
  %v513 = vld [vmem:[%s0 + $0x7b0] sm:$0xf]
  %v514 = vld [vmem:[%s0 + $0x7b4] sm:$0xf]
  %v515 = vld [vmem:[%s0 + $0x7b8] sm:$0xf]
  %v516 = vld [vmem:[%s0 + $0x7bc] sm:$0xf]
  %v517 = vld [vmem:[%s0 + $0x7c0] sm:$0xf]
  %v518 = vld [vmem:[%s0 + $0x7c4] sm:$0xf]
  %v519 = vld [vmem:[%s0 + $0x7c8] sm:$0xf]
  %v520 = vld [vmem:[%s0 + $0x7cc] sm:$0xf]
  %v521 = vld [vmem:[%s0 + $0x7d0] sm:$0xf]
  %v522 = vld [vmem:[%s0 + $0x7d4] sm:$0xf]
  %v523 = vld [vmem:[%s0 + $0x7d8] sm:$0xf]
  %v524 = vld [vmem:[%s0 + $0x7dc] sm:$0xf]
  %v525 = vld [vmem:[%s0 + $0x7e0] sm:$0xf]
  %v526 = vld [vmem:[%s0 + $0x7e4] sm:$0xf]
  %v527 = vld [vmem:[%s0 + $0x7e8] sm:$0xf]
  %v528 = vld [vmem:[%s0 + $0x7ec] sm:$0xf]
  %v529 = vld [vmem:[%s0 + $0x7f0] sm:$0xf]
  %v530 = vld [vmem:[%s0 + $0x7f4] sm:$0xf]
  %v531 = vld [vmem:[%s0 + $0x7f8] sm:$0xf]
  %v532 = vld [vmem:[%s0 + $0x7fc] sm:$0xf]
  %v533 = vld [vmem:[%s0 + $0x800] sm:$0xf]
  %v534 = vld [vmem:[%s0 + $0x804] sm:$0xf]
  %v535 = vld [vmem:[%s0 + $0x808] sm:$0xf]
  %v536 = vld [vmem:[%s0 + $0x80c] sm:$0xf]
  %v537 = vld [vmem:[%s0 + $0x810] sm:$0xf]
  %v538 = vld [vmem:[%s0 + $0x814] sm:$0xf]
  %v539 = vld [vmem:[%s0 + $0x818] sm:$0xf]
  %v540 = vld [vmem:[%s0 + $0x81c] sm:$0xf]
  %v541 = vld [vmem:[%s0 + $0x820] sm:$0xf]
  %v542 = vld [vmem:[%s0 + $0x824] sm:$0xf]
  %v543 = vld [vmem:[%s0 + $0x828] sm:$0xf]
  %v544 = vld [vmem:[%s0 + $0x82c] sm:$0xf]
  %v545 = vld [vmem:[%s0 + $0x830] sm:$0xf]
  %v546 = vld [vmem:[%s0 + $0x834] sm:$0xf]
  %v547 = vld [vmem:[%s0 + $0x838] sm:$0xf]
  %v548 = vld [vmem:[%s0 + $0x83c] sm:$0xf]
  %v549 = vld [vmem:[%s0 + $0x840] sm:$0xf]
  %v550 = vld [vmem:[%s0 + $0x844] sm:$0xf]
  %v551 = vld [vmem:[%s0 + $0x848] sm:$0xf]
  %v552 = vld [vmem:[%s0 + $0x84c] sm:$0xf]
  %v553 = vld [vmem:[%s0 + $0x850] sm:$0xf]
  %v554 = vld [vmem:[%s0 + $0x854] sm:$0xf]
  %v555 = vld [vmem:[%s0 + $0x858] sm:$0xf]
  %v556 = vld [vmem:[%s0 + $0x85c] sm:$0xf]
  %v557 = vld [vmem:[%s0 + $0x860] sm:$0xf]
  %v558 = vld [vmem:[%s0 + $0x864] sm:$0xf]
  %v559 = vld [vmem:[%s0 + $0x868] sm:$0xf]
  %v560 = vld [vmem:[%s0 + $0x86c] sm:$0xf]
  %v561 = vld [vmem:[%s0 + $0x870] sm:$0xf]
  %v562 = vld [vmem:[%s0 + $0x874] sm:$0xf]
  %v563 = vld [vmem:[%s0 + $0x878] sm:$0xf]
  %v564 = vld [vmem:[%s0 + $0x87c] sm:$0xf]
  %v565 = vld [vmem:[%s0 + $0x880] sm:$0xf]
  %v566 = vld [vmem:[%s0 + $0x884] sm:$0xf]
  %v567 = vld [vmem:[%s0 + $0x888] sm:$0xf]
  %v568 = vld [vmem:[%s0 + $0x88c] sm:$0xf]
  %v569 = vld [vmem:[%s0 + $0x890] sm:$0xf]
  %v570 = vld [vmem:[%s0 + $0x894] sm:$0xf]
  %v571 = vld [vmem:[%s0 + $0x898] sm:$0xf]
  %v572 = vld [vmem:[%s0 + $0x89c] sm:$0xf]
  %v573 = vld [vmem:[%s0 + $0x8a0] sm:$0xf]
  %v574 = vld [vmem:[%s0 + $0x8a4] sm:$0xf]
  %v575 = vld [vmem:[%s0 + $0x8a8] sm:$0xf]
  %v576 = vld [vmem:[%s0 + $0x8ac] sm:$0xf]
  %v577 = vld [vmem:[%s0 + $0x8b0] sm:$0xf]
  %v578 = vld [vmem:[%s0 + $0x8b4] sm:$0xf]
  %v579 = vld [vmem:[%s0 + $0x8b8] sm:$0xf]
  %v580 = vld [vmem:[%s0 + $0x8bc] sm:$0xf]
  %v581 = vld [vmem:[%s0 + $0x8c0] sm:$0xf]
  %v582 = vld [vmem:[%s0 + $0x8c4] sm:$0xf]
  %v583 = vld [vmem:[%s0 + $0x8c8] sm:$0xf]
  %v584 = vld [vmem:[%s0 + $0x8cc] sm:$0xf]
  %v585 = vld [vmem:[%s0 + $0x8d0] sm:$0xf]
  %v586 = vld [vmem:[%s0 + $0x8d4] sm:$0xf]
  %v587 = vld [vmem:[%s0 + $0x8d8] sm:$0xf]
  %v588 = vld [vmem:[%s0 + $0x8dc] sm:$0xf]
  %v589 = vld [vmem:[%s0 + $0x8e0] sm:$0xf]
  %v590 = vld [vmem:[%s0 + $0x8e4] sm:$0xf]
  %v591 = vld [vmem:[%s0 + $0x8e8] sm:$0xf]
  %v592 = vld [vmem:[%s0 + $0x8ec] sm:$0xf]
  %v593 = vld [vmem:[%s0 + $0x8f0] sm:$0xf]
  %v594 = vld [vmem:[%s0 + $0x8f4] sm:$0xf]
  %v595 = vld [vmem:[%s0 + $0x8f8] sm:$0xf]
  %v596 = vld [vmem:[%s0 + $0x8fc] sm:$0xf]
  %v597 = vld [vmem:[%s0 + $0x900] sm:$0xf]
  %v598 = vld [vmem:[%s0 + $0x904] sm:$0xf]
  %v599 = vld [vmem:[%s0 + $0x908] sm:$0xf]
  %v600 = vld [vmem:[%s0 + $0x90c] sm:$0xf]
  %v601 = vld [vmem:[%s0 + $0x910] sm:$0xf]
  %v602 = vld [vmem:[%s0 + $0x914] sm:$0xf]
  %v603 = vld [vmem:[%s0 + $0x918] sm:$0xf]
  %v604 = vld [vmem:[%s0 + $0x91c] sm:$0xf]
  %v605 = vld [vmem:[%s0 + $0x920] sm:$0xf]
  %v606 = vld [vmem:[%s0 + $0x924] sm:$0xf]
  %v607 = vld [vmem:[%s0 + $0x928] sm:$0xf]
  %v608 = vld [vmem:[%s0 + $0x92c] sm:$0xf]
  %v609 = vld [vmem:[%s0 + $0x930] sm:$0xf]
  %v610 = vld [vmem:[%s0 + $0x934] sm:$0xf]
  %v611 = vld [vmem:[%s0 + $0x938] sm:$0xf]
  %v612 = vld [vmem:[%s0 + $0x93c] sm:$0xf]
  %v613 = vld [vmem:[%s0 + $0x940] sm:$0xf]
  %v614 = vld [vmem:[%s0 + $0x944] sm:$0xf]
  %v615 = vld [vmem:[%s0 + $0x948] sm:$0xf]
  %v616 = vld [vmem:[%s0 + $0x94c] sm:$0xf]
  %v617 = vld [vmem:[%s0 + $0x950] sm:$0xf]
  %v618 = vld [vmem:[%s0 + $0x954] sm:$0xf]
  %v619 = vld [vmem:[%s0 + $0x958] sm:$0xf]
  %v620 = vld [vmem:[%s0 + $0x95c] sm:$0xf]
  %v621 = vld [vmem:[%s0 + $0x960] sm:$0xf]
  %v622 = vld [vmem:[%s0 + $0x964] sm:$0xf]
  %v623 = vld [vmem:[%s0 + $0x968] sm:$0xf]
  %v624 = vld [vmem:[%s0 + $0x96c] sm:$0xf]
  %v625 = vld [vmem:[%s0 + $0x970] sm:$0xf]
  %v626 = vld [vmem:[%s0 + $0x974] sm:$0xf]
  %v627 = vld [vmem:[%s0 + $0x978] sm:$0xf]
  %v628 = vld [vmem:[%s0 + $0x97c] sm:$0xf]
  %v629 = vld [vmem:[%s0 + $0x980] sm:$0xf]
  %v630 = vld [vmem:[%s0 + $0x984] sm:$0xf]
  %v631 = vld [vmem:[%s0 + $0x988] sm:$0xf]
  %v632 = vld [vmem:[%s0 + $0x98c] sm:$0xf]
  %v633 = vld [vmem:[%s0 + $0x990] sm:$0xf]
  %v634 = vld [vmem:[%s0 + $0x994] sm:$0xf]
  %v635 = vld [vmem:[%s0 + $0x998] sm:$0xf]
  %v636 = vld [vmem:[%s0 + $0x99c] sm:$0xf]
  %v637 = vld [vmem:[%s0 + $0x9a0] sm:$0xf]
  %v638 = vld [vmem:[%s0 + $0x9a4] sm:$0xf]
  %v639 = vld [vmem:[%s0 + $0x9a8] sm:$0xf]
  %v640 = vld [vmem:[%s0 + $0x9ac] sm:$0xf]
  %v641 = vld [vmem:[%s0 + $0x9b0] sm:$0xf]
  %v642 = vld [vmem:[%s0 + $0x9b4] sm:$0xf]
  %v643 = vld [vmem:[%s0 + $0x9b8] sm:$0xf]
  %v644 = vld [vmem:[%s0 + $0x9bc] sm:$0xf]
  %v645 = vld [vmem:[%s0 + $0x9c0] sm:$0xf]
  %v646 = vld [vmem:[%s0 + $0x9c4] sm:$0xf]
  %v647 = vld [vmem:[%s0 + $0x9c8] sm:$0xf]
  %v648 = vld [vmem:[%s0 + $0x9cc] sm:$0xf]
  %v649 = vld [vmem:[%s0 + $0x9d0] sm:$0xf]
  %v650 = vld [vmem:[%s0 + $0x9d4] sm:$0xf]
  %v651 = vld [vmem:[%s0 + $0x9d8] sm:$0xf]
  %v652 = vld [vmem:[%s0 + $0x9dc] sm:$0xf]
  %v653 = vld [vmem:[%s0 + $0x9e0] sm:$0xf]
  %v654 = vld [vmem:[%s0 + $0x9e4] sm:$0xf]
  %v655 = vld [vmem:[%s0 + $0x9e8] sm:$0xf]
  %v656 = vld [vmem:[%s0 + $0x9ec] sm:$0xf]
  %v657 = vld [vmem:[%s0 + $0x9f0] sm:$0xf]
  %v658 = vld [vmem:[%s0 + $0x9f4] sm:$0xf]
  %v659 = vld [vmem:[%s0 + $0x9f8] sm:$0xf]
  %v660 = vld [vmem:[%s0 + $0x9fc] sm:$0xf]
  %v661 = vld [vmem:[%s0 + $0xa00] sm:$0xf]
  %v662 = vld [vmem:[%s0 + $0xa04] sm:$0xf]
  %v663 = vld [vmem:[%s0 + $0xa08] sm:$0xf]
  %v664 = vld [vmem:[%s0 + $0xa0c] sm:$0xf]
  %v665 = vld [vmem:[%s0 + $0xa10] sm:$0xf]
  %v666 = vld [vmem:[%s0 + $0xa14] sm:$0xf]
  %v667 = vld [vmem:[%s0 + $0xa18] sm:$0xf]
  %v668 = vld [vmem:[%s0 + $0xa1c] sm:$0xf]
  %v669 = vld [vmem:[%s0 + $0xa20] sm:$0xf]
  %v670 = vld [vmem:[%s0 + $0xa24] sm:$0xf]
  %v671 = vld [vmem:[%s0 + $0xa28] sm:$0xf]
  %v672 = vld [vmem:[%s0 + $0xa2c] sm:$0xf]
  %v673 = vld [vmem:[%s0 + $0xa30] sm:$0xf]
  %v674 = vld [vmem:[%s0 + $0xa34] sm:$0xf]
  %v675 = vld [vmem:[%s0 + $0xa38] sm:$0xf]
  %v676 = vld [vmem:[%s0 + $0xa3c] sm:$0xf]
  %v677 = vld [vmem:[%s0 + $0xa40] sm:$0xf]
  %v678 = vld [vmem:[%s0 + $0xa44] sm:$0xf]
  %v679 = vld [vmem:[%s0 + $0xa48] sm:$0xf]
  %v680 = vld [vmem:[%s0 + $0xa4c] sm:$0xf]
  %v681 = vld [vmem:[%s0 + $0xa50] sm:$0xf]
  %v682 = vld [vmem:[%s0 + $0xa54] sm:$0xf]
  %v683 = vld [vmem:[%s0 + $0xa58] sm:$0xf]
  %v684 = vld [vmem:[%s0 + $0xa5c] sm:$0xf]
  %v685 = vld [vmem:[%s0 + $0xa60] sm:$0xf]
  %v686 = vld [vmem:[%s0 + $0xa64] sm:$0xf]
  %v687 = vld [vmem:[%s0 + $0xa68] sm:$0xf]
  %v688 = vld [vmem:[%s0 + $0xa6c] sm:$0xf]
  %v689 = vld [vmem:[%s0 + $0xa70] sm:$0xf]
  %v690 = vld [vmem:[%s0 + $0xa74] sm:$0xf]
  %v691 = vld [vmem:[%s0 + $0xa78] sm:$0xf]
  %v692 = vld [vmem:[%s0 + $0xa7c] sm:$0xf]
  %v693 = vld [vmem:[%s0 + $0xa80] sm:$0xf]
  %v694 = vld [vmem:[%s0 + $0xa84] sm:$0xf]
  %v695 = vld [vmem:[%s0 + $0xa88] sm:$0xf]
  %v696 = vld [vmem:[%s0 + $0xa8c] sm:$0xf]
  %v697 = vld [vmem:[%s0 + $0xa90] sm:$0xf]
  %v698 = vld [vmem:[%s0 + $0xa94] sm:$0xf]
  %v699 = vld [vmem:[%s0 + $0xa98] sm:$0xf]
  %v700 = vld [vmem:[%s0 + $0xa9c] sm:$0xf]
  %v701 = vld [vmem:[%s0 + $0xaa0] sm:$0xf]
  %v702 = vld [vmem:[%s0 + $0xaa4] sm:$0xf]
  %v703 = vld [vmem:[%s0 + $0xaa8] sm:$0xf]
  %v704 = vld [vmem:[%s0 + $0xaac] sm:$0xf]
  %v705 = vld [vmem:[%s0 + $0xab0] sm:$0xf]
  %v706 = vld [vmem:[%s0 + $0xab4] sm:$0xf]
  %v707 = vld [vmem:[%s0 + $0xab8] sm:$0xf]
  %v708 = vld [vmem:[%s0 + $0xabc] sm:$0xf]
  %v709 = vld [vmem:[%s0 + $0xac0] sm:$0xf]
  %v710 = vld [vmem:[%s0 + $0xac4] sm:$0xf]
  %v711 = vld [vmem:[%s0 + $0xac8] sm:$0xf]
  %v712 = vld [vmem:[%s0 + $0xacc] sm:$0xf]
  %v713 = vld [vmem:[%s0 + $0xad0] sm:$0xf]
  %v714 = vld [vmem:[%s0 + $0xad4] sm:$0xf]
  %v715 = vld [vmem:[%s0 + $0xad8] sm:$0xf]
  %v716 = vld [vmem:[%s0 + $0xadc] sm:$0xf]
  %v717 = vld [vmem:[%s0 + $0xae0] sm:$0xf]
  %v718 = vld [vmem:[%s0 + $0xae4] sm:$0xf]
  %v719 = vld [vmem:[%s0 + $0xae8] sm:$0xf]
  %v720 = vld [vmem:[%s0 + $0xaec] sm:$0xf]
  %v721 = vld [vmem:[%s0 + $0xaf0] sm:$0xf]
  %v722 = vld [vmem:[%s0 + $0xaf4] sm:$0xf]
  %v723 = vld [vmem:[%s0 + $0xaf8] sm:$0xf]
  %v724 = vld [vmem:[%s0 + $0xafc] sm:$0xf]
  %v725 = vld [vmem:[%s0 + $0xb00] sm:$0xf]
  %v726 = vld [vmem:[%s0 + $0xb04] sm:$0xf]
  %v727 = vld [vmem:[%s0 + $0xb08] sm:$0xf]
  %v728 = vld [vmem:[%s0 + $0xb0c] sm:$0xf]
  %v729 = vld [vmem:[%s0 + $0xb10] sm:$0xf]
  %v730 = vld [vmem:[%s0 + $0xb14] sm:$0xf]
  %v731 = vld [vmem:[%s0 + $0xb18] sm:$0xf]
  %v732 = vld [vmem:[%s0 + $0xb1c] sm:$0xf]
  %v733 = vld [vmem:[%s0 + $0xb20] sm:$0xf]
  %v734 = vld [vmem:[%s0 + $0xb24] sm:$0xf]
  %v735 = vld [vmem:[%s0 + $0xb28] sm:$0xf]
  %v736 = vld [vmem:[%s0 + $0xb2c] sm:$0xf]
  %v737 = vld [vmem:[%s0 + $0xb30] sm:$0xf]
  %v738 = vld [vmem:[%s0 + $0xb34] sm:$0xf]
  %v739 = vld [vmem:[%s0 + $0xb38] sm:$0xf]
  %v740 = vld [vmem:[%s0 + $0xb3c] sm:$0xf]
  %v741 = vld [vmem:[%s0 + $0xb40] sm:$0xf]
  %v742 = vld [vmem:[%s0 + $0xb44] sm:$0xf]
  %v743 = vld [vmem:[%s0 + $0xb48] sm:$0xf]
  %v744 = vld [vmem:[%s0 + $0xb4c] sm:$0xf]
  %v745 = vld [vmem:[%s0 + $0xb50] sm:$0xf]
  %v746 = vld [vmem:[%s0 + $0xb54] sm:$0xf]
  %v747 = vld [vmem:[%s0 + $0xb58] sm:$0xf]
  %v748 = vld [vmem:[%s0 + $0xb5c] sm:$0xf]
  %v749 = vld [vmem:[%s0 + $0xb60] sm:$0xf]
  %v750 = vld [vmem:[%s0 + $0xb64] sm:$0xf]
  %v751 = vld [vmem:[%s0 + $0xb68] sm:$0xf]
  %v752 = vld [vmem:[%s0 + $0xb6c] sm:$0xf]
  %v753 = vld [vmem:[%s0 + $0xb70] sm:$0xf]
  %v754 = vld [vmem:[%s0 + $0xb74] sm:$0xf]
  %v755 = vld [vmem:[%s0 + $0xb78] sm:$0xf]
  %v756 = vld [vmem:[%s0 + $0xb7c] sm:$0xf]
  %v757 = vld [vmem:[%s0 + $0xb80] sm:$0xf]
  %v758 = vld [vmem:[%s0 + $0xb84] sm:$0xf]
  %v759 = vld [vmem:[%s0 + $0xb88] sm:$0xf]
  %v760 = vld [vmem:[%s0 + $0xb8c] sm:$0xf]
  %v761 = vld [vmem:[%s0 + $0xb90] sm:$0xf]
  %v762 = vld [vmem:[%s0 + $0xb94] sm:$0xf]
  %v763 = vld [vmem:[%s0 + $0xb98] sm:$0xf]
  %v764 = vld [vmem:[%s0 + $0xb9c] sm:$0xf]
  %v765 = vld [vmem:[%s0 + $0xba0] sm:$0xf]
  %v766 = vld [vmem:[%s0 + $0xba4] sm:$0xf]
  %v767 = vld [vmem:[%s0 + $0xba8] sm:$0xf]
  %v768 = vld [vmem:[%s0 + $0xbac] sm:$0xf]
  %v769 = vld [vmem:[%s0 + $0xbb0] sm:$0xf]
  %v770 = vld [vmem:[%s0 + $0xbb4] sm:$0xf]
  %v771 = vld [vmem:[%s0 + $0xbb8] sm:$0xf]
  %v772 = vld [vmem:[%s0 + $0xbbc] sm:$0xf]
  %v773 = vld [vmem:[%s0 + $0xbc0] sm:$0xf]
  %v774 = vld [vmem:[%s0 + $0xbc4] sm:$0xf]
  %v775 = vld [vmem:[%s0 + $0xbc8] sm:$0xf]
  %v776 = vld [vmem:[%s0 + $0xbcc] sm:$0xf]
  %v777 = vld [vmem:[%s0 + $0xbd0] sm:$0xf]
  %v778 = vld [vmem:[%s0 + $0xbd4] sm:$0xf]
  %v779 = vld [vmem:[%s0 + $0xbd8] sm:$0xf]
  %v780 = vld [vmem:[%s0 + $0xbdc] sm:$0xf]
  %v781 = vld [vmem:[%s0 + $0xbe0] sm:$0xf]
  %v782 = vld [vmem:[%s0 + $0xbe4] sm:$0xf]
  %v783 = vld [vmem:[%s0 + $0xbe8] sm:$0xf]
  %v784 = vld [vmem:[%s0 + $0xbec] sm:$0xf]
  %v785 = vld [vmem:[%s0 + $0xbf0] sm:$0xf]
  %v786 = vld [vmem:[%s0 + $0xbf4] sm:$0xf]
  %v787 = vld [vmem:[%s0 + $0xbf8] sm:$0xf]
  %v788 = vld [vmem:[%s0 + $0xbfc] sm:$0xf]
  %v789 = vld [vmem:[%s1] sm:$0xf]
  %v790 = vld [vmem:[%s1 + $0x4] sm:$0xf]
  %v791 = vld [vmem:[%s1 + $0x8] sm:$0xf]
  %v792 = vld [vmem:[%s1 + $0xc] sm:$0x3]
  %v793 = vld [vmem:[%s2] sm:$0x1]
  %v795 = vlaneseq
  %v796 = vshrl.u32 %v795, 7
  %v797 = vsub.s32 0, %v796
  %v798 = vrot.slane %v793, %v797
  %v1568 = vunpack.c.l.b16 %v21
  %v1569 = vunpack.c.l.b16 %v22
  %v1570 = vunpack.c.l.b16 %v23
  %v1571 = vunpack.c.l.b16 %v24
  %v1572 = vunpack.c.l.b16 %v25
  %v1573 = vunpack.c.l.b16 %v26
  %v1574 = vunpack.c.l.b16 %v27
  %v1575 = vunpack.c.l.b16 %v28
  %v1576 = vunpack.c.l.b16 %v29
  %v1577 = vunpack.c.l.b16 %v30
  %v1578 = vunpack.c.l.b16 %v31
  %v1579 = vunpack.c.l.b16 %v32
  %v1580 = vunpack.c.l.b16 %v33
  %v1581 = vunpack.c.l.b16 %v34
  %v1582 = vunpack.c.l.b16 %v35
  %v1583 = vunpack.c.l.b16 %v36
  %v1584 = vunpack.c.l.b16 %v37
  %v1585 = vunpack.c.l.b16 %v38
  %v1586 = vunpack.c.l.b16 %v39
  %v1587 = vunpack.c.l.b16 %v40
  %v1588 = vunpack.c.l.b16 %v41
  %v1589 = vunpack.c.l.b16 %v42
  %v1590 = vunpack.c.l.b16 %v43
  %v1591 = vunpack.c.l.b16 %v44
  %v1592 = vunpack.c.l.b16 %v45
  %v1593 = vunpack.c.l.b16 %v46
  %v1594 = vunpack.c.l.b16 %v47
  %v1595 = vunpack.c.l.b16 %v48
  %v1596 = vunpack.c.l.b16 %v49
  %v1597 = vunpack.c.l.b16 %v50
  %v1598 = vunpack.c.l.b16 %v51
  %v1599 = vunpack.c.l.b16 %v52
  %v1600 = vunpack.c.l.b16 %v53
  %v1601 = vunpack.c.l.b16 %v54
  %v1602 = vunpack.c.l.b16 %v55
  %v1603 = vunpack.c.l.b16 %v56
  %v1604 = vunpack.c.l.b16 %v57
  %v1605 = vunpack.c.l.b16 %v58
  %v1606 = vunpack.c.l.b16 %v59
  %v1607 = vunpack.c.l.b16 %v60
  %v1608 = vunpack.c.l.b16 %v61
  %v1609 = vunpack.c.l.b16 %v62
  %v1610 = vunpack.c.l.b16 %v63
  %v1611 = vunpack.c.l.b16 %v64
  %v1612 = vunpack.c.l.b16 %v65
  %v1613 = vunpack.c.l.b16 %v66
  %v1614 = vunpack.c.l.b16 %v67
  %v1615 = vunpack.c.l.b16 %v68
  %v1616 = vunpack.c.l.b16 %v69
  %v1617 = vunpack.c.l.b16 %v70
  %v1618 = vunpack.c.l.b16 %v71
  %v1619 = vunpack.c.l.b16 %v72
  %v1620 = vunpack.c.l.b16 %v73
  %v1621 = vunpack.c.l.b16 %v74
  %v1622 = vunpack.c.l.b16 %v75
  %v1623 = vunpack.c.l.b16 %v76
  %v1624 = vunpack.c.l.b16 %v77
  %v1625 = vunpack.c.l.b16 %v78
  %v1626 = vunpack.c.l.b16 %v79
  %v1627 = vunpack.c.l.b16 %v80
  %v1628 = vunpack.c.l.b16 %v81
  %v1629 = vunpack.c.l.b16 %v82
  %v1630 = vunpack.c.l.b16 %v83
  %v1631 = vunpack.c.l.b16 %v84
  %v1632 = vunpack.c.l.b16 %v85
  %v1633 = vunpack.c.l.b16 %v86
  %v1634 = vunpack.c.l.b16 %v87
  %v1635 = vunpack.c.l.b16 %v88
  %v1636 = vunpack.c.l.b16 %v89
  %v1637 = vunpack.c.l.b16 %v90
  %v1638 = vunpack.c.l.b16 %v91
  %v1639 = vunpack.c.l.b16 %v92
  %v1640 = vunpack.c.l.b16 %v93
  %v1641 = vunpack.c.l.b16 %v94
  %v1642 = vunpack.c.l.b16 %v95
  %v1643 = vunpack.c.l.b16 %v96
  %v1644 = vunpack.c.l.b16 %v97
  %v1645 = vunpack.c.l.b16 %v98
  %v1646 = vunpack.c.l.b16 %v99
  %v1647 = vunpack.c.l.b16 %v100
  %v1648 = vunpack.c.l.b16 %v101
  %v1649 = vunpack.c.l.b16 %v102
  %v1650 = vunpack.c.l.b16 %v103
  %v1651 = vunpack.c.l.b16 %v104
  %v1652 = vunpack.c.l.b16 %v105
  %v1653 = vunpack.c.l.b16 %v106
  %v1654 = vunpack.c.l.b16 %v107
  %v1655 = vunpack.c.l.b16 %v108
  %v1656 = vunpack.c.l.b16 %v109
  %v1657 = vunpack.c.l.b16 %v110
  %v1658 = vunpack.c.l.b16 %v111
  %v1659 = vunpack.c.l.b16 %v112
  %v1660 = vunpack.c.l.b16 %v113
  %v1661 = vunpack.c.l.b16 %v114
  %v1662 = vunpack.c.l.b16 %v115
  %v1663 = vunpack.c.l.b16 %v116
  %v1664 = vunpack.c.l.b16 %v117
  %v1665 = vunpack.c.l.b16 %v118
  %v1666 = vunpack.c.l.b16 %v119
  %v1667 = vunpack.c.l.b16 %v120
  %v1668 = vunpack.c.l.b16 %v121
  %v1669 = vunpack.c.l.b16 %v122
  %v1670 = vunpack.c.l.b16 %v123
  %v1671 = vunpack.c.l.b16 %v124
  %v1672 = vunpack.c.l.b16 %v125
  %v1673 = vunpack.c.l.b16 %v126
  %v1674 = vunpack.c.l.b16 %v127
  %v1675 = vunpack.c.l.b16 %v128
  %v1676 = vunpack.c.l.b16 %v129
  %v1677 = vunpack.c.l.b16 %v130
  %v1678 = vunpack.c.l.b16 %v131
  %v1679 = vunpack.c.l.b16 %v132
  %v1680 = vunpack.c.l.b16 %v133
  %v1681 = vunpack.c.l.b16 %v134
  %v1682 = vunpack.c.l.b16 %v135
  %v1683 = vunpack.c.l.b16 %v136
  %v1684 = vunpack.c.l.b16 %v137
  %v1685 = vunpack.c.l.b16 %v138
  %v1686 = vunpack.c.l.b16 %v139
  %v1687 = vunpack.c.l.b16 %v140
  %v1688 = vunpack.c.l.b16 %v141
  %v1689 = vunpack.c.l.b16 %v142
  %v1690 = vunpack.c.l.b16 %v143
  %v1691 = vunpack.c.l.b16 %v144
  %v1692 = vunpack.c.l.b16 %v145
  %v1693 = vunpack.c.l.b16 %v146
  %v1694 = vunpack.c.l.b16 %v147
  %v1695 = vunpack.c.l.b16 %v148
  %v1696 = vunpack.c.l.b16 %v149
  %v1697 = vunpack.c.l.b16 %v150
  %v1698 = vunpack.c.l.b16 %v151
  %v1699 = vunpack.c.l.b16 %v152
  %v1700 = vunpack.c.l.b16 %v153
  %v1701 = vunpack.c.l.b16 %v154
  %v1702 = vunpack.c.l.b16 %v155
  %v1703 = vunpack.c.l.b16 %v156
  %v1704 = vunpack.c.l.b16 %v157
  %v1705 = vunpack.c.l.b16 %v158
  %v1706 = vunpack.c.l.b16 %v159
  %v1707 = vunpack.c.l.b16 %v160
  %v1708 = vunpack.c.l.b16 %v161
  %v1709 = vunpack.c.l.b16 %v162
  %v1710 = vunpack.c.l.b16 %v163
  %v1711 = vunpack.c.l.b16 %v164
  %v1712 = vunpack.c.l.b16 %v165
  %v1713 = vunpack.c.l.b16 %v166
  %v1714 = vunpack.c.l.b16 %v167
  %v1715 = vunpack.c.l.b16 %v168
  %v1716 = vunpack.c.l.b16 %v169
  %v1717 = vunpack.c.l.b16 %v170
  %v1718 = vunpack.c.l.b16 %v171
  %v1719 = vunpack.c.l.b16 %v172
  %v1720 = vunpack.c.l.b16 %v173
  %v1721 = vunpack.c.l.b16 %v174
  %v1722 = vunpack.c.l.b16 %v175
  %v1723 = vunpack.c.l.b16 %v176
  %v1724 = vunpack.c.l.b16 %v177
  %v1725 = vunpack.c.l.b16 %v178
  %v1726 = vunpack.c.l.b16 %v179
  %v1727 = vunpack.c.l.b16 %v180
  %v1728 = vunpack.c.l.b16 %v181
  %v1729 = vunpack.c.l.b16 %v182
  %v1730 = vunpack.c.l.b16 %v183
  %v1731 = vunpack.c.l.b16 %v184
  %v1732 = vunpack.c.l.b16 %v185
  %v1733 = vunpack.c.l.b16 %v186
  %v1734 = vunpack.c.l.b16 %v187
  %v1735 = vunpack.c.l.b16 %v188
  %v1736 = vunpack.c.l.b16 %v189
  %v1737 = vunpack.c.l.b16 %v190
  %v1738 = vunpack.c.l.b16 %v191
  %v1739 = vunpack.c.l.b16 %v192
  %v1740 = vunpack.c.l.b16 %v193
  %v1741 = vunpack.c.l.b16 %v194
  %v1742 = vunpack.c.l.b16 %v195
  %v1743 = vunpack.c.l.b16 %v196
  %v1744 = vunpack.c.l.b16 %v197
  %v1745 = vunpack.c.l.b16 %v198
  %v1746 = vunpack.c.l.b16 %v199
  %v1747 = vunpack.c.l.b16 %v200
  %v1748 = vunpack.c.l.b16 %v201
  %v1749 = vunpack.c.l.b16 %v202
  %v1750 = vunpack.c.l.b16 %v203
  %v1751 = vunpack.c.l.b16 %v204
  %v1752 = vunpack.c.l.b16 %v205
  %v1753 = vunpack.c.l.b16 %v206
  %v1754 = vunpack.c.l.b16 %v207
  %v1755 = vunpack.c.l.b16 %v208
  %v1756 = vunpack.c.l.b16 %v209
  %v1757 = vunpack.c.l.b16 %v210
  %v1758 = vunpack.c.l.b16 %v211
  %v1759 = vunpack.c.l.b16 %v212
  %v1760 = vunpack.c.l.b16 %v213
  %v1761 = vunpack.c.l.b16 %v214
  %v1762 = vunpack.c.l.b16 %v215
  %v1763 = vunpack.c.l.b16 %v216
  %v1764 = vunpack.c.l.b16 %v217
  %v1765 = vunpack.c.l.b16 %v218
  %v1766 = vunpack.c.l.b16 %v219
  %v1767 = vunpack.c.l.b16 %v220
  %v1768 = vunpack.c.l.b16 %v221
  %v1769 = vunpack.c.l.b16 %v222
  %v1770 = vunpack.c.l.b16 %v223
  %v1771 = vunpack.c.l.b16 %v224
  %v1772 = vunpack.c.l.b16 %v225
  %v1773 = vunpack.c.l.b16 %v226
  %v1774 = vunpack.c.l.b16 %v227
  %v1775 = vunpack.c.l.b16 %v228
  %v1776 = vunpack.c.l.b16 %v229
  %v1777 = vunpack.c.l.b16 %v230
  %v1778 = vunpack.c.l.b16 %v231
  %v1779 = vunpack.c.l.b16 %v232
  %v1780 = vunpack.c.l.b16 %v233
  %v1781 = vunpack.c.l.b16 %v234
  %v1782 = vunpack.c.l.b16 %v235
  %v1783 = vunpack.c.l.b16 %v236
  %v1784 = vunpack.c.l.b16 %v237
  %v1785 = vunpack.c.l.b16 %v238
  %v1786 = vunpack.c.l.b16 %v239
  %v1787 = vunpack.c.l.b16 %v240
  %v1788 = vunpack.c.l.b16 %v241
  %v1789 = vunpack.c.l.b16 %v242
  %v1790 = vunpack.c.l.b16 %v243
  %v1791 = vunpack.c.l.b16 %v244
  %v1792 = vunpack.c.l.b16 %v245
  %v1793 = vunpack.c.l.b16 %v246
  %v1794 = vunpack.c.l.b16 %v247
  %v1795 = vunpack.c.l.b16 %v248
  %v1796 = vunpack.c.l.b16 %v249
  %v1797 = vunpack.c.l.b16 %v250
  %v1798 = vunpack.c.l.b16 %v251
  %v1799 = vunpack.c.l.b16 %v252
  %v1800 = vunpack.c.l.b16 %v253
  %v1801 = vunpack.c.l.b16 %v254
  %v1802 = vunpack.c.l.b16 %v255
  %v1803 = vunpack.c.l.b16 %v256
  %v1804 = vunpack.c.l.b16 %v257
  %v1805 = vunpack.c.l.b16 %v258
  %v1806 = vunpack.c.l.b16 %v259
  %v1807 = vunpack.c.l.b16 %v260
  %v1808 = vunpack.c.l.b16 %v261
  %v1809 = vunpack.c.l.b16 %v262
  %v1810 = vunpack.c.l.b16 %v263
  %v1811 = vunpack.c.l.b16 %v264
  %v1812 = vunpack.c.l.b16 %v265
  %v1813 = vunpack.c.l.b16 %v266
  %v1814 = vunpack.c.l.b16 %v267
  %v1815 = vunpack.c.l.b16 %v268
  %v1816 = vunpack.c.l.b16 %v269
  %v1817 = vunpack.c.l.b16 %v270
  %v1818 = vunpack.c.l.b16 %v271
  %v1819 = vunpack.c.l.b16 %v272
  %v1820 = vunpack.c.l.b16 %v273
  %v1821 = vunpack.c.l.b16 %v274
  %v1822 = vunpack.c.l.b16 %v275
  %v1823 = vunpack.c.l.b16 %v276
  %v1824 = vunpack.c.l.b16 %v277
  %v1825 = vunpack.c.l.b16 %v278
  %v1826 = vunpack.c.l.b16 %v279
  %v1827 = vunpack.c.l.b16 %v280
  %v1828 = vunpack.c.l.b16 %v281
  %v1829 = vunpack.c.l.b16 %v282
  %v1830 = vunpack.c.l.b16 %v283
  %v1831 = vunpack.c.l.b16 %v284
  %v1832 = vunpack.c.l.b16 %v285
  %v1833 = vunpack.c.l.b16 %v286
  %v1834 = vunpack.c.l.b16 %v287
  %v1835 = vunpack.c.l.b16 %v288
  %v1836 = vunpack.c.l.b16 %v289
  %v1837 = vunpack.c.l.b16 %v290
  %v1838 = vunpack.c.l.b16 %v291
  %v1839 = vunpack.c.l.b16 %v292
  %v1840 = vunpack.c.l.b16 %v293
  %v1841 = vunpack.c.l.b16 %v294
  %v1842 = vunpack.c.l.b16 %v295
  %v1843 = vunpack.c.l.b16 %v296
  %v1844 = vunpack.c.l.b16 %v297
  %v1845 = vunpack.c.l.b16 %v298
  %v1846 = vunpack.c.l.b16 %v299
  %v1847 = vunpack.c.l.b16 %v300
  %v1848 = vunpack.c.l.b16 %v301
  %v1849 = vunpack.c.l.b16 %v302
  %v1850 = vunpack.c.l.b16 %v303
  %v1851 = vunpack.c.l.b16 %v304
  %v1852 = vunpack.c.l.b16 %v305
  %v1853 = vunpack.c.l.b16 %v306
  %v1854 = vunpack.c.l.b16 %v307
  %v1855 = vunpack.c.l.b16 %v308
  %v1856 = vunpack.c.l.b16 %v309
  %v1857 = vunpack.c.l.b16 %v310
  %v1858 = vunpack.c.l.b16 %v311
  %v1859 = vunpack.c.l.b16 %v312
  %v1860 = vunpack.c.l.b16 %v313
  %v1861 = vunpack.c.l.b16 %v314
  %v1862 = vunpack.c.l.b16 %v315
  %v1863 = vunpack.c.l.b16 %v316
  %v1864 = vunpack.c.l.b16 %v317
  %v1865 = vunpack.c.l.b16 %v318
  %v1866 = vunpack.c.l.b16 %v319
  %v1867 = vunpack.c.l.b16 %v320
  %v1868 = vunpack.c.l.b16 %v321
  %v1869 = vunpack.c.l.b16 %v322
  %v1870 = vunpack.c.l.b16 %v323
  %v1871 = vunpack.c.l.b16 %v324
  %v1872 = vunpack.c.l.b16 %v325
  %v1873 = vunpack.c.l.b16 %v326
  %v1874 = vunpack.c.l.b16 %v327
  %v1875 = vunpack.c.l.b16 %v328
  %v1876 = vunpack.c.l.b16 %v329
  %v1877 = vunpack.c.l.b16 %v330
  %v1878 = vunpack.c.l.b16 %v331
  %v1879 = vunpack.c.l.b16 %v332
  %v1880 = vunpack.c.l.b16 %v333
  %v1881 = vunpack.c.l.b16 %v334
  %v1882 = vunpack.c.l.b16 %v335
  %v1883 = vunpack.c.l.b16 %v336
  %v1884 = vunpack.c.l.b16 %v337
  %v1885 = vunpack.c.l.b16 %v338
  %v1886 = vunpack.c.l.b16 %v339
  %v1887 = vunpack.c.l.b16 %v340
  %v1888 = vunpack.c.l.b16 %v341
  %v1889 = vunpack.c.l.b16 %v342
  %v1890 = vunpack.c.l.b16 %v343
  %v1891 = vunpack.c.l.b16 %v344
  %v1892 = vunpack.c.l.b16 %v345
  %v1893 = vunpack.c.l.b16 %v346
  %v1894 = vunpack.c.l.b16 %v347
  %v1895 = vunpack.c.l.b16 %v348
  %v1896 = vunpack.c.l.b16 %v349
  %v1897 = vunpack.c.l.b16 %v350
  %v1898 = vunpack.c.l.b16 %v351
  %v1899 = vunpack.c.l.b16 %v352
  %v1900 = vunpack.c.l.b16 %v353
  %v1901 = vunpack.c.l.b16 %v354
  %v1902 = vunpack.c.l.b16 %v355
  %v1903 = vunpack.c.l.b16 %v356
  %v1904 = vunpack.c.l.b16 %v357
  %v1905 = vunpack.c.l.b16 %v358
  %v1906 = vunpack.c.l.b16 %v359
  %v1907 = vunpack.c.l.b16 %v360
  %v1908 = vunpack.c.l.b16 %v361
  %v1909 = vunpack.c.l.b16 %v362
  %v1910 = vunpack.c.l.b16 %v363
  %v1911 = vunpack.c.l.b16 %v364
  %v1912 = vunpack.c.l.b16 %v365
  %v1913 = vunpack.c.l.b16 %v366
  %v1914 = vunpack.c.l.b16 %v367
  %v1915 = vunpack.c.l.b16 %v368
  %v1916 = vunpack.c.l.b16 %v369
  %v1917 = vunpack.c.l.b16 %v370
  %v1918 = vunpack.c.l.b16 %v371
  %v1919 = vunpack.c.l.b16 %v372
  %v1920 = vunpack.c.l.b16 %v373
  %v1921 = vunpack.c.l.b16 %v374
  %v1922 = vunpack.c.l.b16 %v375
  %v1923 = vunpack.c.l.b16 %v376
  %v1924 = vunpack.c.l.b16 %v377
  %v1925 = vunpack.c.l.b16 %v378
  %v1926 = vunpack.c.l.b16 %v379
  %v1927 = vunpack.c.l.b16 %v380
  %v1928 = vunpack.c.l.b16 %v381
  %v1929 = vunpack.c.l.b16 %v382
  %v1930 = vunpack.c.l.b16 %v383
  %v1931 = vunpack.c.l.b16 %v384
  %v1932 = vunpack.c.l.b16 %v385
  %v1933 = vunpack.c.l.b16 %v386
  %v1934 = vunpack.c.l.b16 %v387
  %v1935 = vunpack.c.l.b16 %v388
  %v1936 = vunpack.c.l.b16 %v389
  %v1937 = vunpack.c.l.b16 %v390
  %v1938 = vunpack.c.l.b16 %v391
  %v1939 = vunpack.c.l.b16 %v392
  %v1940 = vunpack.c.l.b16 %v393
  %v1941 = vunpack.c.l.b16 %v394
  %v1942 = vunpack.c.l.b16 %v395
  %v1943 = vunpack.c.l.b16 %v396
  %v1944 = vunpack.c.l.b16 %v397
  %v1945 = vunpack.c.l.b16 %v398
  %v1946 = vunpack.c.l.b16 %v399
  %v1947 = vunpack.c.l.b16 %v400
  %v1948 = vunpack.c.l.b16 %v401
  %v1949 = vunpack.c.l.b16 %v402
  %v1950 = vunpack.c.l.b16 %v403
  %v1951 = vunpack.c.l.b16 %v404
  %v1952 = vunpack.c.l.b16 %v405
  %v1953 = vunpack.c.l.b16 %v406
  %v1954 = vunpack.c.l.b16 %v407
  %v1955 = vunpack.c.l.b16 %v408
  %v1956 = vunpack.c.l.b16 %v409
  %v1957 = vunpack.c.l.b16 %v410
  %v1958 = vunpack.c.l.b16 %v411
  %v1959 = vunpack.c.l.b16 %v412
  %v1960 = vunpack.c.l.b16 %v413
  %v1961 = vunpack.c.l.b16 %v414
  %v1962 = vunpack.c.l.b16 %v415
  %v1963 = vunpack.c.l.b16 %v416
  %v1964 = vunpack.c.l.b16 %v417
  %v1965 = vunpack.c.l.b16 %v418
  %v1966 = vunpack.c.l.b16 %v419
  %v1967 = vunpack.c.l.b16 %v420
  %v1968 = vunpack.c.l.b16 %v421
  %v1969 = vunpack.c.l.b16 %v422
  %v1970 = vunpack.c.l.b16 %v423
  %v1971 = vunpack.c.l.b16 %v424
  %v1972 = vunpack.c.l.b16 %v425
  %v1973 = vunpack.c.l.b16 %v426
  %v1974 = vunpack.c.l.b16 %v427
  %v1975 = vunpack.c.l.b16 %v428
  %v1976 = vunpack.c.l.b16 %v429
  %v1977 = vunpack.c.l.b16 %v430
  %v1978 = vunpack.c.l.b16 %v431
  %v1979 = vunpack.c.l.b16 %v432
  %v1980 = vunpack.c.l.b16 %v433
  %v1981 = vunpack.c.l.b16 %v434
  %v1982 = vunpack.c.l.b16 %v435
  %v1983 = vunpack.c.l.b16 %v436
  %v1984 = vunpack.c.l.b16 %v437
  %v1985 = vunpack.c.l.b16 %v438
  %v1986 = vunpack.c.l.b16 %v439
  %v1987 = vunpack.c.l.b16 %v440
  %v1988 = vunpack.c.l.b16 %v441
  %v1989 = vunpack.c.l.b16 %v442
  %v1990 = vunpack.c.l.b16 %v443
  %v1991 = vunpack.c.l.b16 %v444
  %v1992 = vunpack.c.l.b16 %v445
  %v1993 = vunpack.c.l.b16 %v446
  %v1994 = vunpack.c.l.b16 %v447
  %v1995 = vunpack.c.l.b16 %v448
  %v1996 = vunpack.c.l.b16 %v449
  %v1997 = vunpack.c.l.b16 %v450
  %v1998 = vunpack.c.l.b16 %v451
  %v1999 = vunpack.c.l.b16 %v452
  %v2000 = vunpack.c.l.b16 %v453
  %v2001 = vunpack.c.l.b16 %v454
  %v2002 = vunpack.c.l.b16 %v455
  %v2003 = vunpack.c.l.b16 %v456
  %v2004 = vunpack.c.l.b16 %v457
  %v2005 = vunpack.c.l.b16 %v458
  %v2006 = vunpack.c.l.b16 %v459
  %v2007 = vunpack.c.l.b16 %v460
  %v2008 = vunpack.c.l.b16 %v461
  %v2009 = vunpack.c.l.b16 %v462
  %v2010 = vunpack.c.l.b16 %v463
  %v2011 = vunpack.c.l.b16 %v464
  %v2012 = vunpack.c.l.b16 %v465
  %v2013 = vunpack.c.l.b16 %v466
  %v2014 = vunpack.c.l.b16 %v467
  %v2015 = vunpack.c.l.b16 %v468
  %v2016 = vunpack.c.l.b16 %v469
  %v2017 = vunpack.c.l.b16 %v470
  %v2018 = vunpack.c.l.b16 %v471
  %v2019 = vunpack.c.l.b16 %v472
  %v2020 = vunpack.c.l.b16 %v473
  %v2021 = vunpack.c.l.b16 %v474
  %v2022 = vunpack.c.l.b16 %v475
  %v2023 = vunpack.c.l.b16 %v476
  %v2024 = vunpack.c.l.b16 %v477
  %v2025 = vunpack.c.l.b16 %v478
  %v2026 = vunpack.c.l.b16 %v479
  %v2027 = vunpack.c.l.b16 %v480
  %v2028 = vunpack.c.l.b16 %v481
  %v2029 = vunpack.c.l.b16 %v482
  %v2030 = vunpack.c.l.b16 %v483
  %v2031 = vunpack.c.l.b16 %v484
  %v2032 = vunpack.c.l.b16 %v485
  %v2033 = vunpack.c.l.b16 %v486
  %v2034 = vunpack.c.l.b16 %v487
  %v2035 = vunpack.c.l.b16 %v488
  %v2036 = vunpack.c.l.b16 %v489
  %v2037 = vunpack.c.l.b16 %v490
  %v2038 = vunpack.c.l.b16 %v491
  %v2039 = vunpack.c.l.b16 %v492
  %v2040 = vunpack.c.l.b16 %v493
  %v2041 = vunpack.c.l.b16 %v494
  %v2042 = vunpack.c.l.b16 %v495
  %v2043 = vunpack.c.l.b16 %v496
  %v2044 = vunpack.c.l.b16 %v497
  %v2045 = vunpack.c.l.b16 %v498
  %v2046 = vunpack.c.l.b16 %v499
  %v2047 = vunpack.c.l.b16 %v500
  %v2048 = vunpack.c.l.b16 %v501
  %v2049 = vunpack.c.l.b16 %v502
  %v2050 = vunpack.c.l.b16 %v503
  %v2051 = vunpack.c.l.b16 %v504
  %v2052 = vunpack.c.l.b16 %v505
  %v2053 = vunpack.c.l.b16 %v506
  %v2054 = vunpack.c.l.b16 %v507
  %v2055 = vunpack.c.l.b16 %v508
  %v2056 = vunpack.c.l.b16 %v509
  %v2057 = vunpack.c.l.b16 %v510
  %v2058 = vunpack.c.l.b16 %v511
  %v2059 = vunpack.c.l.b16 %v512
  %v2060 = vunpack.c.l.b16 %v513
  %v2061 = vunpack.c.l.b16 %v514
  %v2062 = vunpack.c.l.b16 %v515
  %v2063 = vunpack.c.l.b16 %v516
  %v2064 = vunpack.c.l.b16 %v517
  %v2065 = vunpack.c.l.b16 %v518
  %v2066 = vunpack.c.l.b16 %v519
  %v2067 = vunpack.c.l.b16 %v520
  %v2068 = vunpack.c.l.b16 %v521
  %v2069 = vunpack.c.l.b16 %v522
  %v2070 = vunpack.c.l.b16 %v523
  %v2071 = vunpack.c.l.b16 %v524
  %v2072 = vunpack.c.l.b16 %v525
  %v2073 = vunpack.c.l.b16 %v526
  %v2074 = vunpack.c.l.b16 %v527
  %v2075 = vunpack.c.l.b16 %v528
  %v2076 = vunpack.c.l.b16 %v529
  %v2077 = vunpack.c.l.b16 %v530
  %v2078 = vunpack.c.l.b16 %v531
  %v2079 = vunpack.c.l.b16 %v532
  %v2080 = vunpack.c.l.b16 %v533
  %v2081 = vunpack.c.l.b16 %v534
  %v2082 = vunpack.c.l.b16 %v535
  %v2083 = vunpack.c.l.b16 %v536
  %v2084 = vunpack.c.l.b16 %v537
  %v2085 = vunpack.c.l.b16 %v538
  %v2086 = vunpack.c.l.b16 %v539
  %v2087 = vunpack.c.l.b16 %v540
  %v2088 = vunpack.c.l.b16 %v541
  %v2089 = vunpack.c.l.b16 %v542
  %v2090 = vunpack.c.l.b16 %v543
  %v2091 = vunpack.c.l.b16 %v544
  %v2092 = vunpack.c.l.b16 %v545
  %v2093 = vunpack.c.l.b16 %v546
  %v2094 = vunpack.c.l.b16 %v547
  %v2095 = vunpack.c.l.b16 %v548
  %v2096 = vunpack.c.l.b16 %v549
  %v2097 = vunpack.c.l.b16 %v550
  %v2098 = vunpack.c.l.b16 %v551
  %v2099 = vunpack.c.l.b16 %v552
  %v2100 = vunpack.c.l.b16 %v553
  %v2101 = vunpack.c.l.b16 %v554
  %v2102 = vunpack.c.l.b16 %v555
  %v2103 = vunpack.c.l.b16 %v556
  %v2104 = vunpack.c.l.b16 %v557
  %v2105 = vunpack.c.l.b16 %v558
  %v2106 = vunpack.c.l.b16 %v559
  %v2107 = vunpack.c.l.b16 %v560
  %v2108 = vunpack.c.l.b16 %v561
  %v2109 = vunpack.c.l.b16 %v562
  %v2110 = vunpack.c.l.b16 %v563
  %v2111 = vunpack.c.l.b16 %v564
  %v2112 = vunpack.c.l.b16 %v565
  %v2113 = vunpack.c.l.b16 %v566
  %v2114 = vunpack.c.l.b16 %v567
  %v2115 = vunpack.c.l.b16 %v568
  %v2116 = vunpack.c.l.b16 %v569
  %v2117 = vunpack.c.l.b16 %v570
  %v2118 = vunpack.c.l.b16 %v571
  %v2119 = vunpack.c.l.b16 %v572
  %v2120 = vunpack.c.l.b16 %v573
  %v2121 = vunpack.c.l.b16 %v574
  %v2122 = vunpack.c.l.b16 %v575
  %v2123 = vunpack.c.l.b16 %v576
  %v2124 = vunpack.c.l.b16 %v577
  %v2125 = vunpack.c.l.b16 %v578
  %v2126 = vunpack.c.l.b16 %v579
  %v2127 = vunpack.c.l.b16 %v580
  %v2128 = vunpack.c.l.b16 %v581
  %v2129 = vunpack.c.l.b16 %v582
  %v2130 = vunpack.c.l.b16 %v583
  %v2131 = vunpack.c.l.b16 %v584
  %v2132 = vunpack.c.l.b16 %v585
  %v2133 = vunpack.c.l.b16 %v586
  %v2134 = vunpack.c.l.b16 %v587
  %v2135 = vunpack.c.l.b16 %v588
  %v2136 = vunpack.c.l.b16 %v589
  %v2137 = vunpack.c.l.b16 %v590
  %v2138 = vunpack.c.l.b16 %v591
  %v2139 = vunpack.c.l.b16 %v592
  %v2140 = vunpack.c.l.b16 %v593
  %v2141 = vunpack.c.l.b16 %v594
  %v2142 = vunpack.c.l.b16 %v595
  %v2143 = vunpack.c.l.b16 %v596
  %v2144 = vunpack.c.l.b16 %v597
  %v2145 = vunpack.c.l.b16 %v598
  %v2146 = vunpack.c.l.b16 %v599
  %v2147 = vunpack.c.l.b16 %v600
  %v2148 = vunpack.c.l.b16 %v601
  %v2149 = vunpack.c.l.b16 %v602
  %v2150 = vunpack.c.l.b16 %v603
  %v2151 = vunpack.c.l.b16 %v604
  %v2152 = vunpack.c.l.b16 %v605
  %v2153 = vunpack.c.l.b16 %v606
  %v2154 = vunpack.c.l.b16 %v607
  %v2155 = vunpack.c.l.b16 %v608
  %v2156 = vunpack.c.l.b16 %v609
  %v2157 = vunpack.c.l.b16 %v610
  %v2158 = vunpack.c.l.b16 %v611
  %v2159 = vunpack.c.l.b16 %v612
  %v2160 = vunpack.c.l.b16 %v613
  %v2161 = vunpack.c.l.b16 %v614
  %v2162 = vunpack.c.l.b16 %v615
  %v2163 = vunpack.c.l.b16 %v616
  %v2164 = vunpack.c.l.b16 %v617
  %v2165 = vunpack.c.l.b16 %v618
  %v2166 = vunpack.c.l.b16 %v619
  %v2167 = vunpack.c.l.b16 %v620
  %v2168 = vunpack.c.l.b16 %v621
  %v2169 = vunpack.c.l.b16 %v622
  %v2170 = vunpack.c.l.b16 %v623
  %v2171 = vunpack.c.l.b16 %v624
  %v2172 = vunpack.c.l.b16 %v625
  %v2173 = vunpack.c.l.b16 %v626
  %v2174 = vunpack.c.l.b16 %v627
  %v2175 = vunpack.c.l.b16 %v628
  %v2176 = vunpack.c.l.b16 %v629
  %v2177 = vunpack.c.l.b16 %v630
  %v2178 = vunpack.c.l.b16 %v631
  %v2179 = vunpack.c.l.b16 %v632
  %v2180 = vunpack.c.l.b16 %v633
  %v2181 = vunpack.c.l.b16 %v634
  %v2182 = vunpack.c.l.b16 %v635
  %v2183 = vunpack.c.l.b16 %v636
  %v2184 = vunpack.c.l.b16 %v637
  %v2185 = vunpack.c.l.b16 %v638
  %v2186 = vunpack.c.l.b16 %v639
  %v2187 = vunpack.c.l.b16 %v640
  %v2188 = vunpack.c.l.b16 %v641
  %v2189 = vunpack.c.l.b16 %v642
  %v2190 = vunpack.c.l.b16 %v643
  %v2191 = vunpack.c.l.b16 %v644
  %v2192 = vunpack.c.l.b16 %v645
  %v2193 = vunpack.c.l.b16 %v646
  %v2194 = vunpack.c.l.b16 %v647
  %v2195 = vunpack.c.l.b16 %v648
  %v2196 = vunpack.c.l.b16 %v649
  %v2197 = vunpack.c.l.b16 %v650
  %v2198 = vunpack.c.l.b16 %v651
  %v2199 = vunpack.c.l.b16 %v652
  %v2200 = vunpack.c.l.b16 %v653
  %v2201 = vunpack.c.l.b16 %v654
  %v2202 = vunpack.c.l.b16 %v655
  %v2203 = vunpack.c.l.b16 %v656
  %v2204 = vunpack.c.l.b16 %v657
  %v2205 = vunpack.c.l.b16 %v658
  %v2206 = vunpack.c.l.b16 %v659
  %v2207 = vunpack.c.l.b16 %v660
  %v2208 = vunpack.c.l.b16 %v661
  %v2209 = vunpack.c.l.b16 %v662
  %v2210 = vunpack.c.l.b16 %v663
  %v2211 = vunpack.c.l.b16 %v664
  %v2212 = vunpack.c.l.b16 %v665
  %v2213 = vunpack.c.l.b16 %v666
  %v2214 = vunpack.c.l.b16 %v667
  %v2215 = vunpack.c.l.b16 %v668
  %v2216 = vunpack.c.l.b16 %v669
  %v2217 = vunpack.c.l.b16 %v670
  %v2218 = vunpack.c.l.b16 %v671
  %v2219 = vunpack.c.l.b16 %v672
  %v2220 = vunpack.c.l.b16 %v673
  %v2221 = vunpack.c.l.b16 %v674
  %v2222 = vunpack.c.l.b16 %v675
  %v2223 = vunpack.c.l.b16 %v676
  %v2224 = vunpack.c.l.b16 %v677
  %v2225 = vunpack.c.l.b16 %v678
  %v2226 = vunpack.c.l.b16 %v679
  %v2227 = vunpack.c.l.b16 %v680
  %v2228 = vunpack.c.l.b16 %v681
  %v2229 = vunpack.c.l.b16 %v682
  %v2230 = vunpack.c.l.b16 %v683
  %v2231 = vunpack.c.l.b16 %v684
  %v2232 = vunpack.c.l.b16 %v685
  %v2233 = vunpack.c.l.b16 %v686
  %v2234 = vunpack.c.l.b16 %v687
  %v2235 = vunpack.c.l.b16 %v688
  %v2236 = vunpack.c.l.b16 %v689
  %v2237 = vunpack.c.l.b16 %v690
  %v2238 = vunpack.c.l.b16 %v691
  %v2239 = vunpack.c.l.b16 %v692
  %v2240 = vunpack.c.l.b16 %v693
  %v2241 = vunpack.c.l.b16 %v694
  %v2242 = vunpack.c.l.b16 %v695
  %v2243 = vunpack.c.l.b16 %v696
  %v2244 = vunpack.c.l.b16 %v697
  %v2245 = vunpack.c.l.b16 %v698
  %v2246 = vunpack.c.l.b16 %v699
  %v2247 = vunpack.c.l.b16 %v700
  %v2248 = vunpack.c.l.b16 %v701
  %v2249 = vunpack.c.l.b16 %v702
  %v2250 = vunpack.c.l.b16 %v703
  %v2251 = vunpack.c.l.b16 %v704
  %v2252 = vunpack.c.l.b16 %v705
  %v2253 = vunpack.c.l.b16 %v706
  %v2254 = vunpack.c.l.b16 %v707
  %v2255 = vunpack.c.l.b16 %v708
  %v2256 = vunpack.c.l.b16 %v709
  %v2257 = vunpack.c.l.b16 %v710
  %v2258 = vunpack.c.l.b16 %v711
  %v2259 = vunpack.c.l.b16 %v712
  %v2260 = vunpack.c.l.b16 %v713
  %v2261 = vunpack.c.l.b16 %v714
  %v2262 = vunpack.c.l.b16 %v715
  %v2263 = vunpack.c.l.b16 %v716
  %v2264 = vunpack.c.l.b16 %v717
  %v2265 = vunpack.c.l.b16 %v718
  %v2266 = vunpack.c.l.b16 %v719
  %v2267 = vunpack.c.l.b16 %v720
  %v2268 = vunpack.c.l.b16 %v721
  %v2269 = vunpack.c.l.b16 %v722
  %v2270 = vunpack.c.l.b16 %v723
  %v2271 = vunpack.c.l.b16 %v724
  %v2272 = vunpack.c.l.b16 %v725
  %v2273 = vunpack.c.l.b16 %v726
  %v2274 = vunpack.c.l.b16 %v727
  %v2275 = vunpack.c.l.b16 %v728
  %v2276 = vunpack.c.l.b16 %v729
  %v2277 = vunpack.c.l.b16 %v730
  %v2278 = vunpack.c.l.b16 %v731
  %v2279 = vunpack.c.l.b16 %v732
  %v2280 = vunpack.c.l.b16 %v733
  %v2281 = vunpack.c.l.b16 %v734
  %v2282 = vunpack.c.l.b16 %v735
  %v2283 = vunpack.c.l.b16 %v736
  %v2284 = vunpack.c.l.b16 %v737
  %v2285 = vunpack.c.l.b16 %v738
  %v2286 = vunpack.c.l.b16 %v739
  %v2287 = vunpack.c.l.b16 %v740
  %v2288 = vunpack.c.l.b16 %v741
  %v2289 = vunpack.c.l.b16 %v742
  %v2290 = vunpack.c.l.b16 %v743
  %v2291 = vunpack.c.l.b16 %v744
  %v2292 = vunpack.c.l.b16 %v745
  %v2293 = vunpack.c.l.b16 %v746
  %v2294 = vunpack.c.l.b16 %v747
  %v2295 = vunpack.c.l.b16 %v748
  %v2296 = vunpack.c.l.b16 %v749
  %v2297 = vunpack.c.l.b16 %v750
  %v2298 = vunpack.c.l.b16 %v751
  %v2299 = vunpack.c.l.b16 %v752
  %v2300 = vunpack.c.l.b16 %v753
  %v2301 = vunpack.c.l.b16 %v754
  %v2302 = vunpack.c.l.b16 %v755
  %v2303 = vunpack.c.l.b16 %v756
  %v2304 = vunpack.c.l.b16 %v757
  %v2305 = vunpack.c.l.b16 %v758
  %v2306 = vunpack.c.l.b16 %v759
  %v2307 = vunpack.c.l.b16 %v760
  %v2308 = vunpack.c.l.b16 %v761
  %v2309 = vunpack.c.l.b16 %v762
  %v2310 = vunpack.c.l.b16 %v763
  %v2311 = vunpack.c.l.b16 %v764
  %v2312 = vunpack.c.l.b16 %v765
  %v2313 = vunpack.c.l.b16 %v766
  %v2314 = vunpack.c.l.b16 %v767
  %v2315 = vunpack.c.l.b16 %v768
  %v2316 = vunpack.c.l.b16 %v769
  %v2317 = vunpack.c.l.b16 %v770
  %v2318 = vunpack.c.l.b16 %v771
  %v2319 = vunpack.c.l.b16 %v772
  %v2320 = vunpack.c.l.b16 %v773
  %v2321 = vunpack.c.l.b16 %v774
  %v2322 = vunpack.c.l.b16 %v775
  %v2323 = vunpack.c.l.b16 %v776
  %v2324 = vunpack.c.l.b16 %v777
  %v2325 = vunpack.c.l.b16 %v778
  %v2326 = vunpack.c.l.b16 %v779
  %v2327 = vunpack.c.l.b16 %v780
  %v2328 = vunpack.c.l.b16 %v781
  %v2329 = vunpack.c.l.b16 %v782
  %v2330 = vunpack.c.l.b16 %v783
  %v2331 = vunpack.c.l.b16 %v784
  %v2332 = vunpack.c.l.b16 %v785
  %v2333 = vunpack.c.l.b16 %v786
  %v2334 = vunpack.c.l.b16 %v787
  %v2335 = vunpack.c.l.b16 %v788
  %v2336 = vpack.c.b16 %v1569, %v1568
  %v2337 = vpack.c.b16 %v1571, %v1570
  %v2338 = vpack.c.b16 %v1573, %v1572
  %v2339 = vpack.c.b16 %v1575, %v1574
  %v2340 = vpack.c.b16 %v1577, %v1576
  %v2341 = vpack.c.b16 %v1579, %v1578
  %v2342 = vpack.c.b16 %v1581, %v1580
  %v2343 = vpack.c.b16 %v1583, %v1582
  %v2344 = vpack.c.b16 %v1585, %v1584
  %v2345 = vpack.c.b16 %v1587, %v1586
  %v2346 = vpack.c.b16 %v1589, %v1588
  %v2347 = vpack.c.b16 %v1591, %v1590
  %v2348 = vpack.c.b16 %v1593, %v1592
  %v2349 = vpack.c.b16 %v1595, %v1594
  %v2350 = vpack.c.b16 %v1597, %v1596
  %v2351 = vpack.c.b16 %v1599, %v1598
  %v2352 = vpack.c.b16 %v1601, %v1600
  %v2353 = vpack.c.b16 %v1603, %v1602
  %v2354 = vpack.c.b16 %v1605, %v1604
  %v2355 = vpack.c.b16 %v1607, %v1606
  %v2356 = vpack.c.b16 %v1609, %v1608
  %v2357 = vpack.c.b16 %v1611, %v1610
  %v2358 = vpack.c.b16 %v1613, %v1612
  %v2359 = vpack.c.b16 %v1615, %v1614
  %v2360 = vpack.c.b16 %v1617, %v1616
  %v2361 = vpack.c.b16 %v1619, %v1618
  %v2362 = vpack.c.b16 %v1621, %v1620
  %v2363 = vpack.c.b16 %v1623, %v1622
  %v2364 = vpack.c.b16 %v1625, %v1624
  %v2365 = vpack.c.b16 %v1627, %v1626
  %v2366 = vpack.c.b16 %v1629, %v1628
  %v2367 = vpack.c.b16 %v1631, %v1630
  %v2368 = vpack.c.b16 %v1633, %v1632
  %v2369 = vpack.c.b16 %v1635, %v1634
  %v2370 = vpack.c.b16 %v1637, %v1636
  %v2371 = vpack.c.b16 %v1639, %v1638
  %v2372 = vpack.c.b16 %v1641, %v1640
  %v2373 = vpack.c.b16 %v1643, %v1642
  %v2374 = vpack.c.b16 %v1645, %v1644
  %v2375 = vpack.c.b16 %v1647, %v1646
  %v2376 = vpack.c.b16 %v1649, %v1648
  %v2377 = vpack.c.b16 %v1651, %v1650
  %v2378 = vpack.c.b16 %v1653, %v1652
  %v2379 = vpack.c.b16 %v1655, %v1654
  %v2380 = vpack.c.b16 %v1657, %v1656
  %v2381 = vpack.c.b16 %v1659, %v1658
  %v2382 = vpack.c.b16 %v1661, %v1660
  %v2383 = vpack.c.b16 %v1663, %v1662
  %v2384 = vpack.c.b16 %v1665, %v1664
  %v2385 = vpack.c.b16 %v1667, %v1666
  %v2386 = vpack.c.b16 %v1669, %v1668
  %v2387 = vpack.c.b16 %v1671, %v1670
  %v2388 = vpack.c.b16 %v1673, %v1672
  %v2389 = vpack.c.b16 %v1675, %v1674
  %v2390 = vpack.c.b16 %v1677, %v1676
  %v2391 = vpack.c.b16 %v1679, %v1678
  %v2392 = vpack.c.b16 %v1681, %v1680
  %v2393 = vpack.c.b16 %v1683, %v1682
  %v2394 = vpack.c.b16 %v1685, %v1684
  %v2395 = vpack.c.b16 %v1687, %v1686
  %v2396 = vpack.c.b16 %v1689, %v1688
  %v2397 = vpack.c.b16 %v1691, %v1690
  %v2398 = vpack.c.b16 %v1693, %v1692
  %v2399 = vpack.c.b16 %v1695, %v1694
  %v2400 = vpack.c.b16 %v1697, %v1696
  %v2401 = vpack.c.b16 %v1699, %v1698
  %v2402 = vpack.c.b16 %v1701, %v1700
  %v2403 = vpack.c.b16 %v1703, %v1702
  %v2404 = vpack.c.b16 %v1705, %v1704
  %v2405 = vpack.c.b16 %v1707, %v1706
  %v2406 = vpack.c.b16 %v1709, %v1708
  %v2407 = vpack.c.b16 %v1711, %v1710
  %v2408 = vpack.c.b16 %v1713, %v1712
  %v2409 = vpack.c.b16 %v1715, %v1714
  %v2410 = vpack.c.b16 %v1717, %v1716
  %v2411 = vpack.c.b16 %v1719, %v1718
  %v2412 = vpack.c.b16 %v1721, %v1720
  %v2413 = vpack.c.b16 %v1723, %v1722
  %v2414 = vpack.c.b16 %v1725, %v1724
  %v2415 = vpack.c.b16 %v1727, %v1726
  %v2416 = vpack.c.b16 %v1729, %v1728
  %v2417 = vpack.c.b16 %v1731, %v1730
  %v2418 = vpack.c.b16 %v1733, %v1732
  %v2419 = vpack.c.b16 %v1735, %v1734
  %v2420 = vpack.c.b16 %v1737, %v1736
  %v2421 = vpack.c.b16 %v1739, %v1738
  %v2422 = vpack.c.b16 %v1741, %v1740
  %v2423 = vpack.c.b16 %v1743, %v1742
  %v2424 = vpack.c.b16 %v1745, %v1744
  %v2425 = vpack.c.b16 %v1747, %v1746
  %v2426 = vpack.c.b16 %v1749, %v1748
  %v2427 = vpack.c.b16 %v1751, %v1750
  %v2428 = vpack.c.b16 %v1753, %v1752
  %v2429 = vpack.c.b16 %v1755, %v1754
  %v2430 = vpack.c.b16 %v1757, %v1756
  %v2431 = vpack.c.b16 %v1759, %v1758
  %v2432 = vpack.c.b16 %v1761, %v1760
  %v2433 = vpack.c.b16 %v1763, %v1762
  %v2434 = vpack.c.b16 %v1765, %v1764
  %v2435 = vpack.c.b16 %v1767, %v1766
  %v2436 = vpack.c.b16 %v1769, %v1768
  %v2437 = vpack.c.b16 %v1771, %v1770
  %v2438 = vpack.c.b16 %v1773, %v1772
  %v2439 = vpack.c.b16 %v1775, %v1774
  %v2440 = vpack.c.b16 %v1777, %v1776
  %v2441 = vpack.c.b16 %v1779, %v1778
  %v2442 = vpack.c.b16 %v1781, %v1780
  %v2443 = vpack.c.b16 %v1783, %v1782
  %v2444 = vpack.c.b16 %v1785, %v1784
  %v2445 = vpack.c.b16 %v1787, %v1786
  %v2446 = vpack.c.b16 %v1789, %v1788
  %v2447 = vpack.c.b16 %v1791, %v1790
  %v2448 = vpack.c.b16 %v1793, %v1792
  %v2449 = vpack.c.b16 %v1795, %v1794
  %v2450 = vpack.c.b16 %v1797, %v1796
  %v2451 = vpack.c.b16 %v1799, %v1798
  %v2452 = vpack.c.b16 %v1801, %v1800
  %v2453 = vpack.c.b16 %v1803, %v1802
  %v2454 = vpack.c.b16 %v1805, %v1804
  %v2455 = vpack.c.b16 %v1807, %v1806
  %v2456 = vpack.c.b16 %v1809, %v1808
  %v2457 = vpack.c.b16 %v1811, %v1810
  %v2458 = vpack.c.b16 %v1813, %v1812
  %v2459 = vpack.c.b16 %v1815, %v1814
  %v2460 = vpack.c.b16 %v1817, %v1816
  %v2461 = vpack.c.b16 %v1819, %v1818
  %v2462 = vpack.c.b16 %v1821, %v1820
  %v2463 = vpack.c.b16 %v1823, %v1822
  %v2464 = vpack.c.b16 %v1825, %v1824
  %v2465 = vpack.c.b16 %v1827, %v1826
  %v2466 = vpack.c.b16 %v1829, %v1828
  %v2467 = vpack.c.b16 %v1831, %v1830
  %v2468 = vpack.c.b16 %v1833, %v1832
  %v2469 = vpack.c.b16 %v1835, %v1834
  %v2470 = vpack.c.b16 %v1837, %v1836
  %v2471 = vpack.c.b16 %v1839, %v1838
  %v2472 = vpack.c.b16 %v1841, %v1840
  %v2473 = vpack.c.b16 %v1843, %v1842
  %v2474 = vpack.c.b16 %v1845, %v1844
  %v2475 = vpack.c.b16 %v1847, %v1846
  %v2476 = vpack.c.b16 %v1849, %v1848
  %v2477 = vpack.c.b16 %v1851, %v1850
  %v2478 = vpack.c.b16 %v1853, %v1852
  %v2479 = vpack.c.b16 %v1855, %v1854
  %v2480 = vpack.c.b16 %v1857, %v1856
  %v2481 = vpack.c.b16 %v1859, %v1858
  %v2482 = vpack.c.b16 %v1861, %v1860
  %v2483 = vpack.c.b16 %v1863, %v1862
  %v2484 = vpack.c.b16 %v1865, %v1864
  %v2485 = vpack.c.b16 %v1867, %v1866
  %v2486 = vpack.c.b16 %v1869, %v1868
  %v2487 = vpack.c.b16 %v1871, %v1870
  %v2488 = vpack.c.b16 %v1873, %v1872
  %v2489 = vpack.c.b16 %v1875, %v1874
  %v2490 = vpack.c.b16 %v1877, %v1876
  %v2491 = vpack.c.b16 %v1879, %v1878
  %v2492 = vpack.c.b16 %v1881, %v1880
  %v2493 = vpack.c.b16 %v1883, %v1882
  %v2494 = vpack.c.b16 %v1885, %v1884
  %v2495 = vpack.c.b16 %v1887, %v1886
  %v2496 = vpack.c.b16 %v1889, %v1888
  %v2497 = vpack.c.b16 %v1891, %v1890
  %v2498 = vpack.c.b16 %v1893, %v1892
  %v2499 = vpack.c.b16 %v1895, %v1894
  %v2500 = vpack.c.b16 %v1897, %v1896
  %v2501 = vpack.c.b16 %v1899, %v1898
  %v2502 = vpack.c.b16 %v1901, %v1900
  %v2503 = vpack.c.b16 %v1903, %v1902
  %v2504 = vpack.c.b16 %v1905, %v1904
  %v2505 = vpack.c.b16 %v1907, %v1906
  %v2506 = vpack.c.b16 %v1909, %v1908
  %v2507 = vpack.c.b16 %v1911, %v1910
  %v2508 = vpack.c.b16 %v1913, %v1912
  %v2509 = vpack.c.b16 %v1915, %v1914
  %v2510 = vpack.c.b16 %v1917, %v1916
  %v2511 = vpack.c.b16 %v1919, %v1918
  %v2512 = vpack.c.b16 %v1921, %v1920
  %v2513 = vpack.c.b16 %v1923, %v1922
  %v2514 = vpack.c.b16 %v1925, %v1924
  %v2515 = vpack.c.b16 %v1927, %v1926
  %v2516 = vpack.c.b16 %v1929, %v1928
  %v2517 = vpack.c.b16 %v1931, %v1930
  %v2518 = vpack.c.b16 %v1933, %v1932
  %v2519 = vpack.c.b16 %v1935, %v1934
  %v2520 = vpack.c.b16 %v1937, %v1936
  %v2521 = vpack.c.b16 %v1939, %v1938
  %v2522 = vpack.c.b16 %v1941, %v1940
  %v2523 = vpack.c.b16 %v1943, %v1942
  %v2524 = vpack.c.b16 %v1945, %v1944
  %v2525 = vpack.c.b16 %v1947, %v1946
  %v2526 = vpack.c.b16 %v1949, %v1948
  %v2527 = vpack.c.b16 %v1951, %v1950
  %v2528 = vpack.c.b16 %v1953, %v1952
  %v2529 = vpack.c.b16 %v1955, %v1954
  %v2530 = vpack.c.b16 %v1957, %v1956
  %v2531 = vpack.c.b16 %v1959, %v1958
  %v2532 = vpack.c.b16 %v1961, %v1960
  %v2533 = vpack.c.b16 %v1963, %v1962
  %v2534 = vpack.c.b16 %v1965, %v1964
  %v2535 = vpack.c.b16 %v1967, %v1966
  %v2536 = vpack.c.b16 %v1969, %v1968
  %v2537 = vpack.c.b16 %v1971, %v1970
  %v2538 = vpack.c.b16 %v1973, %v1972
  %v2539 = vpack.c.b16 %v1975, %v1974
  %v2540 = vpack.c.b16 %v1977, %v1976
  %v2541 = vpack.c.b16 %v1979, %v1978
  %v2542 = vpack.c.b16 %v1981, %v1980
  %v2543 = vpack.c.b16 %v1983, %v1982
  %v2544 = vpack.c.b16 %v1985, %v1984
  %v2545 = vpack.c.b16 %v1987, %v1986
  %v2546 = vpack.c.b16 %v1989, %v1988
  %v2547 = vpack.c.b16 %v1991, %v1990
  %v2548 = vpack.c.b16 %v1993, %v1992
  %v2549 = vpack.c.b16 %v1995, %v1994
  %v2550 = vpack.c.b16 %v1997, %v1996
  %v2551 = vpack.c.b16 %v1999, %v1998
  %v2552 = vpack.c.b16 %v2001, %v2000
  %v2553 = vpack.c.b16 %v2003, %v2002
  %v2554 = vpack.c.b16 %v2005, %v2004
  %v2555 = vpack.c.b16 %v2007, %v2006
  %v2556 = vpack.c.b16 %v2009, %v2008
  %v2557 = vpack.c.b16 %v2011, %v2010
  %v2558 = vpack.c.b16 %v2013, %v2012
  %v2559 = vpack.c.b16 %v2015, %v2014
  %v2560 = vpack.c.b16 %v2017, %v2016
  %v2561 = vpack.c.b16 %v2019, %v2018
  %v2562 = vpack.c.b16 %v2021, %v2020
  %v2563 = vpack.c.b16 %v2023, %v2022
  %v2564 = vpack.c.b16 %v2025, %v2024
  %v2565 = vpack.c.b16 %v2027, %v2026
  %v2566 = vpack.c.b16 %v2029, %v2028
  %v2567 = vpack.c.b16 %v2031, %v2030
  %v2568 = vpack.c.b16 %v2033, %v2032
  %v2569 = vpack.c.b16 %v2035, %v2034
  %v2570 = vpack.c.b16 %v2037, %v2036
  %v2571 = vpack.c.b16 %v2039, %v2038
  %v2572 = vpack.c.b16 %v2041, %v2040
  %v2573 = vpack.c.b16 %v2043, %v2042
  %v2574 = vpack.c.b16 %v2045, %v2044
  %v2575 = vpack.c.b16 %v2047, %v2046
  %v2576 = vpack.c.b16 %v2049, %v2048
  %v2577 = vpack.c.b16 %v2051, %v2050
  %v2578 = vpack.c.b16 %v2053, %v2052
  %v2579 = vpack.c.b16 %v2055, %v2054
  %v2580 = vpack.c.b16 %v2057, %v2056
  %v2581 = vpack.c.b16 %v2059, %v2058
  %v2582 = vpack.c.b16 %v2061, %v2060
  %v2583 = vpack.c.b16 %v2063, %v2062
  %v2584 = vpack.c.b16 %v2065, %v2064
  %v2585 = vpack.c.b16 %v2067, %v2066
  %v2586 = vpack.c.b16 %v2069, %v2068
  %v2587 = vpack.c.b16 %v2071, %v2070
  %v2588 = vpack.c.b16 %v2073, %v2072
  %v2589 = vpack.c.b16 %v2075, %v2074
  %v2590 = vpack.c.b16 %v2077, %v2076
  %v2591 = vpack.c.b16 %v2079, %v2078
  %v2592 = vpack.c.b16 %v2081, %v2080
  %v2593 = vpack.c.b16 %v2083, %v2082
  %v2594 = vpack.c.b16 %v2085, %v2084
  %v2595 = vpack.c.b16 %v2087, %v2086
  %v2596 = vpack.c.b16 %v2089, %v2088
  %v2597 = vpack.c.b16 %v2091, %v2090
  %v2598 = vpack.c.b16 %v2093, %v2092
  %v2599 = vpack.c.b16 %v2095, %v2094
  %v2600 = vpack.c.b16 %v2097, %v2096
  %v2601 = vpack.c.b16 %v2099, %v2098
  %v2602 = vpack.c.b16 %v2101, %v2100
  %v2603 = vpack.c.b16 %v2103, %v2102
  %v2604 = vpack.c.b16 %v2105, %v2104
  %v2605 = vpack.c.b16 %v2107, %v2106
  %v2606 = vpack.c.b16 %v2109, %v2108
  %v2607 = vpack.c.b16 %v2111, %v2110
  %v2608 = vpack.c.b16 %v2113, %v2112
  %v2609 = vpack.c.b16 %v2115, %v2114
  %v2610 = vpack.c.b16 %v2117, %v2116
  %v2611 = vpack.c.b16 %v2119, %v2118
  %v2612 = vpack.c.b16 %v2121, %v2120
  %v2613 = vpack.c.b16 %v2123, %v2122
  %v2614 = vpack.c.b16 %v2125, %v2124
  %v2615 = vpack.c.b16 %v2127, %v2126
  %v2616 = vpack.c.b16 %v2129, %v2128
  %v2617 = vpack.c.b16 %v2131, %v2130
  %v2618 = vpack.c.b16 %v2133, %v2132
  %v2619 = vpack.c.b16 %v2135, %v2134
  %v2620 = vpack.c.b16 %v2137, %v2136
  %v2621 = vpack.c.b16 %v2139, %v2138
  %v2622 = vpack.c.b16 %v2141, %v2140
  %v2623 = vpack.c.b16 %v2143, %v2142
  %v2624 = vpack.c.b16 %v2145, %v2144
  %v2625 = vpack.c.b16 %v2147, %v2146
  %v2626 = vpack.c.b16 %v2149, %v2148
  %v2627 = vpack.c.b16 %v2151, %v2150
  %v2628 = vpack.c.b16 %v2153, %v2152
  %v2629 = vpack.c.b16 %v2155, %v2154
  %v2630 = vpack.c.b16 %v2157, %v2156
  %v2631 = vpack.c.b16 %v2159, %v2158
  %v2632 = vpack.c.b16 %v2161, %v2160
  %v2633 = vpack.c.b16 %v2163, %v2162
  %v2634 = vpack.c.b16 %v2165, %v2164
  %v2635 = vpack.c.b16 %v2167, %v2166
  %v2636 = vpack.c.b16 %v2169, %v2168
  %v2637 = vpack.c.b16 %v2171, %v2170
  %v2638 = vpack.c.b16 %v2173, %v2172
  %v2639 = vpack.c.b16 %v2175, %v2174
  %v2640 = vpack.c.b16 %v2177, %v2176
  %v2641 = vpack.c.b16 %v2179, %v2178
  %v2642 = vpack.c.b16 %v2181, %v2180
  %v2643 = vpack.c.b16 %v2183, %v2182
  %v2644 = vpack.c.b16 %v2185, %v2184
  %v2645 = vpack.c.b16 %v2187, %v2186
  %v2646 = vpack.c.b16 %v2189, %v2188
  %v2647 = vpack.c.b16 %v2191, %v2190
  %v2648 = vpack.c.b16 %v2193, %v2192
  %v2649 = vpack.c.b16 %v2195, %v2194
  %v2650 = vpack.c.b16 %v2197, %v2196
  %v2651 = vpack.c.b16 %v2199, %v2198
  %v2652 = vpack.c.b16 %v2201, %v2200
  %v2653 = vpack.c.b16 %v2203, %v2202
  %v2654 = vpack.c.b16 %v2205, %v2204
  %v2655 = vpack.c.b16 %v2207, %v2206
  %v2656 = vpack.c.b16 %v2209, %v2208
  %v2657 = vpack.c.b16 %v2211, %v2210
  %v2658 = vpack.c.b16 %v2213, %v2212
  %v2659 = vpack.c.b16 %v2215, %v2214
  %v2660 = vpack.c.b16 %v2217, %v2216
  %v2661 = vpack.c.b16 %v2219, %v2218
  %v2662 = vpack.c.b16 %v2221, %v2220
  %v2663 = vpack.c.b16 %v2223, %v2222
  %v2664 = vpack.c.b16 %v2225, %v2224
  %v2665 = vpack.c.b16 %v2227, %v2226
  %v2666 = vpack.c.b16 %v2229, %v2228
  %v2667 = vpack.c.b16 %v2231, %v2230
  %v2668 = vpack.c.b16 %v2233, %v2232
  %v2669 = vpack.c.b16 %v2235, %v2234
  %v2670 = vpack.c.b16 %v2237, %v2236
  %v2671 = vpack.c.b16 %v2239, %v2238
  %v2672 = vpack.c.b16 %v2241, %v2240
  %v2673 = vpack.c.b16 %v2243, %v2242
  %v2674 = vpack.c.b16 %v2245, %v2244
  %v2675 = vpack.c.b16 %v2247, %v2246
  %v2676 = vpack.c.b16 %v2249, %v2248
  %v2677 = vpack.c.b16 %v2251, %v2250
  %v2678 = vpack.c.b16 %v2253, %v2252
  %v2679 = vpack.c.b16 %v2255, %v2254
  %v2680 = vpack.c.b16 %v2257, %v2256
  %v2681 = vpack.c.b16 %v2259, %v2258
  %v2682 = vpack.c.b16 %v2261, %v2260
  %v2683 = vpack.c.b16 %v2263, %v2262
  %v2684 = vpack.c.b16 %v2265, %v2264
  %v2685 = vpack.c.b16 %v2267, %v2266
  %v2686 = vpack.c.b16 %v2269, %v2268
  %v2687 = vpack.c.b16 %v2271, %v2270
  %v2688 = vpack.c.b16 %v2273, %v2272
  %v2689 = vpack.c.b16 %v2275, %v2274
  %v2690 = vpack.c.b16 %v2277, %v2276
  %v2691 = vpack.c.b16 %v2279, %v2278
  %v2692 = vpack.c.b16 %v2281, %v2280
  %v2693 = vpack.c.b16 %v2283, %v2282
  %v2694 = vpack.c.b16 %v2285, %v2284
  %v2695 = vpack.c.b16 %v2287, %v2286
  %v2696 = vpack.c.b16 %v2289, %v2288
  %v2697 = vpack.c.b16 %v2291, %v2290
  %v2698 = vpack.c.b16 %v2293, %v2292
  %v2699 = vpack.c.b16 %v2295, %v2294
  %v2700 = vpack.c.b16 %v2297, %v2296
  %v2701 = vpack.c.b16 %v2299, %v2298
  %v2702 = vpack.c.b16 %v2301, %v2300
  %v2703 = vpack.c.b16 %v2303, %v2302
  %v2704 = vpack.c.b16 %v2305, %v2304
  %v2705 = vpack.c.b16 %v2307, %v2306
  %v2706 = vpack.c.b16 %v2309, %v2308
  %v2707 = vpack.c.b16 %v2311, %v2310
  %v2708 = vpack.c.b16 %v2313, %v2312
  %v2709 = vpack.c.b16 %v2315, %v2314
  %v2710 = vpack.c.b16 %v2317, %v2316
  %v2711 = vpack.c.b16 %v2319, %v2318
  %v2712 = vpack.c.b16 %v2321, %v2320
  %v2713 = vpack.c.b16 %v2323, %v2322
  %v2714 = vpack.c.b16 %v2325, %v2324
  %v2715 = vpack.c.b16 %v2327, %v2326
  %v2716 = vpack.c.b16 %v2329, %v2328
  %v2717 = vpack.c.b16 %v2331, %v2330
  %v2718 = vpack.c.b16 %v2333, %v2332
  %v2719 = vpack.c.b16 %v2335, %v2334
  %v2724 = vunpack.c.l.b16 %v789
  %v2725 = vunpack.c.l.b16 %v790
  %v2726 = vunpack.c.l.b16 %v791
  %v2727 = vunpack.c.l.b16 %v792
  %v2728 = vpack.c.b16 %v2725, %v2724
  %v2729 = vpack.c.b16 %v2727, %v2726
  %vm2731 = vcmask 220160
  %v2733 = vsel %vm2731, %v2336, 0
  %v2736 = vsel %vm2731, %v2337, 0
  %v2739 = vsel %vm2731, %v2338, 0
  %v2742 = vsel %vm2731, %v2339, 0
  %v2745 = vsel %vm2731, %v2340, 0
  %v2748 = vsel %vm2731, %v2341, 0
  %v2751 = vsel %vm2731, %v2342, 0
  %v2754 = vsel %vm2731, %v2343, 0
  %v2757 = vsel %vm2731, %v2344, 0
  %v2760 = vsel %vm2731, %v2345, 0
  %v2763 = vsel %vm2731, %v2346, 0
  %v2766 = vsel %vm2731, %v2347, 0
  %v2769 = vsel %vm2731, %v2348, 0
  %v2772 = vsel %vm2731, %v2349, 0
  %v2775 = vsel %vm2731, %v2350, 0
  %v2778 = vsel %vm2731, %v2351, 0
  %v2781 = vsel %vm2731, %v2352, 0
  %v2784 = vsel %vm2731, %v2353, 0
  %v2787 = vsel %vm2731, %v2354, 0
  %v2790 = vsel %vm2731, %v2355, 0
  %v2793 = vsel %vm2731, %v2356, 0
  %v2796 = vsel %vm2731, %v2357, 0
  %v2799 = vsel %vm2731, %v2358, 0
  %v2802 = vsel %vm2731, %v2359, 0
  %v2805 = vsel %vm2731, %v2360, 0
  %v2808 = vsel %vm2731, %v2361, 0
  %v2811 = vsel %vm2731, %v2362, 0
  %v2814 = vsel %vm2731, %v2363, 0
  %v2817 = vsel %vm2731, %v2364, 0
  %v2820 = vsel %vm2731, %v2365, 0
  %v2823 = vsel %vm2731, %v2366, 0
  %v2826 = vsel %vm2731, %v2367, 0
  %v2829 = vsel %vm2731, %v2368, 0
  %v2832 = vsel %vm2731, %v2369, 0
  %v2835 = vsel %vm2731, %v2370, 0
  %v2838 = vsel %vm2731, %v2371, 0
  %v2841 = vsel %vm2731, %v2372, 0
  %v2844 = vsel %vm2731, %v2373, 0
  %v2847 = vsel %vm2731, %v2374, 0
  %v2850 = vsel %vm2731, %v2375, 0
  %v2853 = vsel %vm2731, %v2376, 0
  %v2856 = vsel %vm2731, %v2377, 0
  %v2859 = vsel %vm2731, %v2378, 0
  %v2862 = vsel %vm2731, %v2379, 0
  %v2865 = vsel %vm2731, %v2380, 0
  %v2868 = vsel %vm2731, %v2381, 0
  %v2871 = vsel %vm2731, %v2382, 0
  %v2874 = vsel %vm2731, %v2383, 0
  %v2877 = vsel %vm2731, %v2384, 0
  %v2880 = vsel %vm2731, %v2385, 0
  %v2883 = vsel %vm2731, %v2386, 0
  %v2886 = vsel %vm2731, %v2387, 0
  %v2889 = vsel %vm2731, %v2388, 0
  %v2892 = vsel %vm2731, %v2389, 0
  %v2895 = vsel %vm2731, %v2390, 0
  %v2898 = vsel %vm2731, %v2391, 0
  %v2901 = vsel %vm2731, %v2392, 0
  %v2904 = vsel %vm2731, %v2393, 0
  %v2907 = vsel %vm2731, %v2394, 0
  %v2910 = vsel %vm2731, %v2395, 0
  %v2913 = vsel %vm2731, %v2396, 0
  %v2916 = vsel %vm2731, %v2397, 0
  %v2919 = vsel %vm2731, %v2398, 0
  %v2922 = vsel %vm2731, %v2399, 0
  %v2925 = vsel %vm2731, %v2400, 0
  %v2928 = vsel %vm2731, %v2401, 0
  %v2931 = vsel %vm2731, %v2402, 0
  %v2934 = vsel %vm2731, %v2403, 0
  %v2937 = vsel %vm2731, %v2404, 0
  %v2940 = vsel %vm2731, %v2405, 0
  %v2943 = vsel %vm2731, %v2406, 0
  %v2946 = vsel %vm2731, %v2407, 0
  %v2949 = vsel %vm2731, %v2408, 0
  %v2952 = vsel %vm2731, %v2409, 0
  %v2955 = vsel %vm2731, %v2410, 0
  %v2958 = vsel %vm2731, %v2411, 0
  %v2961 = vsel %vm2731, %v2412, 0
  %v2964 = vsel %vm2731, %v2413, 0
  %v2967 = vsel %vm2731, %v2414, 0
  %v2970 = vsel %vm2731, %v2415, 0
  %v2973 = vsel %vm2731, %v2416, 0
  %v2976 = vsel %vm2731, %v2417, 0
  %v2979 = vsel %vm2731, %v2418, 0
  %v2982 = vsel %vm2731, %v2419, 0
  %v2985 = vsel %vm2731, %v2420, 0
  %v2988 = vsel %vm2731, %v2421, 0
  %v2991 = vsel %vm2731, %v2422, 0
  %v2994 = vsel %vm2731, %v2423, 0
  %v2997 = vsel %vm2731, %v2424, 0
  %v3000 = vsel %vm2731, %v2425, 0
  %v3003 = vsel %vm2731, %v2426, 0
  %v3006 = vsel %vm2731, %v2427, 0
  %v3009 = vsel %vm2731, %v2428, 0
  %v3012 = vsel %vm2731, %v2429, 0
  %v3015 = vsel %vm2731, %v2430, 0
  %v3018 = vsel %vm2731, %v2431, 0
  %v3021 = vsel %vm2731, %v2432, 0
  %v3024 = vsel %vm2731, %v2433, 0
  %v3027 = vsel %vm2731, %v2434, 0
  %v3030 = vsel %vm2731, %v2435, 0
  %v3033 = vsel %vm2731, %v2436, 0
  %v3036 = vsel %vm2731, %v2437, 0
  %v3039 = vsel %vm2731, %v2438, 0
  %v3042 = vsel %vm2731, %v2439, 0
  %v3045 = vsel %vm2731, %v2440, 0
  %v3048 = vsel %vm2731, %v2441, 0
  %v3051 = vsel %vm2731, %v2442, 0
  %v3054 = vsel %vm2731, %v2443, 0
  %v3057 = vsel %vm2731, %v2444, 0
  %v3060 = vsel %vm2731, %v2445, 0
  %v3063 = vsel %vm2731, %v2446, 0
  %v3066 = vsel %vm2731, %v2447, 0
  %v3069 = vsel %vm2731, %v2448, 0
  %v3072 = vsel %vm2731, %v2449, 0
  %v3075 = vsel %vm2731, %v2450, 0
  %v3078 = vsel %vm2731, %v2451, 0
  %v3081 = vsel %vm2731, %v2452, 0
  %v3084 = vsel %vm2731, %v2453, 0
  %v3087 = vsel %vm2731, %v2454, 0
  %v3090 = vsel %vm2731, %v2455, 0
  %v3093 = vsel %vm2731, %v2456, 0
  %v3096 = vsel %vm2731, %v2457, 0
  %v3099 = vsel %vm2731, %v2458, 0
  %v3102 = vsel %vm2731, %v2459, 0
  %v3105 = vsel %vm2731, %v2460, 0
  %v3108 = vsel %vm2731, %v2461, 0
  %v3111 = vsel %vm2731, %v2462, 0
  %v3114 = vsel %vm2731, %v2463, 0
  %v3117 = vsel %vm2731, %v2464, 0
  %v3120 = vsel %vm2731, %v2465, 0
  %v3123 = vsel %vm2731, %v2466, 0
  %v3126 = vsel %vm2731, %v2467, 0
  %v3129 = vsel %vm2731, %v2468, 0
  %v3132 = vsel %vm2731, %v2469, 0
  %v3135 = vsel %vm2731, %v2470, 0
  %v3138 = vsel %vm2731, %v2471, 0
  %v3141 = vsel %vm2731, %v2472, 0
  %v3144 = vsel %vm2731, %v2473, 0
  %v3147 = vsel %vm2731, %v2474, 0
  %v3150 = vsel %vm2731, %v2475, 0
  %v3153 = vsel %vm2731, %v2476, 0
  %v3156 = vsel %vm2731, %v2477, 0
  %v3159 = vsel %vm2731, %v2478, 0
  %v3162 = vsel %vm2731, %v2479, 0
  %v3165 = vsel %vm2731, %v2480, 0
  %v3168 = vsel %vm2731, %v2481, 0
  %v3171 = vsel %vm2731, %v2482, 0
  %v3174 = vsel %vm2731, %v2483, 0
  %v3177 = vsel %vm2731, %v2484, 0
  %v3180 = vsel %vm2731, %v2485, 0
  %v3183 = vsel %vm2731, %v2486, 0
  %v3186 = vsel %vm2731, %v2487, 0
  %v3189 = vsel %vm2731, %v2488, 0
  %v3192 = vsel %vm2731, %v2489, 0
  %v3195 = vsel %vm2731, %v2490, 0
  %v3198 = vsel %vm2731, %v2491, 0
  %v3201 = vsel %vm2731, %v2492, 0
  %v3204 = vsel %vm2731, %v2493, 0
  %v3207 = vsel %vm2731, %v2494, 0
  %v3210 = vsel %vm2731, %v2495, 0
  %v3213 = vsel %vm2731, %v2496, 0
  %v3216 = vsel %vm2731, %v2497, 0
  %v3219 = vsel %vm2731, %v2498, 0
  %v3222 = vsel %vm2731, %v2499, 0
  %v3225 = vsel %vm2731, %v2500, 0
  %v3228 = vsel %vm2731, %v2501, 0
  %v3231 = vsel %vm2731, %v2502, 0
  %v3234 = vsel %vm2731, %v2503, 0
  %v3237 = vsel %vm2731, %v2504, 0
  %v3240 = vsel %vm2731, %v2505, 0
  %v3243 = vsel %vm2731, %v2506, 0
  %v3246 = vsel %vm2731, %v2507, 0
  %v3249 = vsel %vm2731, %v2508, 0
  %v3252 = vsel %vm2731, %v2509, 0
  %v3255 = vsel %vm2731, %v2510, 0
  %v3258 = vsel %vm2731, %v2511, 0
  %v3261 = vsel %vm2731, %v2512, 0
  %v3264 = vsel %vm2731, %v2513, 0
  %v3267 = vsel %vm2731, %v2514, 0
  %v3270 = vsel %vm2731, %v2515, 0
  %v3273 = vsel %vm2731, %v2516, 0
  %v3276 = vsel %vm2731, %v2517, 0
  %v3279 = vsel %vm2731, %v2518, 0
  %v3282 = vsel %vm2731, %v2519, 0
  %v3285 = vsel %vm2731, %v2520, 0
  %v3288 = vsel %vm2731, %v2521, 0
  %v3291 = vsel %vm2731, %v2522, 0
  %v3294 = vsel %vm2731, %v2523, 0
  %v3297 = vsel %vm2731, %v2524, 0
  %v3300 = vsel %vm2731, %v2525, 0
  %v3303 = vsel %vm2731, %v2526, 0
  %v3306 = vsel %vm2731, %v2527, 0
  %v3309 = vsel %vm2731, %v2528, 0
  %v3312 = vsel %vm2731, %v2529, 0
  %v3315 = vsel %vm2731, %v2530, 0
  %v3318 = vsel %vm2731, %v2531, 0
  %v3321 = vsel %vm2731, %v2532, 0
  %v3324 = vsel %vm2731, %v2533, 0
  %v3327 = vsel %vm2731, %v2534, 0
  %v3330 = vsel %vm2731, %v2535, 0
  %v3333 = vsel %vm2731, %v2536, 0
  %v3336 = vsel %vm2731, %v2537, 0
  %v3339 = vsel %vm2731, %v2538, 0
  %v3342 = vsel %vm2731, %v2539, 0
  %v3345 = vsel %vm2731, %v2540, 0
  %v3348 = vsel %vm2731, %v2541, 0
  %v3351 = vsel %vm2731, %v2542, 0
  %v3354 = vsel %vm2731, %v2543, 0
  %v3357 = vsel %vm2731, %v2544, 0
  %v3360 = vsel %vm2731, %v2545, 0
  %v3363 = vsel %vm2731, %v2546, 0
  %v3366 = vsel %vm2731, %v2547, 0
  %v3369 = vsel %vm2731, %v2548, 0
  %v3372 = vsel %vm2731, %v2549, 0
  %v3375 = vsel %vm2731, %v2550, 0
  %v3378 = vsel %vm2731, %v2551, 0
  %v3381 = vsel %vm2731, %v2552, 0
  %v3384 = vsel %vm2731, %v2553, 0
  %v3387 = vsel %vm2731, %v2554, 0
  %v3390 = vsel %vm2731, %v2555, 0
  %v3393 = vsel %vm2731, %v2556, 0
  %v3396 = vsel %vm2731, %v2557, 0
  %v3399 = vsel %vm2731, %v2558, 0
  %v3402 = vsel %vm2731, %v2559, 0
  %v3405 = vsel %vm2731, %v2560, 0
  %v3408 = vsel %vm2731, %v2561, 0
  %v3411 = vsel %vm2731, %v2562, 0
  %v3414 = vsel %vm2731, %v2563, 0
  %v3417 = vsel %vm2731, %v2564, 0
  %v3420 = vsel %vm2731, %v2565, 0
  %v3423 = vsel %vm2731, %v2566, 0
  %v3426 = vsel %vm2731, %v2567, 0
  %v3429 = vsel %vm2731, %v2568, 0
  %v3432 = vsel %vm2731, %v2569, 0
  %v3435 = vsel %vm2731, %v2570, 0
  %v3438 = vsel %vm2731, %v2571, 0
  %v3441 = vsel %vm2731, %v2572, 0
  %v3444 = vsel %vm2731, %v2573, 0
  %v3447 = vsel %vm2731, %v2574, 0
  %v3450 = vsel %vm2731, %v2575, 0
  %v3453 = vsel %vm2731, %v2576, 0
  %v3456 = vsel %vm2731, %v2577, 0
  %v3459 = vsel %vm2731, %v2578, 0
  %v3462 = vsel %vm2731, %v2579, 0
  %v3465 = vsel %vm2731, %v2580, 0
  %v3468 = vsel %vm2731, %v2581, 0
  %v3471 = vsel %vm2731, %v2582, 0
  %v3474 = vsel %vm2731, %v2583, 0
  %v3477 = vsel %vm2731, %v2584, 0
  %v3480 = vsel %vm2731, %v2585, 0
  %v3483 = vsel %vm2731, %v2586, 0
  %v3486 = vsel %vm2731, %v2587, 0
  %v3489 = vsel %vm2731, %v2588, 0
  %v3492 = vsel %vm2731, %v2589, 0
  %v3495 = vsel %vm2731, %v2590, 0
  %v3498 = vsel %vm2731, %v2591, 0
  %v3501 = vsel %vm2731, %v2592, 0
  %v3504 = vsel %vm2731, %v2593, 0
  %v3507 = vsel %vm2731, %v2594, 0
  %v3510 = vsel %vm2731, %v2595, 0
  %v3513 = vsel %vm2731, %v2596, 0
  %v3516 = vsel %vm2731, %v2597, 0
  %v3519 = vsel %vm2731, %v2598, 0
  %v3522 = vsel %vm2731, %v2599, 0
  %v3525 = vsel %vm2731, %v2600, 0
  %v3528 = vsel %vm2731, %v2601, 0
  %v3531 = vsel %vm2731, %v2602, 0
  %v3534 = vsel %vm2731, %v2603, 0
  %v3537 = vsel %vm2731, %v2604, 0
  %v3540 = vsel %vm2731, %v2605, 0
  %v3543 = vsel %vm2731, %v2606, 0
  %v3546 = vsel %vm2731, %v2607, 0
  %v3549 = vsel %vm2731, %v2608, 0
  %v3552 = vsel %vm2731, %v2609, 0
  %v3555 = vsel %vm2731, %v2610, 0
  %v3558 = vsel %vm2731, %v2611, 0
  %v3561 = vsel %vm2731, %v2612, 0
  %v3564 = vsel %vm2731, %v2613, 0
  %v3567 = vsel %vm2731, %v2614, 0
  %v3570 = vsel %vm2731, %v2615, 0
  %v3573 = vsel %vm2731, %v2616, 0
  %v3576 = vsel %vm2731, %v2617, 0
  %v3579 = vsel %vm2731, %v2618, 0
  %v3582 = vsel %vm2731, %v2619, 0
  %v3585 = vsel %vm2731, %v2620, 0
  %v3588 = vsel %vm2731, %v2621, 0
  %v3591 = vsel %vm2731, %v2622, 0
  %v3594 = vsel %vm2731, %v2623, 0
  %v3597 = vsel %vm2731, %v2624, 0
  %v3600 = vsel %vm2731, %v2625, 0
  %v3603 = vsel %vm2731, %v2626, 0
  %v3606 = vsel %vm2731, %v2627, 0
  %v3609 = vsel %vm2731, %v2628, 0
  %v3612 = vsel %vm2731, %v2629, 0
  %v3615 = vsel %vm2731, %v2630, 0
  %v3618 = vsel %vm2731, %v2631, 0
  %v3621 = vsel %vm2731, %v2632, 0
  %v3624 = vsel %vm2731, %v2633, 0
  %v3627 = vsel %vm2731, %v2634, 0
  %v3630 = vsel %vm2731, %v2635, 0
  %v3633 = vsel %vm2731, %v2636, 0
  %v3636 = vsel %vm2731, %v2637, 0
  %v3639 = vsel %vm2731, %v2638, 0
  %v3642 = vsel %vm2731, %v2639, 0
  %v3645 = vsel %vm2731, %v2640, 0
  %v3648 = vsel %vm2731, %v2641, 0
  %v3651 = vsel %vm2731, %v2642, 0
  %v3654 = vsel %vm2731, %v2643, 0
  %v3657 = vsel %vm2731, %v2644, 0
  %v3660 = vsel %vm2731, %v2645, 0
  %v3663 = vsel %vm2731, %v2646, 0
  %v3666 = vsel %vm2731, %v2647, 0
  %v3669 = vsel %vm2731, %v2648, 0
  %v3672 = vsel %vm2731, %v2649, 0
  %v3675 = vsel %vm2731, %v2650, 0
  %v3678 = vsel %vm2731, %v2651, 0
  %v3681 = vsel %vm2731, %v2652, 0
  %v3684 = vsel %vm2731, %v2653, 0
  %v3687 = vsel %vm2731, %v2654, 0
  %v3690 = vsel %vm2731, %v2655, 0
  %v3693 = vsel %vm2731, %v2656, 0
  %v3696 = vsel %vm2731, %v2657, 0
  %v3699 = vsel %vm2731, %v2658, 0
  %v3702 = vsel %vm2731, %v2659, 0
  %v3705 = vsel %vm2731, %v2660, 0
  %v3708 = vsel %vm2731, %v2661, 0
  %v3711 = vsel %vm2731, %v2662, 0
  %v3714 = vsel %vm2731, %v2663, 0
  %v3717 = vsel %vm2731, %v2664, 0
  %v3720 = vsel %vm2731, %v2665, 0
  %v3723 = vsel %vm2731, %v2666, 0
  %v3726 = vsel %vm2731, %v2667, 0
  %v3729 = vsel %vm2731, %v2668, 0
  %v3732 = vsel %vm2731, %v2669, 0
  %v3735 = vsel %vm2731, %v2670, 0
  %v3738 = vsel %vm2731, %v2671, 0
  %v3741 = vsel %vm2731, %v2672, 0
  %v3744 = vsel %vm2731, %v2673, 0
  %v3747 = vsel %vm2731, %v2674, 0
  %v3750 = vsel %vm2731, %v2675, 0
  %v3753 = vsel %vm2731, %v2676, 0
  %v3756 = vsel %vm2731, %v2677, 0
  %v3759 = vsel %vm2731, %v2678, 0
  %v3762 = vsel %vm2731, %v2679, 0
  %v3765 = vsel %vm2731, %v2680, 0
  %v3768 = vsel %vm2731, %v2681, 0
  %v3771 = vsel %vm2731, %v2682, 0
  %v3774 = vsel %vm2731, %v2683, 0
  %v3777 = vsel %vm2731, %v2684, 0
  %v3780 = vsel %vm2731, %v2685, 0
  %v3783 = vsel %vm2731, %v2686, 0
  %v3786 = vsel %vm2731, %v2687, 0
  %v3789 = vsel %vm2731, %v2688, 0
  %v3792 = vsel %vm2731, %v2689, 0
  %v3795 = vsel %vm2731, %v2690, 0
  %v3798 = vsel %vm2731, %v2691, 0
  %v3801 = vsel %vm2731, %v2692, 0
  %v3804 = vsel %vm2731, %v2693, 0
  %v3807 = vsel %vm2731, %v2694, 0
  %v3810 = vsel %vm2731, %v2695, 0
  %v3813 = vsel %vm2731, %v2696, 0
  %v3816 = vsel %vm2731, %v2697, 0
  %v3819 = vsel %vm2731, %v2698, 0
  %v3822 = vsel %vm2731, %v2699, 0
  %v3825 = vsel %vm2731, %v2700, 0
  %v3828 = vsel %vm2731, %v2701, 0
  %v3831 = vsel %vm2731, %v2702, 0
  %v3834 = vsel %vm2731, %v2703, 0
  %v3837 = vsel %vm2731, %v2704, 0
  %v3840 = vsel %vm2731, %v2705, 0
  %v3843 = vsel %vm2731, %v2706, 0
  %v3846 = vsel %vm2731, %v2707, 0
  %v3849 = vsel %vm2731, %v2708, 0
  %v3852 = vsel %vm2731, %v2709, 0
  %v3855 = vsel %vm2731, %v2710, 0
  %v3858 = vsel %vm2731, %v2711, 0
  %v3861 = vsel %vm2731, %v2712, 0
  %v3864 = vsel %vm2731, %v2713, 0
  %v3867 = vsel %vm2731, %v2714, 0
  %v3870 = vsel %vm2731, %v2715, 0
  %v3873 = vsel %vm2731, %v2716, 0
  %v3876 = vsel %vm2731, %v2717, 0
  %v3879 = vsel %vm2731, %v2718, 0
  %v3882 = vsel %vm2731, %v2719, 0
  %vm3884 = vcmask 1044480
  %vm3885 = vcmask 1045504
  %v3886 = vsel %vm3884, 4294967295, 65535
  %v3887 = vsel %vm3885, %v3886, 0
  %v3889 = vand.u32 %v2729, %v3887
  %3891 = vmatprep.subr.bf16.mxu0 0
  %3892 = vmatpush1.bf16.msra.mxu0 %v2728
  %3893 = vmatprep.subr.bf16.mxu0 0
  %3894 = vmatpush1.bf16.msra.mxu0 %v3889
  %3895 = vmatprep.subr.bf16.mxu0 0
  %3896 = vmatpush1.bf16.msra.mxu0 0
  %3897 = vmatprep.subr.bf16.mxu0 0
  %3898 = vmatpush1.bf16.msra.mxu0 0
  %3899 = vmatprep.subr.bf16.mxu0 0
  %3900 = vmatpush1.bf16.msra.mxu0 0
  %3901 = vmatprep.subr.bf16.mxu0 0
  %3902 = vmatpush1.bf16.msra.mxu0 0
  %3903 = vmatprep.subr.bf16.mxu0 0
  %3904 = vmatpush1.bf16.msra.mxu0 0
  %3905 = vmatprep.subr.bf16.mxu0 0
  %3906 = vmatpush1.bf16.msra.mxu0 0
  %3907 = vmatprep.subr.bf16.mxu0 0
  %3908 = vmatpush1.bf16.msra.mxu0 0
  %3909 = vmatprep.subr.bf16.mxu0 0
  %3910 = vmatpush1.bf16.msra.mxu0 0
  %3911 = vmatprep.subr.bf16.mxu0 0
  %3912 = vmatpush1.bf16.msra.mxu0 0
  %3913 = vmatprep.subr.bf16.mxu0 0
  %3914 = vmatpush1.bf16.msra.mxu0 0
  %3915 = vmatprep.subr.bf16.mxu0 0
  %3916 = vmatpush1.bf16.msra.mxu0 0
  %3917 = vmatprep.subr.bf16.mxu0 0
  %3918 = vmatpush1.bf16.msra.mxu0 0
  %3919 = vmatprep.subr.bf16.mxu0 0
  %3920 = vmatpush1.bf16.msra.mxu0 0
  %3921 = vmatprep.subr.bf16.mxu0 0
  %3922 = vmatpush1.bf16.msra.mxu0 0
  %3923 = vmatprep.mubr.bf16.mxu0 0
  %3924 = vmatmul.mubr.bf16.gmra.mrb[0].mxu0 %v2733
  %v3925 = vpop.f32.mrb[0].mxu0
  %v3926 = vadd.f32 %v798, %v3925
  %v3927 = vpop.f32.mrb[0].mxu0
  %v3928 = vpop.f32.mrb[0].mxu0
  %v3929 = vadd.f32 %v798, %v3928
  %v3930 = vpop.f32.mrb[0].mxu0
  %3931 = vmatprep.mubr.bf16.mxu0 0
  %3932 = vmatmul.mubr.bf16.gmra.mrb[0].mxu0 %v2736
  %v3933 = vpop.f32.mrb[0].mxu0
  %v3934 = vadd.f32 %v798, %v3933
  %v3935 = vpop.f32.mrb[0].mxu0
  %v3936 = vpop.f32.mrb[0].mxu0
  %v3937 = vadd.f32 %v798, %v3936
  %v3938 = vpop.f32.mrb[0].mxu0
  %3939 = vmatprep.mubr.bf16.mxu0 0
  %3940 = vmatmul.mubr.bf16.gmra.mrb[0].mxu0 %v2739
  %v3941 = vpop.f32.mrb[0].mxu0
  %v3942 = vadd.f32 %v798, %v3941
  %v3943 = vpop.f32.mrb[0].mxu0
  %v3944 = vpop.f32.mrb[0].mxu0
  %v3945 = vadd.f32 %v798, %v3944
  %v3946 = vpop.f32.mrb[0].mxu0
  %3947 = vmatprep.mubr.bf16.mxu0 0
  %3948 = vmatmul.mubr.bf16.gmra.mrb[0].mxu0 %v2742
  %v3949 = vpop.f32.mrb[0].mxu0
  %v3950 = vadd.f32 %v798, %v3949
  %v3951 = vpop.f32.mrb[0].mxu0
  %v3952 = vpop.f32.mrb[0].mxu0
  %v3953 = vadd.f32 %v798, %v3952
  %v3954 = vpop.f32.mrb[0].mxu0
  %3955 = vmatprep.mubr.bf16.mxu0 0
  %3956 = vmatmul.mubr.bf16.gmra.mrb[0].mxu0 %v2745
  %v3957 = vpop.f32.mrb[0].mxu0
  %v3958 = vadd.f32 %v798, %v3957
  %v3959 = vpop.f32.mrb[0].mxu0
  %v3960 = vpop.f32.mrb[0].mxu0
  %v3961 = vadd.f32 %v798, %v3960
  %v3962 = vpop.f32.mrb[0].mxu0
  %3963 = vmatprep.mubr.bf16.mxu0 0
  %3964 = vmatmul.mubr.bf16.gmra.mrb[0].mxu0 %v2748
  %v3965 = vpop.f32.mrb[0].mxu0
  %v3966 = vadd.f32 %v798, %v3965
  %v3967 = vpop.f32.mrb[0].mxu0
  %v3968 = vpop.f32.mrb[0].mxu0
  %v3969 = vadd.f32 %v798, %v3968
  %v3970 = vpop.f32.mrb[0].mxu0
  %3971 = vmatprep.mubr.bf16.mxu0 0
  %3972 = vmatmul.mubr.bf16.gmra.mrb[0].mxu0 %v2751
  %v3973 = vpop.f32.mrb[0].mxu0
  %v3974 = vadd.f32 %v798, %v3973
  %v3975 = vpop.f32.mrb[0].mxu0
  %v3976 = vpop.f32.mrb[0].mxu0
  %v3977 = vadd.f32 %v798, %v3976
  %v3978 = vpop.f32.mrb[0].mxu0
  %3979 = vmatprep.mubr.bf16.mxu0 0
  %3980 = vmatmul.mubr.bf16.gmra.mrb[0].mxu0 %v2754
  %v3981 = vpop.f32.mrb[0].mxu0
  %v3982 = vadd.f32 %v798, %v3981
  %v3983 = vpop.f32.mrb[0].mxu0
  %v3984 = vpop.f32.mrb[0].mxu0
  %v3985 = vadd.f32 %v798, %v3984
  %v3986 = vpop.f32.mrb[0].mxu0
  %3987 = vmatprep.mubr.bf16.mxu0 0
  %3988 = vmatmul.mubr.bf16.gmra.mrb[0].mxu0 %v2757
  %v3989 = vpop.f32.mrb[0].mxu0
  %v3990 = vadd.f32 %v798, %v3989
  %v3991 = vpop.f32.mrb[0].mxu0
  %v3992 = vpop.f32.mrb[0].mxu0
  %v3993 = vadd.f32 %v798, %v3992
  %v3994 = vpop.f32.mrb[0].mxu0
  %3995 = vmatprep.mubr.bf16.mxu0 0
  %3996 = vmatmul.mubr.bf16.gmra.mrb[0].mxu0 %v2760
  %v3997 = vpop.f32.mrb[0].mxu0
  %v3998 = vadd.f32 %v798, %v3997
  %v3999 = vpop.f32.mrb[0].mxu0
  %v4000 = vpop.f32.mrb[0].mxu0
  %v4001 = vadd.f32 %v798, %v4000
  %v4002 = vpop.f32.mrb[0].mxu0
  %4003 = vmatprep.mubr.bf16.mxu0 0
  %4004 = vmatmul.mubr.bf16.gmra.mrb[0].mxu0 %v2763
  %v4005 = vpop.f32.mrb[0].mxu0
  %v4006 = vadd.f32 %v798, %v4005
  %v4007 = vpop.f32.mrb[0].mxu0
  %v4008 = vpop.f32.mrb[0].mxu0
  %v4009 = vadd.f32 %v798, %v4008
  %v4010 = vpop.f32.mrb[0].mxu0
  %4011 = vmatprep.mubr.bf16.mxu0 0
  %4012 = vmatmul.mubr.bf16.gmra.mrb[0].mxu0 %v2766
  %v4013 = vpop.f32.mrb[0].mxu0
  %v4014 = vadd.f32 %v798, %v4013
  %v4015 = vpop.f32.mrb[0].mxu0
  %v4016 = vpop.f32.mrb[0].mxu0
  %v4017 = vadd.f32 %v798, %v4016
  %v4018 = vpop.f32.mrb[0].mxu0
  %4019 = vmatprep.mubr.bf16.mxu0 0
  %4020 = vmatmul.mubr.bf16.gmra.mrb[0].mxu0 %v2769
  %v4021 = vpop.f32.mrb[0].mxu0
  %v4022 = vadd.f32 %v798, %v4021
  %v4023 = vpop.f32.mrb[0].mxu0
  %v4024 = vpop.f32.mrb[0].mxu0
  %v4025 = vadd.f32 %v798, %v4024
  %v4026 = vpop.f32.mrb[0].mxu0
  %4027 = vmatprep.mubr.bf16.mxu0 0
  %4028 = vmatmul.mubr.bf16.gmra.mrb[0].mxu0 %v2772
  %v4029 = vpop.f32.mrb[0].mxu0
  %v4030 = vadd.f32 %v798, %v4029
  %v4031 = vpop.f32.mrb[0].mxu0
  %v4032 = vpop.f32.mrb[0].mxu0
  %v4033 = vadd.f32 %v798, %v4032
  %v4034 = vpop.f32.mrb[0].mxu0
  %4035 = vmatprep.mubr.bf16.mxu0 0
  %4036 = vmatmul.mubr.bf16.gmra.mrb[0].mxu0 %v2775
  %v4037 = vpop.f32.mrb[0].mxu0
  %v4038 = vadd.f32 %v798, %v4037
  %v4039 = vpop.f32.mrb[0].mxu0
  %v4040 = vpop.f32.mrb[0].mxu0
  %v4041 = vadd.f32 %v798, %v4040
  %v4042 = vpop.f32.mrb[0].mxu0
  %4043 = vmatprep.mubr.bf16.mxu0 0
  %4044 = vmatmul.mubr.bf16.gmra.mrb[0].mxu0 %v2778
  %v4045 = vpop.f32.mrb[0].mxu0
  %v4046 = vadd.f32 %v798, %v4045
  %v4047 = vpop.f32.mrb[0].mxu0
  %v4048 = vpop.f32.mrb[0].mxu0
  %v4049 = vadd.f32 %v798, %v4048
  %v4050 = vpop.f32.mrb[0].mxu0
  %4051 = vmatprep.mubr.bf16.mxu0 0
  %4052 = vmatmul.mubr.bf16.gmra.mrb[0].mxu0 %v2781
  %v4053 = vpop.f32.mrb[0].mxu0
  %v4054 = vadd.f32 %v798, %v4053
  %v4055 = vpop.f32.mrb[0].mxu0
  %v4056 = vpop.f32.mrb[0].mxu0
  %v4057 = vadd.f32 %v798, %v4056
  %v4058 = vpop.f32.mrb[0].mxu0
  %4059 = vmatprep.mubr.bf16.mxu0 0
  %4060 = vmatmul.mubr.bf16.gmra.mrb[0].mxu0 %v2784
  %v4061 = vpop.f32.mrb[0].mxu0
  %v4062 = vadd.f32 %v798, %v4061
  %v4063 = vpop.f32.mrb[0].mxu0
  %v4064 = vpop.f32.mrb[0].mxu0
  %v4065 = vadd.f32 %v798, %v4064
  %v4066 = vpop.f32.mrb[0].mxu0
  %4067 = vmatprep.mubr.bf16.mxu0 0
  %4068 = vmatmul.mubr.bf16.gmra.mrb[0].mxu0 %v2787
  %v4069 = vpop.f32.mrb[0].mxu0
  %v4070 = vadd.f32 %v798, %v4069
  %v4071 = vpop.f32.mrb[0].mxu0
  %v4072 = vpop.f32.mrb[0].mxu0
  %v4073 = vadd.f32 %v798, %v4072
  %v4074 = vpop.f32.mrb[0].mxu0
  %4075 = vmatprep.mubr.bf16.mxu0 0
  %4076 = vmatmul.mubr.bf16.gmra.mrb[0].mxu0 %v2790
  %v4077 = vpop.f32.mrb[0].mxu0
  %v4078 = vadd.f32 %v798, %v4077
  %v4079 = vpop.f32.mrb[0].mxu0
  %v4080 = vpop.f32.mrb[0].mxu0
  %v4081 = vadd.f32 %v798, %v4080
  %v4082 = vpop.f32.mrb[0].mxu0
  %4083 = vmatprep.mubr.bf16.mxu0 0
  %4084 = vmatmul.mubr.bf16.gmra.mrb[0].mxu0 %v2793
  %v4085 = vpop.f32.mrb[0].mxu0
  %v4086 = vadd.f32 %v798, %v4085
  %v4087 = vpop.f32.mrb[0].mxu0
  %v4088 = vpop.f32.mrb[0].mxu0
  %v4089 = vadd.f32 %v798, %v4088
  %v4090 = vpop.f32.mrb[0].mxu0
  %4091 = vmatprep.mubr.bf16.mxu0 0
  %4092 = vmatmul.mubr.bf16.gmra.mrb[0].mxu0 %v2796
  %v4093 = vpop.f32.mrb[0].mxu0
  %v4094 = vadd.f32 %v798, %v4093
  %v4095 = vpop.f32.mrb[0].mxu0
  %v4096 = vpop.f32.mrb[0].mxu0
  %v4097 = vadd.f32 %v798, %v4096
  %v4098 = vpop.f32.mrb[0].mxu0
  %4099 = vmatprep.mubr.bf16.mxu0 0
  %4100 = vmatmul.mubr.bf16.gmra.mrb[0].mxu0 %v2799
  %v4101 = vpop.f32.mrb[0].mxu0
  %v4102 = vadd.f32 %v798, %v4101
  %v4103 = vpop.f32.mrb[0].mxu0
  %v4104 = vpop.f32.mrb[0].mxu0
  %v4105 = vadd.f32 %v798, %v4104
  %v4106 = vpop.f32.mrb[0].mxu0
  %4107 = vmatprep.mubr.bf16.mxu0 0
  %4108 = vmatmul.mubr.bf16.gmra.mrb[0].mxu0 %v2802
  %v4109 = vpop.f32.mrb[0].mxu0
  %v4110 = vadd.f32 %v798, %v4109
  %v4111 = vpop.f32.mrb[0].mxu0
  %v4112 = vpop.f32.mrb[0].mxu0
  %v4113 = vadd.f32 %v798, %v4112
  %v4114 = vpop.f32.mrb[0].mxu0
  %4115 = vmatprep.mubr.bf16.mxu0 0
  %4116 = vmatmul.mubr.bf16.gmra.mrb[0].mxu0 %v2805
  %v4117 = vpop.f32.mrb[0].mxu0
  %v4118 = vadd.f32 %v798, %v4117
  %v4119 = vpop.f32.mrb[0].mxu0
  %v4120 = vpop.f32.mrb[0].mxu0
  %v4121 = vadd.f32 %v798, %v4120
  %v4122 = vpop.f32.mrb[0].mxu0
  %4123 = vmatprep.mubr.bf16.mxu0 0
  %4124 = vmatmul.mubr.bf16.gmra.mrb[0].mxu0 %v2808
  %v4125 = vpop.f32.mrb[0].mxu0
  %v4126 = vadd.f32 %v798, %v4125
  %v4127 = vpop.f32.mrb[0].mxu0
  %v4128 = vpop.f32.mrb[0].mxu0
  %v4129 = vadd.f32 %v798, %v4128
  %v4130 = vpop.f32.mrb[0].mxu0
  %4131 = vmatprep.mubr.bf16.mxu0 0
  %4132 = vmatmul.mubr.bf16.gmra.mrb[0].mxu0 %v2811
  %v4133 = vpop.f32.mrb[0].mxu0
  %v4134 = vadd.f32 %v798, %v4133
  %v4135 = vpop.f32.mrb[0].mxu0
  %v4136 = vpop.f32.mrb[0].mxu0
  %v4137 = vadd.f32 %v798, %v4136
  %v4138 = vpop.f32.mrb[0].mxu0
  %4139 = vmatprep.mubr.bf16.mxu0 0
  %4140 = vmatmul.mubr.bf16.gmra.mrb[0].mxu0 %v2814
  %v4141 = vpop.f32.mrb[0].mxu0
  %v4142 = vadd.f32 %v798, %v4141
  %v4143 = vpop.f32.mrb[0].mxu0
  %v4144 = vpop.f32.mrb[0].mxu0
  %v4145 = vadd.f32 %v798, %v4144
  %v4146 = vpop.f32.mrb[0].mxu0
  %4147 = vmatprep.mubr.bf16.mxu0 0
  %4148 = vmatmul.mubr.bf16.gmra.mrb[0].mxu0 %v2817
  %v4149 = vpop.f32.mrb[0].mxu0
  %v4150 = vadd.f32 %v798, %v4149
  %v4151 = vpop.f32.mrb[0].mxu0
  %v4152 = vpop.f32.mrb[0].mxu0
  %v4153 = vadd.f32 %v798, %v4152
  %v4154 = vpop.f32.mrb[0].mxu0
  %4155 = vmatprep.mubr.bf16.mxu0 0
  %4156 = vmatmul.mubr.bf16.gmra.mrb[0].mxu0 %v2820
  %v4157 = vpop.f32.mrb[0].mxu0
  %v4158 = vadd.f32 %v798, %v4157
  %v4159 = vpop.f32.mrb[0].mxu0
  %v4160 = vpop.f32.mrb[0].mxu0
  %v4161 = vadd.f32 %v798, %v4160
  %v4162 = vpop.f32.mrb[0].mxu0
  %4163 = vmatprep.mubr.bf16.mxu0 0
  %4164 = vmatmul.mubr.bf16.gmra.mrb[0].mxu0 %v2823
  %v4165 = vpop.f32.mrb[0].mxu0
  %v4166 = vadd.f32 %v798, %v4165
  %v4167 = vpop.f32.mrb[0].mxu0
  %v4168 = vpop.f32.mrb[0].mxu0
  %v4169 = vadd.f32 %v798, %v4168
  %v4170 = vpop.f32.mrb[0].mxu0
  %4171 = vmatprep.mubr.bf16.mxu0 0
  %4172 = vmatmul.mubr.bf16.gmra.mrb[0].mxu0 %v2826
  %v4173 = vpop.f32.mrb[0].mxu0
  %v4174 = vadd.f32 %v798, %v4173
  %v4175 = vpop.f32.mrb[0].mxu0
  %v4176 = vpop.f32.mrb[0].mxu0
  %v4177 = vadd.f32 %v798, %v4176
  %v4178 = vpop.f32.mrb[0].mxu0
  %4179 = vmatprep.mubr.bf16.mxu0 0
  %4180 = vmatmul.mubr.bf16.gmra.mrb[0].mxu0 %v2829
  %v4181 = vpop.f32.mrb[0].mxu0
  %v4182 = vadd.f32 %v798, %v4181
  %v4183 = vpop.f32.mrb[0].mxu0
  %v4184 = vpop.f32.mrb[0].mxu0
  %v4185 = vadd.f32 %v798, %v4184
  %v4186 = vpop.f32.mrb[0].mxu0
  %4187 = vmatprep.mubr.bf16.mxu0 0
  %4188 = vmatmul.mubr.bf16.gmra.mrb[0].mxu0 %v2832
  %v4189 = vpop.f32.mrb[0].mxu0
  %v4190 = vadd.f32 %v798, %v4189
  %v4191 = vpop.f32.mrb[0].mxu0
  %v4192 = vpop.f32.mrb[0].mxu0
  %v4193 = vadd.f32 %v798, %v4192
  %v4194 = vpop.f32.mrb[0].mxu0
  %4195 = vmatprep.mubr.bf16.mxu0 0
  %4196 = vmatmul.mubr.bf16.gmra.mrb[0].mxu0 %v2835
  %v4197 = vpop.f32.mrb[0].mxu0
  %v4198 = vadd.f32 %v798, %v4197
  %v4199 = vpop.f32.mrb[0].mxu0
  %v4200 = vpop.f32.mrb[0].mxu0
  %v4201 = vadd.f32 %v798, %v4200
  %v4202 = vpop.f32.mrb[0].mxu0
  %4203 = vmatprep.mubr.bf16.mxu0 0
  %4204 = vmatmul.mubr.bf16.gmra.mrb[0].mxu0 %v2838
  %v4205 = vpop.f32.mrb[0].mxu0
  %v4206 = vadd.f32 %v798, %v4205
  %v4207 = vpop.f32.mrb[0].mxu0
  %v4208 = vpop.f32.mrb[0].mxu0
  %v4209 = vadd.f32 %v798, %v4208
  %v4210 = vpop.f32.mrb[0].mxu0
  %4211 = vmatprep.mubr.bf16.mxu0 0
  %4212 = vmatmul.mubr.bf16.gmra.mrb[0].mxu0 %v2841
  %v4213 = vpop.f32.mrb[0].mxu0
  %v4214 = vadd.f32 %v798, %v4213
  %v4215 = vpop.f32.mrb[0].mxu0
  %v4216 = vpop.f32.mrb[0].mxu0
  %v4217 = vadd.f32 %v798, %v4216
  %v4218 = vpop.f32.mrb[0].mxu0
  %4219 = vmatprep.mubr.bf16.mxu0 0
  %4220 = vmatmul.mubr.bf16.gmra.mrb[0].mxu0 %v2844
  %v4221 = vpop.f32.mrb[0].mxu0
  %v4222 = vadd.f32 %v798, %v4221
  %v4223 = vpop.f32.mrb[0].mxu0
  %v4224 = vpop.f32.mrb[0].mxu0
  %v4225 = vadd.f32 %v798, %v4224
  %v4226 = vpop.f32.mrb[0].mxu0
  %4227 = vmatprep.mubr.bf16.mxu0 0
  %4228 = vmatmul.mubr.bf16.gmra.mrb[0].mxu0 %v2847
  %v4229 = vpop.f32.mrb[0].mxu0
  %v4230 = vadd.f32 %v798, %v4229
  %v4231 = vpop.f32.mrb[0].mxu0
  %v4232 = vpop.f32.mrb[0].mxu0
  %v4233 = vadd.f32 %v798, %v4232
  %v4234 = vpop.f32.mrb[0].mxu0
  %4235 = vmatprep.mubr.bf16.mxu0 0
  %4236 = vmatmul.mubr.bf16.gmra.mrb[0].mxu0 %v2850
  %v4237 = vpop.f32.mrb[0].mxu0
  %v4238 = vadd.f32 %v798, %v4237
  %v4239 = vpop.f32.mrb[0].mxu0
  %v4240 = vpop.f32.mrb[0].mxu0
  %v4241 = vadd.f32 %v798, %v4240
  %v4242 = vpop.f32.mrb[0].mxu0
  %4243 = vmatprep.mubr.bf16.mxu0 0
  %4244 = vmatmul.mubr.bf16.gmra.mrb[0].mxu0 %v2853
  %v4245 = vpop.f32.mrb[0].mxu0
  %v4246 = vadd.f32 %v798, %v4245
  %v4247 = vpop.f32.mrb[0].mxu0
  %v4248 = vpop.f32.mrb[0].mxu0
  %v4249 = vadd.f32 %v798, %v4248
  %v4250 = vpop.f32.mrb[0].mxu0
  %4251 = vmatprep.mubr.bf16.mxu0 0
  %4252 = vmatmul.mubr.bf16.gmra.mrb[0].mxu0 %v2856
  %v4253 = vpop.f32.mrb[0].mxu0
  %v4254 = vadd.f32 %v798, %v4253
  %v4255 = vpop.f32.mrb[0].mxu0
  %v4256 = vpop.f32.mrb[0].mxu0
  %v4257 = vadd.f32 %v798, %v4256
  %v4258 = vpop.f32.mrb[0].mxu0
  %4259 = vmatprep.mubr.bf16.mxu0 0
  %4260 = vmatmul.mubr.bf16.gmra.mrb[0].mxu0 %v2859
  %v4261 = vpop.f32.mrb[0].mxu0
  %v4262 = vadd.f32 %v798, %v4261
  %v4263 = vpop.f32.mrb[0].mxu0
  %v4264 = vpop.f32.mrb[0].mxu0
  %v4265 = vadd.f32 %v798, %v4264
  %v4266 = vpop.f32.mrb[0].mxu0
  %4267 = vmatprep.mubr.bf16.mxu0 0
  %4268 = vmatmul.mubr.bf16.gmra.mrb[0].mxu0 %v2862
  %v4269 = vpop.f32.mrb[0].mxu0
  %v4270 = vadd.f32 %v798, %v4269
  %v4271 = vpop.f32.mrb[0].mxu0
  %v4272 = vpop.f32.mrb[0].mxu0
  %v4273 = vadd.f32 %v798, %v4272
  %v4274 = vpop.f32.mrb[0].mxu0
  %4275 = vmatprep.mubr.bf16.mxu0 0
  %4276 = vmatmul.mubr.bf16.gmra.mrb[0].mxu0 %v2865
  %v4277 = vpop.f32.mrb[0].mxu0
  %v4278 = vadd.f32 %v798, %v4277
  %v4279 = vpop.f32.mrb[0].mxu0
  %v4280 = vpop.f32.mrb[0].mxu0
  %v4281 = vadd.f32 %v798, %v4280
  %v4282 = vpop.f32.mrb[0].mxu0
  %4283 = vmatprep.mubr.bf16.mxu0 0
  %4284 = vmatmul.mubr.bf16.gmra.mrb[0].mxu0 %v2868
  %v4285 = vpop.f32.mrb[0].mxu0
  %v4286 = vadd.f32 %v798, %v4285
  %v4287 = vpop.f32.mrb[0].mxu0
  %v4288 = vpop.f32.mrb[0].mxu0
  %v4289 = vadd.f32 %v798, %v4288
  %v4290 = vpop.f32.mrb[0].mxu0
  %4291 = vmatprep.mubr.bf16.mxu0 0
  %4292 = vmatmul.mubr.bf16.gmra.mrb[0].mxu0 %v2871
  %v4293 = vpop.f32.mrb[0].mxu0
  %v4294 = vadd.f32 %v798, %v4293
  %v4295 = vpop.f32.mrb[0].mxu0
  %v4296 = vpop.f32.mrb[0].mxu0
  %v4297 = vadd.f32 %v798, %v4296
  %v4298 = vpop.f32.mrb[0].mxu0
  %4299 = vmatprep.mubr.bf16.mxu0 0
  %4300 = vmatmul.mubr.bf16.gmra.mrb[0].mxu0 %v2874
  %v4301 = vpop.f32.mrb[0].mxu0
  %v4302 = vadd.f32 %v798, %v4301
  %v4303 = vpop.f32.mrb[0].mxu0
  %v4304 = vpop.f32.mrb[0].mxu0
  %v4305 = vadd.f32 %v798, %v4304
  %v4306 = vpop.f32.mrb[0].mxu0
  %4307 = vmatprep.mubr.bf16.mxu0 0
  %4308 = vmatmul.mubr.bf16.gmra.mrb[0].mxu0 %v2877
  %v4309 = vpop.f32.mrb[0].mxu0
  %v4310 = vadd.f32 %v798, %v4309
  %v4311 = vpop.f32.mrb[0].mxu0
  %v4312 = vpop.f32.mrb[0].mxu0
  %v4313 = vadd.f32 %v798, %v4312
  %v4314 = vpop.f32.mrb[0].mxu0
  %4315 = vmatprep.mubr.bf16.mxu0 0
  %4316 = vmatmul.mubr.bf16.gmra.mrb[0].mxu0 %v2880
  %v4317 = vpop.f32.mrb[0].mxu0
  %v4318 = vadd.f32 %v798, %v4317
  %v4319 = vpop.f32.mrb[0].mxu0
  %v4320 = vpop.f32.mrb[0].mxu0
  %v4321 = vadd.f32 %v798, %v4320
  %v4322 = vpop.f32.mrb[0].mxu0
  %4323 = vmatprep.mubr.bf16.mxu0 0
  %4324 = vmatmul.mubr.bf16.gmra.mrb[0].mxu0 %v2883
  %v4325 = vpop.f32.mrb[0].mxu0
  %v4326 = vadd.f32 %v798, %v4325
  %v4327 = vpop.f32.mrb[0].mxu0
  %v4328 = vpop.f32.mrb[0].mxu0
  %v4329 = vadd.f32 %v798, %v4328
  %v4330 = vpop.f32.mrb[0].mxu0
  %4331 = vmatprep.mubr.bf16.mxu0 0
  %4332 = vmatmul.mubr.bf16.gmra.mrb[0].mxu0 %v2886
  %v4333 = vpop.f32.mrb[0].mxu0
  %v4334 = vadd.f32 %v798, %v4333
  %v4335 = vpop.f32.mrb[0].mxu0
  %v4336 = vpop.f32.mrb[0].mxu0
  %v4337 = vadd.f32 %v798, %v4336
  %v4338 = vpop.f32.mrb[0].mxu0
  %4339 = vmatprep.mubr.bf16.mxu0 0
  %4340 = vmatmul.mubr.bf16.gmra.mrb[0].mxu0 %v2889
  %v4341 = vpop.f32.mrb[0].mxu0
  %v4342 = vadd.f32 %v798, %v4341
  %v4343 = vpop.f32.mrb[0].mxu0
  %v4344 = vpop.f32.mrb[0].mxu0
  %v4345 = vadd.f32 %v798, %v4344
  %v4346 = vpop.f32.mrb[0].mxu0
  %4347 = vmatprep.mubr.bf16.mxu0 0
  %4348 = vmatmul.mubr.bf16.gmra.mrb[0].mxu0 %v2892
  %v4349 = vpop.f32.mrb[0].mxu0
  %v4350 = vadd.f32 %v798, %v4349
  %v4351 = vpop.f32.mrb[0].mxu0
  %v4352 = vpop.f32.mrb[0].mxu0
  %v4353 = vadd.f32 %v798, %v4352
  %v4354 = vpop.f32.mrb[0].mxu0
  %4355 = vmatprep.mubr.bf16.mxu0 0
  %4356 = vmatmul.mubr.bf16.gmra.mrb[0].mxu0 %v2895
  %v4357 = vpop.f32.mrb[0].mxu0
  %v4358 = vadd.f32 %v798, %v4357
  %v4359 = vpop.f32.mrb[0].mxu0
  %v4360 = vpop.f32.mrb[0].mxu0
  %v4361 = vadd.f32 %v798, %v4360
  %v4362 = vpop.f32.mrb[0].mxu0
  %4363 = vmatprep.mubr.bf16.mxu0 0
  %4364 = vmatmul.mubr.bf16.gmra.mrb[0].mxu0 %v2898
  %v4365 = vpop.f32.mrb[0].mxu0
  %v4366 = vadd.f32 %v798, %v4365
  %v4367 = vpop.f32.mrb[0].mxu0
  %v4368 = vpop.f32.mrb[0].mxu0
  %v4369 = vadd.f32 %v798, %v4368
  %v4370 = vpop.f32.mrb[0].mxu0
  %4371 = vmatprep.mubr.bf16.mxu0 0
  %4372 = vmatmul.mubr.bf16.gmra.mrb[0].mxu0 %v2901
  %v4373 = vpop.f32.mrb[0].mxu0
  %v4374 = vadd.f32 %v798, %v4373
  %v4375 = vpop.f32.mrb[0].mxu0
  %v4376 = vpop.f32.mrb[0].mxu0
  %v4377 = vadd.f32 %v798, %v4376
  %v4378 = vpop.f32.mrb[0].mxu0
  %4379 = vmatprep.mubr.bf16.mxu0 0
  %4380 = vmatmul.mubr.bf16.gmra.mrb[0].mxu0 %v2904
  %v4381 = vpop.f32.mrb[0].mxu0
  %v4382 = vadd.f32 %v798, %v4381
  %v4383 = vpop.f32.mrb[0].mxu0
  %v4384 = vpop.f32.mrb[0].mxu0
  %v4385 = vadd.f32 %v798, %v4384
  %v4386 = vpop.f32.mrb[0].mxu0
  %4387 = vmatprep.mubr.bf16.mxu0 0
  %4388 = vmatmul.mubr.bf16.gmra.mrb[0].mxu0 %v2907
  %v4389 = vpop.f32.mrb[0].mxu0
  %v4390 = vadd.f32 %v798, %v4389
  %v4391 = vpop.f32.mrb[0].mxu0
  %v4392 = vpop.f32.mrb[0].mxu0
  %v4393 = vadd.f32 %v798, %v4392
  %v4394 = vpop.f32.mrb[0].mxu0
  %4395 = vmatprep.mubr.bf16.mxu0 0
  %4396 = vmatmul.mubr.bf16.gmra.mrb[0].mxu0 %v2910
  %v4397 = vpop.f32.mrb[0].mxu0
  %v4398 = vadd.f32 %v798, %v4397
  %v4399 = vpop.f32.mrb[0].mxu0
  %v4400 = vpop.f32.mrb[0].mxu0
  %v4401 = vadd.f32 %v798, %v4400
  %v4402 = vpop.f32.mrb[0].mxu0
  %4403 = vmatprep.mubr.bf16.mxu0 0
  %4404 = vmatmul.mubr.bf16.gmra.mrb[0].mxu0 %v2913
  %v4405 = vpop.f32.mrb[0].mxu0
  %v4406 = vadd.f32 %v798, %v4405
  %v4407 = vpop.f32.mrb[0].mxu0
  %v4408 = vpop.f32.mrb[0].mxu0
  %v4409 = vadd.f32 %v798, %v4408
  %v4410 = vpop.f32.mrb[0].mxu0
  %4411 = vmatprep.mubr.bf16.mxu0 0
  %4412 = vmatmul.mubr.bf16.gmra.mrb[0].mxu0 %v2916
  %v4413 = vpop.f32.mrb[0].mxu0
  %v4414 = vadd.f32 %v798, %v4413
  %v4415 = vpop.f32.mrb[0].mxu0
  %v4416 = vpop.f32.mrb[0].mxu0
  %v4417 = vadd.f32 %v798, %v4416
  %v4418 = vpop.f32.mrb[0].mxu0
  %4419 = vmatprep.mubr.bf16.mxu0 0
  %4420 = vmatmul.mubr.bf16.gmra.mrb[0].mxu0 %v2919
  %v4421 = vpop.f32.mrb[0].mxu0
  %v4422 = vadd.f32 %v798, %v4421
  %v4423 = vpop.f32.mrb[0].mxu0
  %v4424 = vpop.f32.mrb[0].mxu0
  %v4425 = vadd.f32 %v798, %v4424
  %v4426 = vpop.f32.mrb[0].mxu0
  %4427 = vmatprep.mubr.bf16.mxu0 0
  %4428 = vmatmul.mubr.bf16.gmra.mrb[0].mxu0 %v2922
  %v4429 = vpop.f32.mrb[0].mxu0
  %v4430 = vadd.f32 %v798, %v4429
  %v4431 = vpop.f32.mrb[0].mxu0
  %v4432 = vpop.f32.mrb[0].mxu0
  %v4433 = vadd.f32 %v798, %v4432
  %v4434 = vpop.f32.mrb[0].mxu0
  %4435 = vmatprep.mubr.bf16.mxu0 0
  %4436 = vmatmul.mubr.bf16.gmra.mrb[0].mxu0 %v2925
  %v4437 = vpop.f32.mrb[0].mxu0
  %v4438 = vadd.f32 %v798, %v4437
  %v4439 = vpop.f32.mrb[0].mxu0
  %v4440 = vpop.f32.mrb[0].mxu0
  %v4441 = vadd.f32 %v798, %v4440
  %v4442 = vpop.f32.mrb[0].mxu0
  %4443 = vmatprep.mubr.bf16.mxu0 0
  %4444 = vmatmul.mubr.bf16.gmra.mrb[0].mxu0 %v2928
  %v4445 = vpop.f32.mrb[0].mxu0
  %v4446 = vadd.f32 %v798, %v4445
  %v4447 = vpop.f32.mrb[0].mxu0
  %v4448 = vpop.f32.mrb[0].mxu0
  %v4449 = vadd.f32 %v798, %v4448
  %v4450 = vpop.f32.mrb[0].mxu0
  %4451 = vmatprep.mubr.bf16.mxu0 0
  %4452 = vmatmul.mubr.bf16.gmra.mrb[0].mxu0 %v2931
  %v4453 = vpop.f32.mrb[0].mxu0
  %v4454 = vadd.f32 %v798, %v4453
  %v4455 = vpop.f32.mrb[0].mxu0
  %v4456 = vpop.f32.mrb[0].mxu0
  %v4457 = vadd.f32 %v798, %v4456
  %v4458 = vpop.f32.mrb[0].mxu0
  %4459 = vmatprep.mubr.bf16.mxu0 0
  %4460 = vmatmul.mubr.bf16.gmra.mrb[0].mxu0 %v2934
  %v4461 = vpop.f32.mrb[0].mxu0
  %v4462 = vadd.f32 %v798, %v4461
  %v4463 = vpop.f32.mrb[0].mxu0
  %v4464 = vpop.f32.mrb[0].mxu0
  %v4465 = vadd.f32 %v798, %v4464
  %v4466 = vpop.f32.mrb[0].mxu0
  %4467 = vmatprep.mubr.bf16.mxu0 0
  %4468 = vmatmul.mubr.bf16.gmra.mrb[0].mxu0 %v2937
  %v4469 = vpop.f32.mrb[0].mxu0
  %v4470 = vadd.f32 %v798, %v4469
  %v4471 = vpop.f32.mrb[0].mxu0
  %v4472 = vpop.f32.mrb[0].mxu0
  %v4473 = vadd.f32 %v798, %v4472
  %v4474 = vpop.f32.mrb[0].mxu0
  %4475 = vmatprep.mubr.bf16.mxu0 0
  %4476 = vmatmul.mubr.bf16.gmra.mrb[0].mxu0 %v2940
  %v4477 = vpop.f32.mrb[0].mxu0
  %v4478 = vadd.f32 %v798, %v4477
  %v4479 = vpop.f32.mrb[0].mxu0
  %v4480 = vpop.f32.mrb[0].mxu0
  %v4481 = vadd.f32 %v798, %v4480
  %v4482 = vpop.f32.mrb[0].mxu0
  %4483 = vmatprep.mubr.bf16.mxu0 0
  %4484 = vmatmul.mubr.bf16.gmra.mrb[0].mxu0 %v2943
  %v4485 = vpop.f32.mrb[0].mxu0
  %v4486 = vadd.f32 %v798, %v4485
  %v4487 = vpop.f32.mrb[0].mxu0
  %v4488 = vpop.f32.mrb[0].mxu0
  %v4489 = vadd.f32 %v798, %v4488
  %v4490 = vpop.f32.mrb[0].mxu0
  %4491 = vmatprep.mubr.bf16.mxu0 0
  %4492 = vmatmul.mubr.bf16.gmra.mrb[0].mxu0 %v2946
  %v4493 = vpop.f32.mrb[0].mxu0
  %v4494 = vadd.f32 %v798, %v4493
  %v4495 = vpop.f32.mrb[0].mxu0
  %v4496 = vpop.f32.mrb[0].mxu0
  %v4497 = vadd.f32 %v798, %v4496
  %v4498 = vpop.f32.mrb[0].mxu0
  %4499 = vmatprep.mubr.bf16.mxu0 0
  %4500 = vmatmul.mubr.bf16.gmra.mrb[0].mxu0 %v2949
  %v4501 = vpop.f32.mrb[0].mxu0
  %v4502 = vadd.f32 %v798, %v4501
  %v4503 = vpop.f32.mrb[0].mxu0
  %v4504 = vpop.f32.mrb[0].mxu0
  %v4505 = vadd.f32 %v798, %v4504
  %v4506 = vpop.f32.mrb[0].mxu0
  %4507 = vmatprep.mubr.bf16.mxu0 0
  %4508 = vmatmul.mubr.bf16.gmra.mrb[0].mxu0 %v2952
  %v4509 = vpop.f32.mrb[0].mxu0
  %v4510 = vadd.f32 %v798, %v4509
  %v4511 = vpop.f32.mrb[0].mxu0
  %v4512 = vpop.f32.mrb[0].mxu0
  %v4513 = vadd.f32 %v798, %v4512
  %v4514 = vpop.f32.mrb[0].mxu0
  %4515 = vmatprep.mubr.bf16.mxu0 0
  %4516 = vmatmul.mubr.bf16.gmra.mrb[0].mxu0 %v2955
  %v4517 = vpop.f32.mrb[0].mxu0
  %v4518 = vadd.f32 %v798, %v4517
  %v4519 = vpop.f32.mrb[0].mxu0
  %v4520 = vpop.f32.mrb[0].mxu0
  %v4521 = vadd.f32 %v798, %v4520
  %v4522 = vpop.f32.mrb[0].mxu0
  %4523 = vmatprep.mubr.bf16.mxu0 0
  %4524 = vmatmul.mubr.bf16.gmra.mrb[0].mxu0 %v2958
  %v4525 = vpop.f32.mrb[0].mxu0
  %v4526 = vadd.f32 %v798, %v4525
  %v4527 = vpop.f32.mrb[0].mxu0
  %v4528 = vpop.f32.mrb[0].mxu0
  %v4529 = vadd.f32 %v798, %v4528
  %v4530 = vpop.f32.mrb[0].mxu0
  %4531 = vmatprep.mubr.bf16.mxu0 0
  %4532 = vmatmul.mubr.bf16.gmra.mrb[0].mxu0 %v2961
  %v4533 = vpop.f32.mrb[0].mxu0
  %v4534 = vadd.f32 %v798, %v4533
  %v4535 = vpop.f32.mrb[0].mxu0
  %v4536 = vpop.f32.mrb[0].mxu0
  %v4537 = vadd.f32 %v798, %v4536
  %v4538 = vpop.f32.mrb[0].mxu0
  %4539 = vmatprep.mubr.bf16.mxu0 0
  %4540 = vmatmul.mubr.bf16.gmra.mrb[0].mxu0 %v2964
  %v4541 = vpop.f32.mrb[0].mxu0
  %v4542 = vadd.f32 %v798, %v4541
  %v4543 = vpop.f32.mrb[0].mxu0
  %v4544 = vpop.f32.mrb[0].mxu0
  %v4545 = vadd.f32 %v798, %v4544
  %v4546 = vpop.f32.mrb[0].mxu0
  %4547 = vmatprep.mubr.bf16.mxu0 0
  %4548 = vmatmul.mubr.bf16.gmra.mrb[0].mxu0 %v2967
  %v4549 = vpop.f32.mrb[0].mxu0
  %v4550 = vadd.f32 %v798, %v4549
  %v4551 = vpop.f32.mrb[0].mxu0
  %v4552 = vpop.f32.mrb[0].mxu0
  %v4553 = vadd.f32 %v798, %v4552
  %v4554 = vpop.f32.mrb[0].mxu0
  %4555 = vmatprep.mubr.bf16.mxu0 0
  %4556 = vmatmul.mubr.bf16.gmra.mrb[0].mxu0 %v2970
  %v4557 = vpop.f32.mrb[0].mxu0
  %v4558 = vadd.f32 %v798, %v4557
  %v4559 = vpop.f32.mrb[0].mxu0
  %v4560 = vpop.f32.mrb[0].mxu0
  %v4561 = vadd.f32 %v798, %v4560
  %v4562 = vpop.f32.mrb[0].mxu0
  %4563 = vmatprep.mubr.bf16.mxu0 0
  %4564 = vmatmul.mubr.bf16.gmra.mrb[0].mxu0 %v2973
  %v4565 = vpop.f32.mrb[0].mxu0
  %v4566 = vadd.f32 %v798, %v4565
  %v4567 = vpop.f32.mrb[0].mxu0
  %v4568 = vpop.f32.mrb[0].mxu0
  %v4569 = vadd.f32 %v798, %v4568
  %v4570 = vpop.f32.mrb[0].mxu0
  %4571 = vmatprep.mubr.bf16.mxu0 0
  %4572 = vmatmul.mubr.bf16.gmra.mrb[0].mxu0 %v2976
  %v4573 = vpop.f32.mrb[0].mxu0
  %v4574 = vadd.f32 %v798, %v4573
  %v4575 = vpop.f32.mrb[0].mxu0
  %v4576 = vpop.f32.mrb[0].mxu0
  %v4577 = vadd.f32 %v798, %v4576
  %v4578 = vpop.f32.mrb[0].mxu0
  %4579 = vmatprep.mubr.bf16.mxu0 0
  %4580 = vmatmul.mubr.bf16.gmra.mrb[0].mxu0 %v2979
  %v4581 = vpop.f32.mrb[0].mxu0
  %v4582 = vadd.f32 %v798, %v4581
  %v4583 = vpop.f32.mrb[0].mxu0
  %v4584 = vpop.f32.mrb[0].mxu0
  %v4585 = vadd.f32 %v798, %v4584
  %v4586 = vpop.f32.mrb[0].mxu0
  %4587 = vmatprep.mubr.bf16.mxu0 0
  %4588 = vmatmul.mubr.bf16.gmra.mrb[0].mxu0 %v2982
  %v4589 = vpop.f32.mrb[0].mxu0
  %v4590 = vadd.f32 %v798, %v4589
  %v4591 = vpop.f32.mrb[0].mxu0
  %v4592 = vpop.f32.mrb[0].mxu0
  %v4593 = vadd.f32 %v798, %v4592
  %v4594 = vpop.f32.mrb[0].mxu0
  %4595 = vmatprep.mubr.bf16.mxu0 0
  %4596 = vmatmul.mubr.bf16.gmra.mrb[0].mxu0 %v2985
  %v4597 = vpop.f32.mrb[0].mxu0
  %v4598 = vadd.f32 %v798, %v4597
  %v4599 = vpop.f32.mrb[0].mxu0
  %v4600 = vpop.f32.mrb[0].mxu0
  %v4601 = vadd.f32 %v798, %v4600
  %v4602 = vpop.f32.mrb[0].mxu0
  %4603 = vmatprep.mubr.bf16.mxu0 0
  %4604 = vmatmul.mubr.bf16.gmra.mrb[0].mxu0 %v2988
  %v4605 = vpop.f32.mrb[0].mxu0
  %v4606 = vadd.f32 %v798, %v4605
  %v4607 = vpop.f32.mrb[0].mxu0
  %v4608 = vpop.f32.mrb[0].mxu0
  %v4609 = vadd.f32 %v798, %v4608
  %v4610 = vpop.f32.mrb[0].mxu0
  %4611 = vmatprep.mubr.bf16.mxu0 0
  %4612 = vmatmul.mubr.bf16.gmra.mrb[0].mxu0 %v2991
  %v4613 = vpop.f32.mrb[0].mxu0
  %v4614 = vadd.f32 %v798, %v4613
  %v4615 = vpop.f32.mrb[0].mxu0
  %v4616 = vpop.f32.mrb[0].mxu0
  %v4617 = vadd.f32 %v798, %v4616
  %v4618 = vpop.f32.mrb[0].mxu0
  %4619 = vmatprep.mubr.bf16.mxu0 0
  %4620 = vmatmul.mubr.bf16.gmra.mrb[0].mxu0 %v2994
  %v4621 = vpop.f32.mrb[0].mxu0
  %v4622 = vadd.f32 %v798, %v4621
  %v4623 = vpop.f32.mrb[0].mxu0
  %v4624 = vpop.f32.mrb[0].mxu0
  %v4625 = vadd.f32 %v798, %v4624
  %v4626 = vpop.f32.mrb[0].mxu0
  %4627 = vmatprep.mubr.bf16.mxu0 0
  %4628 = vmatmul.mubr.bf16.gmra.mrb[0].mxu0 %v2997
  %v4629 = vpop.f32.mrb[0].mxu0
  %v4630 = vadd.f32 %v798, %v4629
  %v4631 = vpop.f32.mrb[0].mxu0
  %v4632 = vpop.f32.mrb[0].mxu0
  %v4633 = vadd.f32 %v798, %v4632
  %v4634 = vpop.f32.mrb[0].mxu0
  %4635 = vmatprep.mubr.bf16.mxu0 0
  %4636 = vmatmul.mubr.bf16.gmra.mrb[0].mxu0 %v3000
  %v4637 = vpop.f32.mrb[0].mxu0
  %v4638 = vadd.f32 %v798, %v4637
  %v4639 = vpop.f32.mrb[0].mxu0
  %v4640 = vpop.f32.mrb[0].mxu0
  %v4641 = vadd.f32 %v798, %v4640
  %v4642 = vpop.f32.mrb[0].mxu0
  %4643 = vmatprep.mubr.bf16.mxu0 0
  %4644 = vmatmul.mubr.bf16.gmra.mrb[0].mxu0 %v3003
  %v4645 = vpop.f32.mrb[0].mxu0
  %v4646 = vadd.f32 %v798, %v4645
  %v4647 = vpop.f32.mrb[0].mxu0
  %v4648 = vpop.f32.mrb[0].mxu0
  %v4649 = vadd.f32 %v798, %v4648
  %v4650 = vpop.f32.mrb[0].mxu0
  %4651 = vmatprep.mubr.bf16.mxu0 0
  %4652 = vmatmul.mubr.bf16.gmra.mrb[0].mxu0 %v3006
  %v4653 = vpop.f32.mrb[0].mxu0
  %v4654 = vadd.f32 %v798, %v4653
  %v4655 = vpop.f32.mrb[0].mxu0
  %v4656 = vpop.f32.mrb[0].mxu0
  %v4657 = vadd.f32 %v798, %v4656
  %v4658 = vpop.f32.mrb[0].mxu0
  %4659 = vmatprep.mubr.bf16.mxu0 0
  %4660 = vmatmul.mubr.bf16.gmra.mrb[0].mxu0 %v3009
  %v4661 = vpop.f32.mrb[0].mxu0
  %v4662 = vadd.f32 %v798, %v4661
  %v4663 = vpop.f32.mrb[0].mxu0
  %v4664 = vpop.f32.mrb[0].mxu0
  %v4665 = vadd.f32 %v798, %v4664
  %v4666 = vpop.f32.mrb[0].mxu0
  %4667 = vmatprep.mubr.bf16.mxu0 0
  %4668 = vmatmul.mubr.bf16.gmra.mrb[0].mxu0 %v3012
  %v4669 = vpop.f32.mrb[0].mxu0
  %v4670 = vadd.f32 %v798, %v4669
  %v4671 = vpop.f32.mrb[0].mxu0
  %v4672 = vpop.f32.mrb[0].mxu0
  %v4673 = vadd.f32 %v798, %v4672
  %v4674 = vpop.f32.mrb[0].mxu0
  %4675 = vmatprep.mubr.bf16.mxu0 0
  %4676 = vmatmul.mubr.bf16.gmra.mrb[0].mxu0 %v3015
  %v4677 = vpop.f32.mrb[0].mxu0
  %v4678 = vadd.f32 %v798, %v4677
  %v4679 = vpop.f32.mrb[0].mxu0
  %v4680 = vpop.f32.mrb[0].mxu0
  %v4681 = vadd.f32 %v798, %v4680
  %v4682 = vpop.f32.mrb[0].mxu0
  %4683 = vmatprep.mubr.bf16.mxu0 0
  %4684 = vmatmul.mubr.bf16.gmra.mrb[0].mxu0 %v3018
  %v4685 = vpop.f32.mrb[0].mxu0
  %v4686 = vadd.f32 %v798, %v4685
  %v4687 = vpop.f32.mrb[0].mxu0
  %v4688 = vpop.f32.mrb[0].mxu0
  %v4689 = vadd.f32 %v798, %v4688
  %v4690 = vpop.f32.mrb[0].mxu0
  %4691 = vmatprep.mubr.bf16.mxu0 0
  %4692 = vmatmul.mubr.bf16.gmra.mrb[0].mxu0 %v3021
  %v4693 = vpop.f32.mrb[0].mxu0
  %v4694 = vadd.f32 %v798, %v4693
  %v4695 = vpop.f32.mrb[0].mxu0
  %v4696 = vpop.f32.mrb[0].mxu0
  %v4697 = vadd.f32 %v798, %v4696
  %v4698 = vpop.f32.mrb[0].mxu0
  %4699 = vmatprep.mubr.bf16.mxu0 0
  %4700 = vmatmul.mubr.bf16.gmra.mrb[0].mxu0 %v3024
  %v4701 = vpop.f32.mrb[0].mxu0
  %v4702 = vadd.f32 %v798, %v4701
  %v4703 = vpop.f32.mrb[0].mxu0
  %v4704 = vpop.f32.mrb[0].mxu0
  %v4705 = vadd.f32 %v798, %v4704
  %v4706 = vpop.f32.mrb[0].mxu0
  %4707 = vmatprep.mubr.bf16.mxu0 0
  %4708 = vmatmul.mubr.bf16.gmra.mrb[0].mxu0 %v3027
  %v4709 = vpop.f32.mrb[0].mxu0
  %v4710 = vadd.f32 %v798, %v4709
  %v4711 = vpop.f32.mrb[0].mxu0
  %v4712 = vpop.f32.mrb[0].mxu0
  %v4713 = vadd.f32 %v798, %v4712
  %v4714 = vpop.f32.mrb[0].mxu0
  %4715 = vmatprep.mubr.bf16.mxu0 0
  %4716 = vmatmul.mubr.bf16.gmra.mrb[0].mxu0 %v3030
  %v4717 = vpop.f32.mrb[0].mxu0
  %v4718 = vadd.f32 %v798, %v4717
  %v4719 = vpop.f32.mrb[0].mxu0
  %v4720 = vpop.f32.mrb[0].mxu0
  %v4721 = vadd.f32 %v798, %v4720
  %v4722 = vpop.f32.mrb[0].mxu0
  %4723 = vmatprep.mubr.bf16.mxu0 0
  %4724 = vmatmul.mubr.bf16.gmra.mrb[0].mxu0 %v3033
  %v4725 = vpop.f32.mrb[0].mxu0
  %v4726 = vadd.f32 %v798, %v4725
  %v4727 = vpop.f32.mrb[0].mxu0
  %v4728 = vpop.f32.mrb[0].mxu0
  %v4729 = vadd.f32 %v798, %v4728
  %v4730 = vpop.f32.mrb[0].mxu0
  %4731 = vmatprep.mubr.bf16.mxu0 0
  %4732 = vmatmul.mubr.bf16.gmra.mrb[0].mxu0 %v3036
  %v4733 = vpop.f32.mrb[0].mxu0
  %v4734 = vadd.f32 %v798, %v4733
  %v4735 = vpop.f32.mrb[0].mxu0
  %v4736 = vpop.f32.mrb[0].mxu0
  %v4737 = vadd.f32 %v798, %v4736
  %v4738 = vpop.f32.mrb[0].mxu0
  %4739 = vmatprep.mubr.bf16.mxu0 0
  %4740 = vmatmul.mubr.bf16.gmra.mrb[0].mxu0 %v3039
  %v4741 = vpop.f32.mrb[0].mxu0
  %v4742 = vadd.f32 %v798, %v4741
  %v4743 = vpop.f32.mrb[0].mxu0
  %v4744 = vpop.f32.mrb[0].mxu0
  %v4745 = vadd.f32 %v798, %v4744
  %v4746 = vpop.f32.mrb[0].mxu0
  %4747 = vmatprep.mubr.bf16.mxu0 0
  %4748 = vmatmul.mubr.bf16.gmra.mrb[0].mxu0 %v3042
  %v4749 = vpop.f32.mrb[0].mxu0
  %v4750 = vadd.f32 %v798, %v4749
  %v4751 = vpop.f32.mrb[0].mxu0
  %v4752 = vpop.f32.mrb[0].mxu0
  %v4753 = vadd.f32 %v798, %v4752
  %v4754 = vpop.f32.mrb[0].mxu0
  %4755 = vmatprep.mubr.bf16.mxu0 0
  %4756 = vmatmul.mubr.bf16.gmra.mrb[0].mxu0 %v3045
  %v4757 = vpop.f32.mrb[0].mxu0
  %v4758 = vadd.f32 %v798, %v4757
  %v4759 = vpop.f32.mrb[0].mxu0
  %v4760 = vpop.f32.mrb[0].mxu0
  %v4761 = vadd.f32 %v798, %v4760
  %v4762 = vpop.f32.mrb[0].mxu0
  %4763 = vmatprep.mubr.bf16.mxu0 0
  %4764 = vmatmul.mubr.bf16.gmra.mrb[0].mxu0 %v3048
  %v4765 = vpop.f32.mrb[0].mxu0
  %v4766 = vadd.f32 %v798, %v4765
  %v4767 = vpop.f32.mrb[0].mxu0
  %v4768 = vpop.f32.mrb[0].mxu0
  %v4769 = vadd.f32 %v798, %v4768
  %v4770 = vpop.f32.mrb[0].mxu0
  %4771 = vmatprep.mubr.bf16.mxu0 0
  %4772 = vmatmul.mubr.bf16.gmra.mrb[0].mxu0 %v3051
  %v4773 = vpop.f32.mrb[0].mxu0
  %v4774 = vadd.f32 %v798, %v4773
  %v4775 = vpop.f32.mrb[0].mxu0
  %v4776 = vpop.f32.mrb[0].mxu0
  %v4777 = vadd.f32 %v798, %v4776
  %v4778 = vpop.f32.mrb[0].mxu0
  %4779 = vmatprep.mubr.bf16.mxu0 0
  %4780 = vmatmul.mubr.bf16.gmra.mrb[0].mxu0 %v3054
  %v4781 = vpop.f32.mrb[0].mxu0
  %v4782 = vadd.f32 %v798, %v4781
  %v4783 = vpop.f32.mrb[0].mxu0
  %v4784 = vpop.f32.mrb[0].mxu0
  %v4785 = vadd.f32 %v798, %v4784
  %v4786 = vpop.f32.mrb[0].mxu0
  %4787 = vmatprep.mubr.bf16.mxu0 0
  %4788 = vmatmul.mubr.bf16.gmra.mrb[0].mxu0 %v3057
  %v4789 = vpop.f32.mrb[0].mxu0
  %v4790 = vadd.f32 %v798, %v4789
  %v4791 = vpop.f32.mrb[0].mxu0
  %v4792 = vpop.f32.mrb[0].mxu0
  %v4793 = vadd.f32 %v798, %v4792
  %v4794 = vpop.f32.mrb[0].mxu0
  %4795 = vmatprep.mubr.bf16.mxu0 0
  %4796 = vmatmul.mubr.bf16.gmra.mrb[0].mxu0 %v3060
  %v4797 = vpop.f32.mrb[0].mxu0
  %v4798 = vadd.f32 %v798, %v4797
  %v4799 = vpop.f32.mrb[0].mxu0
  %v4800 = vpop.f32.mrb[0].mxu0
  %v4801 = vadd.f32 %v798, %v4800
  %v4802 = vpop.f32.mrb[0].mxu0
  %4803 = vmatprep.mubr.bf16.mxu0 0
  %4804 = vmatmul.mubr.bf16.gmra.mrb[0].mxu0 %v3063
  %v4805 = vpop.f32.mrb[0].mxu0
  %v4806 = vadd.f32 %v798, %v4805
  %v4807 = vpop.f32.mrb[0].mxu0
  %v4808 = vpop.f32.mrb[0].mxu0
  %v4809 = vadd.f32 %v798, %v4808
  %v4810 = vpop.f32.mrb[0].mxu0
  %4811 = vmatprep.mubr.bf16.mxu0 0
  %4812 = vmatmul.mubr.bf16.gmra.mrb[0].mxu0 %v3066
  %v4813 = vpop.f32.mrb[0].mxu0
  %v4814 = vadd.f32 %v798, %v4813
  %v4815 = vpop.f32.mrb[0].mxu0
  %v4816 = vpop.f32.mrb[0].mxu0
  %v4817 = vadd.f32 %v798, %v4816
  %v4818 = vpop.f32.mrb[0].mxu0
  %4819 = vmatprep.mubr.bf16.mxu0 0
  %4820 = vmatmul.mubr.bf16.gmra.mrb[0].mxu0 %v3069
  %v4821 = vpop.f32.mrb[0].mxu0
  %v4822 = vadd.f32 %v798, %v4821
  %v4823 = vpop.f32.mrb[0].mxu0
  %v4824 = vpop.f32.mrb[0].mxu0
  %v4825 = vadd.f32 %v798, %v4824
  %v4826 = vpop.f32.mrb[0].mxu0
  %4827 = vmatprep.mubr.bf16.mxu0 0
  %4828 = vmatmul.mubr.bf16.gmra.mrb[0].mxu0 %v3072
  %v4829 = vpop.f32.mrb[0].mxu0
  %v4830 = vadd.f32 %v798, %v4829
  %v4831 = vpop.f32.mrb[0].mxu0
  %v4832 = vpop.f32.mrb[0].mxu0
  %v4833 = vadd.f32 %v798, %v4832
  %v4834 = vpop.f32.mrb[0].mxu0
  %4835 = vmatprep.mubr.bf16.mxu0 0
  %4836 = vmatmul.mubr.bf16.gmra.mrb[0].mxu0 %v3075
  %v4837 = vpop.f32.mrb[0].mxu0
  %v4838 = vadd.f32 %v798, %v4837
  %v4839 = vpop.f32.mrb[0].mxu0
  %v4840 = vpop.f32.mrb[0].mxu0
  %v4841 = vadd.f32 %v798, %v4840
  %v4842 = vpop.f32.mrb[0].mxu0
  %4843 = vmatprep.mubr.bf16.mxu0 0
  %4844 = vmatmul.mubr.bf16.gmra.mrb[0].mxu0 %v3078
  %v4845 = vpop.f32.mrb[0].mxu0
  %v4846 = vadd.f32 %v798, %v4845
  %v4847 = vpop.f32.mrb[0].mxu0
  %v4848 = vpop.f32.mrb[0].mxu0
  %v4849 = vadd.f32 %v798, %v4848
  %v4850 = vpop.f32.mrb[0].mxu0
  %4851 = vmatprep.mubr.bf16.mxu0 0
  %4852 = vmatmul.mubr.bf16.gmra.mrb[0].mxu0 %v3081
  %v4853 = vpop.f32.mrb[0].mxu0
  %v4854 = vadd.f32 %v798, %v4853
  %v4855 = vpop.f32.mrb[0].mxu0
  %v4856 = vpop.f32.mrb[0].mxu0
  %v4857 = vadd.f32 %v798, %v4856
  %v4858 = vpop.f32.mrb[0].mxu0
  %4859 = vmatprep.mubr.bf16.mxu0 0
  %4860 = vmatmul.mubr.bf16.gmra.mrb[0].mxu0 %v3084
  %v4861 = vpop.f32.mrb[0].mxu0
  %v4862 = vadd.f32 %v798, %v4861
  %v4863 = vpop.f32.mrb[0].mxu0
  %v4864 = vpop.f32.mrb[0].mxu0
  %v4865 = vadd.f32 %v798, %v4864
  %v4866 = vpop.f32.mrb[0].mxu0
  %4867 = vmatprep.mubr.bf16.mxu0 0
  %4868 = vmatmul.mubr.bf16.gmra.mrb[0].mxu0 %v3087
  %v4869 = vpop.f32.mrb[0].mxu0
  %v4870 = vadd.f32 %v798, %v4869
  %v4871 = vpop.f32.mrb[0].mxu0
  %v4872 = vpop.f32.mrb[0].mxu0
  %v4873 = vadd.f32 %v798, %v4872
  %v4874 = vpop.f32.mrb[0].mxu0
  %4875 = vmatprep.mubr.bf16.mxu0 0
  %4876 = vmatmul.mubr.bf16.gmra.mrb[0].mxu0 %v3090
  %v4877 = vpop.f32.mrb[0].mxu0
  %v4878 = vadd.f32 %v798, %v4877
  %v4879 = vpop.f32.mrb[0].mxu0
  %v4880 = vpop.f32.mrb[0].mxu0
  %v4881 = vadd.f32 %v798, %v4880
  %v4882 = vpop.f32.mrb[0].mxu0
  %4883 = vmatprep.mubr.bf16.mxu0 0
  %4884 = vmatmul.mubr.bf16.gmra.mrb[0].mxu0 %v3093
  %v4885 = vpop.f32.mrb[0].mxu0
  %v4886 = vadd.f32 %v798, %v4885
  %v4887 = vpop.f32.mrb[0].mxu0
  %v4888 = vpop.f32.mrb[0].mxu0
  %v4889 = vadd.f32 %v798, %v4888
  %v4890 = vpop.f32.mrb[0].mxu0
  %4891 = vmatprep.mubr.bf16.mxu0 0
  %4892 = vmatmul.mubr.bf16.gmra.mrb[0].mxu0 %v3096
  %v4893 = vpop.f32.mrb[0].mxu0
  %v4894 = vadd.f32 %v798, %v4893
  %v4895 = vpop.f32.mrb[0].mxu0
  %v4896 = vpop.f32.mrb[0].mxu0
  %v4897 = vadd.f32 %v798, %v4896
  %v4898 = vpop.f32.mrb[0].mxu0
  %4899 = vmatprep.mubr.bf16.mxu0 0
  %4900 = vmatmul.mubr.bf16.gmra.mrb[0].mxu0 %v3099
  %v4901 = vpop.f32.mrb[0].mxu0
  %v4902 = vadd.f32 %v798, %v4901
  %v4903 = vpop.f32.mrb[0].mxu0
  %v4904 = vpop.f32.mrb[0].mxu0
  %v4905 = vadd.f32 %v798, %v4904
  %v4906 = vpop.f32.mrb[0].mxu0
  %4907 = vmatprep.mubr.bf16.mxu0 0
  %4908 = vmatmul.mubr.bf16.gmra.mrb[0].mxu0 %v3102
  %v4909 = vpop.f32.mrb[0].mxu0
  %v4910 = vadd.f32 %v798, %v4909
  %v4911 = vpop.f32.mrb[0].mxu0
  %v4912 = vpop.f32.mrb[0].mxu0
  %v4913 = vadd.f32 %v798, %v4912
  %v4914 = vpop.f32.mrb[0].mxu0
  %4915 = vmatprep.mubr.bf16.mxu0 0
  %4916 = vmatmul.mubr.bf16.gmra.mrb[0].mxu0 %v3105
  %v4917 = vpop.f32.mrb[0].mxu0
  %v4918 = vadd.f32 %v798, %v4917
  %v4919 = vpop.f32.mrb[0].mxu0
  %v4920 = vpop.f32.mrb[0].mxu0
  %v4921 = vadd.f32 %v798, %v4920
  %v4922 = vpop.f32.mrb[0].mxu0
  %4923 = vmatprep.mubr.bf16.mxu0 0
  %4924 = vmatmul.mubr.bf16.gmra.mrb[0].mxu0 %v3108
  %v4925 = vpop.f32.mrb[0].mxu0
  %v4926 = vadd.f32 %v798, %v4925
  %v4927 = vpop.f32.mrb[0].mxu0
  %v4928 = vpop.f32.mrb[0].mxu0
  %v4929 = vadd.f32 %v798, %v4928
  %v4930 = vpop.f32.mrb[0].mxu0
  %4931 = vmatprep.mubr.bf16.mxu0 0
  %4932 = vmatmul.mubr.bf16.gmra.mrb[0].mxu0 %v3111
  %v4933 = vpop.f32.mrb[0].mxu0
  %v4934 = vadd.f32 %v798, %v4933
  %v4935 = vpop.f32.mrb[0].mxu0
  %v4936 = vpop.f32.mrb[0].mxu0
  %v4937 = vadd.f32 %v798, %v4936
  %v4938 = vpop.f32.mrb[0].mxu0
  %4939 = vmatprep.mubr.bf16.mxu0 0
  %4940 = vmatmul.mubr.bf16.gmra.mrb[0].mxu0 %v3114
  %v4941 = vpop.f32.mrb[0].mxu0
  %v4942 = vadd.f32 %v798, %v4941
  %v4943 = vpop.f32.mrb[0].mxu0
  %v4944 = vpop.f32.mrb[0].mxu0
  %v4945 = vadd.f32 %v798, %v4944
  %v4946 = vpop.f32.mrb[0].mxu0
  %4947 = vmatprep.mubr.bf16.mxu0 0
  %4948 = vmatmul.mubr.bf16.gmra.mrb[0].mxu0 %v3117
  %v4949 = vpop.f32.mrb[0].mxu0
  %v4950 = vadd.f32 %v798, %v4949
  %v4951 = vpop.f32.mrb[0].mxu0
  %v4952 = vpop.f32.mrb[0].mxu0
  %v4953 = vadd.f32 %v798, %v4952
  %v4954 = vpop.f32.mrb[0].mxu0
  %4955 = vmatprep.mubr.bf16.mxu0 0
  %4956 = vmatmul.mubr.bf16.gmra.mrb[0].mxu0 %v3120
  %v4957 = vpop.f32.mrb[0].mxu0
  %v4958 = vadd.f32 %v798, %v4957
  %v4959 = vpop.f32.mrb[0].mxu0
  %v4960 = vpop.f32.mrb[0].mxu0
  %v4961 = vadd.f32 %v798, %v4960
  %v4962 = vpop.f32.mrb[0].mxu0
  %4963 = vmatprep.mubr.bf16.mxu0 0
  %4964 = vmatmul.mubr.bf16.gmra.mrb[0].mxu0 %v3123
  %v4965 = vpop.f32.mrb[0].mxu0
  %v4966 = vadd.f32 %v798, %v4965
  %v4967 = vpop.f32.mrb[0].mxu0
  %v4968 = vpop.f32.mrb[0].mxu0
  %v4969 = vadd.f32 %v798, %v4968
  %v4970 = vpop.f32.mrb[0].mxu0
  %4971 = vmatprep.mubr.bf16.mxu0 0
  %4972 = vmatmul.mubr.bf16.gmra.mrb[0].mxu0 %v3126
  %v4973 = vpop.f32.mrb[0].mxu0
  %v4974 = vadd.f32 %v798, %v4973
  %v4975 = vpop.f32.mrb[0].mxu0
  %v4976 = vpop.f32.mrb[0].mxu0
  %v4977 = vadd.f32 %v798, %v4976
  %v4978 = vpop.f32.mrb[0].mxu0
  %4979 = vmatprep.mubr.bf16.mxu0 0
  %4980 = vmatmul.mubr.bf16.gmra.mrb[0].mxu0 %v3129
  %v4981 = vpop.f32.mrb[0].mxu0
  %v4982 = vadd.f32 %v798, %v4981
  %v4983 = vpop.f32.mrb[0].mxu0
  %v4984 = vpop.f32.mrb[0].mxu0
  %v4985 = vadd.f32 %v798, %v4984
  %v4986 = vpop.f32.mrb[0].mxu0
  %4987 = vmatprep.mubr.bf16.mxu0 0
  %4988 = vmatmul.mubr.bf16.gmra.mrb[0].mxu0 %v3132
  %v4989 = vpop.f32.mrb[0].mxu0
  %v4990 = vadd.f32 %v798, %v4989
  %v4991 = vpop.f32.mrb[0].mxu0
  %v4992 = vpop.f32.mrb[0].mxu0
  %v4993 = vadd.f32 %v798, %v4992
  %v4994 = vpop.f32.mrb[0].mxu0
  %4995 = vmatprep.mubr.bf16.mxu0 0
  %4996 = vmatmul.mubr.bf16.gmra.mrb[0].mxu0 %v3135
  %v4997 = vpop.f32.mrb[0].mxu0
  %v4998 = vadd.f32 %v798, %v4997
  %v4999 = vpop.f32.mrb[0].mxu0
  %v5000 = vpop.f32.mrb[0].mxu0
  %v5001 = vadd.f32 %v798, %v5000
  %v5002 = vpop.f32.mrb[0].mxu0
  %5003 = vmatprep.mubr.bf16.mxu0 0
  %5004 = vmatmul.mubr.bf16.gmra.mrb[0].mxu0 %v3138
  %v5005 = vpop.f32.mrb[0].mxu0
  %v5006 = vadd.f32 %v798, %v5005
  %v5007 = vpop.f32.mrb[0].mxu0
  %v5008 = vpop.f32.mrb[0].mxu0
  %v5009 = vadd.f32 %v798, %v5008
  %v5010 = vpop.f32.mrb[0].mxu0
  %5011 = vmatprep.mubr.bf16.mxu0 0
  %5012 = vmatmul.mubr.bf16.gmra.mrb[0].mxu0 %v3141
  %v5013 = vpop.f32.mrb[0].mxu0
  %v5014 = vadd.f32 %v798, %v5013
  %v5015 = vpop.f32.mrb[0].mxu0
  %v5016 = vpop.f32.mrb[0].mxu0
  %v5017 = vadd.f32 %v798, %v5016
  %v5018 = vpop.f32.mrb[0].mxu0
  %5019 = vmatprep.mubr.bf16.mxu0 0
  %5020 = vmatmul.mubr.bf16.gmra.mrb[0].mxu0 %v3144
  %v5021 = vpop.f32.mrb[0].mxu0
  %v5022 = vadd.f32 %v798, %v5021
  %v5023 = vpop.f32.mrb[0].mxu0
  %v5024 = vpop.f32.mrb[0].mxu0
  %v5025 = vadd.f32 %v798, %v5024
  %v5026 = vpop.f32.mrb[0].mxu0
  %5027 = vmatprep.mubr.bf16.mxu0 0
  %5028 = vmatmul.mubr.bf16.gmra.mrb[0].mxu0 %v3147
  %v5029 = vpop.f32.mrb[0].mxu0
  %v5030 = vadd.f32 %v798, %v5029
  %v5031 = vpop.f32.mrb[0].mxu0
  %v5032 = vpop.f32.mrb[0].mxu0
  %v5033 = vadd.f32 %v798, %v5032
  %v5034 = vpop.f32.mrb[0].mxu0
  %5035 = vmatprep.mubr.bf16.mxu0 0
  %5036 = vmatmul.mubr.bf16.gmra.mrb[0].mxu0 %v3150
  %v5037 = vpop.f32.mrb[0].mxu0
  %v5038 = vadd.f32 %v798, %v5037
  %v5039 = vpop.f32.mrb[0].mxu0
  %v5040 = vpop.f32.mrb[0].mxu0
  %v5041 = vadd.f32 %v798, %v5040
  %v5042 = vpop.f32.mrb[0].mxu0
  %5043 = vmatprep.mubr.bf16.mxu0 0
  %5044 = vmatmul.mubr.bf16.gmra.mrb[0].mxu0 %v3153
  %v5045 = vpop.f32.mrb[0].mxu0
  %v5046 = vadd.f32 %v798, %v5045
  %v5047 = vpop.f32.mrb[0].mxu0
  %v5048 = vpop.f32.mrb[0].mxu0
  %v5049 = vadd.f32 %v798, %v5048
  %v5050 = vpop.f32.mrb[0].mxu0
  %5051 = vmatprep.mubr.bf16.mxu0 0
  %5052 = vmatmul.mubr.bf16.gmra.mrb[0].mxu0 %v3156
  %v5053 = vpop.f32.mrb[0].mxu0
  %v5054 = vadd.f32 %v798, %v5053
  %v5055 = vpop.f32.mrb[0].mxu0
  %v5056 = vpop.f32.mrb[0].mxu0
  %v5057 = vadd.f32 %v798, %v5056
  %v5058 = vpop.f32.mrb[0].mxu0
  %5059 = vmatprep.mubr.bf16.mxu0 0
  %5060 = vmatmul.mubr.bf16.gmra.mrb[0].mxu0 %v3159
  %v5061 = vpop.f32.mrb[0].mxu0
  %v5062 = vadd.f32 %v798, %v5061
  %v5063 = vpop.f32.mrb[0].mxu0
  %v5064 = vpop.f32.mrb[0].mxu0
  %v5065 = vadd.f32 %v798, %v5064
  %v5066 = vpop.f32.mrb[0].mxu0
  %5067 = vmatprep.mubr.bf16.mxu0 0
  %5068 = vmatmul.mubr.bf16.gmra.mrb[0].mxu0 %v3162
  %v5069 = vpop.f32.mrb[0].mxu0
  %v5070 = vadd.f32 %v798, %v5069
  %v5071 = vpop.f32.mrb[0].mxu0
  %v5072 = vpop.f32.mrb[0].mxu0
  %v5073 = vadd.f32 %v798, %v5072
  %v5074 = vpop.f32.mrb[0].mxu0
  %5075 = vmatprep.mubr.bf16.mxu0 0
  %5076 = vmatmul.mubr.bf16.gmra.mrb[0].mxu0 %v3165
  %v5077 = vpop.f32.mrb[0].mxu0
  %v5078 = vadd.f32 %v798, %v5077
  %v5079 = vpop.f32.mrb[0].mxu0
  %v5080 = vpop.f32.mrb[0].mxu0
  %v5081 = vadd.f32 %v798, %v5080
  %v5082 = vpop.f32.mrb[0].mxu0
  %5083 = vmatprep.mubr.bf16.mxu0 0
  %5084 = vmatmul.mubr.bf16.gmra.mrb[0].mxu0 %v3168
  %v5085 = vpop.f32.mrb[0].mxu0
  %v5086 = vadd.f32 %v798, %v5085
  %v5087 = vpop.f32.mrb[0].mxu0
  %v5088 = vpop.f32.mrb[0].mxu0
  %v5089 = vadd.f32 %v798, %v5088
  %v5090 = vpop.f32.mrb[0].mxu0
  %5091 = vmatprep.mubr.bf16.mxu0 0
  %5092 = vmatmul.mubr.bf16.gmra.mrb[0].mxu0 %v3171
  %v5093 = vpop.f32.mrb[0].mxu0
  %v5094 = vadd.f32 %v798, %v5093
  %v5095 = vpop.f32.mrb[0].mxu0
  %v5096 = vpop.f32.mrb[0].mxu0
  %v5097 = vadd.f32 %v798, %v5096
  %v5098 = vpop.f32.mrb[0].mxu0
  %5099 = vmatprep.mubr.bf16.mxu0 0
  %5100 = vmatmul.mubr.bf16.gmra.mrb[0].mxu0 %v3174
  %v5101 = vpop.f32.mrb[0].mxu0
  %v5102 = vadd.f32 %v798, %v5101
  %v5103 = vpop.f32.mrb[0].mxu0
  %v5104 = vpop.f32.mrb[0].mxu0
  %v5105 = vadd.f32 %v798, %v5104
  %v5106 = vpop.f32.mrb[0].mxu0
  %5107 = vmatprep.mubr.bf16.mxu0 0
  %5108 = vmatmul.mubr.bf16.gmra.mrb[0].mxu0 %v3177
  %v5109 = vpop.f32.mrb[0].mxu0
  %v5110 = vadd.f32 %v798, %v5109
  %v5111 = vpop.f32.mrb[0].mxu0
  %v5112 = vpop.f32.mrb[0].mxu0
  %v5113 = vadd.f32 %v798, %v5112
  %v5114 = vpop.f32.mrb[0].mxu0
  %5115 = vmatprep.mubr.bf16.mxu0 0
  %5116 = vmatmul.mubr.bf16.gmra.mrb[0].mxu0 %v3180
  %v5117 = vpop.f32.mrb[0].mxu0
  %v5118 = vadd.f32 %v798, %v5117
  %v5119 = vpop.f32.mrb[0].mxu0
  %v5120 = vpop.f32.mrb[0].mxu0
  %v5121 = vadd.f32 %v798, %v5120
  %v5122 = vpop.f32.mrb[0].mxu0
  %5123 = vmatprep.mubr.bf16.mxu0 0
  %5124 = vmatmul.mubr.bf16.gmra.mrb[0].mxu0 %v3183
  %v5125 = vpop.f32.mrb[0].mxu0
  %v5126 = vadd.f32 %v798, %v5125
  %v5127 = vpop.f32.mrb[0].mxu0
  %v5128 = vpop.f32.mrb[0].mxu0
  %v5129 = vadd.f32 %v798, %v5128
  %v5130 = vpop.f32.mrb[0].mxu0
  %5131 = vmatprep.mubr.bf16.mxu0 0
  %5132 = vmatmul.mubr.bf16.gmra.mrb[0].mxu0 %v3186
  %v5133 = vpop.f32.mrb[0].mxu0
  %v5134 = vadd.f32 %v798, %v5133
  %v5135 = vpop.f32.mrb[0].mxu0
  %v5136 = vpop.f32.mrb[0].mxu0
  %v5137 = vadd.f32 %v798, %v5136
  %v5138 = vpop.f32.mrb[0].mxu0
  %5139 = vmatprep.mubr.bf16.mxu0 0
  %5140 = vmatmul.mubr.bf16.gmra.mrb[0].mxu0 %v3189
  %v5141 = vpop.f32.mrb[0].mxu0
  %v5142 = vadd.f32 %v798, %v5141
  %v5143 = vpop.f32.mrb[0].mxu0
  %v5144 = vpop.f32.mrb[0].mxu0
  %v5145 = vadd.f32 %v798, %v5144
  %v5146 = vpop.f32.mrb[0].mxu0
  %5147 = vmatprep.mubr.bf16.mxu0 0
  %5148 = vmatmul.mubr.bf16.gmra.mrb[0].mxu0 %v3192
  %v5149 = vpop.f32.mrb[0].mxu0
  %v5150 = vadd.f32 %v798, %v5149
  %v5151 = vpop.f32.mrb[0].mxu0
  %v5152 = vpop.f32.mrb[0].mxu0
  %v5153 = vadd.f32 %v798, %v5152
  %v5154 = vpop.f32.mrb[0].mxu0
  %5155 = vmatprep.mubr.bf16.mxu0 0
  %5156 = vmatmul.mubr.bf16.gmra.mrb[0].mxu0 %v3195
  %v5157 = vpop.f32.mrb[0].mxu0
  %v5158 = vadd.f32 %v798, %v5157
  %v5159 = vpop.f32.mrb[0].mxu0
  %v5160 = vpop.f32.mrb[0].mxu0
  %v5161 = vadd.f32 %v798, %v5160
  %v5162 = vpop.f32.mrb[0].mxu0
  %5163 = vmatprep.mubr.bf16.mxu0 0
  %5164 = vmatmul.mubr.bf16.gmra.mrb[0].mxu0 %v3198
  %v5165 = vpop.f32.mrb[0].mxu0
  %v5166 = vadd.f32 %v798, %v5165
  %v5167 = vpop.f32.mrb[0].mxu0
  %v5168 = vpop.f32.mrb[0].mxu0
  %v5169 = vadd.f32 %v798, %v5168
  %v5170 = vpop.f32.mrb[0].mxu0
  %5171 = vmatprep.mubr.bf16.mxu0 0
  %5172 = vmatmul.mubr.bf16.gmra.mrb[0].mxu0 %v3201
  %v5173 = vpop.f32.mrb[0].mxu0
  %v5174 = vadd.f32 %v798, %v5173
  %v5175 = vpop.f32.mrb[0].mxu0
  %v5176 = vpop.f32.mrb[0].mxu0
  %v5177 = vadd.f32 %v798, %v5176
  %v5178 = vpop.f32.mrb[0].mxu0
  %5179 = vmatprep.mubr.bf16.mxu0 0
  %5180 = vmatmul.mubr.bf16.gmra.mrb[0].mxu0 %v3204
  %v5181 = vpop.f32.mrb[0].mxu0
  %v5182 = vadd.f32 %v798, %v5181
  %v5183 = vpop.f32.mrb[0].mxu0
  %v5184 = vpop.f32.mrb[0].mxu0
  %v5185 = vadd.f32 %v798, %v5184
  %v5186 = vpop.f32.mrb[0].mxu0
  %5187 = vmatprep.mubr.bf16.mxu0 0
  %5188 = vmatmul.mubr.bf16.gmra.mrb[0].mxu0 %v3207
  %v5189 = vpop.f32.mrb[0].mxu0
  %v5190 = vadd.f32 %v798, %v5189
  %v5191 = vpop.f32.mrb[0].mxu0
  %v5192 = vpop.f32.mrb[0].mxu0
  %v5193 = vadd.f32 %v798, %v5192
  %v5194 = vpop.f32.mrb[0].mxu0
  %5195 = vmatprep.mubr.bf16.mxu0 0
  %5196 = vmatmul.mubr.bf16.gmra.mrb[0].mxu0 %v3210
  %v5197 = vpop.f32.mrb[0].mxu0
  %v5198 = vadd.f32 %v798, %v5197
  %v5199 = vpop.f32.mrb[0].mxu0
  %v5200 = vpop.f32.mrb[0].mxu0
  %v5201 = vadd.f32 %v798, %v5200
  %v5202 = vpop.f32.mrb[0].mxu0
  %5203 = vmatprep.mubr.bf16.mxu0 0
  %5204 = vmatmul.mubr.bf16.gmra.mrb[0].mxu0 %v3213
  %v5205 = vpop.f32.mrb[0].mxu0
  %v5206 = vadd.f32 %v798, %v5205
  %v5207 = vpop.f32.mrb[0].mxu0
  %v5208 = vpop.f32.mrb[0].mxu0
  %v5209 = vadd.f32 %v798, %v5208
  %v5210 = vpop.f32.mrb[0].mxu0
  %5211 = vmatprep.mubr.bf16.mxu0 0
  %5212 = vmatmul.mubr.bf16.gmra.mrb[0].mxu0 %v3216
  %v5213 = vpop.f32.mrb[0].mxu0
  %v5214 = vadd.f32 %v798, %v5213
  %v5215 = vpop.f32.mrb[0].mxu0
  %v5216 = vpop.f32.mrb[0].mxu0
  %v5217 = vadd.f32 %v798, %v5216
  %v5218 = vpop.f32.mrb[0].mxu0
  %5219 = vmatprep.mubr.bf16.mxu0 0
  %5220 = vmatmul.mubr.bf16.gmra.mrb[0].mxu0 %v3219
  %v5221 = vpop.f32.mrb[0].mxu0
  %v5222 = vadd.f32 %v798, %v5221
  %v5223 = vpop.f32.mrb[0].mxu0
  %v5224 = vpop.f32.mrb[0].mxu0
  %v5225 = vadd.f32 %v798, %v5224
  %v5226 = vpop.f32.mrb[0].mxu0
  %5227 = vmatprep.mubr.bf16.mxu0 0
  %5228 = vmatmul.mubr.bf16.gmra.mrb[0].mxu0 %v3222
  %v5229 = vpop.f32.mrb[0].mxu0
  %v5230 = vadd.f32 %v798, %v5229
  %v5231 = vpop.f32.mrb[0].mxu0
  %v5232 = vpop.f32.mrb[0].mxu0
  %v5233 = vadd.f32 %v798, %v5232
  %v5234 = vpop.f32.mrb[0].mxu0
  %5235 = vmatprep.mubr.bf16.mxu0 0
  %5236 = vmatmul.mubr.bf16.gmra.mrb[0].mxu0 %v3225
  %v5237 = vpop.f32.mrb[0].mxu0
  %v5238 = vadd.f32 %v798, %v5237
  %v5239 = vpop.f32.mrb[0].mxu0
  %v5240 = vpop.f32.mrb[0].mxu0
  %v5241 = vadd.f32 %v798, %v5240
  %v5242 = vpop.f32.mrb[0].mxu0
  %5243 = vmatprep.mubr.bf16.mxu0 0
  %5244 = vmatmul.mubr.bf16.gmra.mrb[0].mxu0 %v3228
  %v5245 = vpop.f32.mrb[0].mxu0
  %v5246 = vadd.f32 %v798, %v5245
  %v5247 = vpop.f32.mrb[0].mxu0
  %v5248 = vpop.f32.mrb[0].mxu0
  %v5249 = vadd.f32 %v798, %v5248
  %v5250 = vpop.f32.mrb[0].mxu0
  %5251 = vmatprep.mubr.bf16.mxu0 0
  %5252 = vmatmul.mubr.bf16.gmra.mrb[0].mxu0 %v3231
  %v5253 = vpop.f32.mrb[0].mxu0
  %v5254 = vadd.f32 %v798, %v5253
  %v5255 = vpop.f32.mrb[0].mxu0
  %v5256 = vpop.f32.mrb[0].mxu0
  %v5257 = vadd.f32 %v798, %v5256
  %v5258 = vpop.f32.mrb[0].mxu0
  %5259 = vmatprep.mubr.bf16.mxu0 0
  %5260 = vmatmul.mubr.bf16.gmra.mrb[0].mxu0 %v3234
  %v5261 = vpop.f32.mrb[0].mxu0
  %v5262 = vadd.f32 %v798, %v5261
  %v5263 = vpop.f32.mrb[0].mxu0
  %v5264 = vpop.f32.mrb[0].mxu0
  %v5265 = vadd.f32 %v798, %v5264
  %v5266 = vpop.f32.mrb[0].mxu0
  %5267 = vmatprep.mubr.bf16.mxu0 0
  %5268 = vmatmul.mubr.bf16.gmra.mrb[0].mxu0 %v3237
  %v5269 = vpop.f32.mrb[0].mxu0
  %v5270 = vadd.f32 %v798, %v5269
  %v5271 = vpop.f32.mrb[0].mxu0
  %v5272 = vpop.f32.mrb[0].mxu0
  %v5273 = vadd.f32 %v798, %v5272
  %v5274 = vpop.f32.mrb[0].mxu0
  %5275 = vmatprep.mubr.bf16.mxu0 0
  %5276 = vmatmul.mubr.bf16.gmra.mrb[0].mxu0 %v3240
  %v5277 = vpop.f32.mrb[0].mxu0
  %v5278 = vadd.f32 %v798, %v5277
  %v5279 = vpop.f32.mrb[0].mxu0
  %v5280 = vpop.f32.mrb[0].mxu0
  %v5281 = vadd.f32 %v798, %v5280
  %v5282 = vpop.f32.mrb[0].mxu0
  %5283 = vmatprep.mubr.bf16.mxu0 0
  %5284 = vmatmul.mubr.bf16.gmra.mrb[0].mxu0 %v3243
  %v5285 = vpop.f32.mrb[0].mxu0
  %v5286 = vadd.f32 %v798, %v5285
  %v5287 = vpop.f32.mrb[0].mxu0
  %v5288 = vpop.f32.mrb[0].mxu0
  %v5289 = vadd.f32 %v798, %v5288
  %v5290 = vpop.f32.mrb[0].mxu0
  %5291 = vmatprep.mubr.bf16.mxu0 0
  %5292 = vmatmul.mubr.bf16.gmra.mrb[0].mxu0 %v3246
  %v5293 = vpop.f32.mrb[0].mxu0
  %v5294 = vadd.f32 %v798, %v5293
  %v5295 = vpop.f32.mrb[0].mxu0
  %v5296 = vpop.f32.mrb[0].mxu0
  %v5297 = vadd.f32 %v798, %v5296
  %v5298 = vpop.f32.mrb[0].mxu0
  %5299 = vmatprep.mubr.bf16.mxu0 0
  %5300 = vmatmul.mubr.bf16.gmra.mrb[0].mxu0 %v3249
  %v5301 = vpop.f32.mrb[0].mxu0
  %v5302 = vadd.f32 %v798, %v5301
  %v5303 = vpop.f32.mrb[0].mxu0
  %v5304 = vpop.f32.mrb[0].mxu0
  %v5305 = vadd.f32 %v798, %v5304
  %v5306 = vpop.f32.mrb[0].mxu0
  %5307 = vmatprep.mubr.bf16.mxu0 0
  %5308 = vmatmul.mubr.bf16.gmra.mrb[0].mxu0 %v3252
  %v5309 = vpop.f32.mrb[0].mxu0
  %v5310 = vadd.f32 %v798, %v5309
  %v5311 = vpop.f32.mrb[0].mxu0
  %v5312 = vpop.f32.mrb[0].mxu0
  %v5313 = vadd.f32 %v798, %v5312
  %v5314 = vpop.f32.mrb[0].mxu0
  %5315 = vmatprep.mubr.bf16.mxu0 0
  %5316 = vmatmul.mubr.bf16.gmra.mrb[0].mxu0 %v3255
  %v5317 = vpop.f32.mrb[0].mxu0
  %v5318 = vadd.f32 %v798, %v5317
  %v5319 = vpop.f32.mrb[0].mxu0
  %v5320 = vpop.f32.mrb[0].mxu0
  %v5321 = vadd.f32 %v798, %v5320
  %v5322 = vpop.f32.mrb[0].mxu0
  %5323 = vmatprep.mubr.bf16.mxu0 0
  %5324 = vmatmul.mubr.bf16.gmra.mrb[0].mxu0 %v3258
  %v5325 = vpop.f32.mrb[0].mxu0
  %v5326 = vadd.f32 %v798, %v5325
  %v5327 = vpop.f32.mrb[0].mxu0
  %v5328 = vpop.f32.mrb[0].mxu0
  %v5329 = vadd.f32 %v798, %v5328
  %v5330 = vpop.f32.mrb[0].mxu0
  %5331 = vmatprep.mubr.bf16.mxu0 0
  %5332 = vmatmul.mubr.bf16.gmra.mrb[0].mxu0 %v3261
  %v5333 = vpop.f32.mrb[0].mxu0
  %v5334 = vadd.f32 %v798, %v5333
  %v5335 = vpop.f32.mrb[0].mxu0
  %v5336 = vpop.f32.mrb[0].mxu0
  %v5337 = vadd.f32 %v798, %v5336
  %v5338 = vpop.f32.mrb[0].mxu0
  %5339 = vmatprep.mubr.bf16.mxu0 0
  %5340 = vmatmul.mubr.bf16.gmra.mrb[0].mxu0 %v3264
  %v5341 = vpop.f32.mrb[0].mxu0
  %v5342 = vadd.f32 %v798, %v5341
  %v5343 = vpop.f32.mrb[0].mxu0
  %v5344 = vpop.f32.mrb[0].mxu0
  %v5345 = vadd.f32 %v798, %v5344
  %v5346 = vpop.f32.mrb[0].mxu0
  %5347 = vmatprep.mubr.bf16.mxu0 0
  %5348 = vmatmul.mubr.bf16.gmra.mrb[0].mxu0 %v3267
  %v5349 = vpop.f32.mrb[0].mxu0
  %v5350 = vadd.f32 %v798, %v5349
  %v5351 = vpop.f32.mrb[0].mxu0
  %v5352 = vpop.f32.mrb[0].mxu0
  %v5353 = vadd.f32 %v798, %v5352
  %v5354 = vpop.f32.mrb[0].mxu0
  %5355 = vmatprep.mubr.bf16.mxu0 0
  %5356 = vmatmul.mubr.bf16.gmra.mrb[0].mxu0 %v3270
  %v5357 = vpop.f32.mrb[0].mxu0
  %v5358 = vadd.f32 %v798, %v5357
  %v5359 = vpop.f32.mrb[0].mxu0
  %v5360 = vpop.f32.mrb[0].mxu0
  %v5361 = vadd.f32 %v798, %v5360
  %v5362 = vpop.f32.mrb[0].mxu0
  %5363 = vmatprep.mubr.bf16.mxu0 0
  %5364 = vmatmul.mubr.bf16.gmra.mrb[0].mxu0 %v3273
  %v5365 = vpop.f32.mrb[0].mxu0
  %v5366 = vadd.f32 %v798, %v5365
  %v5367 = vpop.f32.mrb[0].mxu0
  %v5368 = vpop.f32.mrb[0].mxu0
  %v5369 = vadd.f32 %v798, %v5368
  %v5370 = vpop.f32.mrb[0].mxu0
  %5371 = vmatprep.mubr.bf16.mxu0 0
  %5372 = vmatmul.mubr.bf16.gmra.mrb[0].mxu0 %v3276
  %v5373 = vpop.f32.mrb[0].mxu0
  %v5374 = vadd.f32 %v798, %v5373
  %v5375 = vpop.f32.mrb[0].mxu0
  %v5376 = vpop.f32.mrb[0].mxu0
  %v5377 = vadd.f32 %v798, %v5376
  %v5378 = vpop.f32.mrb[0].mxu0
  %5379 = vmatprep.mubr.bf16.mxu0 0
  %5380 = vmatmul.mubr.bf16.gmra.mrb[0].mxu0 %v3279
  %v5381 = vpop.f32.mrb[0].mxu0
  %v5382 = vadd.f32 %v798, %v5381
  %v5383 = vpop.f32.mrb[0].mxu0
  %v5384 = vpop.f32.mrb[0].mxu0
  %v5385 = vadd.f32 %v798, %v5384
  %v5386 = vpop.f32.mrb[0].mxu0
  %5387 = vmatprep.mubr.bf16.mxu0 0
  %5388 = vmatmul.mubr.bf16.gmra.mrb[0].mxu0 %v3282
  %v5389 = vpop.f32.mrb[0].mxu0
  %v5390 = vadd.f32 %v798, %v5389
  %v5391 = vpop.f32.mrb[0].mxu0
  %v5392 = vpop.f32.mrb[0].mxu0
  %v5393 = vadd.f32 %v798, %v5392
  %v5394 = vpop.f32.mrb[0].mxu0
  %5395 = vmatprep.mubr.bf16.mxu0 0
  %5396 = vmatmul.mubr.bf16.gmra.mrb[0].mxu0 %v3285
  %v5397 = vpop.f32.mrb[0].mxu0
  %v5398 = vadd.f32 %v798, %v5397
  %v5399 = vpop.f32.mrb[0].mxu0
  %v5400 = vpop.f32.mrb[0].mxu0
  %v5401 = vadd.f32 %v798, %v5400
  %v5402 = vpop.f32.mrb[0].mxu0
  %5403 = vmatprep.mubr.bf16.mxu0 0
  %5404 = vmatmul.mubr.bf16.gmra.mrb[0].mxu0 %v3288
  %v5405 = vpop.f32.mrb[0].mxu0
  %v5406 = vadd.f32 %v798, %v5405
  %v5407 = vpop.f32.mrb[0].mxu0
  %v5408 = vpop.f32.mrb[0].mxu0
  %v5409 = vadd.f32 %v798, %v5408
  %v5410 = vpop.f32.mrb[0].mxu0
  %5411 = vmatprep.mubr.bf16.mxu0 0
  %5412 = vmatmul.mubr.bf16.gmra.mrb[0].mxu0 %v3291
  %v5413 = vpop.f32.mrb[0].mxu0
  %v5414 = vadd.f32 %v798, %v5413
  %v5415 = vpop.f32.mrb[0].mxu0
  %v5416 = vpop.f32.mrb[0].mxu0
  %v5417 = vadd.f32 %v798, %v5416
  %v5418 = vpop.f32.mrb[0].mxu0
  %5419 = vmatprep.mubr.bf16.mxu0 0
  %5420 = vmatmul.mubr.bf16.gmra.mrb[0].mxu0 %v3294
  %v5421 = vpop.f32.mrb[0].mxu0
  %v5422 = vadd.f32 %v798, %v5421
  %v5423 = vpop.f32.mrb[0].mxu0
  %v5424 = vpop.f32.mrb[0].mxu0
  %v5425 = vadd.f32 %v798, %v5424
  %v5426 = vpop.f32.mrb[0].mxu0
  %5427 = vmatprep.mubr.bf16.mxu0 0
  %5428 = vmatmul.mubr.bf16.gmra.mrb[0].mxu0 %v3297
  %v5429 = vpop.f32.mrb[0].mxu0
  %v5430 = vadd.f32 %v798, %v5429
  %v5431 = vpop.f32.mrb[0].mxu0
  %v5432 = vpop.f32.mrb[0].mxu0
  %v5433 = vadd.f32 %v798, %v5432
  %v5434 = vpop.f32.mrb[0].mxu0
  %5435 = vmatprep.mubr.bf16.mxu0 0
  %5436 = vmatmul.mubr.bf16.gmra.mrb[0].mxu0 %v3300
  %v5437 = vpop.f32.mrb[0].mxu0
  %v5438 = vadd.f32 %v798, %v5437
  %v5439 = vpop.f32.mrb[0].mxu0
  %v5440 = vpop.f32.mrb[0].mxu0
  %v5441 = vadd.f32 %v798, %v5440
  %v5442 = vpop.f32.mrb[0].mxu0
  %5443 = vmatprep.mubr.bf16.mxu0 0
  %5444 = vmatmul.mubr.bf16.gmra.mrb[0].mxu0 %v3303
  %v5445 = vpop.f32.mrb[0].mxu0
  %v5446 = vadd.f32 %v798, %v5445
  %v5447 = vpop.f32.mrb[0].mxu0
  %v5448 = vpop.f32.mrb[0].mxu0
  %v5449 = vadd.f32 %v798, %v5448
  %v5450 = vpop.f32.mrb[0].mxu0
  %5451 = vmatprep.mubr.bf16.mxu0 0
  %5452 = vmatmul.mubr.bf16.gmra.mrb[0].mxu0 %v3306
  %v5453 = vpop.f32.mrb[0].mxu0
  %v5454 = vadd.f32 %v798, %v5453
  %v5455 = vpop.f32.mrb[0].mxu0
  %v5456 = vpop.f32.mrb[0].mxu0
  %v5457 = vadd.f32 %v798, %v5456
  %v5458 = vpop.f32.mrb[0].mxu0
  %5459 = vmatprep.mubr.bf16.mxu0 0
  %5460 = vmatmul.mubr.bf16.gmra.mrb[0].mxu0 %v3309
  %v5461 = vpop.f32.mrb[0].mxu0
  %v5462 = vadd.f32 %v798, %v5461
  %v5463 = vpop.f32.mrb[0].mxu0
  %v5464 = vpop.f32.mrb[0].mxu0
  %v5465 = vadd.f32 %v798, %v5464
  %v5466 = vpop.f32.mrb[0].mxu0
  %5467 = vmatprep.mubr.bf16.mxu0 0
  %5468 = vmatmul.mubr.bf16.gmra.mrb[0].mxu0 %v3312
  %v5469 = vpop.f32.mrb[0].mxu0
  %v5470 = vadd.f32 %v798, %v5469
  %v5471 = vpop.f32.mrb[0].mxu0
  %v5472 = vpop.f32.mrb[0].mxu0
  %v5473 = vadd.f32 %v798, %v5472
  %v5474 = vpop.f32.mrb[0].mxu0
  %5475 = vmatprep.mubr.bf16.mxu0 0
  %5476 = vmatmul.mubr.bf16.gmra.mrb[0].mxu0 %v3315
  %v5477 = vpop.f32.mrb[0].mxu0
  %v5478 = vadd.f32 %v798, %v5477
  %v5479 = vpop.f32.mrb[0].mxu0
  %v5480 = vpop.f32.mrb[0].mxu0
  %v5481 = vadd.f32 %v798, %v5480
  %v5482 = vpop.f32.mrb[0].mxu0
  %5483 = vmatprep.mubr.bf16.mxu0 0
  %5484 = vmatmul.mubr.bf16.gmra.mrb[0].mxu0 %v3318
  %v5485 = vpop.f32.mrb[0].mxu0
  %v5486 = vadd.f32 %v798, %v5485
  %v5487 = vpop.f32.mrb[0].mxu0
  %v5488 = vpop.f32.mrb[0].mxu0
  %v5489 = vadd.f32 %v798, %v5488
  %v5490 = vpop.f32.mrb[0].mxu0
  %5491 = vmatprep.mubr.bf16.mxu0 0
  %5492 = vmatmul.mubr.bf16.gmra.mrb[0].mxu0 %v3321
  %v5493 = vpop.f32.mrb[0].mxu0
  %v5494 = vadd.f32 %v798, %v5493
  %v5495 = vpop.f32.mrb[0].mxu0
  %v5496 = vpop.f32.mrb[0].mxu0
  %v5497 = vadd.f32 %v798, %v5496
  %v5498 = vpop.f32.mrb[0].mxu0
  %5499 = vmatprep.mubr.bf16.mxu0 0
  %5500 = vmatmul.mubr.bf16.gmra.mrb[0].mxu0 %v3324
  %v5501 = vpop.f32.mrb[0].mxu0
  %v5502 = vadd.f32 %v798, %v5501
  %v5503 = vpop.f32.mrb[0].mxu0
  %v5504 = vpop.f32.mrb[0].mxu0
  %v5505 = vadd.f32 %v798, %v5504
  %v5506 = vpop.f32.mrb[0].mxu0
  %5507 = vmatprep.mubr.bf16.mxu0 0
  %5508 = vmatmul.mubr.bf16.gmra.mrb[0].mxu0 %v3327
  %v5509 = vpop.f32.mrb[0].mxu0
  %v5510 = vadd.f32 %v798, %v5509
  %v5511 = vpop.f32.mrb[0].mxu0
  %v5512 = vpop.f32.mrb[0].mxu0
  %v5513 = vadd.f32 %v798, %v5512
  %v5514 = vpop.f32.mrb[0].mxu0
  %5515 = vmatprep.mubr.bf16.mxu0 0
  %5516 = vmatmul.mubr.bf16.gmra.mrb[0].mxu0 %v3330
  %v5517 = vpop.f32.mrb[0].mxu0
  %v5518 = vadd.f32 %v798, %v5517
  %v5519 = vpop.f32.mrb[0].mxu0
  %v5520 = vpop.f32.mrb[0].mxu0
  %v5521 = vadd.f32 %v798, %v5520
  %v5522 = vpop.f32.mrb[0].mxu0
  %5523 = vmatprep.mubr.bf16.mxu0 0
  %5524 = vmatmul.mubr.bf16.gmra.mrb[0].mxu0 %v3333
  %v5525 = vpop.f32.mrb[0].mxu0
  %v5526 = vadd.f32 %v798, %v5525
  %v5527 = vpop.f32.mrb[0].mxu0
  %v5528 = vpop.f32.mrb[0].mxu0
  %v5529 = vadd.f32 %v798, %v5528
  %v5530 = vpop.f32.mrb[0].mxu0
  %5531 = vmatprep.mubr.bf16.mxu0 0
  %5532 = vmatmul.mubr.bf16.gmra.mrb[0].mxu0 %v3336
  %v5533 = vpop.f32.mrb[0].mxu0
  %v5534 = vadd.f32 %v798, %v5533
  %v5535 = vpop.f32.mrb[0].mxu0
  %v5536 = vpop.f32.mrb[0].mxu0
  %v5537 = vadd.f32 %v798, %v5536
  %v5538 = vpop.f32.mrb[0].mxu0
  %5539 = vmatprep.mubr.bf16.mxu0 0
  %5540 = vmatmul.mubr.bf16.gmra.mrb[0].mxu0 %v3339
  %v5541 = vpop.f32.mrb[0].mxu0
  %v5542 = vadd.f32 %v798, %v5541
  %v5543 = vpop.f32.mrb[0].mxu0
  %v5544 = vpop.f32.mrb[0].mxu0
  %v5545 = vadd.f32 %v798, %v5544
  %v5546 = vpop.f32.mrb[0].mxu0
  %5547 = vmatprep.mubr.bf16.mxu0 0
  %5548 = vmatmul.mubr.bf16.gmra.mrb[0].mxu0 %v3342
  %v5549 = vpop.f32.mrb[0].mxu0
  %v5550 = vadd.f32 %v798, %v5549
  %v5551 = vpop.f32.mrb[0].mxu0
  %v5552 = vpop.f32.mrb[0].mxu0
  %v5553 = vadd.f32 %v798, %v5552
  %v5554 = vpop.f32.mrb[0].mxu0
  %5555 = vmatprep.mubr.bf16.mxu0 0
  %5556 = vmatmul.mubr.bf16.gmra.mrb[0].mxu0 %v3345
  %v5557 = vpop.f32.mrb[0].mxu0
  %v5558 = vadd.f32 %v798, %v5557
  %v5559 = vpop.f32.mrb[0].mxu0
  %v5560 = vpop.f32.mrb[0].mxu0
  %v5561 = vadd.f32 %v798, %v5560
  %v5562 = vpop.f32.mrb[0].mxu0
  %5563 = vmatprep.mubr.bf16.mxu0 0
  %5564 = vmatmul.mubr.bf16.gmra.mrb[0].mxu0 %v3348
  %v5565 = vpop.f32.mrb[0].mxu0
  %v5566 = vadd.f32 %v798, %v5565
  %v5567 = vpop.f32.mrb[0].mxu0
  %v5568 = vpop.f32.mrb[0].mxu0
  %v5569 = vadd.f32 %v798, %v5568
  %v5570 = vpop.f32.mrb[0].mxu0
  %5571 = vmatprep.mubr.bf16.mxu0 0
  %5572 = vmatmul.mubr.bf16.gmra.mrb[0].mxu0 %v3351
  %v5573 = vpop.f32.mrb[0].mxu0
  %v5574 = vadd.f32 %v798, %v5573
  %v5575 = vpop.f32.mrb[0].mxu0
  %v5576 = vpop.f32.mrb[0].mxu0
  %v5577 = vadd.f32 %v798, %v5576
  %v5578 = vpop.f32.mrb[0].mxu0
  %5579 = vmatprep.mubr.bf16.mxu0 0
  %5580 = vmatmul.mubr.bf16.gmra.mrb[0].mxu0 %v3354
  %v5581 = vpop.f32.mrb[0].mxu0
  %v5582 = vadd.f32 %v798, %v5581
  %v5583 = vpop.f32.mrb[0].mxu0
  %v5584 = vpop.f32.mrb[0].mxu0
  %v5585 = vadd.f32 %v798, %v5584
  %v5586 = vpop.f32.mrb[0].mxu0
  %5587 = vmatprep.mubr.bf16.mxu0 0
  %5588 = vmatmul.mubr.bf16.gmra.mrb[0].mxu0 %v3357
  %v5589 = vpop.f32.mrb[0].mxu0
  %v5590 = vadd.f32 %v798, %v5589
  %v5591 = vpop.f32.mrb[0].mxu0
  %v5592 = vpop.f32.mrb[0].mxu0
  %v5593 = vadd.f32 %v798, %v5592
  %v5594 = vpop.f32.mrb[0].mxu0
  %5595 = vmatprep.mubr.bf16.mxu0 0
  %5596 = vmatmul.mubr.bf16.gmra.mrb[0].mxu0 %v3360
  %v5597 = vpop.f32.mrb[0].mxu0
  %v5598 = vadd.f32 %v798, %v5597
  %v5599 = vpop.f32.mrb[0].mxu0
  %v5600 = vpop.f32.mrb[0].mxu0
  %v5601 = vadd.f32 %v798, %v5600
  %v5602 = vpop.f32.mrb[0].mxu0
  %5603 = vmatprep.mubr.bf16.mxu0 0
  %5604 = vmatmul.mubr.bf16.gmra.mrb[0].mxu0 %v3363
  %v5605 = vpop.f32.mrb[0].mxu0
  %v5606 = vadd.f32 %v798, %v5605
  %v5607 = vpop.f32.mrb[0].mxu0
  %v5608 = vpop.f32.mrb[0].mxu0
  %v5609 = vadd.f32 %v798, %v5608
  %v5610 = vpop.f32.mrb[0].mxu0
  %5611 = vmatprep.mubr.bf16.mxu0 0
  %5612 = vmatmul.mubr.bf16.gmra.mrb[0].mxu0 %v3366
  %v5613 = vpop.f32.mrb[0].mxu0
  %v5614 = vadd.f32 %v798, %v5613
  %v5615 = vpop.f32.mrb[0].mxu0
  %v5616 = vpop.f32.mrb[0].mxu0
  %v5617 = vadd.f32 %v798, %v5616
  %v5618 = vpop.f32.mrb[0].mxu0
  %5619 = vmatprep.mubr.bf16.mxu0 0
  %5620 = vmatmul.mubr.bf16.gmra.mrb[0].mxu0 %v3369
  %v5621 = vpop.f32.mrb[0].mxu0
  %v5622 = vadd.f32 %v798, %v5621
  %v5623 = vpop.f32.mrb[0].mxu0
  %v5624 = vpop.f32.mrb[0].mxu0
  %v5625 = vadd.f32 %v798, %v5624
  %v5626 = vpop.f32.mrb[0].mxu0
  %5627 = vmatprep.mubr.bf16.mxu0 0
  %5628 = vmatmul.mubr.bf16.gmra.mrb[0].mxu0 %v3372
  %v5629 = vpop.f32.mrb[0].mxu0
  %v5630 = vadd.f32 %v798, %v5629
  %v5631 = vpop.f32.mrb[0].mxu0
  %v5632 = vpop.f32.mrb[0].mxu0
  %v5633 = vadd.f32 %v798, %v5632
  %v5634 = vpop.f32.mrb[0].mxu0
  %5635 = vmatprep.mubr.bf16.mxu0 0
  %5636 = vmatmul.mubr.bf16.gmra.mrb[0].mxu0 %v3375
  %v5637 = vpop.f32.mrb[0].mxu0
  %v5638 = vadd.f32 %v798, %v5637
  %v5639 = vpop.f32.mrb[0].mxu0
  %v5640 = vpop.f32.mrb[0].mxu0
  %v5641 = vadd.f32 %v798, %v5640
  %v5642 = vpop.f32.mrb[0].mxu0
  %5643 = vmatprep.mubr.bf16.mxu0 0
  %5644 = vmatmul.mubr.bf16.gmra.mrb[0].mxu0 %v3378
  %v5645 = vpop.f32.mrb[0].mxu0
  %v5646 = vadd.f32 %v798, %v5645
  %v5647 = vpop.f32.mrb[0].mxu0
  %v5648 = vpop.f32.mrb[0].mxu0
  %v5649 = vadd.f32 %v798, %v5648
  %v5650 = vpop.f32.mrb[0].mxu0
  %5651 = vmatprep.mubr.bf16.mxu0 0
  %5652 = vmatmul.mubr.bf16.gmra.mrb[0].mxu0 %v3381
  %v5653 = vpop.f32.mrb[0].mxu0
  %v5654 = vadd.f32 %v798, %v5653
  %v5655 = vpop.f32.mrb[0].mxu0
  %v5656 = vpop.f32.mrb[0].mxu0
  %v5657 = vadd.f32 %v798, %v5656
  %v5658 = vpop.f32.mrb[0].mxu0
  %5659 = vmatprep.mubr.bf16.mxu0 0
  %5660 = vmatmul.mubr.bf16.gmra.mrb[0].mxu0 %v3384
  %v5661 = vpop.f32.mrb[0].mxu0
  %v5662 = vadd.f32 %v798, %v5661
  %v5663 = vpop.f32.mrb[0].mxu0
  %v5664 = vpop.f32.mrb[0].mxu0
  %v5665 = vadd.f32 %v798, %v5664
  %v5666 = vpop.f32.mrb[0].mxu0
  %5667 = vmatprep.mubr.bf16.mxu0 0
  %5668 = vmatmul.mubr.bf16.gmra.mrb[0].mxu0 %v3387
  %v5669 = vpop.f32.mrb[0].mxu0
  %v5670 = vadd.f32 %v798, %v5669
  %v5671 = vpop.f32.mrb[0].mxu0
  %v5672 = vpop.f32.mrb[0].mxu0
  %v5673 = vadd.f32 %v798, %v5672
  %v5674 = vpop.f32.mrb[0].mxu0
  %5675 = vmatprep.mubr.bf16.mxu0 0
  %5676 = vmatmul.mubr.bf16.gmra.mrb[0].mxu0 %v3390
  %v5677 = vpop.f32.mrb[0].mxu0
  %v5678 = vadd.f32 %v798, %v5677
  %v5679 = vpop.f32.mrb[0].mxu0
  %v5680 = vpop.f32.mrb[0].mxu0
  %v5681 = vadd.f32 %v798, %v5680
  %v5682 = vpop.f32.mrb[0].mxu0
  %5683 = vmatprep.mubr.bf16.mxu0 0
  %5684 = vmatmul.mubr.bf16.gmra.mrb[0].mxu0 %v3393
  %v5685 = vpop.f32.mrb[0].mxu0
  %v5686 = vadd.f32 %v798, %v5685
  %v5687 = vpop.f32.mrb[0].mxu0
  %v5688 = vpop.f32.mrb[0].mxu0
  %v5689 = vadd.f32 %v798, %v5688
  %v5690 = vpop.f32.mrb[0].mxu0
  %5691 = vmatprep.mubr.bf16.mxu0 0
  %5692 = vmatmul.mubr.bf16.gmra.mrb[0].mxu0 %v3396
  %v5693 = vpop.f32.mrb[0].mxu0
  %v5694 = vadd.f32 %v798, %v5693
  %v5695 = vpop.f32.mrb[0].mxu0
  %v5696 = vpop.f32.mrb[0].mxu0
  %v5697 = vadd.f32 %v798, %v5696
  %v5698 = vpop.f32.mrb[0].mxu0
  %5699 = vmatprep.mubr.bf16.mxu0 0
  %5700 = vmatmul.mubr.bf16.gmra.mrb[0].mxu0 %v3399
  %v5701 = vpop.f32.mrb[0].mxu0
  %v5702 = vadd.f32 %v798, %v5701
  %v5703 = vpop.f32.mrb[0].mxu0
  %v5704 = vpop.f32.mrb[0].mxu0
  %v5705 = vadd.f32 %v798, %v5704
  %v5706 = vpop.f32.mrb[0].mxu0
  %5707 = vmatprep.mubr.bf16.mxu0 0
  %5708 = vmatmul.mubr.bf16.gmra.mrb[0].mxu0 %v3402
  %v5709 = vpop.f32.mrb[0].mxu0
  %v5710 = vadd.f32 %v798, %v5709
  %v5711 = vpop.f32.mrb[0].mxu0
  %v5712 = vpop.f32.mrb[0].mxu0
  %v5713 = vadd.f32 %v798, %v5712
  %v5714 = vpop.f32.mrb[0].mxu0
  %5715 = vmatprep.mubr.bf16.mxu0 0
  %5716 = vmatmul.mubr.bf16.gmra.mrb[0].mxu0 %v3405
  %v5717 = vpop.f32.mrb[0].mxu0
  %v5718 = vadd.f32 %v798, %v5717
  %v5719 = vpop.f32.mrb[0].mxu0
  %v5720 = vpop.f32.mrb[0].mxu0
  %v5721 = vadd.f32 %v798, %v5720
  %v5722 = vpop.f32.mrb[0].mxu0
  %5723 = vmatprep.mubr.bf16.mxu0 0
  %5724 = vmatmul.mubr.bf16.gmra.mrb[0].mxu0 %v3408
  %v5725 = vpop.f32.mrb[0].mxu0
  %v5726 = vadd.f32 %v798, %v5725
  %v5727 = vpop.f32.mrb[0].mxu0
  %v5728 = vpop.f32.mrb[0].mxu0
  %v5729 = vadd.f32 %v798, %v5728
  %v5730 = vpop.f32.mrb[0].mxu0
  %5731 = vmatprep.mubr.bf16.mxu0 0
  %5732 = vmatmul.mubr.bf16.gmra.mrb[0].mxu0 %v3411
  %v5733 = vpop.f32.mrb[0].mxu0
  %v5734 = vadd.f32 %v798, %v5733
  %v5735 = vpop.f32.mrb[0].mxu0
  %v5736 = vpop.f32.mrb[0].mxu0
  %v5737 = vadd.f32 %v798, %v5736
  %v5738 = vpop.f32.mrb[0].mxu0
  %5739 = vmatprep.mubr.bf16.mxu0 0
  %5740 = vmatmul.mubr.bf16.gmra.mrb[0].mxu0 %v3414
  %v5741 = vpop.f32.mrb[0].mxu0
  %v5742 = vadd.f32 %v798, %v5741
  %v5743 = vpop.f32.mrb[0].mxu0
  %v5744 = vpop.f32.mrb[0].mxu0
  %v5745 = vadd.f32 %v798, %v5744
  %v5746 = vpop.f32.mrb[0].mxu0
  %5747 = vmatprep.mubr.bf16.mxu0 0
  %5748 = vmatmul.mubr.bf16.gmra.mrb[0].mxu0 %v3417
  %v5749 = vpop.f32.mrb[0].mxu0
  %v5750 = vadd.f32 %v798, %v5749
  %v5751 = vpop.f32.mrb[0].mxu0
  %v5752 = vpop.f32.mrb[0].mxu0
  %v5753 = vadd.f32 %v798, %v5752
  %v5754 = vpop.f32.mrb[0].mxu0
  %5755 = vmatprep.mubr.bf16.mxu0 0
  %5756 = vmatmul.mubr.bf16.gmra.mrb[0].mxu0 %v3420
  %v5757 = vpop.f32.mrb[0].mxu0
  %v5758 = vadd.f32 %v798, %v5757
  %v5759 = vpop.f32.mrb[0].mxu0
  %v5760 = vpop.f32.mrb[0].mxu0
  %v5761 = vadd.f32 %v798, %v5760
  %v5762 = vpop.f32.mrb[0].mxu0
  %5763 = vmatprep.mubr.bf16.mxu0 0
  %5764 = vmatmul.mubr.bf16.gmra.mrb[0].mxu0 %v3423
  %v5765 = vpop.f32.mrb[0].mxu0
  %v5766 = vadd.f32 %v798, %v5765
  %v5767 = vpop.f32.mrb[0].mxu0
  %v5768 = vpop.f32.mrb[0].mxu0
  %v5769 = vadd.f32 %v798, %v5768
  %v5770 = vpop.f32.mrb[0].mxu0
  %5771 = vmatprep.mubr.bf16.mxu0 0
  %5772 = vmatmul.mubr.bf16.gmra.mrb[0].mxu0 %v3426
  %v5773 = vpop.f32.mrb[0].mxu0
  %v5774 = vadd.f32 %v798, %v5773
  %v5775 = vpop.f32.mrb[0].mxu0
  %v5776 = vpop.f32.mrb[0].mxu0
  %v5777 = vadd.f32 %v798, %v5776
  %v5778 = vpop.f32.mrb[0].mxu0
  %5779 = vmatprep.mubr.bf16.mxu0 0
  %5780 = vmatmul.mubr.bf16.gmra.mrb[0].mxu0 %v3429
  %v5781 = vpop.f32.mrb[0].mxu0
  %v5782 = vadd.f32 %v798, %v5781
  %v5783 = vpop.f32.mrb[0].mxu0
  %v5784 = vpop.f32.mrb[0].mxu0
  %v5785 = vadd.f32 %v798, %v5784
  %v5786 = vpop.f32.mrb[0].mxu0
  %5787 = vmatprep.mubr.bf16.mxu0 0
  %5788 = vmatmul.mubr.bf16.gmra.mrb[0].mxu0 %v3432
  %v5789 = vpop.f32.mrb[0].mxu0
  %v5790 = vadd.f32 %v798, %v5789
  %v5791 = vpop.f32.mrb[0].mxu0
  %v5792 = vpop.f32.mrb[0].mxu0
  %v5793 = vadd.f32 %v798, %v5792
  %v5794 = vpop.f32.mrb[0].mxu0
  %5795 = vmatprep.mubr.bf16.mxu0 0
  %5796 = vmatmul.mubr.bf16.gmra.mrb[0].mxu0 %v3435
  %v5797 = vpop.f32.mrb[0].mxu0
  %v5798 = vadd.f32 %v798, %v5797
  %v5799 = vpop.f32.mrb[0].mxu0
  %v5800 = vpop.f32.mrb[0].mxu0
  %v5801 = vadd.f32 %v798, %v5800
  %v5802 = vpop.f32.mrb[0].mxu0
  %5803 = vmatprep.mubr.bf16.mxu0 0
  %5804 = vmatmul.mubr.bf16.gmra.mrb[0].mxu0 %v3438
  %v5805 = vpop.f32.mrb[0].mxu0
  %v5806 = vadd.f32 %v798, %v5805
  %v5807 = vpop.f32.mrb[0].mxu0
  %v5808 = vpop.f32.mrb[0].mxu0
  %v5809 = vadd.f32 %v798, %v5808
  %v5810 = vpop.f32.mrb[0].mxu0
  %5811 = vmatprep.mubr.bf16.mxu0 0
  %5812 = vmatmul.mubr.bf16.gmra.mrb[0].mxu0 %v3441
  %v5813 = vpop.f32.mrb[0].mxu0
  %v5814 = vadd.f32 %v798, %v5813
  %v5815 = vpop.f32.mrb[0].mxu0
  %v5816 = vpop.f32.mrb[0].mxu0
  %v5817 = vadd.f32 %v798, %v5816
  %v5818 = vpop.f32.mrb[0].mxu0
  %5819 = vmatprep.mubr.bf16.mxu0 0
  %5820 = vmatmul.mubr.bf16.gmra.mrb[0].mxu0 %v3444
  %v5821 = vpop.f32.mrb[0].mxu0
  %v5822 = vadd.f32 %v798, %v5821
  %v5823 = vpop.f32.mrb[0].mxu0
  %v5824 = vpop.f32.mrb[0].mxu0
  %v5825 = vadd.f32 %v798, %v5824
  %v5826 = vpop.f32.mrb[0].mxu0
  %5827 = vmatprep.mubr.bf16.mxu0 0
  %5828 = vmatmul.mubr.bf16.gmra.mrb[0].mxu0 %v3447
  %v5829 = vpop.f32.mrb[0].mxu0
  %v5830 = vadd.f32 %v798, %v5829
  %v5831 = vpop.f32.mrb[0].mxu0
  %v5832 = vpop.f32.mrb[0].mxu0
  %v5833 = vadd.f32 %v798, %v5832
  %v5834 = vpop.f32.mrb[0].mxu0
  %5835 = vmatprep.mubr.bf16.mxu0 0
  %5836 = vmatmul.mubr.bf16.gmra.mrb[0].mxu0 %v3450
  %v5837 = vpop.f32.mrb[0].mxu0
  %v5838 = vadd.f32 %v798, %v5837
  %v5839 = vpop.f32.mrb[0].mxu0
  %v5840 = vpop.f32.mrb[0].mxu0
  %v5841 = vadd.f32 %v798, %v5840
  %v5842 = vpop.f32.mrb[0].mxu0
  %5843 = vmatprep.mubr.bf16.mxu0 0
  %5844 = vmatmul.mubr.bf16.gmra.mrb[0].mxu0 %v3453
  %v5845 = vpop.f32.mrb[0].mxu0
  %v5846 = vadd.f32 %v798, %v5845
  %v5847 = vpop.f32.mrb[0].mxu0
  %v5848 = vpop.f32.mrb[0].mxu0
  %v5849 = vadd.f32 %v798, %v5848
  %v5850 = vpop.f32.mrb[0].mxu0
  %5851 = vmatprep.mubr.bf16.mxu0 0
  %5852 = vmatmul.mubr.bf16.gmra.mrb[0].mxu0 %v3456
  %v5853 = vpop.f32.mrb[0].mxu0
  %v5854 = vadd.f32 %v798, %v5853
  %v5855 = vpop.f32.mrb[0].mxu0
  %v5856 = vpop.f32.mrb[0].mxu0
  %v5857 = vadd.f32 %v798, %v5856
  %v5858 = vpop.f32.mrb[0].mxu0
  %5859 = vmatprep.mubr.bf16.mxu0 0
  %5860 = vmatmul.mubr.bf16.gmra.mrb[0].mxu0 %v3459
  %v5861 = vpop.f32.mrb[0].mxu0
  %v5862 = vadd.f32 %v798, %v5861
  %v5863 = vpop.f32.mrb[0].mxu0
  %v5864 = vpop.f32.mrb[0].mxu0
  %v5865 = vadd.f32 %v798, %v5864
  %v5866 = vpop.f32.mrb[0].mxu0
  %5867 = vmatprep.mubr.bf16.mxu0 0
  %5868 = vmatmul.mubr.bf16.gmra.mrb[0].mxu0 %v3462
  %v5869 = vpop.f32.mrb[0].mxu0
  %v5870 = vadd.f32 %v798, %v5869
  %v5871 = vpop.f32.mrb[0].mxu0
  %v5872 = vpop.f32.mrb[0].mxu0
  %v5873 = vadd.f32 %v798, %v5872
  %v5874 = vpop.f32.mrb[0].mxu0
  %5875 = vmatprep.mubr.bf16.mxu0 0
  %5876 = vmatmul.mubr.bf16.gmra.mrb[0].mxu0 %v3465
  %v5877 = vpop.f32.mrb[0].mxu0
  %v5878 = vadd.f32 %v798, %v5877
  %v5879 = vpop.f32.mrb[0].mxu0
  %v5880 = vpop.f32.mrb[0].mxu0
  %v5881 = vadd.f32 %v798, %v5880
  %v5882 = vpop.f32.mrb[0].mxu0
  %5883 = vmatprep.mubr.bf16.mxu0 0
  %5884 = vmatmul.mubr.bf16.gmra.mrb[0].mxu0 %v3468
  %v5885 = vpop.f32.mrb[0].mxu0
  %v5886 = vadd.f32 %v798, %v5885
  %v5887 = vpop.f32.mrb[0].mxu0
  %v5888 = vpop.f32.mrb[0].mxu0
  %v5889 = vadd.f32 %v798, %v5888
  %v5890 = vpop.f32.mrb[0].mxu0
  %5891 = vmatprep.mubr.bf16.mxu0 0
  %5892 = vmatmul.mubr.bf16.gmra.mrb[0].mxu0 %v3471
  %v5893 = vpop.f32.mrb[0].mxu0
  %v5894 = vadd.f32 %v798, %v5893
  %v5895 = vpop.f32.mrb[0].mxu0
  %v5896 = vpop.f32.mrb[0].mxu0
  %v5897 = vadd.f32 %v798, %v5896
  %v5898 = vpop.f32.mrb[0].mxu0
  %5899 = vmatprep.mubr.bf16.mxu0 0
  %5900 = vmatmul.mubr.bf16.gmra.mrb[0].mxu0 %v3474
  %v5901 = vpop.f32.mrb[0].mxu0
  %v5902 = vadd.f32 %v798, %v5901
  %v5903 = vpop.f32.mrb[0].mxu0
  %v5904 = vpop.f32.mrb[0].mxu0
  %v5905 = vadd.f32 %v798, %v5904
  %v5906 = vpop.f32.mrb[0].mxu0
  %5907 = vmatprep.mubr.bf16.mxu0 0
  %5908 = vmatmul.mubr.bf16.gmra.mrb[0].mxu0 %v3477
  %v5909 = vpop.f32.mrb[0].mxu0
  %v5910 = vadd.f32 %v798, %v5909
  %v5911 = vpop.f32.mrb[0].mxu0
  %v5912 = vpop.f32.mrb[0].mxu0
  %v5913 = vadd.f32 %v798, %v5912
  %v5914 = vpop.f32.mrb[0].mxu0
  %5915 = vmatprep.mubr.bf16.mxu0 0
  %5916 = vmatmul.mubr.bf16.gmra.mrb[0].mxu0 %v3480
  %v5917 = vpop.f32.mrb[0].mxu0
  %v5918 = vadd.f32 %v798, %v5917
  %v5919 = vpop.f32.mrb[0].mxu0
  %v5920 = vpop.f32.mrb[0].mxu0
  %v5921 = vadd.f32 %v798, %v5920
  %v5922 = vpop.f32.mrb[0].mxu0
  %5923 = vmatprep.mubr.bf16.mxu0 0
  %5924 = vmatmul.mubr.bf16.gmra.mrb[0].mxu0 %v3483
  %v5925 = vpop.f32.mrb[0].mxu0
  %v5926 = vadd.f32 %v798, %v5925
  %v5927 = vpop.f32.mrb[0].mxu0
  %v5928 = vpop.f32.mrb[0].mxu0
  %v5929 = vadd.f32 %v798, %v5928
  %v5930 = vpop.f32.mrb[0].mxu0
  %5931 = vmatprep.mubr.bf16.mxu0 0
  %5932 = vmatmul.mubr.bf16.gmra.mrb[0].mxu0 %v3486
  %v5933 = vpop.f32.mrb[0].mxu0
  %v5934 = vadd.f32 %v798, %v5933
  %v5935 = vpop.f32.mrb[0].mxu0
  %v5936 = vpop.f32.mrb[0].mxu0
  %v5937 = vadd.f32 %v798, %v5936
  %v5938 = vpop.f32.mrb[0].mxu0
  %5939 = vmatprep.mubr.bf16.mxu0 0
  %5940 = vmatmul.mubr.bf16.gmra.mrb[0].mxu0 %v3489
  %v5941 = vpop.f32.mrb[0].mxu0
  %v5942 = vadd.f32 %v798, %v5941
  %v5943 = vpop.f32.mrb[0].mxu0
  %v5944 = vpop.f32.mrb[0].mxu0
  %v5945 = vadd.f32 %v798, %v5944
  %v5946 = vpop.f32.mrb[0].mxu0
  %5947 = vmatprep.mubr.bf16.mxu0 0
  %5948 = vmatmul.mubr.bf16.gmra.mrb[0].mxu0 %v3492
  %v5949 = vpop.f32.mrb[0].mxu0
  %v5950 = vadd.f32 %v798, %v5949
  %v5951 = vpop.f32.mrb[0].mxu0
  %v5952 = vpop.f32.mrb[0].mxu0
  %v5953 = vadd.f32 %v798, %v5952
  %v5954 = vpop.f32.mrb[0].mxu0
  %5955 = vmatprep.mubr.bf16.mxu0 0
  %5956 = vmatmul.mubr.bf16.gmra.mrb[0].mxu0 %v3495
  %v5957 = vpop.f32.mrb[0].mxu0
  %v5958 = vadd.f32 %v798, %v5957
  %v5959 = vpop.f32.mrb[0].mxu0
  %v5960 = vpop.f32.mrb[0].mxu0
  %v5961 = vadd.f32 %v798, %v5960
  %v5962 = vpop.f32.mrb[0].mxu0
  %5963 = vmatprep.mubr.bf16.mxu0 0
  %5964 = vmatmul.mubr.bf16.gmra.mrb[0].mxu0 %v3498
  %v5965 = vpop.f32.mrb[0].mxu0
  %v5966 = vadd.f32 %v798, %v5965
  %v5967 = vpop.f32.mrb[0].mxu0
  %v5968 = vpop.f32.mrb[0].mxu0
  %v5969 = vadd.f32 %v798, %v5968
  %v5970 = vpop.f32.mrb[0].mxu0
  %5971 = vmatprep.mubr.bf16.mxu0 0
  %5972 = vmatmul.mubr.bf16.gmra.mrb[0].mxu0 %v3501
  %v5973 = vpop.f32.mrb[0].mxu0
  %v5974 = vadd.f32 %v798, %v5973
  %v5975 = vpop.f32.mrb[0].mxu0
  %v5976 = vpop.f32.mrb[0].mxu0
  %v5977 = vadd.f32 %v798, %v5976
  %v5978 = vpop.f32.mrb[0].mxu0
  %5979 = vmatprep.mubr.bf16.mxu0 0
  %5980 = vmatmul.mubr.bf16.gmra.mrb[0].mxu0 %v3504
  %v5981 = vpop.f32.mrb[0].mxu0
  %v5982 = vadd.f32 %v798, %v5981
  %v5983 = vpop.f32.mrb[0].mxu0
  %v5984 = vpop.f32.mrb[0].mxu0
  %v5985 = vadd.f32 %v798, %v5984
  %v5986 = vpop.f32.mrb[0].mxu0
  %5987 = vmatprep.mubr.bf16.mxu0 0
  %5988 = vmatmul.mubr.bf16.gmra.mrb[0].mxu0 %v3507
  %v5989 = vpop.f32.mrb[0].mxu0
  %v5990 = vadd.f32 %v798, %v5989
  %v5991 = vpop.f32.mrb[0].mxu0
  %v5992 = vpop.f32.mrb[0].mxu0
  %v5993 = vadd.f32 %v798, %v5992
  %v5994 = vpop.f32.mrb[0].mxu0
  %5995 = vmatprep.mubr.bf16.mxu0 0
  %5996 = vmatmul.mubr.bf16.gmra.mrb[0].mxu0 %v3510
  %v5997 = vpop.f32.mrb[0].mxu0
  %v5998 = vadd.f32 %v798, %v5997
  %v5999 = vpop.f32.mrb[0].mxu0
  %v6000 = vpop.f32.mrb[0].mxu0
  %v6001 = vadd.f32 %v798, %v6000
  %v6002 = vpop.f32.mrb[0].mxu0
  %6003 = vmatprep.mubr.bf16.mxu0 0
  %6004 = vmatmul.mubr.bf16.gmra.mrb[0].mxu0 %v3513
  %v6005 = vpop.f32.mrb[0].mxu0
  %v6006 = vadd.f32 %v798, %v6005
  %v6007 = vpop.f32.mrb[0].mxu0
  %v6008 = vpop.f32.mrb[0].mxu0
  %v6009 = vadd.f32 %v798, %v6008
  %v6010 = vpop.f32.mrb[0].mxu0
  %6011 = vmatprep.mubr.bf16.mxu0 0
  %6012 = vmatmul.mubr.bf16.gmra.mrb[0].mxu0 %v3516
  %v6013 = vpop.f32.mrb[0].mxu0
  %v6014 = vadd.f32 %v798, %v6013
  %v6015 = vpop.f32.mrb[0].mxu0
  %v6016 = vpop.f32.mrb[0].mxu0
  %v6017 = vadd.f32 %v798, %v6016
  %v6018 = vpop.f32.mrb[0].mxu0
  %6019 = vmatprep.mubr.bf16.mxu0 0
  %6020 = vmatmul.mubr.bf16.gmra.mrb[0].mxu0 %v3519
  %v6021 = vpop.f32.mrb[0].mxu0
  %v6022 = vadd.f32 %v798, %v6021
  %v6023 = vpop.f32.mrb[0].mxu0
  %v6024 = vpop.f32.mrb[0].mxu0
  %v6025 = vadd.f32 %v798, %v6024
  %v6026 = vpop.f32.mrb[0].mxu0
  %6027 = vmatprep.mubr.bf16.mxu0 0
  %6028 = vmatmul.mubr.bf16.gmra.mrb[0].mxu0 %v3522
  %v6029 = vpop.f32.mrb[0].mxu0
  %v6030 = vadd.f32 %v798, %v6029
  %v6031 = vpop.f32.mrb[0].mxu0
  %v6032 = vpop.f32.mrb[0].mxu0
  %v6033 = vadd.f32 %v798, %v6032
  %v6034 = vpop.f32.mrb[0].mxu0
  %6035 = vmatprep.mubr.bf16.mxu0 0
  %6036 = vmatmul.mubr.bf16.gmra.mrb[0].mxu0 %v3525
  %v6037 = vpop.f32.mrb[0].mxu0
  %v6038 = vadd.f32 %v798, %v6037
  %v6039 = vpop.f32.mrb[0].mxu0
  %v6040 = vpop.f32.mrb[0].mxu0
  %v6041 = vadd.f32 %v798, %v6040
  %v6042 = vpop.f32.mrb[0].mxu0
  %6043 = vmatprep.mubr.bf16.mxu0 0
  %6044 = vmatmul.mubr.bf16.gmra.mrb[0].mxu0 %v3528
  %v6045 = vpop.f32.mrb[0].mxu0
  %v6046 = vadd.f32 %v798, %v6045
  %v6047 = vpop.f32.mrb[0].mxu0
  %v6048 = vpop.f32.mrb[0].mxu0
  %v6049 = vadd.f32 %v798, %v6048
  %v6050 = vpop.f32.mrb[0].mxu0
  %6051 = vmatprep.mubr.bf16.mxu0 0
  %6052 = vmatmul.mubr.bf16.gmra.mrb[0].mxu0 %v3531
  %v6053 = vpop.f32.mrb[0].mxu0
  %v6054 = vadd.f32 %v798, %v6053
  %v6055 = vpop.f32.mrb[0].mxu0
  %v6056 = vpop.f32.mrb[0].mxu0
  %v6057 = vadd.f32 %v798, %v6056
  %v6058 = vpop.f32.mrb[0].mxu0
  %6059 = vmatprep.mubr.bf16.mxu0 0
  %6060 = vmatmul.mubr.bf16.gmra.mrb[0].mxu0 %v3534
  %v6061 = vpop.f32.mrb[0].mxu0
  %v6062 = vadd.f32 %v798, %v6061
  %v6063 = vpop.f32.mrb[0].mxu0
  %v6064 = vpop.f32.mrb[0].mxu0
  %v6065 = vadd.f32 %v798, %v6064
  %v6066 = vpop.f32.mrb[0].mxu0
  %6067 = vmatprep.mubr.bf16.mxu0 0
  %6068 = vmatmul.mubr.bf16.gmra.mrb[0].mxu0 %v3537
  %v6069 = vpop.f32.mrb[0].mxu0
  %v6070 = vadd.f32 %v798, %v6069
  %v6071 = vpop.f32.mrb[0].mxu0
  %v6072 = vpop.f32.mrb[0].mxu0
  %v6073 = vadd.f32 %v798, %v6072
  %v6074 = vpop.f32.mrb[0].mxu0
  %6075 = vmatprep.mubr.bf16.mxu0 0
  %6076 = vmatmul.mubr.bf16.gmra.mrb[0].mxu0 %v3540
  %v6077 = vpop.f32.mrb[0].mxu0
  %v6078 = vadd.f32 %v798, %v6077
  %v6079 = vpop.f32.mrb[0].mxu0
  %v6080 = vpop.f32.mrb[0].mxu0
  %v6081 = vadd.f32 %v798, %v6080
  %v6082 = vpop.f32.mrb[0].mxu0
  %6083 = vmatprep.mubr.bf16.mxu0 0
  %6084 = vmatmul.mubr.bf16.gmra.mrb[0].mxu0 %v3543
  %v6085 = vpop.f32.mrb[0].mxu0
  %v6086 = vadd.f32 %v798, %v6085
  %v6087 = vpop.f32.mrb[0].mxu0
  %v6088 = vpop.f32.mrb[0].mxu0
  %v6089 = vadd.f32 %v798, %v6088
  %v6090 = vpop.f32.mrb[0].mxu0
  %6091 = vmatprep.mubr.bf16.mxu0 0
  %6092 = vmatmul.mubr.bf16.gmra.mrb[0].mxu0 %v3546
  %v6093 = vpop.f32.mrb[0].mxu0
  %v6094 = vadd.f32 %v798, %v6093
  %v6095 = vpop.f32.mrb[0].mxu0
  %v6096 = vpop.f32.mrb[0].mxu0
  %v6097 = vadd.f32 %v798, %v6096
  %v6098 = vpop.f32.mrb[0].mxu0
  %6099 = vmatprep.mubr.bf16.mxu0 0
  %6100 = vmatmul.mubr.bf16.gmra.mrb[0].mxu0 %v3549
  %v6101 = vpop.f32.mrb[0].mxu0
  %v6102 = vadd.f32 %v798, %v6101
  %v6103 = vpop.f32.mrb[0].mxu0
  %v6104 = vpop.f32.mrb[0].mxu0
  %v6105 = vadd.f32 %v798, %v6104
  %v6106 = vpop.f32.mrb[0].mxu0
  %6107 = vmatprep.mubr.bf16.mxu0 0
  %6108 = vmatmul.mubr.bf16.gmra.mrb[0].mxu0 %v3552
  %v6109 = vpop.f32.mrb[0].mxu0
  %v6110 = vadd.f32 %v798, %v6109
  %v6111 = vpop.f32.mrb[0].mxu0
  %v6112 = vpop.f32.mrb[0].mxu0
  %v6113 = vadd.f32 %v798, %v6112
  %v6114 = vpop.f32.mrb[0].mxu0
  %6115 = vmatprep.mubr.bf16.mxu0 0
  %6116 = vmatmul.mubr.bf16.gmra.mrb[0].mxu0 %v3555
  %v6117 = vpop.f32.mrb[0].mxu0
  %v6118 = vadd.f32 %v798, %v6117
  %v6119 = vpop.f32.mrb[0].mxu0
  %v6120 = vpop.f32.mrb[0].mxu0
  %v6121 = vadd.f32 %v798, %v6120
  %v6122 = vpop.f32.mrb[0].mxu0
  %6123 = vmatprep.mubr.bf16.mxu0 0
  %6124 = vmatmul.mubr.bf16.gmra.mrb[0].mxu0 %v3558
  %v6125 = vpop.f32.mrb[0].mxu0
  %v6126 = vadd.f32 %v798, %v6125
  %v6127 = vpop.f32.mrb[0].mxu0
  %v6128 = vpop.f32.mrb[0].mxu0
  %v6129 = vadd.f32 %v798, %v6128
  %v6130 = vpop.f32.mrb[0].mxu0
  %6131 = vmatprep.mubr.bf16.mxu0 0
  %6132 = vmatmul.mubr.bf16.gmra.mrb[0].mxu0 %v3561
  %v6133 = vpop.f32.mrb[0].mxu0
  %v6134 = vadd.f32 %v798, %v6133
  %v6135 = vpop.f32.mrb[0].mxu0
  %v6136 = vpop.f32.mrb[0].mxu0
  %v6137 = vadd.f32 %v798, %v6136
  %v6138 = vpop.f32.mrb[0].mxu0
  %6139 = vmatprep.mubr.bf16.mxu0 0
  %6140 = vmatmul.mubr.bf16.gmra.mrb[0].mxu0 %v3564
  %v6141 = vpop.f32.mrb[0].mxu0
  %v6142 = vadd.f32 %v798, %v6141
  %v6143 = vpop.f32.mrb[0].mxu0
  %v6144 = vpop.f32.mrb[0].mxu0
  %v6145 = vadd.f32 %v798, %v6144
  %v6146 = vpop.f32.mrb[0].mxu0
  %6147 = vmatprep.mubr.bf16.mxu0 0
  %6148 = vmatmul.mubr.bf16.gmra.mrb[0].mxu0 %v3567
  %v6149 = vpop.f32.mrb[0].mxu0
  %v6150 = vadd.f32 %v798, %v6149
  %v6151 = vpop.f32.mrb[0].mxu0
  %v6152 = vpop.f32.mrb[0].mxu0
  %v6153 = vadd.f32 %v798, %v6152
  %v6154 = vpop.f32.mrb[0].mxu0
  %6155 = vmatprep.mubr.bf16.mxu0 0
  %6156 = vmatmul.mubr.bf16.gmra.mrb[0].mxu0 %v3570
  %v6157 = vpop.f32.mrb[0].mxu0
  %v6158 = vadd.f32 %v798, %v6157
  %v6159 = vpop.f32.mrb[0].mxu0
  %v6160 = vpop.f32.mrb[0].mxu0
  %v6161 = vadd.f32 %v798, %v6160
  %v6162 = vpop.f32.mrb[0].mxu0
  %6163 = vmatprep.mubr.bf16.mxu0 0
  %6164 = vmatmul.mubr.bf16.gmra.mrb[0].mxu0 %v3573
  %v6165 = vpop.f32.mrb[0].mxu0
  %v6166 = vadd.f32 %v798, %v6165
  %v6167 = vpop.f32.mrb[0].mxu0
  %v6168 = vpop.f32.mrb[0].mxu0
  %v6169 = vadd.f32 %v798, %v6168
  %v6170 = vpop.f32.mrb[0].mxu0
  %6171 = vmatprep.mubr.bf16.mxu0 0
  %6172 = vmatmul.mubr.bf16.gmra.mrb[0].mxu0 %v3576
  %v6173 = vpop.f32.mrb[0].mxu0
  %v6174 = vadd.f32 %v798, %v6173
  %v6175 = vpop.f32.mrb[0].mxu0
  %v6176 = vpop.f32.mrb[0].mxu0
  %v6177 = vadd.f32 %v798, %v6176
  %v6178 = vpop.f32.mrb[0].mxu0
  %6179 = vmatprep.mubr.bf16.mxu0 0
  %6180 = vmatmul.mubr.bf16.gmra.mrb[0].mxu0 %v3579
  %v6181 = vpop.f32.mrb[0].mxu0
  %v6182 = vadd.f32 %v798, %v6181
  %v6183 = vpop.f32.mrb[0].mxu0
  %v6184 = vpop.f32.mrb[0].mxu0
  %v6185 = vadd.f32 %v798, %v6184
  %v6186 = vpop.f32.mrb[0].mxu0
  %6187 = vmatprep.mubr.bf16.mxu0 0
  %6188 = vmatmul.mubr.bf16.gmra.mrb[0].mxu0 %v3582
  %v6189 = vpop.f32.mrb[0].mxu0
  %v6190 = vadd.f32 %v798, %v6189
  %v6191 = vpop.f32.mrb[0].mxu0
  %v6192 = vpop.f32.mrb[0].mxu0
  %v6193 = vadd.f32 %v798, %v6192
  %v6194 = vpop.f32.mrb[0].mxu0
  %6195 = vmatprep.mubr.bf16.mxu0 0
  %6196 = vmatmul.mubr.bf16.gmra.mrb[0].mxu0 %v3585
  %v6197 = vpop.f32.mrb[0].mxu0
  %v6198 = vadd.f32 %v798, %v6197
  %v6199 = vpop.f32.mrb[0].mxu0
  %v6200 = vpop.f32.mrb[0].mxu0
  %v6201 = vadd.f32 %v798, %v6200
  %v6202 = vpop.f32.mrb[0].mxu0
  %6203 = vmatprep.mubr.bf16.mxu0 0
  %6204 = vmatmul.mubr.bf16.gmra.mrb[0].mxu0 %v3588
  %v6205 = vpop.f32.mrb[0].mxu0
  %v6206 = vadd.f32 %v798, %v6205
  %v6207 = vpop.f32.mrb[0].mxu0
  %v6208 = vpop.f32.mrb[0].mxu0
  %v6209 = vadd.f32 %v798, %v6208
  %v6210 = vpop.f32.mrb[0].mxu0
  %6211 = vmatprep.mubr.bf16.mxu0 0
  %6212 = vmatmul.mubr.bf16.gmra.mrb[0].mxu0 %v3591
  %v6213 = vpop.f32.mrb[0].mxu0
  %v6214 = vadd.f32 %v798, %v6213
  %v6215 = vpop.f32.mrb[0].mxu0
  %v6216 = vpop.f32.mrb[0].mxu0
  %v6217 = vadd.f32 %v798, %v6216
  %v6218 = vpop.f32.mrb[0].mxu0
  %6219 = vmatprep.mubr.bf16.mxu0 0
  %6220 = vmatmul.mubr.bf16.gmra.mrb[0].mxu0 %v3594
  %v6221 = vpop.f32.mrb[0].mxu0
  %v6222 = vadd.f32 %v798, %v6221
  %v6223 = vpop.f32.mrb[0].mxu0
  %v6224 = vpop.f32.mrb[0].mxu0
  %v6225 = vadd.f32 %v798, %v6224
  %v6226 = vpop.f32.mrb[0].mxu0
  %6227 = vmatprep.mubr.bf16.mxu0 0
  %6228 = vmatmul.mubr.bf16.gmra.mrb[0].mxu0 %v3597
  %v6229 = vpop.f32.mrb[0].mxu0
  %v6230 = vadd.f32 %v798, %v6229
  %v6231 = vpop.f32.mrb[0].mxu0
  %v6232 = vpop.f32.mrb[0].mxu0
  %v6233 = vadd.f32 %v798, %v6232
  %v6234 = vpop.f32.mrb[0].mxu0
  %6235 = vmatprep.mubr.bf16.mxu0 0
  %6236 = vmatmul.mubr.bf16.gmra.mrb[0].mxu0 %v3600
  %v6237 = vpop.f32.mrb[0].mxu0
  %v6238 = vadd.f32 %v798, %v6237
  %v6239 = vpop.f32.mrb[0].mxu0
  %v6240 = vpop.f32.mrb[0].mxu0
  %v6241 = vadd.f32 %v798, %v6240
  %v6242 = vpop.f32.mrb[0].mxu0
  %6243 = vmatprep.mubr.bf16.mxu0 0
  %6244 = vmatmul.mubr.bf16.gmra.mrb[0].mxu0 %v3603
  %v6245 = vpop.f32.mrb[0].mxu0
  %v6246 = vadd.f32 %v798, %v6245
  %v6247 = vpop.f32.mrb[0].mxu0
  %v6248 = vpop.f32.mrb[0].mxu0
  %v6249 = vadd.f32 %v798, %v6248
  %v6250 = vpop.f32.mrb[0].mxu0
  %6251 = vmatprep.mubr.bf16.mxu0 0
  %6252 = vmatmul.mubr.bf16.gmra.mrb[0].mxu0 %v3606
  %v6253 = vpop.f32.mrb[0].mxu0
  %v6254 = vadd.f32 %v798, %v6253
  %v6255 = vpop.f32.mrb[0].mxu0
  %v6256 = vpop.f32.mrb[0].mxu0
  %v6257 = vadd.f32 %v798, %v6256
  %v6258 = vpop.f32.mrb[0].mxu0
  %6259 = vmatprep.mubr.bf16.mxu0 0
  %6260 = vmatmul.mubr.bf16.gmra.mrb[0].mxu0 %v3609
  %v6261 = vpop.f32.mrb[0].mxu0
  %v6262 = vadd.f32 %v798, %v6261
  %v6263 = vpop.f32.mrb[0].mxu0
  %v6264 = vpop.f32.mrb[0].mxu0
  %v6265 = vadd.f32 %v798, %v6264
  %v6266 = vpop.f32.mrb[0].mxu0
  %6267 = vmatprep.mubr.bf16.mxu0 0
  %6268 = vmatmul.mubr.bf16.gmra.mrb[0].mxu0 %v3612
  %v6269 = vpop.f32.mrb[0].mxu0
  %v6270 = vadd.f32 %v798, %v6269
  %v6271 = vpop.f32.mrb[0].mxu0
  %v6272 = vpop.f32.mrb[0].mxu0
  %v6273 = vadd.f32 %v798, %v6272
  %v6274 = vpop.f32.mrb[0].mxu0
  %6275 = vmatprep.mubr.bf16.mxu0 0
  %6276 = vmatmul.mubr.bf16.gmra.mrb[0].mxu0 %v3615
  %v6277 = vpop.f32.mrb[0].mxu0
  %v6278 = vadd.f32 %v798, %v6277
  %v6279 = vpop.f32.mrb[0].mxu0
  %v6280 = vpop.f32.mrb[0].mxu0
  %v6281 = vadd.f32 %v798, %v6280
  %v6282 = vpop.f32.mrb[0].mxu0
  %6283 = vmatprep.mubr.bf16.mxu0 0
  %6284 = vmatmul.mubr.bf16.gmra.mrb[0].mxu0 %v3618
  %v6285 = vpop.f32.mrb[0].mxu0
  %v6286 = vadd.f32 %v798, %v6285
  %v6287 = vpop.f32.mrb[0].mxu0
  %v6288 = vpop.f32.mrb[0].mxu0
  %v6289 = vadd.f32 %v798, %v6288
  %v6290 = vpop.f32.mrb[0].mxu0
  %6291 = vmatprep.mubr.bf16.mxu0 0
  %6292 = vmatmul.mubr.bf16.gmra.mrb[0].mxu0 %v3621
  %v6293 = vpop.f32.mrb[0].mxu0
  %v6294 = vadd.f32 %v798, %v6293
  %v6295 = vpop.f32.mrb[0].mxu0
  %v6296 = vpop.f32.mrb[0].mxu0
  %v6297 = vadd.f32 %v798, %v6296
  %v6298 = vpop.f32.mrb[0].mxu0
  %6299 = vmatprep.mubr.bf16.mxu0 0
  %6300 = vmatmul.mubr.bf16.gmra.mrb[0].mxu0 %v3624
  %v6301 = vpop.f32.mrb[0].mxu0
  %v6302 = vadd.f32 %v798, %v6301
  %v6303 = vpop.f32.mrb[0].mxu0
  %v6304 = vpop.f32.mrb[0].mxu0
  %v6305 = vadd.f32 %v798, %v6304
  %v6306 = vpop.f32.mrb[0].mxu0
  %6307 = vmatprep.mubr.bf16.mxu0 0
  %6308 = vmatmul.mubr.bf16.gmra.mrb[0].mxu0 %v3627
  %v6309 = vpop.f32.mrb[0].mxu0
  %v6310 = vadd.f32 %v798, %v6309
  %v6311 = vpop.f32.mrb[0].mxu0
  %v6312 = vpop.f32.mrb[0].mxu0
  %v6313 = vadd.f32 %v798, %v6312
  %v6314 = vpop.f32.mrb[0].mxu0
  %6315 = vmatprep.mubr.bf16.mxu0 0
  %6316 = vmatmul.mubr.bf16.gmra.mrb[0].mxu0 %v3630
  %v6317 = vpop.f32.mrb[0].mxu0
  %v6318 = vadd.f32 %v798, %v6317
  %v6319 = vpop.f32.mrb[0].mxu0
  %v6320 = vpop.f32.mrb[0].mxu0
  %v6321 = vadd.f32 %v798, %v6320
  %v6322 = vpop.f32.mrb[0].mxu0
  %6323 = vmatprep.mubr.bf16.mxu0 0
  %6324 = vmatmul.mubr.bf16.gmra.mrb[0].mxu0 %v3633
  %v6325 = vpop.f32.mrb[0].mxu0
  %v6326 = vadd.f32 %v798, %v6325
  %v6327 = vpop.f32.mrb[0].mxu0
  %v6328 = vpop.f32.mrb[0].mxu0
  %v6329 = vadd.f32 %v798, %v6328
  %v6330 = vpop.f32.mrb[0].mxu0
  %6331 = vmatprep.mubr.bf16.mxu0 0
  %6332 = vmatmul.mubr.bf16.gmra.mrb[0].mxu0 %v3636
  %v6333 = vpop.f32.mrb[0].mxu0
  %v6334 = vadd.f32 %v798, %v6333
  %v6335 = vpop.f32.mrb[0].mxu0
  %v6336 = vpop.f32.mrb[0].mxu0
  %v6337 = vadd.f32 %v798, %v6336
  %v6338 = vpop.f32.mrb[0].mxu0
  %6339 = vmatprep.mubr.bf16.mxu0 0
  %6340 = vmatmul.mubr.bf16.gmra.mrb[0].mxu0 %v3639
  %v6341 = vpop.f32.mrb[0].mxu0
  %v6342 = vadd.f32 %v798, %v6341
  %v6343 = vpop.f32.mrb[0].mxu0
  %v6344 = vpop.f32.mrb[0].mxu0
  %v6345 = vadd.f32 %v798, %v6344
  %v6346 = vpop.f32.mrb[0].mxu0
  %6347 = vmatprep.mubr.bf16.mxu0 0
  %6348 = vmatmul.mubr.bf16.gmra.mrb[0].mxu0 %v3642
  %v6349 = vpop.f32.mrb[0].mxu0
  %v6350 = vadd.f32 %v798, %v6349
  %v6351 = vpop.f32.mrb[0].mxu0
  %v6352 = vpop.f32.mrb[0].mxu0
  %v6353 = vadd.f32 %v798, %v6352
  %v6354 = vpop.f32.mrb[0].mxu0
  %6355 = vmatprep.mubr.bf16.mxu0 0
  %6356 = vmatmul.mubr.bf16.gmra.mrb[0].mxu0 %v3645
  %v6357 = vpop.f32.mrb[0].mxu0
  %v6358 = vadd.f32 %v798, %v6357
  %v6359 = vpop.f32.mrb[0].mxu0
  %v6360 = vpop.f32.mrb[0].mxu0
  %v6361 = vadd.f32 %v798, %v6360
  %v6362 = vpop.f32.mrb[0].mxu0
  %6363 = vmatprep.mubr.bf16.mxu0 0
  %6364 = vmatmul.mubr.bf16.gmra.mrb[0].mxu0 %v3648
  %v6365 = vpop.f32.mrb[0].mxu0
  %v6366 = vadd.f32 %v798, %v6365
  %v6367 = vpop.f32.mrb[0].mxu0
  %v6368 = vpop.f32.mrb[0].mxu0
  %v6369 = vadd.f32 %v798, %v6368
  %v6370 = vpop.f32.mrb[0].mxu0
  %6371 = vmatprep.mubr.bf16.mxu0 0
  %6372 = vmatmul.mubr.bf16.gmra.mrb[0].mxu0 %v3651
  %v6373 = vpop.f32.mrb[0].mxu0
  %v6374 = vadd.f32 %v798, %v6373
  %v6375 = vpop.f32.mrb[0].mxu0
  %v6376 = vpop.f32.mrb[0].mxu0
  %v6377 = vadd.f32 %v798, %v6376
  %v6378 = vpop.f32.mrb[0].mxu0
  %6379 = vmatprep.mubr.bf16.mxu0 0
  %6380 = vmatmul.mubr.bf16.gmra.mrb[0].mxu0 %v3654
  %v6381 = vpop.f32.mrb[0].mxu0
  %v6382 = vadd.f32 %v798, %v6381
  %v6383 = vpop.f32.mrb[0].mxu0
  %v6384 = vpop.f32.mrb[0].mxu0
  %v6385 = vadd.f32 %v798, %v6384
  %v6386 = vpop.f32.mrb[0].mxu0
  %6387 = vmatprep.mubr.bf16.mxu0 0
  %6388 = vmatmul.mubr.bf16.gmra.mrb[0].mxu0 %v3657
  %v6389 = vpop.f32.mrb[0].mxu0
  %v6390 = vadd.f32 %v798, %v6389
  %v6391 = vpop.f32.mrb[0].mxu0
  %v6392 = vpop.f32.mrb[0].mxu0
  %v6393 = vadd.f32 %v798, %v6392
  %v6394 = vpop.f32.mrb[0].mxu0
  %6395 = vmatprep.mubr.bf16.mxu0 0
  %6396 = vmatmul.mubr.bf16.gmra.mrb[0].mxu0 %v3660
  %v6397 = vpop.f32.mrb[0].mxu0
  %v6398 = vadd.f32 %v798, %v6397
  %v6399 = vpop.f32.mrb[0].mxu0
  %v6400 = vpop.f32.mrb[0].mxu0
  %v6401 = vadd.f32 %v798, %v6400
  %v6402 = vpop.f32.mrb[0].mxu0
  %6403 = vmatprep.mubr.bf16.mxu0 0
  %6404 = vmatmul.mubr.bf16.gmra.mrb[0].mxu0 %v3663
  %v6405 = vpop.f32.mrb[0].mxu0
  %v6406 = vadd.f32 %v798, %v6405
  %v6407 = vpop.f32.mrb[0].mxu0
  %v6408 = vpop.f32.mrb[0].mxu0
  %v6409 = vadd.f32 %v798, %v6408
  %v6410 = vpop.f32.mrb[0].mxu0
  %6411 = vmatprep.mubr.bf16.mxu0 0
  %6412 = vmatmul.mubr.bf16.gmra.mrb[0].mxu0 %v3666
  %v6413 = vpop.f32.mrb[0].mxu0
  %v6414 = vadd.f32 %v798, %v6413
  %v6415 = vpop.f32.mrb[0].mxu0
  %v6416 = vpop.f32.mrb[0].mxu0
  %v6417 = vadd.f32 %v798, %v6416
  %v6418 = vpop.f32.mrb[0].mxu0
  %6419 = vmatprep.mubr.bf16.mxu0 0
  %6420 = vmatmul.mubr.bf16.gmra.mrb[0].mxu0 %v3669
  %v6421 = vpop.f32.mrb[0].mxu0
  %v6422 = vadd.f32 %v798, %v6421
  %v6423 = vpop.f32.mrb[0].mxu0
  %v6424 = vpop.f32.mrb[0].mxu0
  %v6425 = vadd.f32 %v798, %v6424
  %v6426 = vpop.f32.mrb[0].mxu0
  %6427 = vmatprep.mubr.bf16.mxu0 0
  %6428 = vmatmul.mubr.bf16.gmra.mrb[0].mxu0 %v3672
  %v6429 = vpop.f32.mrb[0].mxu0
  %v6430 = vadd.f32 %v798, %v6429
  %v6431 = vpop.f32.mrb[0].mxu0
  %v6432 = vpop.f32.mrb[0].mxu0
  %v6433 = vadd.f32 %v798, %v6432
  %v6434 = vpop.f32.mrb[0].mxu0
  %6435 = vmatprep.mubr.bf16.mxu0 0
  %6436 = vmatmul.mubr.bf16.gmra.mrb[0].mxu0 %v3675
  %v6437 = vpop.f32.mrb[0].mxu0
  %v6438 = vadd.f32 %v798, %v6437
  %v6439 = vpop.f32.mrb[0].mxu0
  %v6440 = vpop.f32.mrb[0].mxu0
  %v6441 = vadd.f32 %v798, %v6440
  %v6442 = vpop.f32.mrb[0].mxu0
  %6443 = vmatprep.mubr.bf16.mxu0 0
  %6444 = vmatmul.mubr.bf16.gmra.mrb[0].mxu0 %v3678
  %v6445 = vpop.f32.mrb[0].mxu0
  %v6446 = vadd.f32 %v798, %v6445
  %v6447 = vpop.f32.mrb[0].mxu0
  %v6448 = vpop.f32.mrb[0].mxu0
  %v6449 = vadd.f32 %v798, %v6448
  %v6450 = vpop.f32.mrb[0].mxu0
  %6451 = vmatprep.mubr.bf16.mxu0 0
  %6452 = vmatmul.mubr.bf16.gmra.mrb[0].mxu0 %v3681
  %v6453 = vpop.f32.mrb[0].mxu0
  %v6454 = vadd.f32 %v798, %v6453
  %v6455 = vpop.f32.mrb[0].mxu0
  %v6456 = vpop.f32.mrb[0].mxu0
  %v6457 = vadd.f32 %v798, %v6456
  %v6458 = vpop.f32.mrb[0].mxu0
  %6459 = vmatprep.mubr.bf16.mxu0 0
  %6460 = vmatmul.mubr.bf16.gmra.mrb[0].mxu0 %v3684
  %v6461 = vpop.f32.mrb[0].mxu0
  %v6462 = vadd.f32 %v798, %v6461
  %v6463 = vpop.f32.mrb[0].mxu0
  %v6464 = vpop.f32.mrb[0].mxu0
  %v6465 = vadd.f32 %v798, %v6464
  %v6466 = vpop.f32.mrb[0].mxu0
  %6467 = vmatprep.mubr.bf16.mxu0 0
  %6468 = vmatmul.mubr.bf16.gmra.mrb[0].mxu0 %v3687
  %v6469 = vpop.f32.mrb[0].mxu0
  %v6470 = vadd.f32 %v798, %v6469
  %v6471 = vpop.f32.mrb[0].mxu0
  %v6472 = vpop.f32.mrb[0].mxu0
  %v6473 = vadd.f32 %v798, %v6472
  %v6474 = vpop.f32.mrb[0].mxu0
  %6475 = vmatprep.mubr.bf16.mxu0 0
  %6476 = vmatmul.mubr.bf16.gmra.mrb[0].mxu0 %v3690
  %v6477 = vpop.f32.mrb[0].mxu0
  %v6478 = vadd.f32 %v798, %v6477
  %v6479 = vpop.f32.mrb[0].mxu0
  %v6480 = vpop.f32.mrb[0].mxu0
  %v6481 = vadd.f32 %v798, %v6480
  %v6482 = vpop.f32.mrb[0].mxu0
  %6483 = vmatprep.mubr.bf16.mxu0 0
  %6484 = vmatmul.mubr.bf16.gmra.mrb[0].mxu0 %v3693
  %v6485 = vpop.f32.mrb[0].mxu0
  %v6486 = vadd.f32 %v798, %v6485
  %v6487 = vpop.f32.mrb[0].mxu0
  %v6488 = vpop.f32.mrb[0].mxu0
  %v6489 = vadd.f32 %v798, %v6488
  %v6490 = vpop.f32.mrb[0].mxu0
  %6491 = vmatprep.mubr.bf16.mxu0 0
  %6492 = vmatmul.mubr.bf16.gmra.mrb[0].mxu0 %v3696
  %v6493 = vpop.f32.mrb[0].mxu0
  %v6494 = vadd.f32 %v798, %v6493
  %v6495 = vpop.f32.mrb[0].mxu0
  %v6496 = vpop.f32.mrb[0].mxu0
  %v6497 = vadd.f32 %v798, %v6496
  %v6498 = vpop.f32.mrb[0].mxu0
  %6499 = vmatprep.mubr.bf16.mxu0 0
  %6500 = vmatmul.mubr.bf16.gmra.mrb[0].mxu0 %v3699
  %v6501 = vpop.f32.mrb[0].mxu0
  %v6502 = vadd.f32 %v798, %v6501
  %v6503 = vpop.f32.mrb[0].mxu0
  %v6504 = vpop.f32.mrb[0].mxu0
  %v6505 = vadd.f32 %v798, %v6504
  %v6506 = vpop.f32.mrb[0].mxu0
  %6507 = vmatprep.mubr.bf16.mxu0 0
  %6508 = vmatmul.mubr.bf16.gmra.mrb[0].mxu0 %v3702
  %v6509 = vpop.f32.mrb[0].mxu0
  %v6510 = vadd.f32 %v798, %v6509
  %v6511 = vpop.f32.mrb[0].mxu0
  %v6512 = vpop.f32.mrb[0].mxu0
  %v6513 = vadd.f32 %v798, %v6512
  %v6514 = vpop.f32.mrb[0].mxu0
  %6515 = vmatprep.mubr.bf16.mxu0 0
  %6516 = vmatmul.mubr.bf16.gmra.mrb[0].mxu0 %v3705
  %v6517 = vpop.f32.mrb[0].mxu0
  %v6518 = vadd.f32 %v798, %v6517
  %v6519 = vpop.f32.mrb[0].mxu0
  %v6520 = vpop.f32.mrb[0].mxu0
  %v6521 = vadd.f32 %v798, %v6520
  %v6522 = vpop.f32.mrb[0].mxu0
  %6523 = vmatprep.mubr.bf16.mxu0 0
  %6524 = vmatmul.mubr.bf16.gmra.mrb[0].mxu0 %v3708
  %v6525 = vpop.f32.mrb[0].mxu0
  %v6526 = vadd.f32 %v798, %v6525
  %v6527 = vpop.f32.mrb[0].mxu0
  %v6528 = vpop.f32.mrb[0].mxu0
  %v6529 = vadd.f32 %v798, %v6528
  %v6530 = vpop.f32.mrb[0].mxu0
  %6531 = vmatprep.mubr.bf16.mxu0 0
  %6532 = vmatmul.mubr.bf16.gmra.mrb[0].mxu0 %v3711
  %v6533 = vpop.f32.mrb[0].mxu0
  %v6534 = vadd.f32 %v798, %v6533
  %v6535 = vpop.f32.mrb[0].mxu0
  %v6536 = vpop.f32.mrb[0].mxu0
  %v6537 = vadd.f32 %v798, %v6536
  %v6538 = vpop.f32.mrb[0].mxu0
  %6539 = vmatprep.mubr.bf16.mxu0 0
  %6540 = vmatmul.mubr.bf16.gmra.mrb[0].mxu0 %v3714
  %v6541 = vpop.f32.mrb[0].mxu0
  %v6542 = vadd.f32 %v798, %v6541
  %v6543 = vpop.f32.mrb[0].mxu0
  %v6544 = vpop.f32.mrb[0].mxu0
  %v6545 = vadd.f32 %v798, %v6544
  %v6546 = vpop.f32.mrb[0].mxu0
  %6547 = vmatprep.mubr.bf16.mxu0 0
  %6548 = vmatmul.mubr.bf16.gmra.mrb[0].mxu0 %v3717
  %v6549 = vpop.f32.mrb[0].mxu0
  %v6550 = vadd.f32 %v798, %v6549
  %v6551 = vpop.f32.mrb[0].mxu0
  %v6552 = vpop.f32.mrb[0].mxu0
  %v6553 = vadd.f32 %v798, %v6552
  %v6554 = vpop.f32.mrb[0].mxu0
  %6555 = vmatprep.mubr.bf16.mxu0 0
  %6556 = vmatmul.mubr.bf16.gmra.mrb[0].mxu0 %v3720
  %v6557 = vpop.f32.mrb[0].mxu0
  %v6558 = vadd.f32 %v798, %v6557
  %v6559 = vpop.f32.mrb[0].mxu0
  %v6560 = vpop.f32.mrb[0].mxu0
  %v6561 = vadd.f32 %v798, %v6560
  %v6562 = vpop.f32.mrb[0].mxu0
  %6563 = vmatprep.mubr.bf16.mxu0 0
  %6564 = vmatmul.mubr.bf16.gmra.mrb[0].mxu0 %v3723
  %v6565 = vpop.f32.mrb[0].mxu0
  %v6566 = vadd.f32 %v798, %v6565
  %v6567 = vpop.f32.mrb[0].mxu0
  %v6568 = vpop.f32.mrb[0].mxu0
  %v6569 = vadd.f32 %v798, %v6568
  %v6570 = vpop.f32.mrb[0].mxu0
  %6571 = vmatprep.mubr.bf16.mxu0 0
  %6572 = vmatmul.mubr.bf16.gmra.mrb[0].mxu0 %v3726
  %v6573 = vpop.f32.mrb[0].mxu0
  %v6574 = vadd.f32 %v798, %v6573
  %v6575 = vpop.f32.mrb[0].mxu0
  %v6576 = vpop.f32.mrb[0].mxu0
  %v6577 = vadd.f32 %v798, %v6576
  %v6578 = vpop.f32.mrb[0].mxu0
  %6579 = vmatprep.mubr.bf16.mxu0 0
  %6580 = vmatmul.mubr.bf16.gmra.mrb[0].mxu0 %v3729
  %v6581 = vpop.f32.mrb[0].mxu0
  %v6582 = vadd.f32 %v798, %v6581
  %v6583 = vpop.f32.mrb[0].mxu0
  %v6584 = vpop.f32.mrb[0].mxu0
  %v6585 = vadd.f32 %v798, %v6584
  %v6586 = vpop.f32.mrb[0].mxu0
  %6587 = vmatprep.mubr.bf16.mxu0 0
  %6588 = vmatmul.mubr.bf16.gmra.mrb[0].mxu0 %v3732
  %v6589 = vpop.f32.mrb[0].mxu0
  %v6590 = vadd.f32 %v798, %v6589
  %v6591 = vpop.f32.mrb[0].mxu0
  %v6592 = vpop.f32.mrb[0].mxu0
  %v6593 = vadd.f32 %v798, %v6592
  %v6594 = vpop.f32.mrb[0].mxu0
  %6595 = vmatprep.mubr.bf16.mxu0 0
  %6596 = vmatmul.mubr.bf16.gmra.mrb[0].mxu0 %v3735
  %v6597 = vpop.f32.mrb[0].mxu0
  %v6598 = vadd.f32 %v798, %v6597
  %v6599 = vpop.f32.mrb[0].mxu0
  %v6600 = vpop.f32.mrb[0].mxu0
  %v6601 = vadd.f32 %v798, %v6600
  %v6602 = vpop.f32.mrb[0].mxu0
  %6603 = vmatprep.mubr.bf16.mxu0 0
  %6604 = vmatmul.mubr.bf16.gmra.mrb[0].mxu0 %v3738
  %v6605 = vpop.f32.mrb[0].mxu0
  %v6606 = vadd.f32 %v798, %v6605
  %v6607 = vpop.f32.mrb[0].mxu0
  %v6608 = vpop.f32.mrb[0].mxu0
  %v6609 = vadd.f32 %v798, %v6608
  %v6610 = vpop.f32.mrb[0].mxu0
  %6611 = vmatprep.mubr.bf16.mxu0 0
  %6612 = vmatmul.mubr.bf16.gmra.mrb[0].mxu0 %v3741
  %v6613 = vpop.f32.mrb[0].mxu0
  %v6614 = vadd.f32 %v798, %v6613
  %v6615 = vpop.f32.mrb[0].mxu0
  %v6616 = vpop.f32.mrb[0].mxu0
  %v6617 = vadd.f32 %v798, %v6616
  %v6618 = vpop.f32.mrb[0].mxu0
  %6619 = vmatprep.mubr.bf16.mxu0 0
  %6620 = vmatmul.mubr.bf16.gmra.mrb[0].mxu0 %v3744
  %v6621 = vpop.f32.mrb[0].mxu0
  %v6622 = vadd.f32 %v798, %v6621
  %v6623 = vpop.f32.mrb[0].mxu0
  %v6624 = vpop.f32.mrb[0].mxu0
  %v6625 = vadd.f32 %v798, %v6624
  %v6626 = vpop.f32.mrb[0].mxu0
  %6627 = vmatprep.mubr.bf16.mxu0 0
  %6628 = vmatmul.mubr.bf16.gmra.mrb[0].mxu0 %v3747
  %v6629 = vpop.f32.mrb[0].mxu0
  %v6630 = vadd.f32 %v798, %v6629
  %v6631 = vpop.f32.mrb[0].mxu0
  %v6632 = vpop.f32.mrb[0].mxu0
  %v6633 = vadd.f32 %v798, %v6632
  %v6634 = vpop.f32.mrb[0].mxu0
  %6635 = vmatprep.mubr.bf16.mxu0 0
  %6636 = vmatmul.mubr.bf16.gmra.mrb[0].mxu0 %v3750
  %v6637 = vpop.f32.mrb[0].mxu0
  %v6638 = vadd.f32 %v798, %v6637
  %v6639 = vpop.f32.mrb[0].mxu0
  %v6640 = vpop.f32.mrb[0].mxu0
  %v6641 = vadd.f32 %v798, %v6640
  %v6642 = vpop.f32.mrb[0].mxu0
  %6643 = vmatprep.mubr.bf16.mxu0 0
  %6644 = vmatmul.mubr.bf16.gmra.mrb[0].mxu0 %v3753
  %v6645 = vpop.f32.mrb[0].mxu0
  %v6646 = vadd.f32 %v798, %v6645
  %v6647 = vpop.f32.mrb[0].mxu0
  %v6648 = vpop.f32.mrb[0].mxu0
  %v6649 = vadd.f32 %v798, %v6648
  %v6650 = vpop.f32.mrb[0].mxu0
  %6651 = vmatprep.mubr.bf16.mxu0 0
  %6652 = vmatmul.mubr.bf16.gmra.mrb[0].mxu0 %v3756
  %v6653 = vpop.f32.mrb[0].mxu0
  %v6654 = vadd.f32 %v798, %v6653
  %v6655 = vpop.f32.mrb[0].mxu0
  %v6656 = vpop.f32.mrb[0].mxu0
  %v6657 = vadd.f32 %v798, %v6656
  %v6658 = vpop.f32.mrb[0].mxu0
  %6659 = vmatprep.mubr.bf16.mxu0 0
  %6660 = vmatmul.mubr.bf16.gmra.mrb[0].mxu0 %v3759
  %v6661 = vpop.f32.mrb[0].mxu0
  %v6662 = vadd.f32 %v798, %v6661
  %v6663 = vpop.f32.mrb[0].mxu0
  %v6664 = vpop.f32.mrb[0].mxu0
  %v6665 = vadd.f32 %v798, %v6664
  %v6666 = vpop.f32.mrb[0].mxu0
  %6667 = vmatprep.mubr.bf16.mxu0 0
  %6668 = vmatmul.mubr.bf16.gmra.mrb[0].mxu0 %v3762
  %v6669 = vpop.f32.mrb[0].mxu0
  %v6670 = vadd.f32 %v798, %v6669
  %v6671 = vpop.f32.mrb[0].mxu0
  %v6672 = vpop.f32.mrb[0].mxu0
  %v6673 = vadd.f32 %v798, %v6672
  %v6674 = vpop.f32.mrb[0].mxu0
  %6675 = vmatprep.mubr.bf16.mxu0 0
  %6676 = vmatmul.mubr.bf16.gmra.mrb[0].mxu0 %v3765
  %v6677 = vpop.f32.mrb[0].mxu0
  %v6678 = vadd.f32 %v798, %v6677
  %v6679 = vpop.f32.mrb[0].mxu0
  %v6680 = vpop.f32.mrb[0].mxu0
  %v6681 = vadd.f32 %v798, %v6680
  %v6682 = vpop.f32.mrb[0].mxu0
  %6683 = vmatprep.mubr.bf16.mxu0 0
  %6684 = vmatmul.mubr.bf16.gmra.mrb[0].mxu0 %v3768
  %v6685 = vpop.f32.mrb[0].mxu0
  %v6686 = vadd.f32 %v798, %v6685
  %v6687 = vpop.f32.mrb[0].mxu0
  %v6688 = vpop.f32.mrb[0].mxu0
  %v6689 = vadd.f32 %v798, %v6688
  %v6690 = vpop.f32.mrb[0].mxu0
  %6691 = vmatprep.mubr.bf16.mxu0 0
  %6692 = vmatmul.mubr.bf16.gmra.mrb[0].mxu0 %v3771
  %v6693 = vpop.f32.mrb[0].mxu0
  %v6694 = vadd.f32 %v798, %v6693
  %v6695 = vpop.f32.mrb[0].mxu0
  %v6696 = vpop.f32.mrb[0].mxu0
  %v6697 = vadd.f32 %v798, %v6696
  %v6698 = vpop.f32.mrb[0].mxu0
  %6699 = vmatprep.mubr.bf16.mxu0 0
  %6700 = vmatmul.mubr.bf16.gmra.mrb[0].mxu0 %v3774
  %v6701 = vpop.f32.mrb[0].mxu0
  %v6702 = vadd.f32 %v798, %v6701
  %v6703 = vpop.f32.mrb[0].mxu0
  %v6704 = vpop.f32.mrb[0].mxu0
  %v6705 = vadd.f32 %v798, %v6704
  %v6706 = vpop.f32.mrb[0].mxu0
  %6707 = vmatprep.mubr.bf16.mxu0 0
  %6708 = vmatmul.mubr.bf16.gmra.mrb[0].mxu0 %v3777
  %v6709 = vpop.f32.mrb[0].mxu0
  %v6710 = vadd.f32 %v798, %v6709
  %v6711 = vpop.f32.mrb[0].mxu0
  %v6712 = vpop.f32.mrb[0].mxu0
  %v6713 = vadd.f32 %v798, %v6712
  %v6714 = vpop.f32.mrb[0].mxu0
  %6715 = vmatprep.mubr.bf16.mxu0 0
  %6716 = vmatmul.mubr.bf16.gmra.mrb[0].mxu0 %v3780
  %v6717 = vpop.f32.mrb[0].mxu0
  %v6718 = vadd.f32 %v798, %v6717
  %v6719 = vpop.f32.mrb[0].mxu0
  %v6720 = vpop.f32.mrb[0].mxu0
  %v6721 = vadd.f32 %v798, %v6720
  %v6722 = vpop.f32.mrb[0].mxu0
  %6723 = vmatprep.mubr.bf16.mxu0 0
  %6724 = vmatmul.mubr.bf16.gmra.mrb[0].mxu0 %v3783
  %v6725 = vpop.f32.mrb[0].mxu0
  %v6726 = vadd.f32 %v798, %v6725
  %v6727 = vpop.f32.mrb[0].mxu0
  %v6728 = vpop.f32.mrb[0].mxu0
  %v6729 = vadd.f32 %v798, %v6728
  %v6730 = vpop.f32.mrb[0].mxu0
  %6731 = vmatprep.mubr.bf16.mxu0 0
  %6732 = vmatmul.mubr.bf16.gmra.mrb[0].mxu0 %v3786
  %v6733 = vpop.f32.mrb[0].mxu0
  %v6734 = vadd.f32 %v798, %v6733
  %v6735 = vpop.f32.mrb[0].mxu0
  %v6736 = vpop.f32.mrb[0].mxu0
  %v6737 = vadd.f32 %v798, %v6736
  %v6738 = vpop.f32.mrb[0].mxu0
  %6739 = vmatprep.mubr.bf16.mxu0 0
  %6740 = vmatmul.mubr.bf16.gmra.mrb[0].mxu0 %v3789
  %v6741 = vpop.f32.mrb[0].mxu0
  %v6742 = vadd.f32 %v798, %v6741
  %v6743 = vpop.f32.mrb[0].mxu0
  %v6744 = vpop.f32.mrb[0].mxu0
  %v6745 = vadd.f32 %v798, %v6744
  %v6746 = vpop.f32.mrb[0].mxu0
  %6747 = vmatprep.mubr.bf16.mxu0 0
  %6748 = vmatmul.mubr.bf16.gmra.mrb[0].mxu0 %v3792
  %v6749 = vpop.f32.mrb[0].mxu0
  %v6750 = vadd.f32 %v798, %v6749
  %v6751 = vpop.f32.mrb[0].mxu0
  %v6752 = vpop.f32.mrb[0].mxu0
  %v6753 = vadd.f32 %v798, %v6752
  %v6754 = vpop.f32.mrb[0].mxu0
  %6755 = vmatprep.mubr.bf16.mxu0 0
  %6756 = vmatmul.mubr.bf16.gmra.mrb[0].mxu0 %v3795
  %v6757 = vpop.f32.mrb[0].mxu0
  %v6758 = vadd.f32 %v798, %v6757
  %v6759 = vpop.f32.mrb[0].mxu0
  %v6760 = vpop.f32.mrb[0].mxu0
  %v6761 = vadd.f32 %v798, %v6760
  %v6762 = vpop.f32.mrb[0].mxu0
  %6763 = vmatprep.mubr.bf16.mxu0 0
  %6764 = vmatmul.mubr.bf16.gmra.mrb[0].mxu0 %v3798
  %v6765 = vpop.f32.mrb[0].mxu0
  %v6766 = vadd.f32 %v798, %v6765
  %v6767 = vpop.f32.mrb[0].mxu0
  %v6768 = vpop.f32.mrb[0].mxu0
  %v6769 = vadd.f32 %v798, %v6768
  %v6770 = vpop.f32.mrb[0].mxu0
  %6771 = vmatprep.mubr.bf16.mxu0 0
  %6772 = vmatmul.mubr.bf16.gmra.mrb[0].mxu0 %v3801
  %v6773 = vpop.f32.mrb[0].mxu0
  %v6774 = vadd.f32 %v798, %v6773
  %v6775 = vpop.f32.mrb[0].mxu0
  %v6776 = vpop.f32.mrb[0].mxu0
  %v6777 = vadd.f32 %v798, %v6776
  %v6778 = vpop.f32.mrb[0].mxu0
  %6779 = vmatprep.mubr.bf16.mxu0 0
  %6780 = vmatmul.mubr.bf16.gmra.mrb[0].mxu0 %v3804
  %v6781 = vpop.f32.mrb[0].mxu0
  %v6782 = vadd.f32 %v798, %v6781
  %v6783 = vpop.f32.mrb[0].mxu0
  %v6784 = vpop.f32.mrb[0].mxu0
  %v6785 = vadd.f32 %v798, %v6784
  %v6786 = vpop.f32.mrb[0].mxu0
  %6787 = vmatprep.mubr.bf16.mxu0 0
  %6788 = vmatmul.mubr.bf16.gmra.mrb[0].mxu0 %v3807
  %v6789 = vpop.f32.mrb[0].mxu0
  %v6790 = vadd.f32 %v798, %v6789
  %v6791 = vpop.f32.mrb[0].mxu0
  %v6792 = vpop.f32.mrb[0].mxu0
  %v6793 = vadd.f32 %v798, %v6792
  %v6794 = vpop.f32.mrb[0].mxu0
  %6795 = vmatprep.mubr.bf16.mxu0 0
  %6796 = vmatmul.mubr.bf16.gmra.mrb[0].mxu0 %v3810
  %v6797 = vpop.f32.mrb[0].mxu0
  %v6798 = vadd.f32 %v798, %v6797
  %v6799 = vpop.f32.mrb[0].mxu0
  %v6800 = vpop.f32.mrb[0].mxu0
  %v6801 = vadd.f32 %v798, %v6800
  %v6802 = vpop.f32.mrb[0].mxu0
  %6803 = vmatprep.mubr.bf16.mxu0 0
  %6804 = vmatmul.mubr.bf16.gmra.mrb[0].mxu0 %v3813
  %v6805 = vpop.f32.mrb[0].mxu0
  %v6806 = vadd.f32 %v798, %v6805
  %v6807 = vpop.f32.mrb[0].mxu0
  %v6808 = vpop.f32.mrb[0].mxu0
  %v6809 = vadd.f32 %v798, %v6808
  %v6810 = vpop.f32.mrb[0].mxu0
  %6811 = vmatprep.mubr.bf16.mxu0 0
  %6812 = vmatmul.mubr.bf16.gmra.mrb[0].mxu0 %v3816
  %v6813 = vpop.f32.mrb[0].mxu0
  %v6814 = vadd.f32 %v798, %v6813
  %v6815 = vpop.f32.mrb[0].mxu0
  %v6816 = vpop.f32.mrb[0].mxu0
  %v6817 = vadd.f32 %v798, %v6816
  %v6818 = vpop.f32.mrb[0].mxu0
  %6819 = vmatprep.mubr.bf16.mxu0 0
  %6820 = vmatmul.mubr.bf16.gmra.mrb[0].mxu0 %v3819
  %v6821 = vpop.f32.mrb[0].mxu0
  %v6822 = vadd.f32 %v798, %v6821
  %v6823 = vpop.f32.mrb[0].mxu0
  %v6824 = vpop.f32.mrb[0].mxu0
  %v6825 = vadd.f32 %v798, %v6824
  %v6826 = vpop.f32.mrb[0].mxu0
  %6827 = vmatprep.mubr.bf16.mxu0 0
  %6828 = vmatmul.mubr.bf16.gmra.mrb[0].mxu0 %v3822
  %v6829 = vpop.f32.mrb[0].mxu0
  %v6830 = vadd.f32 %v798, %v6829
  %v6831 = vpop.f32.mrb[0].mxu0
  %v6832 = vpop.f32.mrb[0].mxu0
  %v6833 = vadd.f32 %v798, %v6832
  %v6834 = vpop.f32.mrb[0].mxu0
  %6835 = vmatprep.mubr.bf16.mxu0 0
  %6836 = vmatmul.mubr.bf16.gmra.mrb[0].mxu0 %v3825
  %v6837 = vpop.f32.mrb[0].mxu0
  %v6838 = vadd.f32 %v798, %v6837
  %v6839 = vpop.f32.mrb[0].mxu0
  %v6840 = vpop.f32.mrb[0].mxu0
  %v6841 = vadd.f32 %v798, %v6840
  %v6842 = vpop.f32.mrb[0].mxu0
  %6843 = vmatprep.mubr.bf16.mxu0 0
  %6844 = vmatmul.mubr.bf16.gmra.mrb[0].mxu0 %v3828
  %v6845 = vpop.f32.mrb[0].mxu0
  %v6846 = vadd.f32 %v798, %v6845
  %v6847 = vpop.f32.mrb[0].mxu0
  %v6848 = vpop.f32.mrb[0].mxu0
  %v6849 = vadd.f32 %v798, %v6848
  %v6850 = vpop.f32.mrb[0].mxu0
  %6851 = vmatprep.mubr.bf16.mxu0 0
  %6852 = vmatmul.mubr.bf16.gmra.mrb[0].mxu0 %v3831
  %v6853 = vpop.f32.mrb[0].mxu0
  %v6854 = vadd.f32 %v798, %v6853
  %v6855 = vpop.f32.mrb[0].mxu0
  %v6856 = vpop.f32.mrb[0].mxu0
  %v6857 = vadd.f32 %v798, %v6856
  %v6858 = vpop.f32.mrb[0].mxu0
  %6859 = vmatprep.mubr.bf16.mxu0 0
  %6860 = vmatmul.mubr.bf16.gmra.mrb[0].mxu0 %v3834
  %v6861 = vpop.f32.mrb[0].mxu0
  %v6862 = vadd.f32 %v798, %v6861
  %v6863 = vpop.f32.mrb[0].mxu0
  %v6864 = vpop.f32.mrb[0].mxu0
  %v6865 = vadd.f32 %v798, %v6864
  %v6866 = vpop.f32.mrb[0].mxu0
  %6867 = vmatprep.mubr.bf16.mxu0 0
  %6868 = vmatmul.mubr.bf16.gmra.mrb[0].mxu0 %v3837
  %v6869 = vpop.f32.mrb[0].mxu0
  %v6870 = vadd.f32 %v798, %v6869
  %v6871 = vpop.f32.mrb[0].mxu0
  %v6872 = vpop.f32.mrb[0].mxu0
  %v6873 = vadd.f32 %v798, %v6872
  %v6874 = vpop.f32.mrb[0].mxu0
  %6875 = vmatprep.mubr.bf16.mxu0 0
  %6876 = vmatmul.mubr.bf16.gmra.mrb[0].mxu0 %v3840
  %v6877 = vpop.f32.mrb[0].mxu0
  %v6878 = vadd.f32 %v798, %v6877
  %v6879 = vpop.f32.mrb[0].mxu0
  %v6880 = vpop.f32.mrb[0].mxu0
  %v6881 = vadd.f32 %v798, %v6880
  %v6882 = vpop.f32.mrb[0].mxu0
  %6883 = vmatprep.mubr.bf16.mxu0 0
  %6884 = vmatmul.mubr.bf16.gmra.mrb[0].mxu0 %v3843
  %v6885 = vpop.f32.mrb[0].mxu0
  %v6886 = vadd.f32 %v798, %v6885
  %v6887 = vpop.f32.mrb[0].mxu0
  %v6888 = vpop.f32.mrb[0].mxu0
  %v6889 = vadd.f32 %v798, %v6888
  %v6890 = vpop.f32.mrb[0].mxu0
  %6891 = vmatprep.mubr.bf16.mxu0 0
  %6892 = vmatmul.mubr.bf16.gmra.mrb[0].mxu0 %v3846
  %v6893 = vpop.f32.mrb[0].mxu0
  %v6894 = vadd.f32 %v798, %v6893
  %v6895 = vpop.f32.mrb[0].mxu0
  %v6896 = vpop.f32.mrb[0].mxu0
  %v6897 = vadd.f32 %v798, %v6896
  %v6898 = vpop.f32.mrb[0].mxu0
  %6899 = vmatprep.mubr.bf16.mxu0 0
  %6900 = vmatmul.mubr.bf16.gmra.mrb[0].mxu0 %v3849
  %v6901 = vpop.f32.mrb[0].mxu0
  %v6902 = vadd.f32 %v798, %v6901
  %v6903 = vpop.f32.mrb[0].mxu0
  %v6904 = vpop.f32.mrb[0].mxu0
  %v6905 = vadd.f32 %v798, %v6904
  %v6906 = vpop.f32.mrb[0].mxu0
  %6907 = vmatprep.mubr.bf16.mxu0 0
  %6908 = vmatmul.mubr.bf16.gmra.mrb[0].mxu0 %v3852
  %v6909 = vpop.f32.mrb[0].mxu0
  %v6910 = vadd.f32 %v798, %v6909
  %v6911 = vpop.f32.mrb[0].mxu0
  %v6912 = vpop.f32.mrb[0].mxu0
  %v6913 = vadd.f32 %v798, %v6912
  %v6914 = vpop.f32.mrb[0].mxu0
  %6915 = vmatprep.mubr.bf16.mxu0 0
  %6916 = vmatmul.mubr.bf16.gmra.mrb[0].mxu0 %v3855
  %v6917 = vpop.f32.mrb[0].mxu0
  %v6918 = vadd.f32 %v798, %v6917
  %v6919 = vpop.f32.mrb[0].mxu0
  %v6920 = vpop.f32.mrb[0].mxu0
  %v6921 = vadd.f32 %v798, %v6920
  %v6922 = vpop.f32.mrb[0].mxu0
  %6923 = vmatprep.mubr.bf16.mxu0 0
  %6924 = vmatmul.mubr.bf16.gmra.mrb[0].mxu0 %v3858
  %v6925 = vpop.f32.mrb[0].mxu0
  %v6926 = vadd.f32 %v798, %v6925
  %v6927 = vpop.f32.mrb[0].mxu0
  %v6928 = vpop.f32.mrb[0].mxu0
  %v6929 = vadd.f32 %v798, %v6928
  %v6930 = vpop.f32.mrb[0].mxu0
  %6931 = vmatprep.mubr.bf16.mxu0 0
  %6932 = vmatmul.mubr.bf16.gmra.mrb[0].mxu0 %v3861
  %v6933 = vpop.f32.mrb[0].mxu0
  %v6934 = vadd.f32 %v798, %v6933
  %v6935 = vpop.f32.mrb[0].mxu0
  %v6936 = vpop.f32.mrb[0].mxu0
  %v6937 = vadd.f32 %v798, %v6936
  %v6938 = vpop.f32.mrb[0].mxu0
  %6939 = vmatprep.mubr.bf16.mxu0 0
  %6940 = vmatmul.mubr.bf16.gmra.mrb[0].mxu0 %v3864
  %v6941 = vpop.f32.mrb[0].mxu0
  %v6942 = vadd.f32 %v798, %v6941
  %v6943 = vpop.f32.mrb[0].mxu0
  %v6944 = vpop.f32.mrb[0].mxu0
  %v6945 = vadd.f32 %v798, %v6944
  %v6946 = vpop.f32.mrb[0].mxu0
  %6947 = vmatprep.mubr.bf16.mxu0 0
  %6948 = vmatmul.mubr.bf16.gmra.mrb[0].mxu0 %v3867
  %v6949 = vpop.f32.mrb[0].mxu0
  %v6950 = vadd.f32 %v798, %v6949
  %v6951 = vpop.f32.mrb[0].mxu0
  %v6952 = vpop.f32.mrb[0].mxu0
  %v6953 = vadd.f32 %v798, %v6952
  %v6954 = vpop.f32.mrb[0].mxu0
  %6955 = vmatprep.mubr.bf16.mxu0 0
  %6956 = vmatmul.mubr.bf16.gmra.mrb[0].mxu0 %v3870
  %v6957 = vpop.f32.mrb[0].mxu0
  %v6958 = vadd.f32 %v798, %v6957
  %v6959 = vpop.f32.mrb[0].mxu0
  %v6960 = vpop.f32.mrb[0].mxu0
  %v6961 = vadd.f32 %v798, %v6960
  %v6962 = vpop.f32.mrb[0].mxu0
  %6963 = vmatprep.mubr.bf16.mxu0 0
  %6964 = vmatmul.mubr.bf16.gmra.mrb[0].mxu0 %v3873
  %v6965 = vpop.f32.mrb[0].mxu0
  %v6966 = vadd.f32 %v798, %v6965
  %v6967 = vpop.f32.mrb[0].mxu0
  %v6968 = vpop.f32.mrb[0].mxu0
  %v6969 = vadd.f32 %v798, %v6968
  %v6970 = vpop.f32.mrb[0].mxu0
  %6971 = vmatprep.mubr.bf16.mxu0 0
  %6972 = vmatmul.mubr.bf16.gmra.mrb[0].mxu0 %v3876
  %v6973 = vpop.f32.mrb[0].mxu0
  %v6974 = vadd.f32 %v798, %v6973
  %v6975 = vpop.f32.mrb[0].mxu0
  %v6976 = vpop.f32.mrb[0].mxu0
  %v6977 = vadd.f32 %v798, %v6976
  %v6978 = vpop.f32.mrb[0].mxu0
  %6979 = vmatprep.mubr.bf16.mxu0 0
  %6980 = vmatmul.mubr.bf16.gmra.mrb[0].mxu0 %v3879
  %v6981 = vpop.f32.mrb[0].mxu0
  %v6982 = vadd.f32 %v798, %v6981
  %v6983 = vpop.f32.mrb[0].mxu0
  %v6984 = vpop.f32.mrb[0].mxu0
  %v6985 = vadd.f32 %v798, %v6984
  %v6986 = vpop.f32.mrb[0].mxu0
  %6987 = vmatprep.mubr.bf16.mxu0 0
  %6988 = vmatmul.mubr.bf16.gmra.mrb[0].mxu0 %v3882
  %v6989 = vpop.f32.mrb[0].mxu0
  %v6990 = vadd.f32 %v798, %v6989
  %v6991 = vpop.f32.mrb[0].mxu0
  %v6992 = vpop.f32.mrb[0].mxu0
  %v6993 = vadd.f32 %v798, %v6992
  %v6994 = vpop.f32.mrb[0].mxu0
  %6995 = vdwg.mxu0
  %v6996 = vmax.f32 %v3926, 0.0
  %v6997 = vmax.f32 %v3929, 0.0
  %v6998 = vmax.f32 %v3934, 0.0
  %v6999 = vmax.f32 %v3937, 0.0
  %v7000 = vmax.f32 %v3942, 0.0
  %v7001 = vmax.f32 %v3945, 0.0
  %v7002 = vmax.f32 %v3950, 0.0
  %v7003 = vmax.f32 %v3953, 0.0
  %v7004 = vmax.f32 %v3958, 0.0
  %v7005 = vmax.f32 %v3961, 0.0
  %v7006 = vmax.f32 %v3966, 0.0
  %v7007 = vmax.f32 %v3969, 0.0
  %v7008 = vmax.f32 %v3974, 0.0
  %v7009 = vmax.f32 %v3977, 0.0
  %v7010 = vmax.f32 %v3982, 0.0
  %v7011 = vmax.f32 %v3985, 0.0
  %v7012 = vmax.f32 %v3990, 0.0
  %v7013 = vmax.f32 %v3993, 0.0
  %v7014 = vmax.f32 %v3998, 0.0
  %v7015 = vmax.f32 %v4001, 0.0
  %v7016 = vmax.f32 %v4006, 0.0
  %v7017 = vmax.f32 %v4009, 0.0
  %v7018 = vmax.f32 %v4014, 0.0
  %v7019 = vmax.f32 %v4017, 0.0
  %v7020 = vmax.f32 %v4022, 0.0
  %v7021 = vmax.f32 %v4025, 0.0
  %v7022 = vmax.f32 %v4030, 0.0
  %v7023 = vmax.f32 %v4033, 0.0
  %v7024 = vmax.f32 %v4038, 0.0
  %v7025 = vmax.f32 %v4041, 0.0
  %v7026 = vmax.f32 %v4046, 0.0
  %v7027 = vmax.f32 %v4049, 0.0
  %v7028 = vmax.f32 %v4054, 0.0
  %v7029 = vmax.f32 %v4057, 0.0
  %v7030 = vmax.f32 %v4062, 0.0
  %v7031 = vmax.f32 %v4065, 0.0
  %v7032 = vmax.f32 %v4070, 0.0
  %v7033 = vmax.f32 %v4073, 0.0
  %v7034 = vmax.f32 %v4078, 0.0
  %v7035 = vmax.f32 %v4081, 0.0
  %v7036 = vmax.f32 %v4086, 0.0
  %v7037 = vmax.f32 %v4089, 0.0
  %v7038 = vmax.f32 %v4094, 0.0
  %v7039 = vmax.f32 %v4097, 0.0
  %v7040 = vmax.f32 %v4102, 0.0
  %v7041 = vmax.f32 %v4105, 0.0
  %v7042 = vmax.f32 %v4110, 0.0
  %v7043 = vmax.f32 %v4113, 0.0
  %v7044 = vmax.f32 %v4118, 0.0
  %v7045 = vmax.f32 %v4121, 0.0
  %v7046 = vmax.f32 %v4126, 0.0
  %v7047 = vmax.f32 %v4129, 0.0
  %v7048 = vmax.f32 %v4134, 0.0
  %v7049 = vmax.f32 %v4137, 0.0
  %v7050 = vmax.f32 %v4142, 0.0
  %v7051 = vmax.f32 %v4145, 0.0
  %v7052 = vmax.f32 %v4150, 0.0
  %v7053 = vmax.f32 %v4153, 0.0
  %v7054 = vmax.f32 %v4158, 0.0
  %v7055 = vmax.f32 %v4161, 0.0
  %v7056 = vmax.f32 %v4166, 0.0
  %v7057 = vmax.f32 %v4169, 0.0
  %v7058 = vmax.f32 %v4174, 0.0
  %v7059 = vmax.f32 %v4177, 0.0
  %v7060 = vmax.f32 %v4182, 0.0
  %v7061 = vmax.f32 %v4185, 0.0
  %v7062 = vmax.f32 %v4190, 0.0
  %v7063 = vmax.f32 %v4193, 0.0
  %v7064 = vmax.f32 %v4198, 0.0
  %v7065 = vmax.f32 %v4201, 0.0
  %v7066 = vmax.f32 %v4206, 0.0
  %v7067 = vmax.f32 %v4209, 0.0
  %v7068 = vmax.f32 %v4214, 0.0
  %v7069 = vmax.f32 %v4217, 0.0
  %v7070 = vmax.f32 %v4222, 0.0
  %v7071 = vmax.f32 %v4225, 0.0
  %v7072 = vmax.f32 %v4230, 0.0
  %v7073 = vmax.f32 %v4233, 0.0
  %v7074 = vmax.f32 %v4238, 0.0
  %v7075 = vmax.f32 %v4241, 0.0
  %v7076 = vmax.f32 %v4246, 0.0
  %v7077 = vmax.f32 %v4249, 0.0
  %v7078 = vmax.f32 %v4254, 0.0
  %v7079 = vmax.f32 %v4257, 0.0
  %v7080 = vmax.f32 %v4262, 0.0
  %v7081 = vmax.f32 %v4265, 0.0
  %v7082 = vmax.f32 %v4270, 0.0
  %v7083 = vmax.f32 %v4273, 0.0
  %v7084 = vmax.f32 %v4278, 0.0
  %v7085 = vmax.f32 %v4281, 0.0
  %v7086 = vmax.f32 %v4286, 0.0
  %v7087 = vmax.f32 %v4289, 0.0
  %v7088 = vmax.f32 %v4294, 0.0
  %v7089 = vmax.f32 %v4297, 0.0
  %v7090 = vmax.f32 %v4302, 0.0
  %v7091 = vmax.f32 %v4305, 0.0
  %v7092 = vmax.f32 %v4310, 0.0
  %v7093 = vmax.f32 %v4313, 0.0
  %v7094 = vmax.f32 %v4318, 0.0
  %v7095 = vmax.f32 %v4321, 0.0
  %v7096 = vmax.f32 %v4326, 0.0
  %v7097 = vmax.f32 %v4329, 0.0
  %v7098 = vmax.f32 %v4334, 0.0
  %v7099 = vmax.f32 %v4337, 0.0
  %v7100 = vmax.f32 %v4342, 0.0
  %v7101 = vmax.f32 %v4345, 0.0
  %v7102 = vmax.f32 %v4350, 0.0
  %v7103 = vmax.f32 %v4353, 0.0
  %v7104 = vmax.f32 %v4358, 0.0
  %v7105 = vmax.f32 %v4361, 0.0
  %v7106 = vmax.f32 %v4366, 0.0
  %v7107 = vmax.f32 %v4369, 0.0
  %v7108 = vmax.f32 %v4374, 0.0
  %v7109 = vmax.f32 %v4377, 0.0
  %v7110 = vmax.f32 %v4382, 0.0
  %v7111 = vmax.f32 %v4385, 0.0
  %v7112 = vmax.f32 %v4390, 0.0
  %v7113 = vmax.f32 %v4393, 0.0
  %v7114 = vmax.f32 %v4398, 0.0
  %v7115 = vmax.f32 %v4401, 0.0
  %v7116 = vmax.f32 %v4406, 0.0
  %v7117 = vmax.f32 %v4409, 0.0
  %v7118 = vmax.f32 %v4414, 0.0
  %v7119 = vmax.f32 %v4417, 0.0
  %v7120 = vmax.f32 %v4422, 0.0
  %v7121 = vmax.f32 %v4425, 0.0
  %v7122 = vmax.f32 %v4430, 0.0
  %v7123 = vmax.f32 %v4433, 0.0
  %v7124 = vmax.f32 %v4438, 0.0
  %v7125 = vmax.f32 %v4441, 0.0
  %v7126 = vmax.f32 %v4446, 0.0
  %v7127 = vmax.f32 %v4449, 0.0
  %v7128 = vmax.f32 %v4454, 0.0
  %v7129 = vmax.f32 %v4457, 0.0
  %v7130 = vmax.f32 %v4462, 0.0
  %v7131 = vmax.f32 %v4465, 0.0
  %v7132 = vmax.f32 %v4470, 0.0
  %v7133 = vmax.f32 %v4473, 0.0
  %v7134 = vmax.f32 %v4478, 0.0
  %v7135 = vmax.f32 %v4481, 0.0
  %v7136 = vmax.f32 %v4486, 0.0
  %v7137 = vmax.f32 %v4489, 0.0
  %v7138 = vmax.f32 %v4494, 0.0
  %v7139 = vmax.f32 %v4497, 0.0
  %v7140 = vmax.f32 %v4502, 0.0
  %v7141 = vmax.f32 %v4505, 0.0
  %v7142 = vmax.f32 %v4510, 0.0
  %v7143 = vmax.f32 %v4513, 0.0
  %v7144 = vmax.f32 %v4518, 0.0
  %v7145 = vmax.f32 %v4521, 0.0
  %v7146 = vmax.f32 %v4526, 0.0
  %v7147 = vmax.f32 %v4529, 0.0
  %v7148 = vmax.f32 %v4534, 0.0
  %v7149 = vmax.f32 %v4537, 0.0
  %v7150 = vmax.f32 %v4542, 0.0
  %v7151 = vmax.f32 %v4545, 0.0
  %v7152 = vmax.f32 %v4550, 0.0
  %v7153 = vmax.f32 %v4553, 0.0
  %v7154 = vmax.f32 %v4558, 0.0
  %v7155 = vmax.f32 %v4561, 0.0
  %v7156 = vmax.f32 %v4566, 0.0
  %v7157 = vmax.f32 %v4569, 0.0
  %v7158 = vmax.f32 %v4574, 0.0
  %v7159 = vmax.f32 %v4577, 0.0
  %v7160 = vmax.f32 %v4582, 0.0
  %v7161 = vmax.f32 %v4585, 0.0
  %v7162 = vmax.f32 %v4590, 0.0
  %v7163 = vmax.f32 %v4593, 0.0
  %v7164 = vmax.f32 %v4598, 0.0
  %v7165 = vmax.f32 %v4601, 0.0
  %v7166 = vmax.f32 %v4606, 0.0
  %v7167 = vmax.f32 %v4609, 0.0
  %v7168 = vmax.f32 %v4614, 0.0
  %v7169 = vmax.f32 %v4617, 0.0
  %v7170 = vmax.f32 %v4622, 0.0
  %v7171 = vmax.f32 %v4625, 0.0
  %v7172 = vmax.f32 %v4630, 0.0
  %v7173 = vmax.f32 %v4633, 0.0
  %v7174 = vmax.f32 %v4638, 0.0
  %v7175 = vmax.f32 %v4641, 0.0
  %v7176 = vmax.f32 %v4646, 0.0
  %v7177 = vmax.f32 %v4649, 0.0
  %v7178 = vmax.f32 %v4654, 0.0
  %v7179 = vmax.f32 %v4657, 0.0
  %v7180 = vmax.f32 %v4662, 0.0
  %v7181 = vmax.f32 %v4665, 0.0
  %v7182 = vmax.f32 %v4670, 0.0
  %v7183 = vmax.f32 %v4673, 0.0
  %v7184 = vmax.f32 %v4678, 0.0
  %v7185 = vmax.f32 %v4681, 0.0
  %v7186 = vmax.f32 %v4686, 0.0
  %v7187 = vmax.f32 %v4689, 0.0
  %v7188 = vmax.f32 %v4694, 0.0
  %v7189 = vmax.f32 %v4697, 0.0
  %v7190 = vmax.f32 %v4702, 0.0
  %v7191 = vmax.f32 %v4705, 0.0
  %v7192 = vmax.f32 %v4710, 0.0
  %v7193 = vmax.f32 %v4713, 0.0
  %v7194 = vmax.f32 %v4718, 0.0
  %v7195 = vmax.f32 %v4721, 0.0
  %v7196 = vmax.f32 %v4726, 0.0
  %v7197 = vmax.f32 %v4729, 0.0
  %v7198 = vmax.f32 %v4734, 0.0
  %v7199 = vmax.f32 %v4737, 0.0
  %v7200 = vmax.f32 %v4742, 0.0
  %v7201 = vmax.f32 %v4745, 0.0
  %v7202 = vmax.f32 %v4750, 0.0
  %v7203 = vmax.f32 %v4753, 0.0
  %v7204 = vmax.f32 %v4758, 0.0
  %v7205 = vmax.f32 %v4761, 0.0
  %v7206 = vmax.f32 %v4766, 0.0
  %v7207 = vmax.f32 %v4769, 0.0
  %v7208 = vmax.f32 %v4774, 0.0
  %v7209 = vmax.f32 %v4777, 0.0
  %v7210 = vmax.f32 %v4782, 0.0
  %v7211 = vmax.f32 %v4785, 0.0
  %v7212 = vmax.f32 %v4790, 0.0
  %v7213 = vmax.f32 %v4793, 0.0
  %v7214 = vmax.f32 %v4798, 0.0
  %v7215 = vmax.f32 %v4801, 0.0
  %v7216 = vmax.f32 %v4806, 0.0
  %v7217 = vmax.f32 %v4809, 0.0
  %v7218 = vmax.f32 %v4814, 0.0
  %v7219 = vmax.f32 %v4817, 0.0
  %v7220 = vmax.f32 %v4822, 0.0
  %v7221 = vmax.f32 %v4825, 0.0
  %v7222 = vmax.f32 %v4830, 0.0
  %v7223 = vmax.f32 %v4833, 0.0
  %v7224 = vmax.f32 %v4838, 0.0
  %v7225 = vmax.f32 %v4841, 0.0
  %v7226 = vmax.f32 %v4846, 0.0
  %v7227 = vmax.f32 %v4849, 0.0
  %v7228 = vmax.f32 %v4854, 0.0
  %v7229 = vmax.f32 %v4857, 0.0
  %v7230 = vmax.f32 %v4862, 0.0
  %v7231 = vmax.f32 %v4865, 0.0
  %v7232 = vmax.f32 %v4870, 0.0
  %v7233 = vmax.f32 %v4873, 0.0
  %v7234 = vmax.f32 %v4878, 0.0
  %v7235 = vmax.f32 %v4881, 0.0
  %v7236 = vmax.f32 %v4886, 0.0
  %v7237 = vmax.f32 %v4889, 0.0
  %v7238 = vmax.f32 %v4894, 0.0
  %v7239 = vmax.f32 %v4897, 0.0
  %v7240 = vmax.f32 %v4902, 0.0
  %v7241 = vmax.f32 %v4905, 0.0
  %v7242 = vmax.f32 %v4910, 0.0
  %v7243 = vmax.f32 %v4913, 0.0
  %v7244 = vmax.f32 %v4918, 0.0
  %v7245 = vmax.f32 %v4921, 0.0
  %v7246 = vmax.f32 %v4926, 0.0
  %v7247 = vmax.f32 %v4929, 0.0
  %v7248 = vmax.f32 %v4934, 0.0
  %v7249 = vmax.f32 %v4937, 0.0
  %v7250 = vmax.f32 %v4942, 0.0
  %v7251 = vmax.f32 %v4945, 0.0
  %v7252 = vmax.f32 %v4950, 0.0
  %v7253 = vmax.f32 %v4953, 0.0
  %v7254 = vmax.f32 %v4958, 0.0
  %v7255 = vmax.f32 %v4961, 0.0
  %v7256 = vmax.f32 %v4966, 0.0
  %v7257 = vmax.f32 %v4969, 0.0
  %v7258 = vmax.f32 %v4974, 0.0
  %v7259 = vmax.f32 %v4977, 0.0
  %v7260 = vmax.f32 %v4982, 0.0
  %v7261 = vmax.f32 %v4985, 0.0
  %v7262 = vmax.f32 %v4990, 0.0
  %v7263 = vmax.f32 %v4993, 0.0
  %v7264 = vmax.f32 %v4998, 0.0
  %v7265 = vmax.f32 %v5001, 0.0
  %v7266 = vmax.f32 %v5006, 0.0
  %v7267 = vmax.f32 %v5009, 0.0
  %v7268 = vmax.f32 %v5014, 0.0
  %v7269 = vmax.f32 %v5017, 0.0
  %v7270 = vmax.f32 %v5022, 0.0
  %v7271 = vmax.f32 %v5025, 0.0
  %v7272 = vmax.f32 %v5030, 0.0
  %v7273 = vmax.f32 %v5033, 0.0
  %v7274 = vmax.f32 %v5038, 0.0
  %v7275 = vmax.f32 %v5041, 0.0
  %v7276 = vmax.f32 %v5046, 0.0
  %v7277 = vmax.f32 %v5049, 0.0
  %v7278 = vmax.f32 %v5054, 0.0
  %v7279 = vmax.f32 %v5057, 0.0
  %v7280 = vmax.f32 %v5062, 0.0
  %v7281 = vmax.f32 %v5065, 0.0
  %v7282 = vmax.f32 %v5070, 0.0
  %v7283 = vmax.f32 %v5073, 0.0
  %v7284 = vmax.f32 %v5078, 0.0
  %v7285 = vmax.f32 %v5081, 0.0
  %v7286 = vmax.f32 %v5086, 0.0
  %v7287 = vmax.f32 %v5089, 0.0
  %v7288 = vmax.f32 %v5094, 0.0
  %v7289 = vmax.f32 %v5097, 0.0
  %v7290 = vmax.f32 %v5102, 0.0
  %v7291 = vmax.f32 %v5105, 0.0
  %v7292 = vmax.f32 %v5110, 0.0
  %v7293 = vmax.f32 %v5113, 0.0
  %v7294 = vmax.f32 %v5118, 0.0
  %v7295 = vmax.f32 %v5121, 0.0
  %v7296 = vmax.f32 %v5126, 0.0
  %v7297 = vmax.f32 %v5129, 0.0
  %v7298 = vmax.f32 %v5134, 0.0
  %v7299 = vmax.f32 %v5137, 0.0
  %v7300 = vmax.f32 %v5142, 0.0
  %v7301 = vmax.f32 %v5145, 0.0
  %v7302 = vmax.f32 %v5150, 0.0
  %v7303 = vmax.f32 %v5153, 0.0
  %v7304 = vmax.f32 %v5158, 0.0
  %v7305 = vmax.f32 %v5161, 0.0
  %v7306 = vmax.f32 %v5166, 0.0
  %v7307 = vmax.f32 %v5169, 0.0
  %v7308 = vmax.f32 %v5174, 0.0
  %v7309 = vmax.f32 %v5177, 0.0
  %v7310 = vmax.f32 %v5182, 0.0
  %v7311 = vmax.f32 %v5185, 0.0
  %v7312 = vmax.f32 %v5190, 0.0
  %v7313 = vmax.f32 %v5193, 0.0
  %v7314 = vmax.f32 %v5198, 0.0
  %v7315 = vmax.f32 %v5201, 0.0
  %v7316 = vmax.f32 %v5206, 0.0
  %v7317 = vmax.f32 %v5209, 0.0
  %v7318 = vmax.f32 %v5214, 0.0
  %v7319 = vmax.f32 %v5217, 0.0
  %v7320 = vmax.f32 %v5222, 0.0
  %v7321 = vmax.f32 %v5225, 0.0
  %v7322 = vmax.f32 %v5230, 0.0
  %v7323 = vmax.f32 %v5233, 0.0
  %v7324 = vmax.f32 %v5238, 0.0
  %v7325 = vmax.f32 %v5241, 0.0
  %v7326 = vmax.f32 %v5246, 0.0
  %v7327 = vmax.f32 %v5249, 0.0
  %v7328 = vmax.f32 %v5254, 0.0
  %v7329 = vmax.f32 %v5257, 0.0
  %v7330 = vmax.f32 %v5262, 0.0
  %v7331 = vmax.f32 %v5265, 0.0
  %v7332 = vmax.f32 %v5270, 0.0
  %v7333 = vmax.f32 %v5273, 0.0
  %v7334 = vmax.f32 %v5278, 0.0
  %v7335 = vmax.f32 %v5281, 0.0
  %v7336 = vmax.f32 %v5286, 0.0
  %v7337 = vmax.f32 %v5289, 0.0
  %v7338 = vmax.f32 %v5294, 0.0
  %v7339 = vmax.f32 %v5297, 0.0
  %v7340 = vmax.f32 %v5302, 0.0
  %v7341 = vmax.f32 %v5305, 0.0
  %v7342 = vmax.f32 %v5310, 0.0
  %v7343 = vmax.f32 %v5313, 0.0
  %v7344 = vmax.f32 %v5318, 0.0
  %v7345 = vmax.f32 %v5321, 0.0
  %v7346 = vmax.f32 %v5326, 0.0
  %v7347 = vmax.f32 %v5329, 0.0
  %v7348 = vmax.f32 %v5334, 0.0
  %v7349 = vmax.f32 %v5337, 0.0
  %v7350 = vmax.f32 %v5342, 0.0
  %v7351 = vmax.f32 %v5345, 0.0
  %v7352 = vmax.f32 %v5350, 0.0
  %v7353 = vmax.f32 %v5353, 0.0
  %v7354 = vmax.f32 %v5358, 0.0
  %v7355 = vmax.f32 %v5361, 0.0
  %v7356 = vmax.f32 %v5366, 0.0
  %v7357 = vmax.f32 %v5369, 0.0
  %v7358 = vmax.f32 %v5374, 0.0
  %v7359 = vmax.f32 %v5377, 0.0
  %v7360 = vmax.f32 %v5382, 0.0
  %v7361 = vmax.f32 %v5385, 0.0
  %v7362 = vmax.f32 %v5390, 0.0
  %v7363 = vmax.f32 %v5393, 0.0
  %v7364 = vmax.f32 %v5398, 0.0
  %v7365 = vmax.f32 %v5401, 0.0
  %v7366 = vmax.f32 %v5406, 0.0
  %v7367 = vmax.f32 %v5409, 0.0
  %v7368 = vmax.f32 %v5414, 0.0
  %v7369 = vmax.f32 %v5417, 0.0
  %v7370 = vmax.f32 %v5422, 0.0
  %v7371 = vmax.f32 %v5425, 0.0
  %v7372 = vmax.f32 %v5430, 0.0
  %v7373 = vmax.f32 %v5433, 0.0
  %v7374 = vmax.f32 %v5438, 0.0
  %v7375 = vmax.f32 %v5441, 0.0
  %v7376 = vmax.f32 %v5446, 0.0
  %v7377 = vmax.f32 %v5449, 0.0
  %v7378 = vmax.f32 %v5454, 0.0
  %v7379 = vmax.f32 %v5457, 0.0
  %v7380 = vmax.f32 %v5462, 0.0
  %v7381 = vmax.f32 %v5465, 0.0
  %v7382 = vmax.f32 %v5470, 0.0
  %v7383 = vmax.f32 %v5473, 0.0
  %v7384 = vmax.f32 %v5478, 0.0
  %v7385 = vmax.f32 %v5481, 0.0
  %v7386 = vmax.f32 %v5486, 0.0
  %v7387 = vmax.f32 %v5489, 0.0
  %v7388 = vmax.f32 %v5494, 0.0
  %v7389 = vmax.f32 %v5497, 0.0
  %v7390 = vmax.f32 %v5502, 0.0
  %v7391 = vmax.f32 %v5505, 0.0
  %v7392 = vmax.f32 %v5510, 0.0
  %v7393 = vmax.f32 %v5513, 0.0
  %v7394 = vmax.f32 %v5518, 0.0
  %v7395 = vmax.f32 %v5521, 0.0
  %v7396 = vmax.f32 %v5526, 0.0
  %v7397 = vmax.f32 %v5529, 0.0
  %v7398 = vmax.f32 %v5534, 0.0
  %v7399 = vmax.f32 %v5537, 0.0
  %v7400 = vmax.f32 %v5542, 0.0
  %v7401 = vmax.f32 %v5545, 0.0
  %v7402 = vmax.f32 %v5550, 0.0
  %v7403 = vmax.f32 %v5553, 0.0
  %v7404 = vmax.f32 %v5558, 0.0
  %v7405 = vmax.f32 %v5561, 0.0
  %v7406 = vmax.f32 %v5566, 0.0
  %v7407 = vmax.f32 %v5569, 0.0
  %v7408 = vmax.f32 %v5574, 0.0
  %v7409 = vmax.f32 %v5577, 0.0
  %v7410 = vmax.f32 %v5582, 0.0
  %v7411 = vmax.f32 %v5585, 0.0
  %v7412 = vmax.f32 %v5590, 0.0
  %v7413 = vmax.f32 %v5593, 0.0
  %v7414 = vmax.f32 %v5598, 0.0
  %v7415 = vmax.f32 %v5601, 0.0
  %v7416 = vmax.f32 %v5606, 0.0
  %v7417 = vmax.f32 %v5609, 0.0
  %v7418 = vmax.f32 %v5614, 0.0
  %v7419 = vmax.f32 %v5617, 0.0
  %v7420 = vmax.f32 %v5622, 0.0
  %v7421 = vmax.f32 %v5625, 0.0
  %v7422 = vmax.f32 %v5630, 0.0
  %v7423 = vmax.f32 %v5633, 0.0
  %v7424 = vmax.f32 %v5638, 0.0
  %v7425 = vmax.f32 %v5641, 0.0
  %v7426 = vmax.f32 %v5646, 0.0
  %v7427 = vmax.f32 %v5649, 0.0
  %v7428 = vmax.f32 %v5654, 0.0
  %v7429 = vmax.f32 %v5657, 0.0
  %v7430 = vmax.f32 %v5662, 0.0
  %v7431 = vmax.f32 %v5665, 0.0
  %v7432 = vmax.f32 %v5670, 0.0
  %v7433 = vmax.f32 %v5673, 0.0
  %v7434 = vmax.f32 %v5678, 0.0
  %v7435 = vmax.f32 %v5681, 0.0
  %v7436 = vmax.f32 %v5686, 0.0
  %v7437 = vmax.f32 %v5689, 0.0
  %v7438 = vmax.f32 %v5694, 0.0
  %v7439 = vmax.f32 %v5697, 0.0
  %v7440 = vmax.f32 %v5702, 0.0
  %v7441 = vmax.f32 %v5705, 0.0
  %v7442 = vmax.f32 %v5710, 0.0
  %v7443 = vmax.f32 %v5713, 0.0
  %v7444 = vmax.f32 %v5718, 0.0
  %v7445 = vmax.f32 %v5721, 0.0
  %v7446 = vmax.f32 %v5726, 0.0
  %v7447 = vmax.f32 %v5729, 0.0
  %v7448 = vmax.f32 %v5734, 0.0
  %v7449 = vmax.f32 %v5737, 0.0
  %v7450 = vmax.f32 %v5742, 0.0
  %v7451 = vmax.f32 %v5745, 0.0
  %v7452 = vmax.f32 %v5750, 0.0
  %v7453 = vmax.f32 %v5753, 0.0
  %v7454 = vmax.f32 %v5758, 0.0
  %v7455 = vmax.f32 %v5761, 0.0
  %v7456 = vmax.f32 %v5766, 0.0
  %v7457 = vmax.f32 %v5769, 0.0
  %v7458 = vmax.f32 %v5774, 0.0
  %v7459 = vmax.f32 %v5777, 0.0
  %v7460 = vmax.f32 %v5782, 0.0
  %v7461 = vmax.f32 %v5785, 0.0
  %v7462 = vmax.f32 %v5790, 0.0
  %v7463 = vmax.f32 %v5793, 0.0
  %v7464 = vmax.f32 %v5798, 0.0
  %v7465 = vmax.f32 %v5801, 0.0
  %v7466 = vmax.f32 %v5806, 0.0
  %v7467 = vmax.f32 %v5809, 0.0
  %v7468 = vmax.f32 %v5814, 0.0
  %v7469 = vmax.f32 %v5817, 0.0
  %v7470 = vmax.f32 %v5822, 0.0
  %v7471 = vmax.f32 %v5825, 0.0
  %v7472 = vmax.f32 %v5830, 0.0
  %v7473 = vmax.f32 %v5833, 0.0
  %v7474 = vmax.f32 %v5838, 0.0
  %v7475 = vmax.f32 %v5841, 0.0
  %v7476 = vmax.f32 %v5846, 0.0
  %v7477 = vmax.f32 %v5849, 0.0
  %v7478 = vmax.f32 %v5854, 0.0
  %v7479 = vmax.f32 %v5857, 0.0
  %v7480 = vmax.f32 %v5862, 0.0
  %v7481 = vmax.f32 %v5865, 0.0
  %v7482 = vmax.f32 %v5870, 0.0
  %v7483 = vmax.f32 %v5873, 0.0
  %v7484 = vmax.f32 %v5878, 0.0
  %v7485 = vmax.f32 %v5881, 0.0
  %v7486 = vmax.f32 %v5886, 0.0
  %v7487 = vmax.f32 %v5889, 0.0
  %v7488 = vmax.f32 %v5894, 0.0
  %v7489 = vmax.f32 %v5897, 0.0
  %v7490 = vmax.f32 %v5902, 0.0
  %v7491 = vmax.f32 %v5905, 0.0
  %v7492 = vmax.f32 %v5910, 0.0
  %v7493 = vmax.f32 %v5913, 0.0
  %v7494 = vmax.f32 %v5918, 0.0
  %v7495 = vmax.f32 %v5921, 0.0
  %v7496 = vmax.f32 %v5926, 0.0
  %v7497 = vmax.f32 %v5929, 0.0
  %v7498 = vmax.f32 %v5934, 0.0
  %v7499 = vmax.f32 %v5937, 0.0
  %v7500 = vmax.f32 %v5942, 0.0
  %v7501 = vmax.f32 %v5945, 0.0
  %v7502 = vmax.f32 %v5950, 0.0
  %v7503 = vmax.f32 %v5953, 0.0
  %v7504 = vmax.f32 %v5958, 0.0
  %v7505 = vmax.f32 %v5961, 0.0
  %v7506 = vmax.f32 %v5966, 0.0
  %v7507 = vmax.f32 %v5969, 0.0
  %v7508 = vmax.f32 %v5974, 0.0
  %v7509 = vmax.f32 %v5977, 0.0
  %v7510 = vmax.f32 %v5982, 0.0
  %v7511 = vmax.f32 %v5985, 0.0
  %v7512 = vmax.f32 %v5990, 0.0
  %v7513 = vmax.f32 %v5993, 0.0
  %v7514 = vmax.f32 %v5998, 0.0
  %v7515 = vmax.f32 %v6001, 0.0
  %v7516 = vmax.f32 %v6006, 0.0
  %v7517 = vmax.f32 %v6009, 0.0
  %v7518 = vmax.f32 %v6014, 0.0
  %v7519 = vmax.f32 %v6017, 0.0
  %v7520 = vmax.f32 %v6022, 0.0
  %v7521 = vmax.f32 %v6025, 0.0
  %v7522 = vmax.f32 %v6030, 0.0
  %v7523 = vmax.f32 %v6033, 0.0
  %v7524 = vmax.f32 %v6038, 0.0
  %v7525 = vmax.f32 %v6041, 0.0
  %v7526 = vmax.f32 %v6046, 0.0
  %v7527 = vmax.f32 %v6049, 0.0
  %v7528 = vmax.f32 %v6054, 0.0
  %v7529 = vmax.f32 %v6057, 0.0
  %v7530 = vmax.f32 %v6062, 0.0
  %v7531 = vmax.f32 %v6065, 0.0
  %v7532 = vmax.f32 %v6070, 0.0
  %v7533 = vmax.f32 %v6073, 0.0
  %v7534 = vmax.f32 %v6078, 0.0
  %v7535 = vmax.f32 %v6081, 0.0
  %v7536 = vmax.f32 %v6086, 0.0
  %v7537 = vmax.f32 %v6089, 0.0
  %v7538 = vmax.f32 %v6094, 0.0
  %v7539 = vmax.f32 %v6097, 0.0
  %v7540 = vmax.f32 %v6102, 0.0
  %v7541 = vmax.f32 %v6105, 0.0
  %v7542 = vmax.f32 %v6110, 0.0
  %v7543 = vmax.f32 %v6113, 0.0
  %v7544 = vmax.f32 %v6118, 0.0
  %v7545 = vmax.f32 %v6121, 0.0
  %v7546 = vmax.f32 %v6126, 0.0
  %v7547 = vmax.f32 %v6129, 0.0
  %v7548 = vmax.f32 %v6134, 0.0
  %v7549 = vmax.f32 %v6137, 0.0
  %v7550 = vmax.f32 %v6142, 0.0
  %v7551 = vmax.f32 %v6145, 0.0
  %v7552 = vmax.f32 %v6150, 0.0
  %v7553 = vmax.f32 %v6153, 0.0
  %v7554 = vmax.f32 %v6158, 0.0
  %v7555 = vmax.f32 %v6161, 0.0
  %v7556 = vmax.f32 %v6166, 0.0
  %v7557 = vmax.f32 %v6169, 0.0
  %v7558 = vmax.f32 %v6174, 0.0
  %v7559 = vmax.f32 %v6177, 0.0
  %v7560 = vmax.f32 %v6182, 0.0
  %v7561 = vmax.f32 %v6185, 0.0
  %v7562 = vmax.f32 %v6190, 0.0
  %v7563 = vmax.f32 %v6193, 0.0
  %v7564 = vmax.f32 %v6198, 0.0
  %v7565 = vmax.f32 %v6201, 0.0
  %v7566 = vmax.f32 %v6206, 0.0
  %v7567 = vmax.f32 %v6209, 0.0
  %v7568 = vmax.f32 %v6214, 0.0
  %v7569 = vmax.f32 %v6217, 0.0
  %v7570 = vmax.f32 %v6222, 0.0
  %v7571 = vmax.f32 %v6225, 0.0
  %v7572 = vmax.f32 %v6230, 0.0
  %v7573 = vmax.f32 %v6233, 0.0
  %v7574 = vmax.f32 %v6238, 0.0
  %v7575 = vmax.f32 %v6241, 0.0
  %v7576 = vmax.f32 %v6246, 0.0
  %v7577 = vmax.f32 %v6249, 0.0
  %v7578 = vmax.f32 %v6254, 0.0
  %v7579 = vmax.f32 %v6257, 0.0
  %v7580 = vmax.f32 %v6262, 0.0
  %v7581 = vmax.f32 %v6265, 0.0
  %v7582 = vmax.f32 %v6270, 0.0
  %v7583 = vmax.f32 %v6273, 0.0
  %v7584 = vmax.f32 %v6278, 0.0
  %v7585 = vmax.f32 %v6281, 0.0
  %v7586 = vmax.f32 %v6286, 0.0
  %v7587 = vmax.f32 %v6289, 0.0
  %v7588 = vmax.f32 %v6294, 0.0
  %v7589 = vmax.f32 %v6297, 0.0
  %v7590 = vmax.f32 %v6302, 0.0
  %v7591 = vmax.f32 %v6305, 0.0
  %v7592 = vmax.f32 %v6310, 0.0
  %v7593 = vmax.f32 %v6313, 0.0
  %v7594 = vmax.f32 %v6318, 0.0
  %v7595 = vmax.f32 %v6321, 0.0
  %v7596 = vmax.f32 %v6326, 0.0
  %v7597 = vmax.f32 %v6329, 0.0
  %v7598 = vmax.f32 %v6334, 0.0
  %v7599 = vmax.f32 %v6337, 0.0
  %v7600 = vmax.f32 %v6342, 0.0
  %v7601 = vmax.f32 %v6345, 0.0
  %v7602 = vmax.f32 %v6350, 0.0
  %v7603 = vmax.f32 %v6353, 0.0
  %v7604 = vmax.f32 %v6358, 0.0
  %v7605 = vmax.f32 %v6361, 0.0
  %v7606 = vmax.f32 %v6366, 0.0
  %v7607 = vmax.f32 %v6369, 0.0
  %v7608 = vmax.f32 %v6374, 0.0
  %v7609 = vmax.f32 %v6377, 0.0
  %v7610 = vmax.f32 %v6382, 0.0
  %v7611 = vmax.f32 %v6385, 0.0
  %v7612 = vmax.f32 %v6390, 0.0
  %v7613 = vmax.f32 %v6393, 0.0
  %v7614 = vmax.f32 %v6398, 0.0
  %v7615 = vmax.f32 %v6401, 0.0
  %v7616 = vmax.f32 %v6406, 0.0
  %v7617 = vmax.f32 %v6409, 0.0
  %v7618 = vmax.f32 %v6414, 0.0
  %v7619 = vmax.f32 %v6417, 0.0
  %v7620 = vmax.f32 %v6422, 0.0
  %v7621 = vmax.f32 %v6425, 0.0
  %v7622 = vmax.f32 %v6430, 0.0
  %v7623 = vmax.f32 %v6433, 0.0
  %v7624 = vmax.f32 %v6438, 0.0
  %v7625 = vmax.f32 %v6441, 0.0
  %v7626 = vmax.f32 %v6446, 0.0
  %v7627 = vmax.f32 %v6449, 0.0
  %v7628 = vmax.f32 %v6454, 0.0
  %v7629 = vmax.f32 %v6457, 0.0
  %v7630 = vmax.f32 %v6462, 0.0
  %v7631 = vmax.f32 %v6465, 0.0
  %v7632 = vmax.f32 %v6470, 0.0
  %v7633 = vmax.f32 %v6473, 0.0
  %v7634 = vmax.f32 %v6478, 0.0
  %v7635 = vmax.f32 %v6481, 0.0
  %v7636 = vmax.f32 %v6486, 0.0
  %v7637 = vmax.f32 %v6489, 0.0
  %v7638 = vmax.f32 %v6494, 0.0
  %v7639 = vmax.f32 %v6497, 0.0
  %v7640 = vmax.f32 %v6502, 0.0
  %v7641 = vmax.f32 %v6505, 0.0
  %v7642 = vmax.f32 %v6510, 0.0
  %v7643 = vmax.f32 %v6513, 0.0
  %v7644 = vmax.f32 %v6518, 0.0
  %v7645 = vmax.f32 %v6521, 0.0
  %v7646 = vmax.f32 %v6526, 0.0
  %v7647 = vmax.f32 %v6529, 0.0
  %v7648 = vmax.f32 %v6534, 0.0
  %v7649 = vmax.f32 %v6537, 0.0
  %v7650 = vmax.f32 %v6542, 0.0
  %v7651 = vmax.f32 %v6545, 0.0
  %v7652 = vmax.f32 %v6550, 0.0
  %v7653 = vmax.f32 %v6553, 0.0
  %v7654 = vmax.f32 %v6558, 0.0
  %v7655 = vmax.f32 %v6561, 0.0
  %v7656 = vmax.f32 %v6566, 0.0
  %v7657 = vmax.f32 %v6569, 0.0
  %v7658 = vmax.f32 %v6574, 0.0
  %v7659 = vmax.f32 %v6577, 0.0
  %v7660 = vmax.f32 %v6582, 0.0
  %v7661 = vmax.f32 %v6585, 0.0
  %v7662 = vmax.f32 %v6590, 0.0
  %v7663 = vmax.f32 %v6593, 0.0
  %v7664 = vmax.f32 %v6598, 0.0
  %v7665 = vmax.f32 %v6601, 0.0
  %v7666 = vmax.f32 %v6606, 0.0
  %v7667 = vmax.f32 %v6609, 0.0
  %v7668 = vmax.f32 %v6614, 0.0
  %v7669 = vmax.f32 %v6617, 0.0
  %v7670 = vmax.f32 %v6622, 0.0
  %v7671 = vmax.f32 %v6625, 0.0
  %v7672 = vmax.f32 %v6630, 0.0
  %v7673 = vmax.f32 %v6633, 0.0
  %v7674 = vmax.f32 %v6638, 0.0
  %v7675 = vmax.f32 %v6641, 0.0
  %v7676 = vmax.f32 %v6646, 0.0
  %v7677 = vmax.f32 %v6649, 0.0
  %v7678 = vmax.f32 %v6654, 0.0
  %v7679 = vmax.f32 %v6657, 0.0
  %v7680 = vmax.f32 %v6662, 0.0
  %v7681 = vmax.f32 %v6665, 0.0
  %v7682 = vmax.f32 %v6670, 0.0
  %v7683 = vmax.f32 %v6673, 0.0
  %v7684 = vmax.f32 %v6678, 0.0
  %v7685 = vmax.f32 %v6681, 0.0
  %v7686 = vmax.f32 %v6686, 0.0
  %v7687 = vmax.f32 %v6689, 0.0
  %v7688 = vmax.f32 %v6694, 0.0
  %v7689 = vmax.f32 %v6697, 0.0
  %v7690 = vmax.f32 %v6702, 0.0
  %v7691 = vmax.f32 %v6705, 0.0
  %v7692 = vmax.f32 %v6710, 0.0
  %v7693 = vmax.f32 %v6713, 0.0
  %v7694 = vmax.f32 %v6718, 0.0
  %v7695 = vmax.f32 %v6721, 0.0
  %v7696 = vmax.f32 %v6726, 0.0
  %v7697 = vmax.f32 %v6729, 0.0
  %v7698 = vmax.f32 %v6734, 0.0
  %v7699 = vmax.f32 %v6737, 0.0
  %v7700 = vmax.f32 %v6742, 0.0
  %v7701 = vmax.f32 %v6745, 0.0
  %v7702 = vmax.f32 %v6750, 0.0
  %v7703 = vmax.f32 %v6753, 0.0
  %v7704 = vmax.f32 %v6758, 0.0
  %v7705 = vmax.f32 %v6761, 0.0
  %v7706 = vmax.f32 %v6766, 0.0
  %v7707 = vmax.f32 %v6769, 0.0
  %v7708 = vmax.f32 %v6774, 0.0
  %v7709 = vmax.f32 %v6777, 0.0
  %v7710 = vmax.f32 %v6782, 0.0
  %v7711 = vmax.f32 %v6785, 0.0
  %v7712 = vmax.f32 %v6790, 0.0
  %v7713 = vmax.f32 %v6793, 0.0
  %v7714 = vmax.f32 %v6798, 0.0
  %v7715 = vmax.f32 %v6801, 0.0
  %v7716 = vmax.f32 %v6806, 0.0
  %v7717 = vmax.f32 %v6809, 0.0
  %v7718 = vmax.f32 %v6814, 0.0
  %v7719 = vmax.f32 %v6817, 0.0
  %v7720 = vmax.f32 %v6822, 0.0
  %v7721 = vmax.f32 %v6825, 0.0
  %v7722 = vmax.f32 %v6830, 0.0
  %v7723 = vmax.f32 %v6833, 0.0
  %v7724 = vmax.f32 %v6838, 0.0
  %v7725 = vmax.f32 %v6841, 0.0
  %v7726 = vmax.f32 %v6846, 0.0
  %v7727 = vmax.f32 %v6849, 0.0
  %v7728 = vmax.f32 %v6854, 0.0
  %v7729 = vmax.f32 %v6857, 0.0
  %v7730 = vmax.f32 %v6862, 0.0
  %v7731 = vmax.f32 %v6865, 0.0
  %v7732 = vmax.f32 %v6870, 0.0
  %v7733 = vmax.f32 %v6873, 0.0
  %v7734 = vmax.f32 %v6878, 0.0
  %v7735 = vmax.f32 %v6881, 0.0
  %v7736 = vmax.f32 %v6886, 0.0
  %v7737 = vmax.f32 %v6889, 0.0
  %v7738 = vmax.f32 %v6894, 0.0
  %v7739 = vmax.f32 %v6897, 0.0
  %v7740 = vmax.f32 %v6902, 0.0
  %v7741 = vmax.f32 %v6905, 0.0
  %v7742 = vmax.f32 %v6910, 0.0
  %v7743 = vmax.f32 %v6913, 0.0
  %v7744 = vmax.f32 %v6918, 0.0
  %v7745 = vmax.f32 %v6921, 0.0
  %v7746 = vmax.f32 %v6926, 0.0
  %v7747 = vmax.f32 %v6929, 0.0
  %v7748 = vmax.f32 %v6934, 0.0
  %v7749 = vmax.f32 %v6937, 0.0
  %v7750 = vmax.f32 %v6942, 0.0
  %v7751 = vmax.f32 %v6945, 0.0
  %v7752 = vmax.f32 %v6950, 0.0
  %v7753 = vmax.f32 %v6953, 0.0
  %v7754 = vmax.f32 %v6958, 0.0
  %v7755 = vmax.f32 %v6961, 0.0
  %v7756 = vmax.f32 %v6966, 0.0
  %v7757 = vmax.f32 %v6969, 0.0
  %v7758 = vmax.f32 %v6974, 0.0
  %v7759 = vmax.f32 %v6977, 0.0
  %v7760 = vmax.f32 %v6982, 0.0
  %v7761 = vmax.f32 %v6985, 0.0
  %v7762 = vmax.f32 %v6990, 0.0
  %v7763 = vmax.f32 %v6993, 0.0
  %vm7764 = vcmask 64512
  %v7765 = vsel %vm7764, %v6996, 0.0
  %v7766 = vsel %vm7764, %v6997, 0.0
  %v7767 = vadd.f32 %v7765, %v7766
  %v7768 = vsel %vm7764, %v6998, 0.0
  %v7769 = vadd.f32 %v7767, %v7768
  %v7770 = vsel %vm7764, %v6999, 0.0
  %v7771 = vadd.f32 %v7769, %v7770
  %v7772 = vsel %vm7764, %v7000, 0.0
  %v7773 = vadd.f32 %v7771, %v7772
  %v7774 = vsel %vm7764, %v7001, 0.0
  %v7775 = vadd.f32 %v7773, %v7774
  %v7776 = vsel %vm7764, %v7002, 0.0
  %v7777 = vadd.f32 %v7775, %v7776
  %v7778 = vsel %vm7764, %v7003, 0.0
  %v7779 = vadd.f32 %v7777, %v7778
  %v7780 = vsel %vm7764, %v7004, 0.0
  %v7781 = vadd.f32 %v7779, %v7780
  %v7782 = vsel %vm7764, %v7005, 0.0
  %v7783 = vadd.f32 %v7781, %v7782
  %v7784 = vsel %vm7764, %v7006, 0.0
  %v7785 = vadd.f32 %v7783, %v7784
  %v7786 = vsel %vm7764, %v7007, 0.0
  %v7787 = vadd.f32 %v7785, %v7786
  %v7788 = vsel %vm7764, %v7008, 0.0
  %v7789 = vadd.f32 %v7787, %v7788
  %v7790 = vsel %vm7764, %v7009, 0.0
  %v7791 = vadd.f32 %v7789, %v7790
  %v7792 = vsel %vm7764, %v7010, 0.0
  %v7793 = vadd.f32 %v7791, %v7792
  %v7794 = vsel %vm7764, %v7011, 0.0
  %v7795 = vadd.f32 %v7793, %v7794
  %v7796 = vsel %vm7764, %v7012, 0.0
  %v7797 = vadd.f32 %v7795, %v7796
  %v7798 = vsel %vm7764, %v7013, 0.0
  %v7799 = vadd.f32 %v7797, %v7798
  %v7800 = vsel %vm7764, %v7014, 0.0
  %v7801 = vadd.f32 %v7799, %v7800
  %v7802 = vsel %vm7764, %v7015, 0.0
  %v7803 = vadd.f32 %v7801, %v7802
  %v7804 = vsel %vm7764, %v7016, 0.0
  %v7805 = vadd.f32 %v7803, %v7804
  %v7806 = vsel %vm7764, %v7017, 0.0
  %v7807 = vadd.f32 %v7805, %v7806
  %v7808 = vsel %vm7764, %v7018, 0.0
  %v7809 = vadd.f32 %v7807, %v7808
  %v7810 = vsel %vm7764, %v7019, 0.0
  %v7811 = vadd.f32 %v7809, %v7810
  %v7812 = vsel %vm7764, %v7020, 0.0
  %v7813 = vadd.f32 %v7811, %v7812
  %v7814 = vsel %vm7764, %v7021, 0.0
  %v7815 = vadd.f32 %v7813, %v7814
  %v7816 = vsel %vm7764, %v7022, 0.0
  %v7817 = vadd.f32 %v7815, %v7816
  %v7818 = vsel %vm7764, %v7023, 0.0
  %v7819 = vadd.f32 %v7817, %v7818
  %v7820 = vsel %vm7764, %v7024, 0.0
  %v7821 = vadd.f32 %v7819, %v7820
  %v7822 = vsel %vm7764, %v7025, 0.0
  %v7823 = vadd.f32 %v7821, %v7822
  %v7824 = vsel %vm7764, %v7026, 0.0
  %v7825 = vadd.f32 %v7823, %v7824
  %v7826 = vsel %vm7764, %v7027, 0.0
  %v7827 = vadd.f32 %v7825, %v7826
  %v7828 = vrot.slane %v7827, 4
  %v7829 = vadd.f32 %v7827, %v7828
  %v7830 = vrot.slane %v7829, 2
  %v7831 = vadd.f32 %v7829, %v7830
  %v7832 = vrot.slane %v7831, 1
  %v7833 = vadd.f32 %v7831, %v7832
  %v7834 = vsel %vm7764, %v7028, 0.0
  %v7835 = vsel %vm7764, %v7029, 0.0
  %v7836 = vadd.f32 %v7834, %v7835
  %v7837 = vsel %vm7764, %v7030, 0.0
  %v7838 = vadd.f32 %v7836, %v7837
  %v7839 = vsel %vm7764, %v7031, 0.0
  %v7840 = vadd.f32 %v7838, %v7839
  %v7841 = vsel %vm7764, %v7032, 0.0
  %v7842 = vadd.f32 %v7840, %v7841
  %v7843 = vsel %vm7764, %v7033, 0.0
  %v7844 = vadd.f32 %v7842, %v7843
  %v7845 = vsel %vm7764, %v7034, 0.0
  %v7846 = vadd.f32 %v7844, %v7845
  %v7847 = vsel %vm7764, %v7035, 0.0
  %v7848 = vadd.f32 %v7846, %v7847
  %v7849 = vsel %vm7764, %v7036, 0.0
  %v7850 = vadd.f32 %v7848, %v7849
  %v7851 = vsel %vm7764, %v7037, 0.0
  %v7852 = vadd.f32 %v7850, %v7851
  %v7853 = vsel %vm7764, %v7038, 0.0
  %v7854 = vadd.f32 %v7852, %v7853
  %v7855 = vsel %vm7764, %v7039, 0.0
  %v7856 = vadd.f32 %v7854, %v7855
  %v7857 = vsel %vm7764, %v7040, 0.0
  %v7858 = vadd.f32 %v7856, %v7857
  %v7859 = vsel %vm7764, %v7041, 0.0
  %v7860 = vadd.f32 %v7858, %v7859
  %v7861 = vsel %vm7764, %v7042, 0.0
  %v7862 = vadd.f32 %v7860, %v7861
  %v7863 = vsel %vm7764, %v7043, 0.0
  %v7864 = vadd.f32 %v7862, %v7863
  %v7865 = vsel %vm7764, %v7044, 0.0
  %v7866 = vadd.f32 %v7864, %v7865
  %v7867 = vsel %vm7764, %v7045, 0.0
  %v7868 = vadd.f32 %v7866, %v7867
  %v7869 = vsel %vm7764, %v7046, 0.0
  %v7870 = vadd.f32 %v7868, %v7869
  %v7871 = vsel %vm7764, %v7047, 0.0
  %v7872 = vadd.f32 %v7870, %v7871
  %v7873 = vsel %vm7764, %v7048, 0.0
  %v7874 = vadd.f32 %v7872, %v7873
  %v7875 = vsel %vm7764, %v7049, 0.0
  %v7876 = vadd.f32 %v7874, %v7875
  %v7877 = vsel %vm7764, %v7050, 0.0
  %v7878 = vadd.f32 %v7876, %v7877
  %v7879 = vsel %vm7764, %v7051, 0.0
  %v7880 = vadd.f32 %v7878, %v7879
  %v7881 = vsel %vm7764, %v7052, 0.0
  %v7882 = vadd.f32 %v7880, %v7881
  %v7883 = vsel %vm7764, %v7053, 0.0
  %v7884 = vadd.f32 %v7882, %v7883
  %v7885 = vsel %vm7764, %v7054, 0.0
  %v7886 = vadd.f32 %v7884, %v7885
  %v7887 = vsel %vm7764, %v7055, 0.0
  %v7888 = vadd.f32 %v7886, %v7887
  %v7889 = vsel %vm7764, %v7056, 0.0
  %v7890 = vadd.f32 %v7888, %v7889
  %v7891 = vsel %vm7764, %v7057, 0.0
  %v7892 = vadd.f32 %v7890, %v7891
  %v7893 = vsel %vm7764, %v7058, 0.0
  %v7894 = vadd.f32 %v7892, %v7893
  %v7895 = vsel %vm7764, %v7059, 0.0
  %v7896 = vadd.f32 %v7894, %v7895
  %v7897 = vrot.slane %v7896, 4
  %v7898 = vadd.f32 %v7896, %v7897
  %v7899 = vrot.slane %v7898, 2
  %v7900 = vadd.f32 %v7898, %v7899
  %v7901 = vrot.slane %v7900, 1
  %v7902 = vadd.f32 %v7900, %v7901
  %v7903 = vsel %vm7764, %v7060, 0.0
  %v7904 = vsel %vm7764, %v7061, 0.0
  %v7905 = vadd.f32 %v7903, %v7904
  %v7906 = vsel %vm7764, %v7062, 0.0
  %v7907 = vadd.f32 %v7905, %v7906
  %v7908 = vsel %vm7764, %v7063, 0.0
  %v7909 = vadd.f32 %v7907, %v7908
  %v7910 = vsel %vm7764, %v7064, 0.0
  %v7911 = vadd.f32 %v7909, %v7910
  %v7912 = vsel %vm7764, %v7065, 0.0
  %v7913 = vadd.f32 %v7911, %v7912
  %v7914 = vsel %vm7764, %v7066, 0.0
  %v7915 = vadd.f32 %v7913, %v7914
  %v7916 = vsel %vm7764, %v7067, 0.0
  %v7917 = vadd.f32 %v7915, %v7916
  %v7918 = vsel %vm7764, %v7068, 0.0
  %v7919 = vadd.f32 %v7917, %v7918
  %v7920 = vsel %vm7764, %v7069, 0.0
  %v7921 = vadd.f32 %v7919, %v7920
  %v7922 = vsel %vm7764, %v7070, 0.0
  %v7923 = vadd.f32 %v7921, %v7922
  %v7924 = vsel %vm7764, %v7071, 0.0
  %v7925 = vadd.f32 %v7923, %v7924
  %v7926 = vsel %vm7764, %v7072, 0.0
  %v7927 = vadd.f32 %v7925, %v7926
  %v7928 = vsel %vm7764, %v7073, 0.0
  %v7929 = vadd.f32 %v7927, %v7928
  %v7930 = vsel %vm7764, %v7074, 0.0
  %v7931 = vadd.f32 %v7929, %v7930
  %v7932 = vsel %vm7764, %v7075, 0.0
  %v7933 = vadd.f32 %v7931, %v7932
  %v7934 = vsel %vm7764, %v7076, 0.0
  %v7935 = vadd.f32 %v7933, %v7934
  %v7936 = vsel %vm7764, %v7077, 0.0
  %v7937 = vadd.f32 %v7935, %v7936
  %v7938 = vsel %vm7764, %v7078, 0.0
  %v7939 = vadd.f32 %v7937, %v7938
  %v7940 = vsel %vm7764, %v7079, 0.0
  %v7941 = vadd.f32 %v7939, %v7940
  %v7942 = vsel %vm7764, %v7080, 0.0
  %v7943 = vadd.f32 %v7941, %v7942
  %v7944 = vsel %vm7764, %v7081, 0.0
  %v7945 = vadd.f32 %v7943, %v7944
  %v7946 = vsel %vm7764, %v7082, 0.0
  %v7947 = vadd.f32 %v7945, %v7946
  %v7948 = vsel %vm7764, %v7083, 0.0
  %v7949 = vadd.f32 %v7947, %v7948
  %v7950 = vsel %vm7764, %v7084, 0.0
  %v7951 = vadd.f32 %v7949, %v7950
  %v7952 = vsel %vm7764, %v7085, 0.0
  %v7953 = vadd.f32 %v7951, %v7952
  %v7954 = vsel %vm7764, %v7086, 0.0
  %v7955 = vadd.f32 %v7953, %v7954
  %v7956 = vsel %vm7764, %v7087, 0.0
  %v7957 = vadd.f32 %v7955, %v7956
  %v7958 = vsel %vm7764, %v7088, 0.0
  %v7959 = vadd.f32 %v7957, %v7958
  %v7960 = vsel %vm7764, %v7089, 0.0
  %v7961 = vadd.f32 %v7959, %v7960
  %v7962 = vsel %vm7764, %v7090, 0.0
  %v7963 = vadd.f32 %v7961, %v7962
  %v7964 = vsel %vm7764, %v7091, 0.0
  %v7965 = vadd.f32 %v7963, %v7964
  %v7966 = vrot.slane %v7965, 4
  %v7967 = vadd.f32 %v7965, %v7966
  %v7968 = vrot.slane %v7967, 2
  %v7969 = vadd.f32 %v7967, %v7968
  %v7970 = vrot.slane %v7969, 1
  %v7971 = vadd.f32 %v7969, %v7970
  %v7972 = vsel %vm7764, %v7092, 0.0
  %v7973 = vsel %vm7764, %v7093, 0.0
  %v7974 = vadd.f32 %v7972, %v7973
  %v7975 = vsel %vm7764, %v7094, 0.0
  %v7976 = vadd.f32 %v7974, %v7975
  %v7977 = vsel %vm7764, %v7095, 0.0
  %v7978 = vadd.f32 %v7976, %v7977
  %v7979 = vsel %vm7764, %v7096, 0.0
  %v7980 = vadd.f32 %v7978, %v7979
  %v7981 = vsel %vm7764, %v7097, 0.0
  %v7982 = vadd.f32 %v7980, %v7981
  %v7983 = vsel %vm7764, %v7098, 0.0
  %v7984 = vadd.f32 %v7982, %v7983
  %v7985 = vsel %vm7764, %v7099, 0.0
  %v7986 = vadd.f32 %v7984, %v7985
  %v7987 = vsel %vm7764, %v7100, 0.0
  %v7988 = vadd.f32 %v7986, %v7987
  %v7989 = vsel %vm7764, %v7101, 0.0
  %v7990 = vadd.f32 %v7988, %v7989
  %v7991 = vsel %vm7764, %v7102, 0.0
  %v7992 = vadd.f32 %v7990, %v7991
  %v7993 = vsel %vm7764, %v7103, 0.0
  %v7994 = vadd.f32 %v7992, %v7993
  %v7995 = vsel %vm7764, %v7104, 0.0
  %v7996 = vadd.f32 %v7994, %v7995
  %v7997 = vsel %vm7764, %v7105, 0.0
  %v7998 = vadd.f32 %v7996, %v7997
  %v7999 = vsel %vm7764, %v7106, 0.0
  %v8000 = vadd.f32 %v7998, %v7999
  %v8001 = vsel %vm7764, %v7107, 0.0
  %v8002 = vadd.f32 %v8000, %v8001
  %v8003 = vsel %vm7764, %v7108, 0.0
  %v8004 = vadd.f32 %v8002, %v8003
  %v8005 = vsel %vm7764, %v7109, 0.0
  %v8006 = vadd.f32 %v8004, %v8005
  %v8007 = vsel %vm7764, %v7110, 0.0
  %v8008 = vadd.f32 %v8006, %v8007
  %v8009 = vsel %vm7764, %v7111, 0.0
  %v8010 = vadd.f32 %v8008, %v8009
  %v8011 = vsel %vm7764, %v7112, 0.0
  %v8012 = vadd.f32 %v8010, %v8011
  %v8013 = vsel %vm7764, %v7113, 0.0
  %v8014 = vadd.f32 %v8012, %v8013
  %v8015 = vsel %vm7764, %v7114, 0.0
  %v8016 = vadd.f32 %v8014, %v8015
  %v8017 = vsel %vm7764, %v7115, 0.0
  %v8018 = vadd.f32 %v8016, %v8017
  %v8019 = vsel %vm7764, %v7116, 0.0
  %v8020 = vadd.f32 %v8018, %v8019
  %v8021 = vsel %vm7764, %v7117, 0.0
  %v8022 = vadd.f32 %v8020, %v8021
  %v8023 = vsel %vm7764, %v7118, 0.0
  %v8024 = vadd.f32 %v8022, %v8023
  %v8025 = vsel %vm7764, %v7119, 0.0
  %v8026 = vadd.f32 %v8024, %v8025
  %v8027 = vsel %vm7764, %v7120, 0.0
  %v8028 = vadd.f32 %v8026, %v8027
  %v8029 = vsel %vm7764, %v7121, 0.0
  %v8030 = vadd.f32 %v8028, %v8029
  %v8031 = vsel %vm7764, %v7122, 0.0
  %v8032 = vadd.f32 %v8030, %v8031
  %v8033 = vsel %vm7764, %v7123, 0.0
  %v8034 = vadd.f32 %v8032, %v8033
  %v8035 = vrot.slane %v8034, 4
  %v8036 = vadd.f32 %v8034, %v8035
  %v8037 = vrot.slane %v8036, 2
  %v8038 = vadd.f32 %v8036, %v8037
  %v8039 = vrot.slane %v8038, 1
  %v8040 = vadd.f32 %v8038, %v8039
  %v8041 = vsel %vm7764, %v7124, 0.0
  %v8042 = vsel %vm7764, %v7125, 0.0
  %v8043 = vadd.f32 %v8041, %v8042
  %v8044 = vsel %vm7764, %v7126, 0.0
  %v8045 = vadd.f32 %v8043, %v8044
  %v8046 = vsel %vm7764, %v7127, 0.0
  %v8047 = vadd.f32 %v8045, %v8046
  %v8048 = vsel %vm7764, %v7128, 0.0
  %v8049 = vadd.f32 %v8047, %v8048
  %v8050 = vsel %vm7764, %v7129, 0.0
  %v8051 = vadd.f32 %v8049, %v8050
  %v8052 = vsel %vm7764, %v7130, 0.0
  %v8053 = vadd.f32 %v8051, %v8052
  %v8054 = vsel %vm7764, %v7131, 0.0
  %v8055 = vadd.f32 %v8053, %v8054
  %v8056 = vsel %vm7764, %v7132, 0.0
  %v8057 = vadd.f32 %v8055, %v8056
  %v8058 = vsel %vm7764, %v7133, 0.0
  %v8059 = vadd.f32 %v8057, %v8058
  %v8060 = vsel %vm7764, %v7134, 0.0
  %v8061 = vadd.f32 %v8059, %v8060
  %v8062 = vsel %vm7764, %v7135, 0.0
  %v8063 = vadd.f32 %v8061, %v8062
  %v8064 = vsel %vm7764, %v7136, 0.0
  %v8065 = vadd.f32 %v8063, %v8064
  %v8066 = vsel %vm7764, %v7137, 0.0
  %v8067 = vadd.f32 %v8065, %v8066
  %v8068 = vsel %vm7764, %v7138, 0.0
  %v8069 = vadd.f32 %v8067, %v8068
  %v8070 = vsel %vm7764, %v7139, 0.0
  %v8071 = vadd.f32 %v8069, %v8070
  %v8072 = vsel %vm7764, %v7140, 0.0
  %v8073 = vadd.f32 %v8071, %v8072
  %v8074 = vsel %vm7764, %v7141, 0.0
  %v8075 = vadd.f32 %v8073, %v8074
  %v8076 = vsel %vm7764, %v7142, 0.0
  %v8077 = vadd.f32 %v8075, %v8076
  %v8078 = vsel %vm7764, %v7143, 0.0
  %v8079 = vadd.f32 %v8077, %v8078
  %v8080 = vsel %vm7764, %v7144, 0.0
  %v8081 = vadd.f32 %v8079, %v8080
  %v8082 = vsel %vm7764, %v7145, 0.0
  %v8083 = vadd.f32 %v8081, %v8082
  %v8084 = vsel %vm7764, %v7146, 0.0
  %v8085 = vadd.f32 %v8083, %v8084
  %v8086 = vsel %vm7764, %v7147, 0.0
  %v8087 = vadd.f32 %v8085, %v8086
  %v8088 = vsel %vm7764, %v7148, 0.0
  %v8089 = vadd.f32 %v8087, %v8088
  %v8090 = vsel %vm7764, %v7149, 0.0
  %v8091 = vadd.f32 %v8089, %v8090
  %v8092 = vsel %vm7764, %v7150, 0.0
  %v8093 = vadd.f32 %v8091, %v8092
  %v8094 = vsel %vm7764, %v7151, 0.0
  %v8095 = vadd.f32 %v8093, %v8094
  %v8096 = vsel %vm7764, %v7152, 0.0
  %v8097 = vadd.f32 %v8095, %v8096
  %v8098 = vsel %vm7764, %v7153, 0.0
  %v8099 = vadd.f32 %v8097, %v8098
  %v8100 = vsel %vm7764, %v7154, 0.0
  %v8101 = vadd.f32 %v8099, %v8100
  %v8102 = vsel %vm7764, %v7155, 0.0
  %v8103 = vadd.f32 %v8101, %v8102
  %v8104 = vrot.slane %v8103, 4
  %v8105 = vadd.f32 %v8103, %v8104
  %v8106 = vrot.slane %v8105, 2
  %v8107 = vadd.f32 %v8105, %v8106
  %v8108 = vrot.slane %v8107, 1
  %v8109 = vadd.f32 %v8107, %v8108
  %v8110 = vsel %vm7764, %v7156, 0.0
  %v8111 = vsel %vm7764, %v7157, 0.0
  %v8112 = vadd.f32 %v8110, %v8111
  %v8113 = vsel %vm7764, %v7158, 0.0
  %v8114 = vadd.f32 %v8112, %v8113
  %v8115 = vsel %vm7764, %v7159, 0.0
  %v8116 = vadd.f32 %v8114, %v8115
  %v8117 = vsel %vm7764, %v7160, 0.0
  %v8118 = vadd.f32 %v8116, %v8117
  %v8119 = vsel %vm7764, %v7161, 0.0
  %v8120 = vadd.f32 %v8118, %v8119
  %v8121 = vsel %vm7764, %v7162, 0.0
  %v8122 = vadd.f32 %v8120, %v8121
  %v8123 = vsel %vm7764, %v7163, 0.0
  %v8124 = vadd.f32 %v8122, %v8123
  %v8125 = vsel %vm7764, %v7164, 0.0
  %v8126 = vadd.f32 %v8124, %v8125
  %v8127 = vsel %vm7764, %v7165, 0.0
  %v8128 = vadd.f32 %v8126, %v8127
  %v8129 = vsel %vm7764, %v7166, 0.0
  %v8130 = vadd.f32 %v8128, %v8129
  %v8131 = vsel %vm7764, %v7167, 0.0
  %v8132 = vadd.f32 %v8130, %v8131
  %v8133 = vsel %vm7764, %v7168, 0.0
  %v8134 = vadd.f32 %v8132, %v8133
  %v8135 = vsel %vm7764, %v7169, 0.0
  %v8136 = vadd.f32 %v8134, %v8135
  %v8137 = vsel %vm7764, %v7170, 0.0
  %v8138 = vadd.f32 %v8136, %v8137
  %v8139 = vsel %vm7764, %v7171, 0.0
  %v8140 = vadd.f32 %v8138, %v8139
  %v8141 = vsel %vm7764, %v7172, 0.0
  %v8142 = vadd.f32 %v8140, %v8141
  %v8143 = vsel %vm7764, %v7173, 0.0
  %v8144 = vadd.f32 %v8142, %v8143
  %v8145 = vsel %vm7764, %v7174, 0.0
  %v8146 = vadd.f32 %v8144, %v8145
  %v8147 = vsel %vm7764, %v7175, 0.0
  %v8148 = vadd.f32 %v8146, %v8147
  %v8149 = vsel %vm7764, %v7176, 0.0
  %v8150 = vadd.f32 %v8148, %v8149
  %v8151 = vsel %vm7764, %v7177, 0.0
  %v8152 = vadd.f32 %v8150, %v8151
  %v8153 = vsel %vm7764, %v7178, 0.0
  %v8154 = vadd.f32 %v8152, %v8153
  %v8155 = vsel %vm7764, %v7179, 0.0
  %v8156 = vadd.f32 %v8154, %v8155
  %v8157 = vsel %vm7764, %v7180, 0.0
  %v8158 = vadd.f32 %v8156, %v8157
  %v8159 = vsel %vm7764, %v7181, 0.0
  %v8160 = vadd.f32 %v8158, %v8159
  %v8161 = vsel %vm7764, %v7182, 0.0
  %v8162 = vadd.f32 %v8160, %v8161
  %v8163 = vsel %vm7764, %v7183, 0.0
  %v8164 = vadd.f32 %v8162, %v8163
  %v8165 = vsel %vm7764, %v7184, 0.0
  %v8166 = vadd.f32 %v8164, %v8165
  %v8167 = vsel %vm7764, %v7185, 0.0
  %v8168 = vadd.f32 %v8166, %v8167
  %v8169 = vsel %vm7764, %v7186, 0.0
  %v8170 = vadd.f32 %v8168, %v8169
  %v8171 = vsel %vm7764, %v7187, 0.0
  %v8172 = vadd.f32 %v8170, %v8171
  %v8173 = vrot.slane %v8172, 4
  %v8174 = vadd.f32 %v8172, %v8173
  %v8175 = vrot.slane %v8174, 2
  %v8176 = vadd.f32 %v8174, %v8175
  %v8177 = vrot.slane %v8176, 1
  %v8178 = vadd.f32 %v8176, %v8177
  %v8179 = vsel %vm7764, %v7188, 0.0
  %v8180 = vsel %vm7764, %v7189, 0.0
  %v8181 = vadd.f32 %v8179, %v8180
  %v8182 = vsel %vm7764, %v7190, 0.0
  %v8183 = vadd.f32 %v8181, %v8182
  %v8184 = vsel %vm7764, %v7191, 0.0
  %v8185 = vadd.f32 %v8183, %v8184
  %v8186 = vsel %vm7764, %v7192, 0.0
  %v8187 = vadd.f32 %v8185, %v8186
  %v8188 = vsel %vm7764, %v7193, 0.0
  %v8189 = vadd.f32 %v8187, %v8188
  %v8190 = vsel %vm7764, %v7194, 0.0
  %v8191 = vadd.f32 %v8189, %v8190
  %v8192 = vsel %vm7764, %v7195, 0.0
  %v8193 = vadd.f32 %v8191, %v8192
  %v8194 = vsel %vm7764, %v7196, 0.0
  %v8195 = vadd.f32 %v8193, %v8194
  %v8196 = vsel %vm7764, %v7197, 0.0
  %v8197 = vadd.f32 %v8195, %v8196
  %v8198 = vsel %vm7764, %v7198, 0.0
  %v8199 = vadd.f32 %v8197, %v8198
  %v8200 = vsel %vm7764, %v7199, 0.0
  %v8201 = vadd.f32 %v8199, %v8200
  %v8202 = vsel %vm7764, %v7200, 0.0
  %v8203 = vadd.f32 %v8201, %v8202
  %v8204 = vsel %vm7764, %v7201, 0.0
  %v8205 = vadd.f32 %v8203, %v8204
  %v8206 = vsel %vm7764, %v7202, 0.0
  %v8207 = vadd.f32 %v8205, %v8206
  %v8208 = vsel %vm7764, %v7203, 0.0
  %v8209 = vadd.f32 %v8207, %v8208
  %v8210 = vsel %vm7764, %v7204, 0.0
  %v8211 = vadd.f32 %v8209, %v8210
  %v8212 = vsel %vm7764, %v7205, 0.0
  %v8213 = vadd.f32 %v8211, %v8212
  %v8214 = vsel %vm7764, %v7206, 0.0
  %v8215 = vadd.f32 %v8213, %v8214
  %v8216 = vsel %vm7764, %v7207, 0.0
  %v8217 = vadd.f32 %v8215, %v8216
  %v8218 = vsel %vm7764, %v7208, 0.0
  %v8219 = vadd.f32 %v8217, %v8218
  %v8220 = vsel %vm7764, %v7209, 0.0
  %v8221 = vadd.f32 %v8219, %v8220
  %v8222 = vsel %vm7764, %v7210, 0.0
  %v8223 = vadd.f32 %v8221, %v8222
  %v8224 = vsel %vm7764, %v7211, 0.0
  %v8225 = vadd.f32 %v8223, %v8224
  %v8226 = vsel %vm7764, %v7212, 0.0
  %v8227 = vadd.f32 %v8225, %v8226
  %v8228 = vsel %vm7764, %v7213, 0.0
  %v8229 = vadd.f32 %v8227, %v8228
  %v8230 = vsel %vm7764, %v7214, 0.0
  %v8231 = vadd.f32 %v8229, %v8230
  %v8232 = vsel %vm7764, %v7215, 0.0
  %v8233 = vadd.f32 %v8231, %v8232
  %v8234 = vsel %vm7764, %v7216, 0.0
  %v8235 = vadd.f32 %v8233, %v8234
  %v8236 = vsel %vm7764, %v7217, 0.0
  %v8237 = vadd.f32 %v8235, %v8236
  %v8238 = vsel %vm7764, %v7218, 0.0
  %v8239 = vadd.f32 %v8237, %v8238
  %v8240 = vsel %vm7764, %v7219, 0.0
  %v8241 = vadd.f32 %v8239, %v8240
  %v8242 = vrot.slane %v8241, 4
  %v8243 = vadd.f32 %v8241, %v8242
  %v8244 = vrot.slane %v8243, 2
  %v8245 = vadd.f32 %v8243, %v8244
  %v8246 = vrot.slane %v8245, 1
  %v8247 = vadd.f32 %v8245, %v8246
  %v8248 = vsel %vm7764, %v7220, 0.0
  %v8249 = vsel %vm7764, %v7221, 0.0
  %v8250 = vadd.f32 %v8248, %v8249
  %v8251 = vsel %vm7764, %v7222, 0.0
  %v8252 = vadd.f32 %v8250, %v8251
  %v8253 = vsel %vm7764, %v7223, 0.0
  %v8254 = vadd.f32 %v8252, %v8253
  %v8255 = vsel %vm7764, %v7224, 0.0
  %v8256 = vadd.f32 %v8254, %v8255
  %v8257 = vsel %vm7764, %v7225, 0.0
  %v8258 = vadd.f32 %v8256, %v8257
  %v8259 = vsel %vm7764, %v7226, 0.0
  %v8260 = vadd.f32 %v8258, %v8259
  %v8261 = vsel %vm7764, %v7227, 0.0
  %v8262 = vadd.f32 %v8260, %v8261
  %v8263 = vsel %vm7764, %v7228, 0.0
  %v8264 = vadd.f32 %v8262, %v8263
  %v8265 = vsel %vm7764, %v7229, 0.0
  %v8266 = vadd.f32 %v8264, %v8265
  %v8267 = vsel %vm7764, %v7230, 0.0
  %v8268 = vadd.f32 %v8266, %v8267
  %v8269 = vsel %vm7764, %v7231, 0.0
  %v8270 = vadd.f32 %v8268, %v8269
  %v8271 = vsel %vm7764, %v7232, 0.0
  %v8272 = vadd.f32 %v8270, %v8271
  %v8273 = vsel %vm7764, %v7233, 0.0
  %v8274 = vadd.f32 %v8272, %v8273
  %v8275 = vsel %vm7764, %v7234, 0.0
  %v8276 = vadd.f32 %v8274, %v8275
  %v8277 = vsel %vm7764, %v7235, 0.0
  %v8278 = vadd.f32 %v8276, %v8277
  %v8279 = vsel %vm7764, %v7236, 0.0
  %v8280 = vadd.f32 %v8278, %v8279
  %v8281 = vsel %vm7764, %v7237, 0.0
  %v8282 = vadd.f32 %v8280, %v8281
  %v8283 = vsel %vm7764, %v7238, 0.0
  %v8284 = vadd.f32 %v8282, %v8283
  %v8285 = vsel %vm7764, %v7239, 0.0
  %v8286 = vadd.f32 %v8284, %v8285
  %v8287 = vsel %vm7764, %v7240, 0.0
  %v8288 = vadd.f32 %v8286, %v8287
  %v8289 = vsel %vm7764, %v7241, 0.0
  %v8290 = vadd.f32 %v8288, %v8289
  %v8291 = vsel %vm7764, %v7242, 0.0
  %v8292 = vadd.f32 %v8290, %v8291
  %v8293 = vsel %vm7764, %v7243, 0.0
  %v8294 = vadd.f32 %v8292, %v8293
  %v8295 = vsel %vm7764, %v7244, 0.0
  %v8296 = vadd.f32 %v8294, %v8295
  %v8297 = vsel %vm7764, %v7245, 0.0
  %v8298 = vadd.f32 %v8296, %v8297
  %v8299 = vsel %vm7764, %v7246, 0.0
  %v8300 = vadd.f32 %v8298, %v8299
  %v8301 = vsel %vm7764, %v7247, 0.0
  %v8302 = vadd.f32 %v8300, %v8301
  %v8303 = vsel %vm7764, %v7248, 0.0
  %v8304 = vadd.f32 %v8302, %v8303
  %v8305 = vsel %vm7764, %v7249, 0.0
  %v8306 = vadd.f32 %v8304, %v8305
  %v8307 = vsel %vm7764, %v7250, 0.0
  %v8308 = vadd.f32 %v8306, %v8307
  %v8309 = vsel %vm7764, %v7251, 0.0
  %v8310 = vadd.f32 %v8308, %v8309
  %v8311 = vrot.slane %v8310, 4
  %v8312 = vadd.f32 %v8310, %v8311
  %v8313 = vrot.slane %v8312, 2
  %v8314 = vadd.f32 %v8312, %v8313
  %v8315 = vrot.slane %v8314, 1
  %v8316 = vadd.f32 %v8314, %v8315
  %v8317 = vsel %vm7764, %v7252, 0.0
  %v8318 = vsel %vm7764, %v7253, 0.0
  %v8319 = vadd.f32 %v8317, %v8318
  %v8320 = vsel %vm7764, %v7254, 0.0
  %v8321 = vadd.f32 %v8319, %v8320
  %v8322 = vsel %vm7764, %v7255, 0.0
  %v8323 = vadd.f32 %v8321, %v8322
  %v8324 = vsel %vm7764, %v7256, 0.0
  %v8325 = vadd.f32 %v8323, %v8324
  %v8326 = vsel %vm7764, %v7257, 0.0
  %v8327 = vadd.f32 %v8325, %v8326
  %v8328 = vsel %vm7764, %v7258, 0.0
  %v8329 = vadd.f32 %v8327, %v8328
  %v8330 = vsel %vm7764, %v7259, 0.0
  %v8331 = vadd.f32 %v8329, %v8330
  %v8332 = vsel %vm7764, %v7260, 0.0
  %v8333 = vadd.f32 %v8331, %v8332
  %v8334 = vsel %vm7764, %v7261, 0.0
  %v8335 = vadd.f32 %v8333, %v8334
  %v8336 = vsel %vm7764, %v7262, 0.0
  %v8337 = vadd.f32 %v8335, %v8336
  %v8338 = vsel %vm7764, %v7263, 0.0
  %v8339 = vadd.f32 %v8337, %v8338
  %v8340 = vsel %vm7764, %v7264, 0.0
  %v8341 = vadd.f32 %v8339, %v8340
  %v8342 = vsel %vm7764, %v7265, 0.0
  %v8343 = vadd.f32 %v8341, %v8342
  %v8344 = vsel %vm7764, %v7266, 0.0
  %v8345 = vadd.f32 %v8343, %v8344
  %v8346 = vsel %vm7764, %v7267, 0.0
  %v8347 = vadd.f32 %v8345, %v8346
  %v8348 = vsel %vm7764, %v7268, 0.0
  %v8349 = vadd.f32 %v8347, %v8348
  %v8350 = vsel %vm7764, %v7269, 0.0
  %v8351 = vadd.f32 %v8349, %v8350
  %v8352 = vsel %vm7764, %v7270, 0.0
  %v8353 = vadd.f32 %v8351, %v8352
  %v8354 = vsel %vm7764, %v7271, 0.0
  %v8355 = vadd.f32 %v8353, %v8354
  %v8356 = vsel %vm7764, %v7272, 0.0
  %v8357 = vadd.f32 %v8355, %v8356
  %v8358 = vsel %vm7764, %v7273, 0.0
  %v8359 = vadd.f32 %v8357, %v8358
  %v8360 = vsel %vm7764, %v7274, 0.0
  %v8361 = vadd.f32 %v8359, %v8360
  %v8362 = vsel %vm7764, %v7275, 0.0
  %v8363 = vadd.f32 %v8361, %v8362
  %v8364 = vsel %vm7764, %v7276, 0.0
  %v8365 = vadd.f32 %v8363, %v8364
  %v8366 = vsel %vm7764, %v7277, 0.0
  %v8367 = vadd.f32 %v8365, %v8366
  %v8368 = vsel %vm7764, %v7278, 0.0
  %v8369 = vadd.f32 %v8367, %v8368
  %v8370 = vsel %vm7764, %v7279, 0.0
  %v8371 = vadd.f32 %v8369, %v8370
  %v8372 = vsel %vm7764, %v7280, 0.0
  %v8373 = vadd.f32 %v8371, %v8372
  %v8374 = vsel %vm7764, %v7281, 0.0
  %v8375 = vadd.f32 %v8373, %v8374
  %v8376 = vsel %vm7764, %v7282, 0.0
  %v8377 = vadd.f32 %v8375, %v8376
  %v8378 = vsel %vm7764, %v7283, 0.0
  %v8379 = vadd.f32 %v8377, %v8378
  %v8380 = vrot.slane %v8379, 4
  %v8381 = vadd.f32 %v8379, %v8380
  %v8382 = vrot.slane %v8381, 2
  %v8383 = vadd.f32 %v8381, %v8382
  %v8384 = vrot.slane %v8383, 1
  %v8385 = vadd.f32 %v8383, %v8384
  %v8386 = vsel %vm7764, %v7284, 0.0
  %v8387 = vsel %vm7764, %v7285, 0.0
  %v8388 = vadd.f32 %v8386, %v8387
  %v8389 = vsel %vm7764, %v7286, 0.0
  %v8390 = vadd.f32 %v8388, %v8389
  %v8391 = vsel %vm7764, %v7287, 0.0
  %v8392 = vadd.f32 %v8390, %v8391
  %v8393 = vsel %vm7764, %v7288, 0.0
  %v8394 = vadd.f32 %v8392, %v8393
  %v8395 = vsel %vm7764, %v7289, 0.0
  %v8396 = vadd.f32 %v8394, %v8395
  %v8397 = vsel %vm7764, %v7290, 0.0
  %v8398 = vadd.f32 %v8396, %v8397
  %v8399 = vsel %vm7764, %v7291, 0.0
  %v8400 = vadd.f32 %v8398, %v8399
  %v8401 = vsel %vm7764, %v7292, 0.0
  %v8402 = vadd.f32 %v8400, %v8401
  %v8403 = vsel %vm7764, %v7293, 0.0
  %v8404 = vadd.f32 %v8402, %v8403
  %v8405 = vsel %vm7764, %v7294, 0.0
  %v8406 = vadd.f32 %v8404, %v8405
  %v8407 = vsel %vm7764, %v7295, 0.0
  %v8408 = vadd.f32 %v8406, %v8407
  %v8409 = vsel %vm7764, %v7296, 0.0
  %v8410 = vadd.f32 %v8408, %v8409
  %v8411 = vsel %vm7764, %v7297, 0.0
  %v8412 = vadd.f32 %v8410, %v8411
  %v8413 = vsel %vm7764, %v7298, 0.0
  %v8414 = vadd.f32 %v8412, %v8413
  %v8415 = vsel %vm7764, %v7299, 0.0
  %v8416 = vadd.f32 %v8414, %v8415
  %v8417 = vsel %vm7764, %v7300, 0.0
  %v8418 = vadd.f32 %v8416, %v8417
  %v8419 = vsel %vm7764, %v7301, 0.0
  %v8420 = vadd.f32 %v8418, %v8419
  %v8421 = vsel %vm7764, %v7302, 0.0
  %v8422 = vadd.f32 %v8420, %v8421
  %v8423 = vsel %vm7764, %v7303, 0.0
  %v8424 = vadd.f32 %v8422, %v8423
  %v8425 = vsel %vm7764, %v7304, 0.0
  %v8426 = vadd.f32 %v8424, %v8425
  %v8427 = vsel %vm7764, %v7305, 0.0
  %v8428 = vadd.f32 %v8426, %v8427
  %v8429 = vsel %vm7764, %v7306, 0.0
  %v8430 = vadd.f32 %v8428, %v8429
  %v8431 = vsel %vm7764, %v7307, 0.0
  %v8432 = vadd.f32 %v8430, %v8431
  %v8433 = vsel %vm7764, %v7308, 0.0
  %v8434 = vadd.f32 %v8432, %v8433
  %v8435 = vsel %vm7764, %v7309, 0.0
  %v8436 = vadd.f32 %v8434, %v8435
  %v8437 = vsel %vm7764, %v7310, 0.0
  %v8438 = vadd.f32 %v8436, %v8437
  %v8439 = vsel %vm7764, %v7311, 0.0
  %v8440 = vadd.f32 %v8438, %v8439
  %v8441 = vsel %vm7764, %v7312, 0.0
  %v8442 = vadd.f32 %v8440, %v8441
  %v8443 = vsel %vm7764, %v7313, 0.0
  %v8444 = vadd.f32 %v8442, %v8443
  %v8445 = vsel %vm7764, %v7314, 0.0
  %v8446 = vadd.f32 %v8444, %v8445
  %v8447 = vsel %vm7764, %v7315, 0.0
  %v8448 = vadd.f32 %v8446, %v8447
  %v8449 = vrot.slane %v8448, 4
  %v8450 = vadd.f32 %v8448, %v8449
  %v8451 = vrot.slane %v8450, 2
  %v8452 = vadd.f32 %v8450, %v8451
  %v8453 = vrot.slane %v8452, 1
  %v8454 = vadd.f32 %v8452, %v8453
  %v8455 = vsel %vm7764, %v7316, 0.0
  %v8456 = vsel %vm7764, %v7317, 0.0
  %v8457 = vadd.f32 %v8455, %v8456
  %v8458 = vsel %vm7764, %v7318, 0.0
  %v8459 = vadd.f32 %v8457, %v8458
  %v8460 = vsel %vm7764, %v7319, 0.0
  %v8461 = vadd.f32 %v8459, %v8460
  %v8462 = vsel %vm7764, %v7320, 0.0
  %v8463 = vadd.f32 %v8461, %v8462
  %v8464 = vsel %vm7764, %v7321, 0.0
  %v8465 = vadd.f32 %v8463, %v8464
  %v8466 = vsel %vm7764, %v7322, 0.0
  %v8467 = vadd.f32 %v8465, %v8466
  %v8468 = vsel %vm7764, %v7323, 0.0
  %v8469 = vadd.f32 %v8467, %v8468
  %v8470 = vsel %vm7764, %v7324, 0.0
  %v8471 = vadd.f32 %v8469, %v8470
  %v8472 = vsel %vm7764, %v7325, 0.0
  %v8473 = vadd.f32 %v8471, %v8472
  %v8474 = vsel %vm7764, %v7326, 0.0
  %v8475 = vadd.f32 %v8473, %v8474
  %v8476 = vsel %vm7764, %v7327, 0.0
  %v8477 = vadd.f32 %v8475, %v8476
  %v8478 = vsel %vm7764, %v7328, 0.0
  %v8479 = vadd.f32 %v8477, %v8478
  %v8480 = vsel %vm7764, %v7329, 0.0
  %v8481 = vadd.f32 %v8479, %v8480
  %v8482 = vsel %vm7764, %v7330, 0.0
  %v8483 = vadd.f32 %v8481, %v8482
  %v8484 = vsel %vm7764, %v7331, 0.0
  %v8485 = vadd.f32 %v8483, %v8484
  %v8486 = vsel %vm7764, %v7332, 0.0
  %v8487 = vadd.f32 %v8485, %v8486
  %v8488 = vsel %vm7764, %v7333, 0.0
  %v8489 = vadd.f32 %v8487, %v8488
  %v8490 = vsel %vm7764, %v7334, 0.0
  %v8491 = vadd.f32 %v8489, %v8490
  %v8492 = vsel %vm7764, %v7335, 0.0
  %v8493 = vadd.f32 %v8491, %v8492
  %v8494 = vsel %vm7764, %v7336, 0.0
  %v8495 = vadd.f32 %v8493, %v8494
  %v8496 = vsel %vm7764, %v7337, 0.0
  %v8497 = vadd.f32 %v8495, %v8496
  %v8498 = vsel %vm7764, %v7338, 0.0
  %v8499 = vadd.f32 %v8497, %v8498
  %v8500 = vsel %vm7764, %v7339, 0.0
  %v8501 = vadd.f32 %v8499, %v8500
  %v8502 = vsel %vm7764, %v7340, 0.0
  %v8503 = vadd.f32 %v8501, %v8502
  %v8504 = vsel %vm7764, %v7341, 0.0
  %v8505 = vadd.f32 %v8503, %v8504
  %v8506 = vsel %vm7764, %v7342, 0.0
  %v8507 = vadd.f32 %v8505, %v8506
  %v8508 = vsel %vm7764, %v7343, 0.0
  %v8509 = vadd.f32 %v8507, %v8508
  %v8510 = vsel %vm7764, %v7344, 0.0
  %v8511 = vadd.f32 %v8509, %v8510
  %v8512 = vsel %vm7764, %v7345, 0.0
  %v8513 = vadd.f32 %v8511, %v8512
  %v8514 = vsel %vm7764, %v7346, 0.0
  %v8515 = vadd.f32 %v8513, %v8514
  %v8516 = vsel %vm7764, %v7347, 0.0
  %v8517 = vadd.f32 %v8515, %v8516
  %v8518 = vrot.slane %v8517, 4
  %v8519 = vadd.f32 %v8517, %v8518
  %v8520 = vrot.slane %v8519, 2
  %v8521 = vadd.f32 %v8519, %v8520
  %v8522 = vrot.slane %v8521, 1
  %v8523 = vadd.f32 %v8521, %v8522
  %v8524 = vsel %vm7764, %v7348, 0.0
  %v8525 = vsel %vm7764, %v7349, 0.0
  %v8526 = vadd.f32 %v8524, %v8525
  %v8527 = vsel %vm7764, %v7350, 0.0
  %v8528 = vadd.f32 %v8526, %v8527
  %v8529 = vsel %vm7764, %v7351, 0.0
  %v8530 = vadd.f32 %v8528, %v8529
  %v8531 = vsel %vm7764, %v7352, 0.0
  %v8532 = vadd.f32 %v8530, %v8531
  %v8533 = vsel %vm7764, %v7353, 0.0
  %v8534 = vadd.f32 %v8532, %v8533
  %v8535 = vsel %vm7764, %v7354, 0.0
  %v8536 = vadd.f32 %v8534, %v8535
  %v8537 = vsel %vm7764, %v7355, 0.0
  %v8538 = vadd.f32 %v8536, %v8537
  %v8539 = vsel %vm7764, %v7356, 0.0
  %v8540 = vadd.f32 %v8538, %v8539
  %v8541 = vsel %vm7764, %v7357, 0.0
  %v8542 = vadd.f32 %v8540, %v8541
  %v8543 = vsel %vm7764, %v7358, 0.0
  %v8544 = vadd.f32 %v8542, %v8543
  %v8545 = vsel %vm7764, %v7359, 0.0
  %v8546 = vadd.f32 %v8544, %v8545
  %v8547 = vsel %vm7764, %v7360, 0.0
  %v8548 = vadd.f32 %v8546, %v8547
  %v8549 = vsel %vm7764, %v7361, 0.0
  %v8550 = vadd.f32 %v8548, %v8549
  %v8551 = vsel %vm7764, %v7362, 0.0
  %v8552 = vadd.f32 %v8550, %v8551
  %v8553 = vsel %vm7764, %v7363, 0.0
  %v8554 = vadd.f32 %v8552, %v8553
  %v8555 = vsel %vm7764, %v7364, 0.0
  %v8556 = vadd.f32 %v8554, %v8555
  %v8557 = vsel %vm7764, %v7365, 0.0
  %v8558 = vadd.f32 %v8556, %v8557
  %v8559 = vsel %vm7764, %v7366, 0.0
  %v8560 = vadd.f32 %v8558, %v8559
  %v8561 = vsel %vm7764, %v7367, 0.0
  %v8562 = vadd.f32 %v8560, %v8561
  %v8563 = vsel %vm7764, %v7368, 0.0
  %v8564 = vadd.f32 %v8562, %v8563
  %v8565 = vsel %vm7764, %v7369, 0.0
  %v8566 = vadd.f32 %v8564, %v8565
  %v8567 = vsel %vm7764, %v7370, 0.0
  %v8568 = vadd.f32 %v8566, %v8567
  %v8569 = vsel %vm7764, %v7371, 0.0
  %v8570 = vadd.f32 %v8568, %v8569
  %v8571 = vsel %vm7764, %v7372, 0.0
  %v8572 = vadd.f32 %v8570, %v8571
  %v8573 = vsel %vm7764, %v7373, 0.0
  %v8574 = vadd.f32 %v8572, %v8573
  %v8575 = vsel %vm7764, %v7374, 0.0
  %v8576 = vadd.f32 %v8574, %v8575
  %v8577 = vsel %vm7764, %v7375, 0.0
  %v8578 = vadd.f32 %v8576, %v8577
  %v8579 = vsel %vm7764, %v7376, 0.0
  %v8580 = vadd.f32 %v8578, %v8579
  %v8581 = vsel %vm7764, %v7377, 0.0
  %v8582 = vadd.f32 %v8580, %v8581
  %v8583 = vsel %vm7764, %v7378, 0.0
  %v8584 = vadd.f32 %v8582, %v8583
  %v8585 = vsel %vm7764, %v7379, 0.0
  %v8586 = vadd.f32 %v8584, %v8585
  %v8587 = vrot.slane %v8586, 4
  %v8588 = vadd.f32 %v8586, %v8587
  %v8589 = vrot.slane %v8588, 2
  %v8590 = vadd.f32 %v8588, %v8589
  %v8591 = vrot.slane %v8590, 1
  %v8592 = vadd.f32 %v8590, %v8591
  %v8593 = vsel %vm7764, %v7380, 0.0
  %v8594 = vsel %vm7764, %v7381, 0.0
  %v8595 = vadd.f32 %v8593, %v8594
  %v8596 = vsel %vm7764, %v7382, 0.0
  %v8597 = vadd.f32 %v8595, %v8596
  %v8598 = vsel %vm7764, %v7383, 0.0
  %v8599 = vadd.f32 %v8597, %v8598
  %v8600 = vsel %vm7764, %v7384, 0.0
  %v8601 = vadd.f32 %v8599, %v8600
  %v8602 = vsel %vm7764, %v7385, 0.0
  %v8603 = vadd.f32 %v8601, %v8602
  %v8604 = vsel %vm7764, %v7386, 0.0
  %v8605 = vadd.f32 %v8603, %v8604
  %v8606 = vsel %vm7764, %v7387, 0.0
  %v8607 = vadd.f32 %v8605, %v8606
  %v8608 = vsel %vm7764, %v7388, 0.0
  %v8609 = vadd.f32 %v8607, %v8608
  %v8610 = vsel %vm7764, %v7389, 0.0
  %v8611 = vadd.f32 %v8609, %v8610
  %v8612 = vsel %vm7764, %v7390, 0.0
  %v8613 = vadd.f32 %v8611, %v8612
  %v8614 = vsel %vm7764, %v7391, 0.0
  %v8615 = vadd.f32 %v8613, %v8614
  %v8616 = vsel %vm7764, %v7392, 0.0
  %v8617 = vadd.f32 %v8615, %v8616
  %v8618 = vsel %vm7764, %v7393, 0.0
  %v8619 = vadd.f32 %v8617, %v8618
  %v8620 = vsel %vm7764, %v7394, 0.0
  %v8621 = vadd.f32 %v8619, %v8620
  %v8622 = vsel %vm7764, %v7395, 0.0
  %v8623 = vadd.f32 %v8621, %v8622
  %v8624 = vsel %vm7764, %v7396, 0.0
  %v8625 = vadd.f32 %v8623, %v8624
  %v8626 = vsel %vm7764, %v7397, 0.0
  %v8627 = vadd.f32 %v8625, %v8626
  %v8628 = vsel %vm7764, %v7398, 0.0
  %v8629 = vadd.f32 %v8627, %v8628
  %v8630 = vsel %vm7764, %v7399, 0.0
  %v8631 = vadd.f32 %v8629, %v8630
  %v8632 = vsel %vm7764, %v7400, 0.0
  %v8633 = vadd.f32 %v8631, %v8632
  %v8634 = vsel %vm7764, %v7401, 0.0
  %v8635 = vadd.f32 %v8633, %v8634
  %v8636 = vsel %vm7764, %v7402, 0.0
  %v8637 = vadd.f32 %v8635, %v8636
  %v8638 = vsel %vm7764, %v7403, 0.0
  %v8639 = vadd.f32 %v8637, %v8638
  %v8640 = vsel %vm7764, %v7404, 0.0
  %v8641 = vadd.f32 %v8639, %v8640
  %v8642 = vsel %vm7764, %v7405, 0.0
  %v8643 = vadd.f32 %v8641, %v8642
  %v8644 = vsel %vm7764, %v7406, 0.0
  %v8645 = vadd.f32 %v8643, %v8644
  %v8646 = vsel %vm7764, %v7407, 0.0
  %v8647 = vadd.f32 %v8645, %v8646
  %v8648 = vsel %vm7764, %v7408, 0.0
  %v8649 = vadd.f32 %v8647, %v8648
  %v8650 = vsel %vm7764, %v7409, 0.0
  %v8651 = vadd.f32 %v8649, %v8650
  %v8652 = vsel %vm7764, %v7410, 0.0
  %v8653 = vadd.f32 %v8651, %v8652
  %v8654 = vsel %vm7764, %v7411, 0.0
  %v8655 = vadd.f32 %v8653, %v8654
  %v8656 = vrot.slane %v8655, 4
  %v8657 = vadd.f32 %v8655, %v8656
  %v8658 = vrot.slane %v8657, 2
  %v8659 = vadd.f32 %v8657, %v8658
  %v8660 = vrot.slane %v8659, 1
  %v8661 = vadd.f32 %v8659, %v8660
  %v8662 = vsel %vm7764, %v7412, 0.0
  %v8663 = vsel %vm7764, %v7413, 0.0
  %v8664 = vadd.f32 %v8662, %v8663
  %v8665 = vsel %vm7764, %v7414, 0.0
  %v8666 = vadd.f32 %v8664, %v8665
  %v8667 = vsel %vm7764, %v7415, 0.0
  %v8668 = vadd.f32 %v8666, %v8667
  %v8669 = vsel %vm7764, %v7416, 0.0
  %v8670 = vadd.f32 %v8668, %v8669
  %v8671 = vsel %vm7764, %v7417, 0.0
  %v8672 = vadd.f32 %v8670, %v8671
  %v8673 = vsel %vm7764, %v7418, 0.0
  %v8674 = vadd.f32 %v8672, %v8673
  %v8675 = vsel %vm7764, %v7419, 0.0
  %v8676 = vadd.f32 %v8674, %v8675
  %v8677 = vsel %vm7764, %v7420, 0.0
  %v8678 = vadd.f32 %v8676, %v8677
  %v8679 = vsel %vm7764, %v7421, 0.0
  %v8680 = vadd.f32 %v8678, %v8679
  %v8681 = vsel %vm7764, %v7422, 0.0
  %v8682 = vadd.f32 %v8680, %v8681
  %v8683 = vsel %vm7764, %v7423, 0.0
  %v8684 = vadd.f32 %v8682, %v8683
  %v8685 = vsel %vm7764, %v7424, 0.0
  %v8686 = vadd.f32 %v8684, %v8685
  %v8687 = vsel %vm7764, %v7425, 0.0
  %v8688 = vadd.f32 %v8686, %v8687
  %v8689 = vsel %vm7764, %v7426, 0.0
  %v8690 = vadd.f32 %v8688, %v8689
  %v8691 = vsel %vm7764, %v7427, 0.0
  %v8692 = vadd.f32 %v8690, %v8691
  %v8693 = vsel %vm7764, %v7428, 0.0
  %v8694 = vadd.f32 %v8692, %v8693
  %v8695 = vsel %vm7764, %v7429, 0.0
  %v8696 = vadd.f32 %v8694, %v8695
  %v8697 = vsel %vm7764, %v7430, 0.0
  %v8698 = vadd.f32 %v8696, %v8697
  %v8699 = vsel %vm7764, %v7431, 0.0
  %v8700 = vadd.f32 %v8698, %v8699
  %v8701 = vsel %vm7764, %v7432, 0.0
  %v8702 = vadd.f32 %v8700, %v8701
  %v8703 = vsel %vm7764, %v7433, 0.0
  %v8704 = vadd.f32 %v8702, %v8703
  %v8705 = vsel %vm7764, %v7434, 0.0
  %v8706 = vadd.f32 %v8704, %v8705
  %v8707 = vsel %vm7764, %v7435, 0.0
  %v8708 = vadd.f32 %v8706, %v8707
  %v8709 = vsel %vm7764, %v7436, 0.0
  %v8710 = vadd.f32 %v8708, %v8709
  %v8711 = vsel %vm7764, %v7437, 0.0
  %v8712 = vadd.f32 %v8710, %v8711
  %v8713 = vsel %vm7764, %v7438, 0.0
  %v8714 = vadd.f32 %v8712, %v8713
  %v8715 = vsel %vm7764, %v7439, 0.0
  %v8716 = vadd.f32 %v8714, %v8715
  %v8717 = vsel %vm7764, %v7440, 0.0
  %v8718 = vadd.f32 %v8716, %v8717
  %v8719 = vsel %vm7764, %v7441, 0.0
  %v8720 = vadd.f32 %v8718, %v8719
  %v8721 = vsel %vm7764, %v7442, 0.0
  %v8722 = vadd.f32 %v8720, %v8721
  %v8723 = vsel %vm7764, %v7443, 0.0
  %v8724 = vadd.f32 %v8722, %v8723
  %v8725 = vrot.slane %v8724, 4
  %v8726 = vadd.f32 %v8724, %v8725
  %v8727 = vrot.slane %v8726, 2
  %v8728 = vadd.f32 %v8726, %v8727
  %v8729 = vrot.slane %v8728, 1
  %v8730 = vadd.f32 %v8728, %v8729
  %v8731 = vsel %vm7764, %v7444, 0.0
  %v8732 = vsel %vm7764, %v7445, 0.0
  %v8733 = vadd.f32 %v8731, %v8732
  %v8734 = vsel %vm7764, %v7446, 0.0
  %v8735 = vadd.f32 %v8733, %v8734
  %v8736 = vsel %vm7764, %v7447, 0.0
  %v8737 = vadd.f32 %v8735, %v8736
  %v8738 = vsel %vm7764, %v7448, 0.0
  %v8739 = vadd.f32 %v8737, %v8738
  %v8740 = vsel %vm7764, %v7449, 0.0
  %v8741 = vadd.f32 %v8739, %v8740
  %v8742 = vsel %vm7764, %v7450, 0.0
  %v8743 = vadd.f32 %v8741, %v8742
  %v8744 = vsel %vm7764, %v7451, 0.0
  %v8745 = vadd.f32 %v8743, %v8744
  %v8746 = vsel %vm7764, %v7452, 0.0
  %v8747 = vadd.f32 %v8745, %v8746
  %v8748 = vsel %vm7764, %v7453, 0.0
  %v8749 = vadd.f32 %v8747, %v8748
  %v8750 = vsel %vm7764, %v7454, 0.0
  %v8751 = vadd.f32 %v8749, %v8750
  %v8752 = vsel %vm7764, %v7455, 0.0
  %v8753 = vadd.f32 %v8751, %v8752
  %v8754 = vsel %vm7764, %v7456, 0.0
  %v8755 = vadd.f32 %v8753, %v8754
  %v8756 = vsel %vm7764, %v7457, 0.0
  %v8757 = vadd.f32 %v8755, %v8756
  %v8758 = vsel %vm7764, %v7458, 0.0
  %v8759 = vadd.f32 %v8757, %v8758
  %v8760 = vsel %vm7764, %v7459, 0.0
  %v8761 = vadd.f32 %v8759, %v8760
  %v8762 = vsel %vm7764, %v7460, 0.0
  %v8763 = vadd.f32 %v8761, %v8762
  %v8764 = vsel %vm7764, %v7461, 0.0
  %v8765 = vadd.f32 %v8763, %v8764
  %v8766 = vsel %vm7764, %v7462, 0.0
  %v8767 = vadd.f32 %v8765, %v8766
  %v8768 = vsel %vm7764, %v7463, 0.0
  %v8769 = vadd.f32 %v8767, %v8768
  %v8770 = vsel %vm7764, %v7464, 0.0
  %v8771 = vadd.f32 %v8769, %v8770
  %v8772 = vsel %vm7764, %v7465, 0.0
  %v8773 = vadd.f32 %v8771, %v8772
  %v8774 = vsel %vm7764, %v7466, 0.0
  %v8775 = vadd.f32 %v8773, %v8774
  %v8776 = vsel %vm7764, %v7467, 0.0
  %v8777 = vadd.f32 %v8775, %v8776
  %v8778 = vsel %vm7764, %v7468, 0.0
  %v8779 = vadd.f32 %v8777, %v8778
  %v8780 = vsel %vm7764, %v7469, 0.0
  %v8781 = vadd.f32 %v8779, %v8780
  %v8782 = vsel %vm7764, %v7470, 0.0
  %v8783 = vadd.f32 %v8781, %v8782
  %v8784 = vsel %vm7764, %v7471, 0.0
  %v8785 = vadd.f32 %v8783, %v8784
  %v8786 = vsel %vm7764, %v7472, 0.0
  %v8787 = vadd.f32 %v8785, %v8786
  %v8788 = vsel %vm7764, %v7473, 0.0
  %v8789 = vadd.f32 %v8787, %v8788
  %v8790 = vsel %vm7764, %v7474, 0.0
  %v8791 = vadd.f32 %v8789, %v8790
  %v8792 = vsel %vm7764, %v7475, 0.0
  %v8793 = vadd.f32 %v8791, %v8792
  %v8794 = vrot.slane %v8793, 4
  %v8795 = vadd.f32 %v8793, %v8794
  %v8796 = vrot.slane %v8795, 2
  %v8797 = vadd.f32 %v8795, %v8796
  %v8798 = vrot.slane %v8797, 1
  %v8799 = vadd.f32 %v8797, %v8798
  %v8800 = vsel %vm7764, %v7476, 0.0
  %v8801 = vsel %vm7764, %v7477, 0.0
  %v8802 = vadd.f32 %v8800, %v8801
  %v8803 = vsel %vm7764, %v7478, 0.0
  %v8804 = vadd.f32 %v8802, %v8803
  %v8805 = vsel %vm7764, %v7479, 0.0
  %v8806 = vadd.f32 %v8804, %v8805
  %v8807 = vsel %vm7764, %v7480, 0.0
  %v8808 = vadd.f32 %v8806, %v8807
  %v8809 = vsel %vm7764, %v7481, 0.0
  %v8810 = vadd.f32 %v8808, %v8809
  %v8811 = vsel %vm7764, %v7482, 0.0
  %v8812 = vadd.f32 %v8810, %v8811
  %v8813 = vsel %vm7764, %v7483, 0.0
  %v8814 = vadd.f32 %v8812, %v8813
  %v8815 = vsel %vm7764, %v7484, 0.0
  %v8816 = vadd.f32 %v8814, %v8815
  %v8817 = vsel %vm7764, %v7485, 0.0
  %v8818 = vadd.f32 %v8816, %v8817
  %v8819 = vsel %vm7764, %v7486, 0.0
  %v8820 = vadd.f32 %v8818, %v8819
  %v8821 = vsel %vm7764, %v7487, 0.0
  %v8822 = vadd.f32 %v8820, %v8821
  %v8823 = vsel %vm7764, %v7488, 0.0
  %v8824 = vadd.f32 %v8822, %v8823
  %v8825 = vsel %vm7764, %v7489, 0.0
  %v8826 = vadd.f32 %v8824, %v8825
  %v8827 = vsel %vm7764, %v7490, 0.0
  %v8828 = vadd.f32 %v8826, %v8827
  %v8829 = vsel %vm7764, %v7491, 0.0
  %v8830 = vadd.f32 %v8828, %v8829
  %v8831 = vsel %vm7764, %v7492, 0.0
  %v8832 = vadd.f32 %v8830, %v8831
  %v8833 = vsel %vm7764, %v7493, 0.0
  %v8834 = vadd.f32 %v8832, %v8833
  %v8835 = vsel %vm7764, %v7494, 0.0
  %v8836 = vadd.f32 %v8834, %v8835
  %v8837 = vsel %vm7764, %v7495, 0.0
  %v8838 = vadd.f32 %v8836, %v8837
  %v8839 = vsel %vm7764, %v7496, 0.0
  %v8840 = vadd.f32 %v8838, %v8839
  %v8841 = vsel %vm7764, %v7497, 0.0
  %v8842 = vadd.f32 %v8840, %v8841
  %v8843 = vsel %vm7764, %v7498, 0.0
  %v8844 = vadd.f32 %v8842, %v8843
  %v8845 = vsel %vm7764, %v7499, 0.0
  %v8846 = vadd.f32 %v8844, %v8845
  %v8847 = vsel %vm7764, %v7500, 0.0
  %v8848 = vadd.f32 %v8846, %v8847
  %v8849 = vsel %vm7764, %v7501, 0.0
  %v8850 = vadd.f32 %v8848, %v8849
  %v8851 = vsel %vm7764, %v7502, 0.0
  %v8852 = vadd.f32 %v8850, %v8851
  %v8853 = vsel %vm7764, %v7503, 0.0
  %v8854 = vadd.f32 %v8852, %v8853
  %v8855 = vsel %vm7764, %v7504, 0.0
  %v8856 = vadd.f32 %v8854, %v8855
  %v8857 = vsel %vm7764, %v7505, 0.0
  %v8858 = vadd.f32 %v8856, %v8857
  %v8859 = vsel %vm7764, %v7506, 0.0
  %v8860 = vadd.f32 %v8858, %v8859
  %v8861 = vsel %vm7764, %v7507, 0.0
  %v8862 = vadd.f32 %v8860, %v8861
  %v8863 = vrot.slane %v8862, 4
  %v8864 = vadd.f32 %v8862, %v8863
  %v8865 = vrot.slane %v8864, 2
  %v8866 = vadd.f32 %v8864, %v8865
  %v8867 = vrot.slane %v8866, 1
  %v8868 = vadd.f32 %v8866, %v8867
  %v8869 = vsel %vm7764, %v7508, 0.0
  %v8870 = vsel %vm7764, %v7509, 0.0
  %v8871 = vadd.f32 %v8869, %v8870
  %v8872 = vsel %vm7764, %v7510, 0.0
  %v8873 = vadd.f32 %v8871, %v8872
  %v8874 = vsel %vm7764, %v7511, 0.0
  %v8875 = vadd.f32 %v8873, %v8874
  %v8876 = vsel %vm7764, %v7512, 0.0
  %v8877 = vadd.f32 %v8875, %v8876
  %v8878 = vsel %vm7764, %v7513, 0.0
  %v8879 = vadd.f32 %v8877, %v8878
  %v8880 = vsel %vm7764, %v7514, 0.0
  %v8881 = vadd.f32 %v8879, %v8880
  %v8882 = vsel %vm7764, %v7515, 0.0
  %v8883 = vadd.f32 %v8881, %v8882
  %v8884 = vsel %vm7764, %v7516, 0.0
  %v8885 = vadd.f32 %v8883, %v8884
  %v8886 = vsel %vm7764, %v7517, 0.0
  %v8887 = vadd.f32 %v8885, %v8886
  %v8888 = vsel %vm7764, %v7518, 0.0
  %v8889 = vadd.f32 %v8887, %v8888
  %v8890 = vsel %vm7764, %v7519, 0.0
  %v8891 = vadd.f32 %v8889, %v8890
  %v8892 = vsel %vm7764, %v7520, 0.0
  %v8893 = vadd.f32 %v8891, %v8892
  %v8894 = vsel %vm7764, %v7521, 0.0
  %v8895 = vadd.f32 %v8893, %v8894
  %v8896 = vsel %vm7764, %v7522, 0.0
  %v8897 = vadd.f32 %v8895, %v8896
  %v8898 = vsel %vm7764, %v7523, 0.0
  %v8899 = vadd.f32 %v8897, %v8898
  %v8900 = vsel %vm7764, %v7524, 0.0
  %v8901 = vadd.f32 %v8899, %v8900
  %v8902 = vsel %vm7764, %v7525, 0.0
  %v8903 = vadd.f32 %v8901, %v8902
  %v8904 = vsel %vm7764, %v7526, 0.0
  %v8905 = vadd.f32 %v8903, %v8904
  %v8906 = vsel %vm7764, %v7527, 0.0
  %v8907 = vadd.f32 %v8905, %v8906
  %v8908 = vsel %vm7764, %v7528, 0.0
  %v8909 = vadd.f32 %v8907, %v8908
  %v8910 = vsel %vm7764, %v7529, 0.0
  %v8911 = vadd.f32 %v8909, %v8910
  %v8912 = vsel %vm7764, %v7530, 0.0
  %v8913 = vadd.f32 %v8911, %v8912
  %v8914 = vsel %vm7764, %v7531, 0.0
  %v8915 = vadd.f32 %v8913, %v8914
  %v8916 = vsel %vm7764, %v7532, 0.0
  %v8917 = vadd.f32 %v8915, %v8916
  %v8918 = vsel %vm7764, %v7533, 0.0
  %v8919 = vadd.f32 %v8917, %v8918
  %v8920 = vsel %vm7764, %v7534, 0.0
  %v8921 = vadd.f32 %v8919, %v8920
  %v8922 = vsel %vm7764, %v7535, 0.0
  %v8923 = vadd.f32 %v8921, %v8922
  %v8924 = vsel %vm7764, %v7536, 0.0
  %v8925 = vadd.f32 %v8923, %v8924
  %v8926 = vsel %vm7764, %v7537, 0.0
  %v8927 = vadd.f32 %v8925, %v8926
  %v8928 = vsel %vm7764, %v7538, 0.0
  %v8929 = vadd.f32 %v8927, %v8928
  %v8930 = vsel %vm7764, %v7539, 0.0
  %v8931 = vadd.f32 %v8929, %v8930
  %v8932 = vrot.slane %v8931, 4
  %v8933 = vadd.f32 %v8931, %v8932
  %v8934 = vrot.slane %v8933, 2
  %v8935 = vadd.f32 %v8933, %v8934
  %v8936 = vrot.slane %v8935, 1
  %v8937 = vadd.f32 %v8935, %v8936
  %v8938 = vsel %vm7764, %v7540, 0.0
  %v8939 = vsel %vm7764, %v7541, 0.0
  %v8940 = vadd.f32 %v8938, %v8939
  %v8941 = vsel %vm7764, %v7542, 0.0
  %v8942 = vadd.f32 %v8940, %v8941
  %v8943 = vsel %vm7764, %v7543, 0.0
  %v8944 = vadd.f32 %v8942, %v8943
  %v8945 = vsel %vm7764, %v7544, 0.0
  %v8946 = vadd.f32 %v8944, %v8945
  %v8947 = vsel %vm7764, %v7545, 0.0
  %v8948 = vadd.f32 %v8946, %v8947
  %v8949 = vsel %vm7764, %v7546, 0.0
  %v8950 = vadd.f32 %v8948, %v8949
  %v8951 = vsel %vm7764, %v7547, 0.0
  %v8952 = vadd.f32 %v8950, %v8951
  %v8953 = vsel %vm7764, %v7548, 0.0
  %v8954 = vadd.f32 %v8952, %v8953
  %v8955 = vsel %vm7764, %v7549, 0.0
  %v8956 = vadd.f32 %v8954, %v8955
  %v8957 = vsel %vm7764, %v7550, 0.0
  %v8958 = vadd.f32 %v8956, %v8957
  %v8959 = vsel %vm7764, %v7551, 0.0
  %v8960 = vadd.f32 %v8958, %v8959
  %v8961 = vsel %vm7764, %v7552, 0.0
  %v8962 = vadd.f32 %v8960, %v8961
  %v8963 = vsel %vm7764, %v7553, 0.0
  %v8964 = vadd.f32 %v8962, %v8963
  %v8965 = vsel %vm7764, %v7554, 0.0
  %v8966 = vadd.f32 %v8964, %v8965
  %v8967 = vsel %vm7764, %v7555, 0.0
  %v8968 = vadd.f32 %v8966, %v8967
  %v8969 = vsel %vm7764, %v7556, 0.0
  %v8970 = vadd.f32 %v8968, %v8969
  %v8971 = vsel %vm7764, %v7557, 0.0
  %v8972 = vadd.f32 %v8970, %v8971
  %v8973 = vsel %vm7764, %v7558, 0.0
  %v8974 = vadd.f32 %v8972, %v8973
  %v8975 = vsel %vm7764, %v7559, 0.0
  %v8976 = vadd.f32 %v8974, %v8975
  %v8977 = vsel %vm7764, %v7560, 0.0
  %v8978 = vadd.f32 %v8976, %v8977
  %v8979 = vsel %vm7764, %v7561, 0.0
  %v8980 = vadd.f32 %v8978, %v8979
  %v8981 = vsel %vm7764, %v7562, 0.0
  %v8982 = vadd.f32 %v8980, %v8981
  %v8983 = vsel %vm7764, %v7563, 0.0
  %v8984 = vadd.f32 %v8982, %v8983
  %v8985 = vsel %vm7764, %v7564, 0.0
  %v8986 = vadd.f32 %v8984, %v8985
  %v8987 = vsel %vm7764, %v7565, 0.0
  %v8988 = vadd.f32 %v8986, %v8987
  %v8989 = vsel %vm7764, %v7566, 0.0
  %v8990 = vadd.f32 %v8988, %v8989
  %v8991 = vsel %vm7764, %v7567, 0.0
  %v8992 = vadd.f32 %v8990, %v8991
  %v8993 = vsel %vm7764, %v7568, 0.0
  %v8994 = vadd.f32 %v8992, %v8993
  %v8995 = vsel %vm7764, %v7569, 0.0
  %v8996 = vadd.f32 %v8994, %v8995
  %v8997 = vsel %vm7764, %v7570, 0.0
  %v8998 = vadd.f32 %v8996, %v8997
  %v8999 = vsel %vm7764, %v7571, 0.0
  %v9000 = vadd.f32 %v8998, %v8999
  %v9001 = vrot.slane %v9000, 4
  %v9002 = vadd.f32 %v9000, %v9001
  %v9003 = vrot.slane %v9002, 2
  %v9004 = vadd.f32 %v9002, %v9003
  %v9005 = vrot.slane %v9004, 1
  %v9006 = vadd.f32 %v9004, %v9005
  %v9007 = vsel %vm7764, %v7572, 0.0
  %v9008 = vsel %vm7764, %v7573, 0.0
  %v9009 = vadd.f32 %v9007, %v9008
  %v9010 = vsel %vm7764, %v7574, 0.0
  %v9011 = vadd.f32 %v9009, %v9010
  %v9012 = vsel %vm7764, %v7575, 0.0
  %v9013 = vadd.f32 %v9011, %v9012
  %v9014 = vsel %vm7764, %v7576, 0.0
  %v9015 = vadd.f32 %v9013, %v9014
  %v9016 = vsel %vm7764, %v7577, 0.0
  %v9017 = vadd.f32 %v9015, %v9016
  %v9018 = vsel %vm7764, %v7578, 0.0
  %v9019 = vadd.f32 %v9017, %v9018
  %v9020 = vsel %vm7764, %v7579, 0.0
  %v9021 = vadd.f32 %v9019, %v9020
  %v9022 = vsel %vm7764, %v7580, 0.0
  %v9023 = vadd.f32 %v9021, %v9022
  %v9024 = vsel %vm7764, %v7581, 0.0
  %v9025 = vadd.f32 %v9023, %v9024
  %v9026 = vsel %vm7764, %v7582, 0.0
  %v9027 = vadd.f32 %v9025, %v9026
  %v9028 = vsel %vm7764, %v7583, 0.0
  %v9029 = vadd.f32 %v9027, %v9028
  %v9030 = vsel %vm7764, %v7584, 0.0
  %v9031 = vadd.f32 %v9029, %v9030
  %v9032 = vsel %vm7764, %v7585, 0.0
  %v9033 = vadd.f32 %v9031, %v9032
  %v9034 = vsel %vm7764, %v7586, 0.0
  %v9035 = vadd.f32 %v9033, %v9034
  %v9036 = vsel %vm7764, %v7587, 0.0
  %v9037 = vadd.f32 %v9035, %v9036
  %v9038 = vsel %vm7764, %v7588, 0.0
  %v9039 = vadd.f32 %v9037, %v9038
  %v9040 = vsel %vm7764, %v7589, 0.0
  %v9041 = vadd.f32 %v9039, %v9040
  %v9042 = vsel %vm7764, %v7590, 0.0
  %v9043 = vadd.f32 %v9041, %v9042
  %v9044 = vsel %vm7764, %v7591, 0.0
  %v9045 = vadd.f32 %v9043, %v9044
  %v9046 = vsel %vm7764, %v7592, 0.0
  %v9047 = vadd.f32 %v9045, %v9046
  %v9048 = vsel %vm7764, %v7593, 0.0
  %v9049 = vadd.f32 %v9047, %v9048
  %v9050 = vsel %vm7764, %v7594, 0.0
  %v9051 = vadd.f32 %v9049, %v9050
  %v9052 = vsel %vm7764, %v7595, 0.0
  %v9053 = vadd.f32 %v9051, %v9052
  %v9054 = vsel %vm7764, %v7596, 0.0
  %v9055 = vadd.f32 %v9053, %v9054
  %v9056 = vsel %vm7764, %v7597, 0.0
  %v9057 = vadd.f32 %v9055, %v9056
  %v9058 = vsel %vm7764, %v7598, 0.0
  %v9059 = vadd.f32 %v9057, %v9058
  %v9060 = vsel %vm7764, %v7599, 0.0
  %v9061 = vadd.f32 %v9059, %v9060
  %v9062 = vsel %vm7764, %v7600, 0.0
  %v9063 = vadd.f32 %v9061, %v9062
  %v9064 = vsel %vm7764, %v7601, 0.0
  %v9065 = vadd.f32 %v9063, %v9064
  %v9066 = vsel %vm7764, %v7602, 0.0
  %v9067 = vadd.f32 %v9065, %v9066
  %v9068 = vsel %vm7764, %v7603, 0.0
  %v9069 = vadd.f32 %v9067, %v9068
  %v9070 = vrot.slane %v9069, 4
  %v9071 = vadd.f32 %v9069, %v9070
  %v9072 = vrot.slane %v9071, 2
  %v9073 = vadd.f32 %v9071, %v9072
  %v9074 = vrot.slane %v9073, 1
  %v9075 = vadd.f32 %v9073, %v9074
  %v9076 = vsel %vm7764, %v7604, 0.0
  %v9077 = vsel %vm7764, %v7605, 0.0
  %v9078 = vadd.f32 %v9076, %v9077
  %v9079 = vsel %vm7764, %v7606, 0.0
  %v9080 = vadd.f32 %v9078, %v9079
  %v9081 = vsel %vm7764, %v7607, 0.0
  %v9082 = vadd.f32 %v9080, %v9081
  %v9083 = vsel %vm7764, %v7608, 0.0
  %v9084 = vadd.f32 %v9082, %v9083
  %v9085 = vsel %vm7764, %v7609, 0.0
  %v9086 = vadd.f32 %v9084, %v9085
  %v9087 = vsel %vm7764, %v7610, 0.0
  %v9088 = vadd.f32 %v9086, %v9087
  %v9089 = vsel %vm7764, %v7611, 0.0
  %v9090 = vadd.f32 %v9088, %v9089
  %v9091 = vsel %vm7764, %v7612, 0.0
  %v9092 = vadd.f32 %v9090, %v9091
  %v9093 = vsel %vm7764, %v7613, 0.0
  %v9094 = vadd.f32 %v9092, %v9093
  %v9095 = vsel %vm7764, %v7614, 0.0
  %v9096 = vadd.f32 %v9094, %v9095
  %v9097 = vsel %vm7764, %v7615, 0.0
  %v9098 = vadd.f32 %v9096, %v9097
  %v9099 = vsel %vm7764, %v7616, 0.0
  %v9100 = vadd.f32 %v9098, %v9099
  %v9101 = vsel %vm7764, %v7617, 0.0
  %v9102 = vadd.f32 %v9100, %v9101
  %v9103 = vsel %vm7764, %v7618, 0.0
  %v9104 = vadd.f32 %v9102, %v9103
  %v9105 = vsel %vm7764, %v7619, 0.0
  %v9106 = vadd.f32 %v9104, %v9105
  %v9107 = vsel %vm7764, %v7620, 0.0
  %v9108 = vadd.f32 %v9106, %v9107
  %v9109 = vsel %vm7764, %v7621, 0.0
  %v9110 = vadd.f32 %v9108, %v9109
  %v9111 = vsel %vm7764, %v7622, 0.0
  %v9112 = vadd.f32 %v9110, %v9111
  %v9113 = vsel %vm7764, %v7623, 0.0
  %v9114 = vadd.f32 %v9112, %v9113
  %v9115 = vsel %vm7764, %v7624, 0.0
  %v9116 = vadd.f32 %v9114, %v9115
  %v9117 = vsel %vm7764, %v7625, 0.0
  %v9118 = vadd.f32 %v9116, %v9117
  %v9119 = vsel %vm7764, %v7626, 0.0
  %v9120 = vadd.f32 %v9118, %v9119
  %v9121 = vsel %vm7764, %v7627, 0.0
  %v9122 = vadd.f32 %v9120, %v9121
  %v9123 = vsel %vm7764, %v7628, 0.0
  %v9124 = vadd.f32 %v9122, %v9123
  %v9125 = vsel %vm7764, %v7629, 0.0
  %v9126 = vadd.f32 %v9124, %v9125
  %v9127 = vsel %vm7764, %v7630, 0.0
  %v9128 = vadd.f32 %v9126, %v9127
  %v9129 = vsel %vm7764, %v7631, 0.0
  %v9130 = vadd.f32 %v9128, %v9129
  %v9131 = vsel %vm7764, %v7632, 0.0
  %v9132 = vadd.f32 %v9130, %v9131
  %v9133 = vsel %vm7764, %v7633, 0.0
  %v9134 = vadd.f32 %v9132, %v9133
  %v9135 = vsel %vm7764, %v7634, 0.0
  %v9136 = vadd.f32 %v9134, %v9135
  %v9137 = vsel %vm7764, %v7635, 0.0
  %v9138 = vadd.f32 %v9136, %v9137
  %v9139 = vrot.slane %v9138, 4
  %v9140 = vadd.f32 %v9138, %v9139
  %v9141 = vrot.slane %v9140, 2
  %v9142 = vadd.f32 %v9140, %v9141
  %v9143 = vrot.slane %v9142, 1
  %v9144 = vadd.f32 %v9142, %v9143
  %v9145 = vsel %vm7764, %v7636, 0.0
  %v9146 = vsel %vm7764, %v7637, 0.0
  %v9147 = vadd.f32 %v9145, %v9146
  %v9148 = vsel %vm7764, %v7638, 0.0
  %v9149 = vadd.f32 %v9147, %v9148
  %v9150 = vsel %vm7764, %v7639, 0.0
  %v9151 = vadd.f32 %v9149, %v9150
  %v9152 = vsel %vm7764, %v7640, 0.0
  %v9153 = vadd.f32 %v9151, %v9152
  %v9154 = vsel %vm7764, %v7641, 0.0
  %v9155 = vadd.f32 %v9153, %v9154
  %v9156 = vsel %vm7764, %v7642, 0.0
  %v9157 = vadd.f32 %v9155, %v9156
  %v9158 = vsel %vm7764, %v7643, 0.0
  %v9159 = vadd.f32 %v9157, %v9158
  %v9160 = vsel %vm7764, %v7644, 0.0
  %v9161 = vadd.f32 %v9159, %v9160
  %v9162 = vsel %vm7764, %v7645, 0.0
  %v9163 = vadd.f32 %v9161, %v9162
  %v9164 = vsel %vm7764, %v7646, 0.0
  %v9165 = vadd.f32 %v9163, %v9164
  %v9166 = vsel %vm7764, %v7647, 0.0
  %v9167 = vadd.f32 %v9165, %v9166
  %v9168 = vsel %vm7764, %v7648, 0.0
  %v9169 = vadd.f32 %v9167, %v9168
  %v9170 = vsel %vm7764, %v7649, 0.0
  %v9171 = vadd.f32 %v9169, %v9170
  %v9172 = vsel %vm7764, %v7650, 0.0
  %v9173 = vadd.f32 %v9171, %v9172
  %v9174 = vsel %vm7764, %v7651, 0.0
  %v9175 = vadd.f32 %v9173, %v9174
  %v9176 = vsel %vm7764, %v7652, 0.0
  %v9177 = vadd.f32 %v9175, %v9176
  %v9178 = vsel %vm7764, %v7653, 0.0
  %v9179 = vadd.f32 %v9177, %v9178
  %v9180 = vsel %vm7764, %v7654, 0.0
  %v9181 = vadd.f32 %v9179, %v9180
  %v9182 = vsel %vm7764, %v7655, 0.0
  %v9183 = vadd.f32 %v9181, %v9182
  %v9184 = vsel %vm7764, %v7656, 0.0
  %v9185 = vadd.f32 %v9183, %v9184
  %v9186 = vsel %vm7764, %v7657, 0.0
  %v9187 = vadd.f32 %v9185, %v9186
  %v9188 = vsel %vm7764, %v7658, 0.0
  %v9189 = vadd.f32 %v9187, %v9188
  %v9190 = vsel %vm7764, %v7659, 0.0
  %v9191 = vadd.f32 %v9189, %v9190
  %v9192 = vsel %vm7764, %v7660, 0.0
  %v9193 = vadd.f32 %v9191, %v9192
  %v9194 = vsel %vm7764, %v7661, 0.0
  %v9195 = vadd.f32 %v9193, %v9194
  %v9196 = vsel %vm7764, %v7662, 0.0
  %v9197 = vadd.f32 %v9195, %v9196
  %v9198 = vsel %vm7764, %v7663, 0.0
  %v9199 = vadd.f32 %v9197, %v9198
  %v9200 = vsel %vm7764, %v7664, 0.0
  %v9201 = vadd.f32 %v9199, %v9200
  %v9202 = vsel %vm7764, %v7665, 0.0
  %v9203 = vadd.f32 %v9201, %v9202
  %v9204 = vsel %vm7764, %v7666, 0.0
  %v9205 = vadd.f32 %v9203, %v9204
  %v9206 = vsel %vm7764, %v7667, 0.0
  %v9207 = vadd.f32 %v9205, %v9206
  %v9208 = vrot.slane %v9207, 4
  %v9209 = vadd.f32 %v9207, %v9208
  %v9210 = vrot.slane %v9209, 2
  %v9211 = vadd.f32 %v9209, %v9210
  %v9212 = vrot.slane %v9211, 1
  %v9213 = vadd.f32 %v9211, %v9212
  %v9214 = vsel %vm7764, %v7668, 0.0
  %v9215 = vsel %vm7764, %v7669, 0.0
  %v9216 = vadd.f32 %v9214, %v9215
  %v9217 = vsel %vm7764, %v7670, 0.0
  %v9218 = vadd.f32 %v9216, %v9217
  %v9219 = vsel %vm7764, %v7671, 0.0
  %v9220 = vadd.f32 %v9218, %v9219
  %v9221 = vsel %vm7764, %v7672, 0.0
  %v9222 = vadd.f32 %v9220, %v9221
  %v9223 = vsel %vm7764, %v7673, 0.0
  %v9224 = vadd.f32 %v9222, %v9223
  %v9225 = vsel %vm7764, %v7674, 0.0
  %v9226 = vadd.f32 %v9224, %v9225
  %v9227 = vsel %vm7764, %v7675, 0.0
  %v9228 = vadd.f32 %v9226, %v9227
  %v9229 = vsel %vm7764, %v7676, 0.0
  %v9230 = vadd.f32 %v9228, %v9229
  %v9231 = vsel %vm7764, %v7677, 0.0
  %v9232 = vadd.f32 %v9230, %v9231
  %v9233 = vsel %vm7764, %v7678, 0.0
  %v9234 = vadd.f32 %v9232, %v9233
  %v9235 = vsel %vm7764, %v7679, 0.0
  %v9236 = vadd.f32 %v9234, %v9235
  %v9237 = vsel %vm7764, %v7680, 0.0
  %v9238 = vadd.f32 %v9236, %v9237
  %v9239 = vsel %vm7764, %v7681, 0.0
  %v9240 = vadd.f32 %v9238, %v9239
  %v9241 = vsel %vm7764, %v7682, 0.0
  %v9242 = vadd.f32 %v9240, %v9241
  %v9243 = vsel %vm7764, %v7683, 0.0
  %v9244 = vadd.f32 %v9242, %v9243
  %v9245 = vsel %vm7764, %v7684, 0.0
  %v9246 = vadd.f32 %v9244, %v9245
  %v9247 = vsel %vm7764, %v7685, 0.0
  %v9248 = vadd.f32 %v9246, %v9247
  %v9249 = vsel %vm7764, %v7686, 0.0
  %v9250 = vadd.f32 %v9248, %v9249
  %v9251 = vsel %vm7764, %v7687, 0.0
  %v9252 = vadd.f32 %v9250, %v9251
  %v9253 = vsel %vm7764, %v7688, 0.0
  %v9254 = vadd.f32 %v9252, %v9253
  %v9255 = vsel %vm7764, %v7689, 0.0
  %v9256 = vadd.f32 %v9254, %v9255
  %v9257 = vsel %vm7764, %v7690, 0.0
  %v9258 = vadd.f32 %v9256, %v9257
  %v9259 = vsel %vm7764, %v7691, 0.0
  %v9260 = vadd.f32 %v9258, %v9259
  %v9261 = vsel %vm7764, %v7692, 0.0
  %v9262 = vadd.f32 %v9260, %v9261
  %v9263 = vsel %vm7764, %v7693, 0.0
  %v9264 = vadd.f32 %v9262, %v9263
  %v9265 = vsel %vm7764, %v7694, 0.0
  %v9266 = vadd.f32 %v9264, %v9265
  %v9267 = vsel %vm7764, %v7695, 0.0
  %v9268 = vadd.f32 %v9266, %v9267
  %v9269 = vsel %vm7764, %v7696, 0.0
  %v9270 = vadd.f32 %v9268, %v9269
  %v9271 = vsel %vm7764, %v7697, 0.0
  %v9272 = vadd.f32 %v9270, %v9271
  %v9273 = vsel %vm7764, %v7698, 0.0
  %v9274 = vadd.f32 %v9272, %v9273
  %v9275 = vsel %vm7764, %v7699, 0.0
  %v9276 = vadd.f32 %v9274, %v9275
  %v9277 = vrot.slane %v9276, 4
  %v9278 = vadd.f32 %v9276, %v9277
  %v9279 = vrot.slane %v9278, 2
  %v9280 = vadd.f32 %v9278, %v9279
  %v9281 = vrot.slane %v9280, 1
  %v9282 = vadd.f32 %v9280, %v9281
  %v9283 = vsel %vm7764, %v7700, 0.0
  %v9284 = vsel %vm7764, %v7701, 0.0
  %v9285 = vadd.f32 %v9283, %v9284
  %v9286 = vsel %vm7764, %v7702, 0.0
  %v9287 = vadd.f32 %v9285, %v9286
  %v9288 = vsel %vm7764, %v7703, 0.0
  %v9289 = vadd.f32 %v9287, %v9288
  %v9290 = vsel %vm7764, %v7704, 0.0
  %v9291 = vadd.f32 %v9289, %v9290
  %v9292 = vsel %vm7764, %v7705, 0.0
  %v9293 = vadd.f32 %v9291, %v9292
  %v9294 = vsel %vm7764, %v7706, 0.0
  %v9295 = vadd.f32 %v9293, %v9294
  %v9296 = vsel %vm7764, %v7707, 0.0
  %v9297 = vadd.f32 %v9295, %v9296
  %v9298 = vsel %vm7764, %v7708, 0.0
  %v9299 = vadd.f32 %v9297, %v9298
  %v9300 = vsel %vm7764, %v7709, 0.0
  %v9301 = vadd.f32 %v9299, %v9300
  %v9302 = vsel %vm7764, %v7710, 0.0
  %v9303 = vadd.f32 %v9301, %v9302
  %v9304 = vsel %vm7764, %v7711, 0.0
  %v9305 = vadd.f32 %v9303, %v9304
  %v9306 = vsel %vm7764, %v7712, 0.0
  %v9307 = vadd.f32 %v9305, %v9306
  %v9308 = vsel %vm7764, %v7713, 0.0
  %v9309 = vadd.f32 %v9307, %v9308
  %v9310 = vsel %vm7764, %v7714, 0.0
  %v9311 = vadd.f32 %v9309, %v9310
  %v9312 = vsel %vm7764, %v7715, 0.0
  %v9313 = vadd.f32 %v9311, %v9312
  %v9314 = vsel %vm7764, %v7716, 0.0
  %v9315 = vadd.f32 %v9313, %v9314
  %v9316 = vsel %vm7764, %v7717, 0.0
  %v9317 = vadd.f32 %v9315, %v9316
  %v9318 = vsel %vm7764, %v7718, 0.0
  %v9319 = vadd.f32 %v9317, %v9318
  %v9320 = vsel %vm7764, %v7719, 0.0
  %v9321 = vadd.f32 %v9319, %v9320
  %v9322 = vsel %vm7764, %v7720, 0.0
  %v9323 = vadd.f32 %v9321, %v9322
  %v9324 = vsel %vm7764, %v7721, 0.0
  %v9325 = vadd.f32 %v9323, %v9324
  %v9326 = vsel %vm7764, %v7722, 0.0
  %v9327 = vadd.f32 %v9325, %v9326
  %v9328 = vsel %vm7764, %v7723, 0.0
  %v9329 = vadd.f32 %v9327, %v9328
  %v9330 = vsel %vm7764, %v7724, 0.0
  %v9331 = vadd.f32 %v9329, %v9330
  %v9332 = vsel %vm7764, %v7725, 0.0
  %v9333 = vadd.f32 %v9331, %v9332
  %v9334 = vsel %vm7764, %v7726, 0.0
  %v9335 = vadd.f32 %v9333, %v9334
  %v9336 = vsel %vm7764, %v7727, 0.0
  %v9337 = vadd.f32 %v9335, %v9336
  %v9338 = vsel %vm7764, %v7728, 0.0
  %v9339 = vadd.f32 %v9337, %v9338
  %v9340 = vsel %vm7764, %v7729, 0.0
  %v9341 = vadd.f32 %v9339, %v9340
  %v9342 = vsel %vm7764, %v7730, 0.0
  %v9343 = vadd.f32 %v9341, %v9342
  %v9344 = vsel %vm7764, %v7731, 0.0
  %v9345 = vadd.f32 %v9343, %v9344
  %v9346 = vrot.slane %v9345, 4
  %v9347 = vadd.f32 %v9345, %v9346
  %v9348 = vrot.slane %v9347, 2
  %v9349 = vadd.f32 %v9347, %v9348
  %v9350 = vrot.slane %v9349, 1
  %v9351 = vadd.f32 %v9349, %v9350
  %v9352 = vsel %vm7764, %v7732, 0.0
  %v9353 = vsel %vm7764, %v7733, 0.0
  %v9354 = vadd.f32 %v9352, %v9353
  %v9355 = vsel %vm7764, %v7734, 0.0
  %v9356 = vadd.f32 %v9354, %v9355
  %v9357 = vsel %vm7764, %v7735, 0.0
  %v9358 = vadd.f32 %v9356, %v9357
  %v9359 = vsel %vm7764, %v7736, 0.0
  %v9360 = vadd.f32 %v9358, %v9359
  %v9361 = vsel %vm7764, %v7737, 0.0
  %v9362 = vadd.f32 %v9360, %v9361
  %v9363 = vsel %vm7764, %v7738, 0.0
  %v9364 = vadd.f32 %v9362, %v9363
  %v9365 = vsel %vm7764, %v7739, 0.0
  %v9366 = vadd.f32 %v9364, %v9365
  %v9367 = vsel %vm7764, %v7740, 0.0
  %v9368 = vadd.f32 %v9366, %v9367
  %v9369 = vsel %vm7764, %v7741, 0.0
  %v9370 = vadd.f32 %v9368, %v9369
  %v9371 = vsel %vm7764, %v7742, 0.0
  %v9372 = vadd.f32 %v9370, %v9371
  %v9373 = vsel %vm7764, %v7743, 0.0
  %v9374 = vadd.f32 %v9372, %v9373
  %v9375 = vsel %vm7764, %v7744, 0.0
  %v9376 = vadd.f32 %v9374, %v9375
  %v9377 = vsel %vm7764, %v7745, 0.0
  %v9378 = vadd.f32 %v9376, %v9377
  %v9379 = vsel %vm7764, %v7746, 0.0
  %v9380 = vadd.f32 %v9378, %v9379
  %v9381 = vsel %vm7764, %v7747, 0.0
  %v9382 = vadd.f32 %v9380, %v9381
  %v9383 = vsel %vm7764, %v7748, 0.0
  %v9384 = vadd.f32 %v9382, %v9383
  %v9385 = vsel %vm7764, %v7749, 0.0
  %v9386 = vadd.f32 %v9384, %v9385
  %v9387 = vsel %vm7764, %v7750, 0.0
  %v9388 = vadd.f32 %v9386, %v9387
  %v9389 = vsel %vm7764, %v7751, 0.0
  %v9390 = vadd.f32 %v9388, %v9389
  %v9391 = vsel %vm7764, %v7752, 0.0
  %v9392 = vadd.f32 %v9390, %v9391
  %v9393 = vsel %vm7764, %v7753, 0.0
  %v9394 = vadd.f32 %v9392, %v9393
  %v9395 = vsel %vm7764, %v7754, 0.0
  %v9396 = vadd.f32 %v9394, %v9395
  %v9397 = vsel %vm7764, %v7755, 0.0
  %v9398 = vadd.f32 %v9396, %v9397
  %v9399 = vsel %vm7764, %v7756, 0.0
  %v9400 = vadd.f32 %v9398, %v9399
  %v9401 = vsel %vm7764, %v7757, 0.0
  %v9402 = vadd.f32 %v9400, %v9401
  %v9403 = vsel %vm7764, %v7758, 0.0
  %v9404 = vadd.f32 %v9402, %v9403
  %v9405 = vsel %vm7764, %v7759, 0.0
  %v9406 = vadd.f32 %v9404, %v9405
  %v9407 = vsel %vm7764, %v7760, 0.0
  %v9408 = vadd.f32 %v9406, %v9407
  %v9409 = vsel %vm7764, %v7761, 0.0
  %v9410 = vadd.f32 %v9408, %v9409
  %v9411 = vsel %vm7764, %v7762, 0.0
  %v9412 = vadd.f32 %v9410, %v9411
  %v9413 = vsel %vm7764, %v7763, 0.0
  %v9414 = vadd.f32 %v9412, %v9413
  %v9415 = vrot.slane %v9414, 4
  %v9416 = vadd.f32 %v9414, %v9415
  %v9417 = vrot.slane %v9416, 2
  %v9418 = vadd.f32 %v9416, %v9417
  %v9419 = vrot.slane %v9418, 1
  %v9420 = vadd.f32 %v9418, %v9419
  %v9421 = vrcp.pop 256.0
  %v9422 = vmul.f32 %v7833, %v9421
  %v9423 = vmul.f32 %v7902, %v9421
  %v9424 = vmul.f32 %v7971, %v9421
  %v9425 = vmul.f32 %v8040, %v9421
  %v9426 = vmul.f32 %v8109, %v9421
  %v9427 = vmul.f32 %v8178, %v9421
  %v9428 = vmul.f32 %v8247, %v9421
  %v9429 = vmul.f32 %v8316, %v9421
  %v9430 = vmul.f32 %v8385, %v9421
  %v9431 = vmul.f32 %v8454, %v9421
  %v9432 = vmul.f32 %v8523, %v9421
  %v9433 = vmul.f32 %v8592, %v9421
  %v9434 = vmul.f32 %v8661, %v9421
  %v9435 = vmul.f32 %v8730, %v9421
  %v9436 = vmul.f32 %v8799, %v9421
  %v9437 = vmul.f32 %v8868, %v9421
  %v9438 = vmul.f32 %v8937, %v9421
  %v9439 = vmul.f32 %v9006, %v9421
  %v9440 = vmul.f32 %v9075, %v9421
  %v9441 = vmul.f32 %v9144, %v9421
  %v9442 = vmul.f32 %v9213, %v9421
  %v9443 = vmul.f32 %v9282, %v9421
  %v9444 = vmul.f32 %v9351, %v9421
  %v9445 = vmul.f32 %v9420, %v9421
  %v9446 = vld [vmem:[%s3] sm:$0xff]
  %v9447 = vld [vmem:[%s4] sm:$0x1]
  %v9449 = vlaneseq
  %v9450 = vshrl.u32 %v9449, 7
  %v9451 = vsub.s32 0, %v9450
  %v9452 = vrot.slane %v9447, %v9451
  %vm9478 = vcmask 1041409
  %v9479 = vsel %vm9478, %v9423, %v9422
  %vm9480 = vcmask 1042434
  %v9481 = vsel %vm9480, %v9424, %v9479
  %vm9482 = vcmask 1043459
  %v9483 = vsel %vm9482, %v9425, %v9481
  %vm9484 = vcmask 1044484
  %v9485 = vsel %vm9484, %v9426, %v9483
  %vm9486 = vcmask 1045509
  %v9487 = vsel %vm9486, %v9427, %v9485
  %vm9488 = vcmask 1046534
  %v9489 = vsel %vm9488, %v9428, %v9487
  %vm9490 = vcmask 1047559
  %v9491 = vsel %vm9490, %v9429, %v9489
  %v9492 = vsel %vm9478, %v9431, %v9430
  %v9493 = vsel %vm9480, %v9432, %v9492
  %v9494 = vsel %vm9482, %v9433, %v9493
  %v9495 = vsel %vm9484, %v9434, %v9494
  %v9496 = vsel %vm9486, %v9435, %v9495
  %v9497 = vsel %vm9488, %v9436, %v9496
  %v9498 = vsel %vm9490, %v9437, %v9497
  %v9499 = vsel %vm9478, %v9439, %v9438
  %v9500 = vsel %vm9480, %v9440, %v9499
  %v9501 = vsel %vm9482, %v9441, %v9500
  %v9502 = vsel %vm9484, %v9442, %v9501
  %v9503 = vsel %vm9486, %v9443, %v9502
  %v9504 = vsel %vm9488, %v9444, %v9503
  %v9505 = vsel %vm9490, %v9445, %v9504
  %v9506 = vsel %vm7764, %v9491, 0
  %v9508 = vsel %vm7764, %v9498, 0
  %v9510 = vsel %vm7764, %v9505, 0
  %9512 = vmatprep.subr.mxu0 0.0
  %9513 = vmatpush1.msra.mxu0 %v9446
  %9514 = vmatprep.subr.mxu0 0.0
  %9515 = vmatpush1.msra.mxu0 0.0
  %9516 = vmatprep.subr.mxu0 0.0
  %9517 = vmatpush1.msra.mxu0 0.0
  %9518 = vmatprep.subr.mxu0 0.0
  %9519 = vmatpush1.msra.mxu0 0.0
  %9520 = vmatprep.subr.mxu0 0.0
  %9521 = vmatpush1.msra.mxu0 0.0
  %9522 = vmatprep.subr.mxu0 0.0
  %9523 = vmatpush1.msra.mxu0 0.0
  %9524 = vmatprep.subr.mxu0 0.0
  %9525 = vmatpush1.msra.mxu0 0.0
  %9526 = vmatprep.subr.mxu0 0.0
  %9527 = vmatpush1.msra.mxu0 0.0
  %9528 = vmatprep.subr.mxu0 0.0
  %9529 = vmatpush1.msra.mxu0 0.0
  %9530 = vmatprep.subr.mxu0 0.0
  %9531 = vmatpush1.msra.mxu0 0.0
  %9532 = vmatprep.subr.mxu0 0.0
  %9533 = vmatpush1.msra.mxu0 0.0
  %9534 = vmatprep.subr.mxu0 0.0
  %9535 = vmatpush1.msra.mxu0 0.0
  %9536 = vmatprep.subr.mxu0 0.0
  %9537 = vmatpush1.msra.mxu0 0.0
  %9538 = vmatprep.subr.mxu0 0.0
  %9539 = vmatpush1.msra.mxu0 0.0
  %9540 = vmatprep.subr.mxu0 0.0
  %9541 = vmatpush1.msra.mxu0 0.0
  %9542 = vmatprep.subr.mxu0 0.0
  %9543 = vmatpush1.msra.mxu0 0.0
  %9544 = vmatprep.subr.mxu0 0.0
  %9545 = vmatpush1.msra.mxu0 0.0
  %9546 = vmatprep.subr.mxu0 0.0
  %9547 = vmatpush1.msra.mxu0 0.0
  %9548 = vmatprep.subr.mxu0 0.0
  %9549 = vmatpush1.msra.mxu0 0.0
  %9550 = vmatprep.subr.mxu0 0.0
  %9551 = vmatpush1.msra.mxu0 0.0
  %9552 = vmatprep.subr.mxu0 0.0
  %9553 = vmatpush1.msra.mxu0 0.0
  %9554 = vmatprep.subr.mxu0 0.0
  %9555 = vmatpush1.msra.mxu0 0.0
  %9556 = vmatprep.subr.mxu0 0.0
  %9557 = vmatpush1.msra.mxu0 0.0
  %9558 = vmatprep.subr.mxu0 0.0
  %9559 = vmatpush1.msra.mxu0 0.0
  %9560 = vmatprep.subr.mxu0 0.0
  %9561 = vmatpush1.msra.mxu0 0.0
  %9562 = vmatprep.subr.mxu0 0.0
  %9563 = vmatpush1.msra.mxu0 0.0
  %9564 = vmatprep.subr.mxu0 0.0
  %9565 = vmatpush1.msra.mxu0 0.0
  %9566 = vmatprep.subr.mxu0 0.0
  %9567 = vmatpush1.msra.mxu0 0.0
  %9568 = vmatprep.subr.mxu0 0.0
  %9569 = vmatpush1.msra.mxu0 0.0
  %9570 = vmatprep.subr.mxu0 0.0
  %9571 = vmatpush1.msra.mxu0 0.0
  %9572 = vmatprep.subr.mxu0 0.0
  %9573 = vmatpush1.msra.mxu0 0.0
  %9574 = vmatprep.subr.mxu0 0.0
  %9575 = vmatpush1.msra.mxu0 0.0
  %9576 = vmatprep.mubr.f32.mxu0 0.0
  %9577 = vmatmul.mubr.f32.gmra.mrb[0].mxu0 %v9506
  %v9578 = vpop.f32.mrb[0].mxu0
  %v9579 = vadd.f32 %v9452, %v9578
  %v9580 = vpop.f32.mrb[0].mxu0
  %9581 = vmatprep.mubr.f32.mxu0 0.0
  %9582 = vmatmul.mubr.f32.gmra.mrb[0].mxu0 %v9508
  %v9583 = vpop.f32.mrb[0].mxu0
  %v9584 = vadd.f32 %v9452, %v9583
  %v9585 = vpop.f32.mrb[0].mxu0
  %9586 = vmatprep.mubr.f32.mxu0 0.0
  %9587 = vmatmul.mubr.f32.gmra.mrb[0].mxu0 %v9510
  %v9588 = vpop.f32.mrb[0].mxu0
  %v9589 = vadd.f32 %v9452, %v9588
  %v9590 = vpop.f32.mrb[0].mxu0
  %9591 = vdwg.mxu0
  %vm9592 = vcmask 261120
  %9593 = vst.msk [vmem:[%s5] sm:$0xff] %vm9592, %v9579
  %9594 = vst.msk [vmem:[%s5 + $0x8] sm:$0xff] %vm9592, %v9584
  %9595 = vst.msk [vmem:[%s5 + $0x10] sm:$0xff] %vm9592, %v9589
  // Predicated region
  $region22: #{group_activity_forward.2} parent=0 // pred_check
    _
  $region23: #{group_activity_forward.2} parent=0 // pred_check_branch
    %9597 = sbr.rel (0) target = $region25
  $region24: #{group_activity_forward.2} parent=0 // pred_region
    _
  $region25: #{group_activity_forward.2} parent=0 // pred_fallthru
    _
  // Predicated region
  $region26: #{group_activity_forward.2} parent=0 // pred_check
    _
  $region27: #{group_activity_forward.2} parent=0 // pred_check_branch
    %9599 = sbr.rel (0) target = $region29
  $region28: #{group_activity_forward.2} parent=0 // pred_region
    _
  $region29: #{group_activity_forward.2} parent=0 // pred_fallthru
    _

</llo_original>
